<compile_context>
chip_gen: v5e
topology: v5e:2x2
jax: 0.10.0
libtpu: 0.0.40
codegen_flags: <defaults>
</compile_context>

<pallas_src>
import functools

import jax
import jax.numpy as jnp
from jax.experimental import pallas as pl
from jax.experimental.pallas import tpu as pltpu

EPS = 1e-5      # nn.BatchNorm2d default eps
LANES = 128     # output channels padded to a multiple of this

_CPARAMS = pltpu.CompilerParams(
    dimension_semantics=("parallel",),     # row-chunk axis: both TCs on v7x
    vmem_limit_bytes=32 * 1024 * 1024,     # explicit, fits v5e / v6e / v7x budgets
)


def _round_up(x, m):
    return (x + m - 1) // m * m


def _pick_tile_h(h, w, max_rows):
    """Largest even divisor of h with tile_h * w <= max_rows (fallback: 2)."""
    assert h % 2 == 0 and w % 2 == 0, "MaxPool2d(2) path assumes even H and W"
    best = 2
    for t in range(2, h + 1, 2):
        if h % t == 0 and t * w <= max_rows:
            best = t
    return best


# ---------------------------------------------------------------------------
# Pass A: conv as k*k tap matmuls (bf16 x bf16 -> f32) + per-chunk BN partials.
# ---------------------------------------------------------------------------
def _make_conv_stats_kernel(k, tile_h, w_out, c_in, c_outp):
    def kernel(x_ref, w_ref, y_ref, st_ref):
        # x_ref : (1, tile_h + 2p, w_out + 2p, c_in)  bf16  (spatially pre-padded)
        # w_ref : (k*k, c_in, c_outp)                 bf16  (VMEM resident)
        # y_ref : (1, tile_h * w_out, c_outp)         bf16  (pre-BN conv output)
        # st_ref: (1, 2, c_outp)                      f32   (per-chunk sum / sum_sq)
        acc = jnp.zeros((tile_h * w_out, c_outp), jnp.float32)
        for di in range(k):
            for dj in range(k):
                win = x_ref[0, di:di + tile_h, dj:dj + w_out, :]
                win = win.reshape(tile_h * w_out, c_in)
                acc = acc + jnp.dot(win, w_ref[di * k + dj],
                                    preferred_element_type=jnp.float32)
        y_ref[...] = acc[None].astype(y_ref.dtype)
        s = jnp.sum(acc, axis=0, keepdims=True)           # (1, c_outp)
        s2 = jnp.sum(acc * acc, axis=0, keepdims=True)    # (1, c_outp)
        st_ref[...] = jnp.concatenate([s, s2], axis=0)[None, :, :]
    return kernel


# ---------------------------------------------------------------------------
# Pass B (conv1): BatchNorm affine + ReLU (elementwise).
# ---------------------------------------------------------------------------
def _bn_act_kernel(y_ref, aff_ref, o_ref):
    # y_ref: (1, TH, W, Cp) bf16 ; aff_ref: (2, Cp) f32 ; o_ref: (1, TH, W, Cp) bf16
    y = y_ref[0].astype(jnp.float32)
    scale = aff_ref[0:1, :]
    shift = aff_ref[1:2, :]
    o_ref[...] = jnp.maximum(y * scale + shift, 0.0)[None].astype(o_ref.dtype)


# ---------------------------------------------------------------------------
# Pass B (conv2): BatchNorm affine + ReLU + fused 2x2 max-pool.
# The W axis arrives pre-split as (W//2, 2) (a free reshape of the same buffer),
# so the kernel only needs integer indexing + an outer-dim split -- no strided or
# sublane-crossing gathers.
# ---------------------------------------------------------------------------
def _make_bn_act_pool_kernel(tile_h, w, c_outp):
    th2, w2 = tile_h // 2, w // 2

    def kernel(y_ref, aff_ref, o_ref):
        # y_ref: (1, TH, W//2, 2, Cp) bf16 ; o_ref: (1, TH//2, W//2, Cp) f32
        scale = aff_ref[0:1, :]
        shift = aff_ref[1:2, :]

        def act(v):
            return jnp.maximum(v.astype(jnp.float32) * scale + shift, 0.0)

        colmax = jnp.maximum(act(y_ref[0, :, :, 0, :]),
                             act(y_ref[0, :, :, 1, :]))       # (TH, W//2, Cp)
        rows = colmax.reshape(th2, 2, w2, c_outp)             # split row pairs (outer)
        o_ref[...] = jnp.maximum(rows[:, 0], rows[:, 1])[None].astype(o_ref.dtype)

    return kernel


# ---------------------------------------------------------------------------
# Glue: spatial zero-pad + overlapping row chunks (2p-row halo) in bf16.
# Duplication is only 2p/tile_h (vs 9x for im2col).
# ---------------------------------------------------------------------------
def _pad_and_chunk(x_nhwc, k, tile_h):
    n, h, w, c = x_nhwc.shape
    p = (k - 1) // 2
    xp = jnp.pad(x_nhwc.astype(jnp.bfloat16), ((0, 0), (p, p), (p, p), (0, 0)))
    nh = h // tile_h
    chunks = [xp[:, i * tile_h:i * tile_h + tile_h + 2 * p, :, :] for i in range(nh)]
    xc = jnp.stack(chunks, axis=1)                 # (N, nh, tile_h+2p, W+2p, C)
    return xc.reshape(n * nh, tile_h + 2 * p, w + 2 * p, c)


def _conv_bn_relu_stage(x_nhwc, weight, gamma, beta, k, tile_h, pool):
    n, h, wd, c_in = x_nhwc.shape
    c_outp = weight.shape[-1]
    p = (k - 1) // 2
    nh = h // tile_h
    nb = n * nh
    m_tile = tile_h * wd

    xc = _pad_and_chunk(x_nhwc, k, tile_h)

    # ---- pass A: conv + per-chunk partial stats (tiled, pipelined, parallel) ----
    y, stats = pl.pallas_call(
        _make_conv_stats_kernel(k, tile_h, wd, c_in, c_outp),
        grid=(nb,),
        in_specs=[
            pl.BlockSpec((1, tile_h + 2 * p, wd + 2 * p, c_in),
                         lambda i: (i, 0, 0, 0)),
            pl.BlockSpec((k * k, c_in, c_outp), lambda i: (0, 0, 0)),
        ],
        out_specs=(
            pl.BlockSpec((1, m_tile, c_outp), lambda i: (i, 0, 0)),
            pl.BlockSpec((1, 2, c_outp), lambda i: (i, 0, 0)),
        ),
        out_shape=(
            jax.ShapeDtypeStruct((nb, m_tile, c_outp), jnp.bfloat16),
            jax.ShapeDtypeStruct((nb, 2, c_outp), jnp.float32),
        ),
        compiler_params=_CPARAMS,
    )(xc, weight.astype(jnp.bfloat16))

    # ---- finalize BatchNorm batch statistics (train-mode, biased variance) ----
    cnt = float(n * h * wd)
    mean = jnp.sum(stats[:, 0, :], axis=0) / cnt
    var = jnp.maximum(jnp.sum(stats[:, 1, :], axis=0) / cnt - mean * mean, 0.0)
    scale = gamma * jax.lax.rsqrt(var + EPS)
    shift = beta - mean * scale
    affine = jnp.stack([scale, shift], axis=0)               # (2, c_outp) f32

    aff_spec = pl.BlockSpec((2, c_outp), lambda i: (0, 0))

    # ---- pass B: normalize + ReLU (+ fused 2x2 max-pool for the second conv) ----
    if pool:
        y5 = y.reshape(nb, tile_h, wd // 2, 2, c_outp)       # free metadata reshape
        out = pl.pallas_call(
            _make_bn_act_pool_kernel(tile_h, wd, c_outp),
            grid=(nb,),
            in_specs=[
                pl.BlockSpec((1, tile_h, wd // 2, 2, c_outp),
                             lambda i: (i, 0, 0, 0, 0)),
                aff_spec,
            ],
            out_specs=pl.BlockSpec((1, tile_h // 2, wd // 2, c_outp),
                                   lambda i: (i, 0, 0, 0)),
            out_shape=jax.ShapeDtypeStruct(
                (nb, tile_h // 2, wd // 2, c_outp), jnp.float32),
            compiler_params=_CPARAMS,
        )(y5, affine)
        return out.reshape(n, h // 2, wd // 2, c_outp)

    y4 = y.reshape(nb, tile_h, wd, c_outp)
    y_spec = pl.BlockSpec((1, tile_h, wd, c_outp), lambda i: (i, 0, 0, 0))
    out = pl.pallas_call(
        _bn_act_kernel,
        grid=(nb,),
        in_specs=[y_spec, aff_spec],
        out_specs=y_spec,
        out_shape=jax.ShapeDtypeStruct((nb, tile_h, wd, c_outp), jnp.bfloat16),
        compiler_params=_CPARAMS,
    )(y4, affine)
    return out.reshape(n, h, wd, c_outp)


def init_params(key, channels, kernels):
    """Deterministic synthetic parameters in the kernel's padded layout.

    w*  : (k*k, C_in[_padded], C_out_padded) with zero padding so padded lanes
          compute exact zeros.
    g*/bt*: (C_out_padded,) BatchNorm affine params (defaults: gamma=1, beta=0).
    b*  : conv biases kept only for interface parity with nn.Conv2d -- they are
          exactly cancelled by the train-mode BatchNorm mean subtraction, so the
          kernels never add them.
    """
    c0, c1, c2 = channels
    k1, k2 = kernels
    c1p = _round_up(c1, LANES)
    c2p = _round_up(c2, LANES)
    ks = jax.random.split(key, 4)

    def conv_w(k, c_in, c_in_pad, c_out, c_out_pad, subkey):
        fan_in = c_in * k * k
        wr = jax.random.normal(subkey, (k * k, c_in, c_out), jnp.float32)
        wr = wr / jnp.sqrt(jnp.float32(fan_in))
        return jnp.pad(wr, ((0, 0), (0, c_in_pad - c_in), (0, c_out_pad - c_out)))

    return {
        "w1": conv_w(k1, c0, c0, c1, c1p, ks[0]),
        "b1": 0.1 * jax.random.normal(ks[1], (c1,), jnp.float32),  # unused (cancelled by BN)
        "g1": jnp.ones((c1p,), jnp.float32),
        "bt1": jnp.zeros((c1p,), jnp.float32),
        "w2": conv_w(k2, c1, c1p, c2, c2p, ks[2]),
        "b2": 0.1 * jax.random.normal(ks[3], (c2,), jnp.float32),  # unused (cancelled by BN)
        "g2": jnp.ones((c2p,), jnp.float32),
        "bt2": jnp.zeros((c2p,), jnp.float32),
    }


@functools.partial(jax.jit, static_argnames=("channels", "kernels", "max_tile_rows"))
def down_conv2d(x_nchw, params, channels, kernels=(3, 3), max_tile_rows=1024):
    """DownConv2d forward: (N, C0, H, W) f32 -> (N, C2, H//2, W//2) f32.

    conv1 + BatchNorm1(batch stats) + ReLU, conv2 + BatchNorm2 + ReLU, MaxPool2d(2).
    # TODO(synk): only the module-default 'relu' activation is implemented;
    # sigmoid/tanh/elu would just swap the elementwise tail of the pass-B kernels.
    """
    _, _, c2 = channels
    _, _, h, w = x_nchw.shape
    tile_h = _pick_tile_h(h, w, max_tile_rows)

    x = jnp.transpose(x_nchw, (0, 2, 3, 1))                  # NCHW -> NHWC
    x = _conv_bn_relu_stage(x, params["w1"], params["g1"], params["bt1"],
                            kernels[0], tile_h, pool=False)
    x = _conv_bn_relu_stage(x, params["w2"], params["g2"], params["bt2"],
                            kernels[1], tile_h, pool=True)
    x = x[..., :c2]                                          # drop lane padding
    return jnp.transpose(x, (0, 3, 1, 2))                    # NHWC -> NCHW


if __name__ == "__main__":
    key = jax.random.PRNGKey(0)
    k_x, k_p = jax.random.split(key)

    channels = (4, 8, 8)   # (in, mid, out)
    kernels = (3, 3)
    N, C, H, W = 2, channels[0], 16, 16

    x = jax.random.normal(k_x, (N, C, H, W), jnp.float32)
    params = init_params(k_p, channels, kernels)

    out = down_conv2d(x, params, channels=channels, kernels=kernels)
    out = jax.block_until_ready(out)

    expected_shape = (N, channels[2], H // 2, W // 2)
    assert out.shape == expected_shape, (out.shape, expected_shape)
    assert bool(jnp.all(jnp.isfinite(out)))
    assert bool(jnp.all(out >= 0.0))  # maxpool of ReLU output is non-negative

    # Exercise the multi-chunk (halo) tiling path and cross-check against the
    # single-chunk result (differences only from bf16/f32 summation order).
    out2 = down_conv2d(x, params, channels=channels, kernels=kernels,
                       max_tile_rows=128)
    out2 = jax.block_until_ready(out2)
    assert out2.shape == expected_shape
    assert bool(jnp.allclose(out, out2, rtol=5e-2, atol=5e-2))

    print("KERNEL_OK")
</pallas_src>

<mosaic_0001>
module attributes {stable_mosaic.version = 11 : i64} {
  func.func @_bn_act_kernel(%arg0: i32, %arg1: memref<1x16x16x128xbf16, #tpu.memory_space<vmem>>, %arg2: memref<2x128xf32, #tpu.memory_space<vmem>>, %arg3: memref<1x16x16x128xbf16, #tpu.memory_space<vmem>>) attributes {dimension_semantics = [#tpu.dimension_semantics<parallel>], iteration_bounds = array<i64: 2>, scalar_prefetch = 0 : i64, scratch_operands = 0 : i64, tpu.core_type = #tpu.core_type<tc>, window_params = [{transform_indices = @transform_0, window_bounds = array<i64: 1, 16, 16, 128>}, {pipeline_mode = #tpu.pipeline_mode<synchronous>, transform_indices = @transform_1, window_bounds = array<i64: 2, 128>}, {transform_indices = @transform_2, window_bounds = array<i64: 1, 16, 16, 128>}]} {
    %c0 = arith.constant 0 : index
    %c0_0 = arith.constant 0 : index
    %c0_1 = arith.constant 0 : index
    %c0_2 = arith.constant 0 : index
    %0 = vector.load %arg1[%c0, %c0_0, %c0_1, %c0_2] : memref<1x16x16x128xbf16, #tpu.memory_space<vmem>>, vector<1x16x16x128xbf16>
    %1 = vector.shape_cast %0 : vector<1x16x16x128xbf16> to vector<16x16x128xbf16>
    %2 = arith.extf %1 : vector<16x16x128xbf16> to vector<16x16x128xf32>
    %c0_3 = arith.constant 0 : index
    %c0_4 = arith.constant 0 : index
    %3 = vector.load %arg2[%c0_3, %c0_4] : memref<2x128xf32, #tpu.memory_space<vmem>>, vector<1x128xf32>
    %c1 = arith.constant 1 : index
    %c0_5 = arith.constant 0 : index
    %4 = vector.load %arg2[%c1, %c0_5] : memref<2x128xf32, #tpu.memory_space<vmem>>, vector<1x128xf32>
    %5 = vector.shape_cast %3 : vector<1x128xf32> to vector<1x1x128xf32>
    %6 = vector.broadcast %5 : vector<1x1x128xf32> to vector<16x16x128xf32>
    %7 = arith.mulf %2, %6 : vector<16x16x128xf32>
    %8 = vector.shape_cast %4 : vector<1x128xf32> to vector<1x1x128xf32>
    %9 = vector.broadcast %8 : vector<1x1x128xf32> to vector<16x16x128xf32>
    %10 = arith.addf %7, %9 : vector<16x16x128xf32>
    %cst = arith.constant 0.000000e+00 : f32
    %11 = vector.broadcast %cst : f32 to vector<16x16x128xf32>
    %12 = arith.maximumf %10, %11 : vector<16x16x128xf32>
    %13 = vector.shape_cast %12 : vector<16x16x128xf32> to vector<1x16x16x128xf32>
    %14 = arith.truncf %13 : vector<1x16x16x128xf32> to vector<1x16x16x128xbf16>
    %c0_6 = arith.constant 0 : index
    %c0_7 = arith.constant 0 : index
    %c0_8 = arith.constant 0 : index
    %c0_9 = arith.constant 0 : index
    %15 = vector.load %arg3[%c0_6, %c0_7, %c0_8, %c0_9] : memref<1x16x16x128xbf16, #tpu.memory_space<vmem>>, vector<1x16x16x128xbf16>
    tpu.vector_store %arg3[%c0_6, %c0_7, %c0_8, %c0_9], %14 {strides = array<i32>} : memref<1x16x16x128xbf16, #tpu.memory_space<vmem>>, vector<1x16x16x128xbf16>,
    return
  }
  func.func @transform_0(%arg0: i32) -> (i32, i32, i32, i32) {
    %c0_i32 = arith.constant 0 : i32
    %c0_i32_0 = arith.constant 0 : i32
    %c0_i32_1 = arith.constant 0 : i32
    %c0_i32_2 = arith.constant 0 : i32
    return %arg0, %c0_i32, %c0_i32_0, %c0_i32_1 : i32, i32, i32, i32
  }
  func.func @transform_1(%arg0: i32) -> (i32, i32) {
    %c0_i32 = arith.constant 0 : i32
    %c0_i32_0 = arith.constant 0 : i32
    %c0_i32_1 = arith.constant 0 : i32
    return %c0_i32, %c0_i32_0 : i32, i32
  }
  func.func @transform_2(%arg0: i32) -> (i32, i32, i32, i32) {
    %c0_i32 = arith.constant 0 : i32
    %c0_i32_0 = arith.constant 0 : i32
    %c0_i32_1 = arith.constant 0 : i32
    %c0_i32_2 = arith.constant 0 : i32
    return %arg0, %c0_i32, %c0_i32_0, %c0_i32_1 : i32, i32, i32, i32
  }
}

module attributes {stable_mosaic.version = 11 : i64} {
  func.func @kernel(%arg0: i32, %arg1: memref<1x18x18x4xbf16, #tpu.memory_space<vmem>>, %arg2: memref<9x4x128xbf16, #tpu.memory_space<vmem>>, %arg3: memref<1x256x128xbf16, #tpu.memory_space<vmem>>, %arg4: memref<1x2x128xf32, #tpu.memory_space<vmem>>) attributes {dimension_semantics = [#tpu.dimension_semantics<parallel>], iteration_bounds = array<i64: 2>, scalar_prefetch = 0 : i64, scratch_operands = 0 : i64, tpu.core_type = #tpu.core_type<tc>, window_params = [{transform_indices = @transform_0, window_bounds = array<i64: 1, 18, 18, 4>}, {pipeline_mode = #tpu.pipeline_mode<synchronous>, transform_indices = @transform_1, window_bounds = array<i64: 9, 4, 128>}, {transform_indices = @transform_2, window_bounds = array<i64: 1, 256, 128>}, {transform_indices = @transform_3, window_bounds = array<i64: 1, 2, 128>}]} {
    %cst = arith.constant 0.000000e+00 : f32
    %0 = vector.broadcast %cst : f32 to vector<256x128xf32>
    %c0 = arith.constant 0 : index
    %c0_0 = arith.constant 0 : index
    %c0_1 = arith.constant 0 : index
    %c0_2 = arith.constant 0 : index
    %1 = vector.load %arg1[%c0, %c0_0, %c0_1, %c0_2] : memref<1x18x18x4xbf16, #tpu.memory_space<vmem>>, vector<1x16x16x4xbf16>
    %2 = vector.shape_cast %1 : vector<1x16x16x4xbf16> to vector<16x16x4xbf16>
    %3 = vector.shape_cast %2 : vector<16x16x4xbf16> to vector<256x4xbf16>
    %c0_3 = arith.constant 0 : index
    %c0_4 = arith.constant 0 : index
    %c0_5 = arith.constant 0 : index
    %4 = vector.load %arg2[%c0_3, %c0_4, %c0_5] : memref<9x4x128xbf16, #tpu.memory_space<vmem>>, vector<1x4x128xbf16>
    %5 = vector.shape_cast %4 : vector<1x4x128xbf16> to vector<4x128xbf16>
    %cst_6 = arith.constant dense<0.000000e+00> : vector<256x128xf32>
    %6 = tpu.matmul %3, %5, %cst_6 {dimension_numbers = #tpu.dot_dimension_numbers<[1], [0], [0], [1], [0, 0, 1, 1], [], []>} : vector<256x4xbf16>, vector<4x128xbf16>, vector<256x128xf32> -> vector<256x128xf32>
    %7 = arith.addf %0, %6 : vector<256x128xf32>
    %c0_7 = arith.constant 0 : index
    %c0_8 = arith.constant 0 : index
    %c1 = arith.constant 1 : index
    %c0_9 = arith.constant 0 : index
    %8 = vector.load %arg1[%c0_7, %c0_8, %c1, %c0_9] : memref<1x18x18x4xbf16, #tpu.memory_space<vmem>>, vector<1x16x16x4xbf16>
    %9 = vector.shape_cast %8 : vector<1x16x16x4xbf16> to vector<16x16x4xbf16>
    %10 = vector.shape_cast %9 : vector<16x16x4xbf16> to vector<256x4xbf16>
    %c1_10 = arith.constant 1 : index
    %c0_11 = arith.constant 0 : index
    %c0_12 = arith.constant 0 : index
    %11 = vector.load %arg2[%c1_10, %c0_11, %c0_12] : memref<9x4x128xbf16, #tpu.memory_space<vmem>>, vector<1x4x128xbf16>
    %12 = vector.shape_cast %11 : vector<1x4x128xbf16> to vector<4x128xbf16>
    %cst_13 = arith.constant dense<0.000000e+00> : vector<256x128xf32>
    %13 = tpu.matmul %10, %12, %cst_13 {dimension_numbers = #tpu.dot_dimension_numbers<[1], [0], [0], [1], [0, 0, 1, 1], [], []>} : vector<256x4xbf16>, vector<4x128xbf16>, vector<256x128xf32> -> vector<256x128xf32>
    %14 = arith.addf %7, %13 : vector<256x128xf32>
    %c0_14 = arith.constant 0 : index
    %c0_15 = arith.constant 0 : index
    %c2 = arith.constant 2 : index
    %c0_16 = arith.constant 0 : index
    %15 = vector.load %arg1[%c0_14, %c0_15, %c2, %c0_16] : memref<1x18x18x4xbf16, #tpu.memory_space<vmem>>, vector<1x16x16x4xbf16>
    %16 = vector.shape_cast %15 : vector<1x16x16x4xbf16> to vector<16x16x4xbf16>
    %17 = vector.shape_cast %16 : vector<16x16x4xbf16> to vector<256x4xbf16>
    %c2_17 = arith.constant 2 : index
    %c0_18 = arith.constant 0 : index
    %c0_19 = arith.constant 0 : index
    %18 = vector.load %arg2[%c2_17, %c0_18, %c0_19] : memref<9x4x128xbf16, #tpu.memory_space<vmem>>, vector<1x4x128xbf16>
    %19 = vector.shape_cast %18 : vector<1x4x128xbf16> to vector<4x128xbf16>
    %cst_20 = arith.constant dense<0.000000e+00> : vector<256x128xf32>
    %20 = tpu.matmul %17, %19, %cst_20 {dimension_numbers = #tpu.dot_dimension_numbers<[1], [0], [0], [1], [0, 0, 1, 1], [], []>} : vector<256x4xbf16>, vector<4x128xbf16>, vector<256x128xf32> -> vector<256x128xf32>
    %21 = arith.addf %14, %20 : vector<256x128xf32>
    %c0_21 = arith.constant 0 : index
    %c1_22 = arith.constant 1 : index
    %c0_23 = arith.constant 0 : index
    %c0_24 = arith.constant 0 : index
    %22 = vector.load %arg1[%c0_21, %c1_22, %c0_23, %c0_24] : memref<1x18x18x4xbf16, #tpu.memory_space<vmem>>, vector<1x16x16x4xbf16>
    %23 = vector.shape_cast %22 : vector<1x16x16x4xbf16> to vector<16x16x4xbf16>
    %24 = vector.shape_cast %23 : vector<16x16x4xbf16> to vector<256x4xbf16>
    %c3 = arith.constant 3 : index
    %c0_25 = arith.constant 0 : index
    %c0_26 = arith.constant 0 : index
    %25 = vector.load %arg2[%c3, %c0_25, %c0_26] : memref<9x4x128xbf16, #tpu.memory_space<vmem>>, vector<1x4x128xbf16>
    %26 = vector.shape_cast %25 : vector<1x4x128xbf16> to vector<4x128xbf16>
    %cst_27 = arith.constant dense<0.000000e+00> : vector<256x128xf32>
    %27 = tpu.matmul %24, %26, %cst_27 {dimension_numbers = #tpu.dot_dimension_numbers<[1], [0], [0], [1], [0, 0, 1, 1], [], []>} : vector<256x4xbf16>, vector<4x128xbf16>, vector<256x128xf32> -> vector<256x128xf32>
    %28 = arith.addf %21, %27 : vector<256x128xf32>
    %c0_28 = arith.constant 0 : index
    %c1_29 = arith.constant 1 : index
    %c1_30 = arith.constant 1 : index
    %c0_31 = arith.constant 0 : index
    %29 = vector.load %arg1[%c0_28, %c1_29, %c1_30, %c0_31] : memref<1x18x18x4xbf16, #tpu.memory_space<vmem>>, vector<1x16x16x4xbf16>
    %30 = vector.shape_cast %29 : vector<1x16x16x4xbf16> to vector<16x16x4xbf16>
    %31 = vector.shape_cast %30 : vector<16x16x4xbf16> to vector<256x4xbf16>
    %c4 = arith.constant 4 : index
    %c0_32 = arith.constant 0 : index
    %c0_33 = arith.constant 0 : index
    %32 = vector.load %arg2[%c4, %c0_32, %c0_33] : memref<9x4x128xbf16, #tpu.memory_space<vmem>>, vector<1x4x128xbf16>
    %33 = vector.shape_cast %32 : vector<1x4x128xbf16> to vector<4x128xbf16>
    %cst_34 = arith.constant dense<0.000000e+00> : vector<256x128xf32>
    %34 = tpu.matmul %31, %33, %cst_34 {dimension_numbers = #tpu.dot_dimension_numbers<[1], [0], [0], [1], [0, 0, 1, 1], [], []>} : vector<256x4xbf16>, vector<4x128xbf16>, vector<256x128xf32> -> vector<256x128xf32>
    %35 = arith.addf %28, %34 : vector<256x128xf32>
    %c0_35 = arith.constant 0 : index
    %c1_36 = arith.constant 1 : index
    %c2_37 = arith.constant 2 : index
    %c0_38 = arith.constant 0 : index
    %36 = vector.load %arg1[%c0_35, %c1_36, %c2_37, %c0_38] : memref<1x18x18x4xbf16, #tpu.memory_space<vmem>>, vector<1x16x16x4xbf16>
    %37 = vector.shape_cast %36 : vector<1x16x16x4xbf16> to vector<16x16x4xbf16>
    %38 = vector.shape_cast %37 : vector<16x16x4xbf16> to vector<256x4xbf16>
    %c5 = arith.constant 5 : index
    %c0_39 = arith.constant 0 : index
    %c0_40 = arith.constant 0 : index
    %39 = vector.load %arg2[%c5, %c0_39, %c0_40] : memref<9x4x128xbf16, #tpu.memory_space<vmem>>, vector<1x4x128xbf16>
    %40 = vector.shape_cast %39 : vector<1x4x128xbf16> to vector<4x128xbf16>
    %cst_41 = arith.constant dense<0.000000e+00> : vector<256x128xf32>
    %41 = tpu.matmul %38, %40, %cst_41 {dimension_numbers = #tpu.dot_dimension_numbers<[1], [0], [0], [1], [0, 0, 1, 1], [], []>} : vector<256x4xbf16>, vector<4x128xbf16>, vector<256x128xf32> -> vector<256x128xf32>
    %42 = arith.addf %35, %41 : vector<256x128xf32>
    %c0_42 = arith.constant 0 : index
    %c2_43 = arith.constant 2 : index
    %c0_44 = arith.constant 0 : index
    %c0_45 = arith.constant 0 : index
    %43 = vector.load %arg1[%c0_42, %c2_43, %c0_44, %c0_45] : memref<1x18x18x4xbf16, #tpu.memory_space<vmem>>, vector<1x16x16x4xbf16>
    %44 = vector.shape_cast %43 : vector<1x16x16x4xbf16> to vector<16x16x4xbf16>
    %45 = vector.shape_cast %44 : vector<16x16x4xbf16> to vector<256x4xbf16>
    %c6 = arith.constant 6 : index
    %c0_46 = arith.constant 0 : index
    %c0_47 = arith.constant 0 : index
    %46 = vector.load %arg2[%c6, %c0_46, %c0_47] : memref<9x4x128xbf16, #tpu.memory_space<vmem>>, vector<1x4x128xbf16>
    %47 = vector.shape_cast %46 : vector<1x4x128xbf16> to vector<4x128xbf16>
    %cst_48 = arith.constant dense<0.000000e+00> : vector<256x128xf32>
    %48 = tpu.matmul %45, %47, %cst_48 {dimension_numbers = #tpu.dot_dimension_numbers<[1], [0], [0], [1], [0, 0, 1, 1], [], []>} : vector<256x4xbf16>, vector<4x128xbf16>, vector<256x128xf32> -> vector<256x128xf32>
    %49 = arith.addf %42, %48 : vector<256x128xf32>
    %c0_49 = arith.constant 0 : index
    %c2_50 = arith.constant 2 : index
    %c1_51 = arith.constant 1 : index
    %c0_52 = arith.constant 0 : index
    %50 = vector.load %arg1[%c0_49, %c2_50, %c1_51, %c0_52] : memref<1x18x18x4xbf16, #tpu.memory_space<vmem>>, vector<1x16x16x4xbf16>
    %51 = vector.shape_cast %50 : vector<1x16x16x4xbf16> to vector<16x16x4xbf16>
    %52 = vector.shape_cast %51 : vector<16x16x4xbf16> to vector<256x4xbf16>
    %c7 = arith.constant 7 : index
    %c0_53 = arith.constant 0 : index
    %c0_54 = arith.constant 0 : index
    %53 = vector.load %arg2[%c7, %c0_53, %c0_54] : memref<9x4x128xbf16, #tpu.memory_space<vmem>>, vector<1x4x128xbf16>
    %54 = vector.shape_cast %53 : vector<1x4x128xbf16> to vector<4x128xbf16>
    %cst_55 = arith.constant dense<0.000000e+00> : vector<256x128xf32>
    %55 = tpu.matmul %52, %54, %cst_55 {dimension_numbers = #tpu.dot_dimension_numbers<[1], [0], [0], [1], [0, 0, 1, 1], [], []>} : vector<256x4xbf16>, vector<4x128xbf16>, vector<256x128xf32> -> vector<256x128xf32>
    %56 = arith.addf %49, %55 : vector<256x128xf32>
    %c0_56 = arith.constant 0 : index
    %c2_57 = arith.constant 2 : index
    %c2_58 = arith.constant 2 : index
    %c0_59 = arith.constant 0 : index
    %57 = vector.load %arg1[%c0_56, %c2_57, %c2_58, %c0_59] : memref<1x18x18x4xbf16, #tpu.memory_space<vmem>>, vector<1x16x16x4xbf16>
    %58 = vector.shape_cast %57 : vector<1x16x16x4xbf16> to vector<16x16x4xbf16>
    %59 = vector.shape_cast %58 : vector<16x16x4xbf16> to vector<256x4xbf16>
    %c8 = arith.constant 8 : index
    %c0_60 = arith.constant 0 : index
    %c0_61 = arith.constant 0 : index
    %60 = vector.load %arg2[%c8, %c0_60, %c0_61] : memref<9x4x128xbf16, #tpu.memory_space<vmem>>, vector<1x4x128xbf16>
    %61 = vector.shape_cast %60 : vector<1x4x128xbf16> to vector<4x128xbf16>
    %cst_62 = arith.constant dense<0.000000e+00> : vector<256x128xf32>
    %62 = tpu.matmul %59, %61, %cst_62 {dimension_numbers = #tpu.dot_dimension_numbers<[1], [0], [0], [1], [0, 0, 1, 1], [], []>} : vector<256x4xbf16>, vector<4x128xbf16>, vector<256x128xf32> -> vector<256x128xf32>
    %63 = arith.addf %56, %62 : vector<256x128xf32>
    %64 = vector.shape_cast %63 : vector<256x128xf32> to vector<1x256x128xf32>
    %65 = arith.truncf %64 : vector<1x256x128xf32> to vector<1x256x128xbf16>
    %c0_63 = arith.constant 0 : index
    %c0_64 = arith.constant 0 : index
    %c0_65 = arith.constant 0 : index
    %66 = vector.load %arg3[%c0_63, %c0_64, %c0_65] : memref<1x256x128xbf16, #tpu.memory_space<vmem>>, vector<1x256x128xbf16>
    tpu.vector_store %arg3[%c0_63, %c0_64, %c0_65], %65 {strides = array<i32>} : memref<1x256x128xbf16, #tpu.memory_space<vmem>>, vector<1x256x128xbf16>,
    %cst_66 = arith.constant dense<0.000000e+00> : vector<128xf32>
    %67 = vector.multi_reduction <add>, %63, %cst_66 [0] : vector<256x128xf32> to vector<128xf32>
    %68 = vector.shape_cast %67 : vector<128xf32> to vector<1x128xf32>
    %69 = arith.mulf %63, %63 : vector<256x128xf32>
    %cst_67 = arith.constant dense<0.000000e+00> : vector<128xf32>
    %70 = vector.multi_reduction <add>, %69, %cst_67 [0] : vector<256x128xf32> to vector<128xf32>
    %71 = vector.shape_cast %70 : vector<128xf32> to vector<1x128xf32>
    %72 = tpu.concatenate %68, %71 in 0 : vector<1x128xf32>, vector<1x128xf32> -> vector<2x128xf32>
    %73 = vector.shape_cast %72 : vector<2x128xf32> to vector<1x2x128xf32>
    %c0_68 = arith.constant 0 : index
    %c0_69 = arith.constant 0 : index
    %c0_70 = arith.constant 0 : index
    %74 = vector.load %arg4[%c0_68, %c0_69, %c0_70] : memref<1x2x128xf32, #tpu.memory_space<vmem>>, vector<1x2x128xf32>
    tpu.vector_store %arg4[%c0_68, %c0_69, %c0_70], %73 {strides = array<i32>} : memref<1x2x128xf32, #tpu.memory_space<vmem>>, vector<1x2x128xf32>,
    return
  }
  func.func @transform_0(%arg0: i32) -> (i32, i32, i32, i32) {
    %c0_i32 = arith.constant 0 : i32
    %c0_i32_0 = arith.constant 0 : i32
    %c0_i32_1 = arith.constant 0 : i32
    %c0_i32_2 = arith.constant 0 : i32
    return %arg0, %c0_i32, %c0_i32_0, %c0_i32_1 : i32, i32, i32, i32
  }
  func.func @transform_1(%arg0: i32) -> (i32, i32, i32) {
    %c0_i32 = arith.constant 0 : i32
    %c0_i32_0 = arith.constant 0 : i32
    %c0_i32_1 = arith.constant 0 : i32
    %c0_i32_2 = arith.constant 0 : i32
    return %c0_i32, %c0_i32_0, %c0_i32_1 : i32, i32, i32
  }
  func.func @transform_2(%arg0: i32) -> (i32, i32, i32) {
    %c0_i32 = arith.constant 0 : i32
    %c0_i32_0 = arith.constant 0 : i32
    %c0_i32_1 = arith.constant 0 : i32
    return %arg0, %c0_i32, %c0_i32_0 : i32, i32, i32
  }
  func.func @transform_3(%arg0: i32) -> (i32, i32, i32) {
    %c0_i32 = arith.constant 0 : i32
    %c0_i32_0 = arith.constant 0 : i32
    %c0_i32_1 = arith.constant 0 : i32
    return %arg0, %c0_i32, %c0_i32_0 : i32, i32, i32
  }
}

module attributes {stable_mosaic.version = 11 : i64} {
  func.func @kernel(%arg0: i32, %arg1: memref<1x18x18x128xbf16, #tpu.memory_space<vmem>>, %arg2: memref<9x128x128xbf16, #tpu.memory_space<vmem>>, %arg3: memref<1x256x128xbf16, #tpu.memory_space<vmem>>, %arg4: memref<1x2x128xf32, #tpu.memory_space<vmem>>) attributes {dimension_semantics = [#tpu.dimension_semantics<parallel>], iteration_bounds = array<i64: 2>, scalar_prefetch = 0 : i64, scratch_operands = 0 : i64, tpu.core_type = #tpu.core_type<tc>, window_params = [{transform_indices = @transform_0, window_bounds = array<i64: 1, 18, 18, 128>}, {pipeline_mode = #tpu.pipeline_mode<synchronous>, transform_indices = @transform_1, window_bounds = array<i64: 9, 128, 128>}, {transform_indices = @transform_2, window_bounds = array<i64: 1, 256, 128>}, {transform_indices = @transform_3, window_bounds = array<i64: 1, 2, 128>}]} {
    %cst = arith.constant 0.000000e+00 : f32
    %0 = vector.broadcast %cst : f32 to vector<256x128xf32>
    %c0 = arith.constant 0 : index
    %c0_0 = arith.constant 0 : index
    %c0_1 = arith.constant 0 : index
    %c0_2 = arith.constant 0 : index
    %1 = vector.load %arg1[%c0, %c0_0, %c0_1, %c0_2] : memref<1x18x18x128xbf16, #tpu.memory_space<vmem>>, vector<1x16x16x128xbf16>
    %2 = vector.shape_cast %1 : vector<1x16x16x128xbf16> to vector<16x16x128xbf16>
    %3 = vector.shape_cast %2 : vector<16x16x128xbf16> to vector<256x128xbf16>
    %c0_3 = arith.constant 0 : index
    %c0_4 = arith.constant 0 : index
    %c0_5 = arith.constant 0 : index
    %4 = vector.load %arg2[%c0_3, %c0_4, %c0_5] : memref<9x128x128xbf16, #tpu.memory_space<vmem>>, vector<1x128x128xbf16>
    %5 = vector.shape_cast %4 : vector<1x128x128xbf16> to vector<128x128xbf16>
    %cst_6 = arith.constant dense<0.000000e+00> : vector<256x128xf32>
    %6 = tpu.matmul %3, %5, %cst_6 {dimension_numbers = #tpu.dot_dimension_numbers<[1], [0], [0], [1], [0, 0, 1, 1], [], []>} : vector<256x128xbf16>, vector<128x128xbf16>, vector<256x128xf32> -> vector<256x128xf32>
    %7 = arith.addf %0, %6 : vector<256x128xf32>
    %c0_7 = arith.constant 0 : index
    %c0_8 = arith.constant 0 : index
    %c1 = arith.constant 1 : index
    %c0_9 = arith.constant 0 : index
    %8 = vector.load %arg1[%c0_7, %c0_8, %c1, %c0_9] : memref<1x18x18x128xbf16, #tpu.memory_space<vmem>>, vector<1x16x16x128xbf16>
    %9 = vector.shape_cast %8 : vector<1x16x16x128xbf16> to vector<16x16x128xbf16>
    %10 = vector.shape_cast %9 : vector<16x16x128xbf16> to vector<256x128xbf16>
    %c1_10 = arith.constant 1 : index
    %c0_11 = arith.constant 0 : index
    %c0_12 = arith.constant 0 : index
    %11 = vector.load %arg2[%c1_10, %c0_11, %c0_12] : memref<9x128x128xbf16, #tpu.memory_space<vmem>>, vector<1x128x128xbf16>
    %12 = vector.shape_cast %11 : vector<1x128x128xbf16> to vector<128x128xbf16>
    %cst_13 = arith.constant dense<0.000000e+00> : vector<256x128xf32>
    %13 = tpu.matmul %10, %12, %cst_13 {dimension_numbers = #tpu.dot_dimension_numbers<[1], [0], [0], [1], [0, 0, 1, 1], [], []>} : vector<256x128xbf16>, vector<128x128xbf16>, vector<256x128xf32> -> vector<256x128xf32>
    %14 = arith.addf %7, %13 : vector<256x128xf32>
    %c0_14 = arith.constant 0 : index
    %c0_15 = arith.constant 0 : index
    %c2 = arith.constant 2 : index
    %c0_16 = arith.constant 0 : index
    %15 = vector.load %arg1[%c0_14, %c0_15, %c2, %c0_16] : memref<1x18x18x128xbf16, #tpu.memory_space<vmem>>, vector<1x16x16x128xbf16>
    %16 = vector.shape_cast %15 : vector<1x16x16x128xbf16> to vector<16x16x128xbf16>
    %17 = vector.shape_cast %16 : vector<16x16x128xbf16> to vector<256x128xbf16>
    %c2_17 = arith.constant 2 : index
    %c0_18 = arith.constant 0 : index
    %c0_19 = arith.constant 0 : index
    %18 = vector.load %arg2[%c2_17, %c0_18, %c0_19] : memref<9x128x128xbf16, #tpu.memory_space<vmem>>, vector<1x128x128xbf16>
    %19 = vector.shape_cast %18 : vector<1x128x128xbf16> to vector<128x128xbf16>
    %cst_20 = arith.constant dense<0.000000e+00> : vector<256x128xf32>
    %20 = tpu.matmul %17, %19, %cst_20 {dimension_numbers = #tpu.dot_dimension_numbers<[1], [0], [0], [1], [0, 0, 1, 1], [], []>} : vector<256x128xbf16>, vector<128x128xbf16>, vector<256x128xf32> -> vector<256x128xf32>
    %21 = arith.addf %14, %20 : vector<256x128xf32>
    %c0_21 = arith.constant 0 : index
    %c1_22 = arith.constant 1 : index
    %c0_23 = arith.constant 0 : index
    %c0_24 = arith.constant 0 : index
    %22 = vector.load %arg1[%c0_21, %c1_22, %c0_23, %c0_24] : memref<1x18x18x128xbf16, #tpu.memory_space<vmem>>, vector<1x16x16x128xbf16>
    %23 = vector.shape_cast %22 : vector<1x16x16x128xbf16> to vector<16x16x128xbf16>
    %24 = vector.shape_cast %23 : vector<16x16x128xbf16> to vector<256x128xbf16>
    %c3 = arith.constant 3 : index
    %c0_25 = arith.constant 0 : index
    %c0_26 = arith.constant 0 : index
    %25 = vector.load %arg2[%c3, %c0_25, %c0_26] : memref<9x128x128xbf16, #tpu.memory_space<vmem>>, vector<1x128x128xbf16>
    %26 = vector.shape_cast %25 : vector<1x128x128xbf16> to vector<128x128xbf16>
    %cst_27 = arith.constant dense<0.000000e+00> : vector<256x128xf32>
    %27 = tpu.matmul %24, %26, %cst_27 {dimension_numbers = #tpu.dot_dimension_numbers<[1], [0], [0], [1], [0, 0, 1, 1], [], []>} : vector<256x128xbf16>, vector<128x128xbf16>, vector<256x128xf32> -> vector<256x128xf32>
    %28 = arith.addf %21, %27 : vector<256x128xf32>
    %c0_28 = arith.constant 0 : index
    %c1_29 = arith.constant 1 : index
    %c1_30 = arith.constant 1 : index
    %c0_31 = arith.constant 0 : index
    %29 = vector.load %arg1[%c0_28, %c1_29, %c1_30, %c0_31] : memref<1x18x18x128xbf16, #tpu.memory_space<vmem>>, vector<1x16x16x128xbf16>
    %30 = vector.shape_cast %29 : vector<1x16x16x128xbf16> to vector<16x16x128xbf16>
    %31 = vector.shape_cast %30 : vector<16x16x128xbf16> to vector<256x128xbf16>
    %c4 = arith.constant 4 : index
    %c0_32 = arith.constant 0 : index
    %c0_33 = arith.constant 0 : index
    %32 = vector.load %arg2[%c4, %c0_32, %c0_33] : memref<9x128x128xbf16, #tpu.memory_space<vmem>>, vector<1x128x128xbf16>
    %33 = vector.shape_cast %32 : vector<1x128x128xbf16> to vector<128x128xbf16>
    %cst_34 = arith.constant dense<0.000000e+00> : vector<256x128xf32>
    %34 = tpu.matmul %31, %33, %cst_34 {dimension_numbers = #tpu.dot_dimension_numbers<[1], [0], [0], [1], [0, 0, 1, 1], [], []>} : vector<256x128xbf16>, vector<128x128xbf16>, vector<256x128xf32> -> vector<256x128xf32>
    %35 = arith.addf %28, %34 : vector<256x128xf32>
    %c0_35 = arith.constant 0 : index
    %c1_36 = arith.constant 1 : index
    %c2_37 = arith.constant 2 : index
    %c0_38 = arith.constant 0 : index
    %36 = vector.load %arg1[%c0_35, %c1_36, %c2_37, %c0_38] : memref<1x18x18x128xbf16, #tpu.memory_space<vmem>>, vector<1x16x16x128xbf16>
    %37 = vector.shape_cast %36 : vector<1x16x16x128xbf16> to vector<16x16x128xbf16>
    %38 = vector.shape_cast %37 : vector<16x16x128xbf16> to vector<256x128xbf16>
    %c5 = arith.constant 5 : index
    %c0_39 = arith.constant 0 : index
    %c0_40 = arith.constant 0 : index
    %39 = vector.load %arg2[%c5, %c0_39, %c0_40] : memref<9x128x128xbf16, #tpu.memory_space<vmem>>, vector<1x128x128xbf16>
    %40 = vector.shape_cast %39 : vector<1x128x128xbf16> to vector<128x128xbf16>
    %cst_41 = arith.constant dense<0.000000e+00> : vector<256x128xf32>
    %41 = tpu.matmul %38, %40, %cst_41 {dimension_numbers = #tpu.dot_dimension_numbers<[1], [0], [0], [1], [0, 0, 1, 1], [], []>} : vector<256x128xbf16>, vector<128x128xbf16>, vector<256x128xf32> -> vector<256x128xf32>
    %42 = arith.addf %35, %41 : vector<256x128xf32>
    %c0_42 = arith.constant 0 : index
    %c2_43 = arith.constant 2 : index
    %c0_44 = arith.constant 0 : index
    %c0_45 = arith.constant 0 : index
    %43 = vector.load %arg1[%c0_42, %c2_43, %c0_44, %c0_45] : memref<1x18x18x128xbf16, #tpu.memory_space<vmem>>, vector<1x16x16x128xbf16>
    %44 = vector.shape_cast %43 : vector<1x16x16x128xbf16> to vector<16x16x128xbf16>
    %45 = vector.shape_cast %44 : vector<16x16x128xbf16> to vector<256x128xbf16>
    %c6 = arith.constant 6 : index
    %c0_46 = arith.constant 0 : index
    %c0_47 = arith.constant 0 : index
    %46 = vector.load %arg2[%c6, %c0_46, %c0_47] : memref<9x128x128xbf16, #tpu.memory_space<vmem>>, vector<1x128x128xbf16>
    %47 = vector.shape_cast %46 : vector<1x128x128xbf16> to vector<128x128xbf16>
    %cst_48 = arith.constant dense<0.000000e+00> : vector<256x128xf32>
    %48 = tpu.matmul %45, %47, %cst_48 {dimension_numbers = #tpu.dot_dimension_numbers<[1], [0], [0], [1], [0, 0, 1, 1], [], []>} : vector<256x128xbf16>, vector<128x128xbf16>, vector<256x128xf32> -> vector<256x128xf32>
    %49 = arith.addf %42, %48 : vector<256x128xf32>
    %c0_49 = arith.constant 0 : index
    %c2_50 = arith.constant 2 : index
    %c1_51 = arith.constant 1 : index
    %c0_52 = arith.constant 0 : index
    %50 = vector.load %arg1[%c0_49, %c2_50, %c1_51, %c0_52] : memref<1x18x18x128xbf16, #tpu.memory_space<vmem>>, vector<1x16x16x128xbf16>
    %51 = vector.shape_cast %50 : vector<1x16x16x128xbf16> to vector<16x16x128xbf16>
    %52 = vector.shape_cast %51 : vector<16x16x128xbf16> to vector<256x128xbf16>
    %c7 = arith.constant 7 : index
    %c0_53 = arith.constant 0 : index
    %c0_54 = arith.constant 0 : index
    %53 = vector.load %arg2[%c7, %c0_53, %c0_54] : memref<9x128x128xbf16, #tpu.memory_space<vmem>>, vector<1x128x128xbf16>
    %54 = vector.shape_cast %53 : vector<1x128x128xbf16> to vector<128x128xbf16>
    %cst_55 = arith.constant dense<0.000000e+00> : vector<256x128xf32>
    %55 = tpu.matmul %52, %54, %cst_55 {dimension_numbers = #tpu.dot_dimension_numbers<[1], [0], [0], [1], [0, 0, 1, 1], [], []>} : vector<256x128xbf16>, vector<128x128xbf16>, vector<256x128xf32> -> vector<256x128xf32>
    %56 = arith.addf %49, %55 : vector<256x128xf32>
    %c0_56 = arith.constant 0 : index
    %c2_57 = arith.constant 2 : index
    %c2_58 = arith.constant 2 : index
    %c0_59 = arith.constant 0 : index
    %57 = vector.load %arg1[%c0_56, %c2_57, %c2_58, %c0_59] : memref<1x18x18x128xbf16, #tpu.memory_space<vmem>>, vector<1x16x16x128xbf16>
    %58 = vector.shape_cast %57 : vector<1x16x16x128xbf16> to vector<16x16x128xbf16>
    %59 = vector.shape_cast %58 : vector<16x16x128xbf16> to vector<256x128xbf16>
    %c8 = arith.constant 8 : index
    %c0_60 = arith.constant 0 : index
    %c0_61 = arith.constant 0 : index
    %60 = vector.load %arg2[%c8, %c0_60, %c0_61] : memref<9x128x128xbf16, #tpu.memory_space<vmem>>, vector<1x128x128xbf16>
    %61 = vector.shape_cast %60 : vector<1x128x128xbf16> to vector<128x128xbf16>
    %cst_62 = arith.constant dense<0.000000e+00> : vector<256x128xf32>
    %62 = tpu.matmul %59, %61, %cst_62 {dimension_numbers = #tpu.dot_dimension_numbers<[1], [0], [0], [1], [0, 0, 1, 1], [], []>} : vector<256x128xbf16>, vector<128x128xbf16>, vector<256x128xf32> -> vector<256x128xf32>
    %63 = arith.addf %56, %62 : vector<256x128xf32>
    %64 = vector.shape_cast %63 : vector<256x128xf32> to vector<1x256x128xf32>
    %65 = arith.truncf %64 : vector<1x256x128xf32> to vector<1x256x128xbf16>
    %c0_63 = arith.constant 0 : index
    %c0_64 = arith.constant 0 : index
    %c0_65 = arith.constant 0 : index
    %66 = vector.load %arg3[%c0_63, %c0_64, %c0_65] : memref<1x256x128xbf16, #tpu.memory_space<vmem>>, vector<1x256x128xbf16>
    tpu.vector_store %arg3[%c0_63, %c0_64, %c0_65], %65 {strides = array<i32>} : memref<1x256x128xbf16, #tpu.memory_space<vmem>>, vector<1x256x128xbf16>,
    %cst_66 = arith.constant dense<0.000000e+00> : vector<128xf32>
    %67 = vector.multi_reduction <add>, %63, %cst_66 [0] : vector<256x128xf32> to vector<128xf32>
    %68 = vector.shape_cast %67 : vector<128xf32> to vector<1x128xf32>
    %69 = arith.mulf %63, %63 : vector<256x128xf32>
    %cst_67 = arith.constant dense<0.000000e+00> : vector<128xf32>
    %70 = vector.multi_reduction <add>, %69, %cst_67 [0] : vector<256x128xf32> to vector<128xf32>
    %71 = vector.shape_cast %70 : vector<128xf32> to vector<1x128xf32>
    %72 = tpu.concatenate %68, %71 in 0 : vector<1x128xf32>, vector<1x128xf32> -> vector<2x128xf32>
    %73 = vector.shape_cast %72 : vector<2x128xf32> to vector<1x2x128xf32>
    %c0_68 = arith.constant 0 : index
    %c0_69 = arith.constant 0 : index
    %c0_70 = arith.constant 0 : index
    %74 = vector.load %arg4[%c0_68, %c0_69, %c0_70] : memref<1x2x128xf32, #tpu.memory_space<vmem>>, vector<1x2x128xf32>
    tpu.vector_store %arg4[%c0_68, %c0_69, %c0_70], %73 {strides = array<i32>} : memref<1x2x128xf32, #tpu.memory_space<vmem>>, vector<1x2x128xf32>,
    return
  }
  func.func @transform_0(%arg0: i32) -> (i32, i32, i32, i32) {
    %c0_i32 = arith.constant 0 : i32
    %c0_i32_0 = arith.constant 0 : i32
    %c0_i32_1 = arith.constant 0 : i32
    %c0_i32_2 = arith.constant 0 : i32
    return %arg0, %c0_i32, %c0_i32_0, %c0_i32_1 : i32, i32, i32, i32
  }
  func.func @transform_1(%arg0: i32) -> (i32, i32, i32) {
    %c0_i32 = arith.constant 0 : i32
    %c0_i32_0 = arith.constant 0 : i32
    %c0_i32_1 = arith.constant 0 : i32
    %c0_i32_2 = arith.constant 0 : i32
    return %c0_i32, %c0_i32_0, %c0_i32_1 : i32, i32, i32
  }
  func.func @transform_2(%arg0: i32) -> (i32, i32, i32) {
    %c0_i32 = arith.constant 0 : i32
    %c0_i32_0 = arith.constant 0 : i32
    %c0_i32_1 = arith.constant 0 : i32
    return %arg0, %c0_i32, %c0_i32_0 : i32, i32, i32
  }
  func.func @transform_3(%arg0: i32) -> (i32, i32, i32) {
    %c0_i32 = arith.constant 0 : i32
    %c0_i32_0 = arith.constant 0 : i32
    %c0_i32_1 = arith.constant 0 : i32
    return %arg0, %c0_i32, %c0_i32_0 : i32, i32, i32
  }
}

module attributes {stable_mosaic.version = 11 : i64} {
  func.func @kernel(%arg0: i32, %arg1: memref<1x16x8x2x128xbf16, #tpu.memory_space<vmem>>, %arg2: memref<2x128xf32, #tpu.memory_space<vmem>>, %arg3: memref<1x8x8x128xf32, #tpu.memory_space<vmem>>) attributes {dimension_semantics = [#tpu.dimension_semantics<parallel>], iteration_bounds = array<i64: 2>, scalar_prefetch = 0 : i64, scratch_operands = 0 : i64, tpu.core_type = #tpu.core_type<tc>, window_params = [{transform_indices = @transform_0, window_bounds = array<i64: 1, 16, 8, 2, 128>}, {pipeline_mode = #tpu.pipeline_mode<synchronous>, transform_indices = @transform_1, window_bounds = array<i64: 2, 128>}, {transform_indices = @transform_2, window_bounds = array<i64: 1, 8, 8, 128>}]} {
    %c0 = arith.constant 0 : index
    %c0_0 = arith.constant 0 : index
    %0 = vector.load %arg2[%c0, %c0_0] : memref<2x128xf32, #tpu.memory_space<vmem>>, vector<1x128xf32>
    %c1 = arith.constant 1 : index
    %c0_1 = arith.constant 0 : index
    %1 = vector.load %arg2[%c1, %c0_1] : memref<2x128xf32, #tpu.memory_space<vmem>>, vector<1x128xf32>
    %c0_2 = arith.constant 0 : index
    %c0_3 = arith.constant 0 : index
    %c0_4 = arith.constant 0 : index
    %c0_5 = arith.constant 0 : index
    %c0_6 = arith.constant 0 : index
    %2 = vector.load %arg1[%c0_2, %c0_3, %c0_4, %c0_5, %c0_6] : memref<1x16x8x2x128xbf16, #tpu.memory_space<vmem>>, vector<1x16x8x1x128xbf16>
    %3 = vector.shape_cast %2 : vector<1x16x8x1x128xbf16> to vector<16x8x128xbf16>
    %4 = arith.extf %3 : vector<16x8x128xbf16> to vector<16x8x128xf32>
    %5 = vector.shape_cast %0 : vector<1x128xf32> to vector<1x1x128xf32>
    %6 = vector.broadcast %5 : vector<1x1x128xf32> to vector<16x8x128xf32>
    %7 = arith.mulf %4, %6 : vector<16x8x128xf32>
    %8 = vector.shape_cast %1 : vector<1x128xf32> to vector<1x1x128xf32>
    %9 = vector.broadcast %8 : vector<1x1x128xf32> to vector<16x8x128xf32>
    %10 = arith.addf %7, %9 : vector<16x8x128xf32>
    %cst = arith.constant 0.000000e+00 : f32
    %11 = vector.broadcast %cst : f32 to vector<16x8x128xf32>
    %12 = arith.maximumf %10, %11 : vector<16x8x128xf32>
    %c0_7 = arith.constant 0 : index
    %c0_8 = arith.constant 0 : index
    %c0_9 = arith.constant 0 : index
    %c1_10 = arith.constant 1 : index
    %c0_11 = arith.constant 0 : index
    %13 = vector.load %arg1[%c0_7, %c0_8, %c0_9, %c1_10, %c0_11] : memref<1x16x8x2x128xbf16, #tpu.memory_space<vmem>>, vector<1x16x8x1x128xbf16>
    %14 = vector.shape_cast %13 : vector<1x16x8x1x128xbf16> to vector<16x8x128xbf16>
    %15 = arith.extf %14 : vector<16x8x128xbf16> to vector<16x8x128xf32>
    %16 = vector.shape_cast %0 : vector<1x128xf32> to vector<1x1x128xf32>
    %17 = vector.broadcast %16 : vector<1x1x128xf32> to vector<16x8x128xf32>
    %18 = arith.mulf %15, %17 : vector<16x8x128xf32>
    %19 = vector.shape_cast %1 : vector<1x128xf32> to vector<1x1x128xf32>
    %20 = vector.broadcast %19 : vector<1x1x128xf32> to vector<16x8x128xf32>
    %21 = arith.addf %18, %20 : vector<16x8x128xf32>
    %cst_12 = arith.constant 0.000000e+00 : f32
    %22 = vector.broadcast %cst_12 : f32 to vector<16x8x128xf32>
    %23 = arith.maximumf %21, %22 : vector<16x8x128xf32>
    %24 = arith.maximumf %12, %23 : vector<16x8x128xf32>
    %25 = vector.shape_cast %24 : vector<16x8x128xf32> to vector<8x2x8x128xf32>
    %26 = vector.extract_strided_slice %25 {offsets = [0, 0, 0, 0], sizes = [8, 1, 8, 128], strides = [1, 1, 1, 1]} : vector<8x2x8x128xf32> to vector<8x1x8x128xf32>
    %27 = vector.shape_cast %26 : vector<8x1x8x128xf32> to vector<8x8x128xf32>
    %28 = vector.extract_strided_slice %25 {offsets = [0, 1, 0, 0], sizes = [8, 1, 8, 128], strides = [1, 1, 1, 1]} : vector<8x2x8x128xf32> to vector<8x1x8x128xf32>
    %29 = vector.shape_cast %28 : vector<8x1x8x128xf32> to vector<8x8x128xf32>
    %30 = arith.maximumf %27, %29 : vector<8x8x128xf32>
    %31 = vector.shape_cast %30 : vector<8x8x128xf32> to vector<1x8x8x128xf32>
    %c0_13 = arith.constant 0 : index
    %c0_14 = arith.constant 0 : index
    %c0_15 = arith.constant 0 : index
    %c0_16 = arith.constant 0 : index
    %32 = vector.load %arg3[%c0_13, %c0_14, %c0_15, %c0_16] : memref<1x8x8x128xf32, #tpu.memory_space<vmem>>, vector<1x8x8x128xf32>
    tpu.vector_store %arg3[%c0_13, %c0_14, %c0_15, %c0_16], %31 {strides = array<i32>} : memref<1x8x8x128xf32, #tpu.memory_space<vmem>>, vector<1x8x8x128xf32>,
    return
  }
  func.func @transform_0(%arg0: i32) -> (i32, i32, i32, i32, i32) {
    %c0_i32 = arith.constant 0 : i32
    %c0_i32_0 = arith.constant 0 : i32
    %c0_i32_1 = arith.constant 0 : i32
    %c0_i32_2 = arith.constant 0 : i32
    %c0_i32_3 = arith.constant 0 : i32
    return %arg0, %c0_i32, %c0_i32_0, %c0_i32_1, %c0_i32_2 : i32, i32, i32, i32, i32
  }
  func.func @transform_1(%arg0: i32) -> (i32, i32) {
    %c0_i32 = arith.constant 0 : i32
    %c0_i32_0 = arith.constant 0 : i32
    %c0_i32_1 = arith.constant 0 : i32
    return %c0_i32, %c0_i32_0 : i32, i32
  }
  func.func @transform_2(%arg0: i32) -> (i32, i32, i32, i32) {
    %c0_i32 = arith.constant 0 : i32
    %c0_i32_0 = arith.constant 0 : i32
    %c0_i32_1 = arith.constant 0 : i32
    %c0_i32_2 = arith.constant 0 : i32
    return %arg0, %c0_i32, %c0_i32_0, %c0_i32_1 : i32, i32, i32, i32
  }
}

</mosaic_0001>

<llo_original>
// kernel: down_conv2d.5
$region0: #{down_conv2d.5}
  #allocation0 [shape = 'u32[]', space=smem, size = 0x4, offset = 0x4, fixed_abs, tag = 'smem constant byte address 0x4 - core index']
  #allocation1 [shape = 'u32[72,128]{1,0:T(1,128)}', space=vmem, size = 0x9000, scoped, tag = 'internal scratch']
  %s0 = inlined_call_operand.vmem [shape: bf16[2,16,16,128], index: 0, kind: input, shape index: {}]
  %s1 = inlined_call_operand.vmem [shape: f32[2,128], index: 1, kind: input, shape index: {}]
  %s2 = inlined_call_operand.vmem [shape: bf16[2,16,16,128], index: 2, kind: output, shape index: {}]
  %s3 = sld [smem:[#allocation0]]
  $region41: #{down_conv2d.5} parent=0
    _
  %s5 = ssub.s32 1, %s3
  %s6 = scalar_select 0, %s5, %s3
  loop: start=0, step=1, limit=4
  $region2: #{down_conv2d.5} parent=0 // loop_pre_header
    _
  $region3: #{down_conv2d.5} parent=0 // loop_header
    %s8 = sphi 0, %s12
    %p9 = scmp.ge.s32.totalorder %s8, 4
    %s18 = sphi 0, %s20
    %s21 = sphi 0, %s18
    %s22 = sphi 0, %s21
    %s38 = sphi 0, %s22
    %s42 = sphi 0, %s42
    %s44 = sphi 0, %s42
    %s45 = sphi 0, %s44
    %s59 = sphi 0, %s45
    %s65 = sphi 0, %s67
    %s68 = sphi 0, %s65
    %s69 = sphi 0, %s68
    %s85 = sphi 0, %s69
  $region4: #{down_conv2d.5} parent=0 // loop_header_branch
    %11 = sbr.rel (%p9) target = $region8
  $region5: #{down_conv2d.5} parent=0 // loop_body
    %s13 = ssub.s32 %s8, 1
    %s14 = ssub.s32 %s8, 2
    %s15 = sadd.s32 %s8, 1
    %s16 = ssub.s32 %s8, %s15
    %p17 = scmp.eq.s32.totalorder %s16, 0
    %s19 = sadd.s32 %s18, 1
    %s20 = scalar_select %p17, %s18, %s19
    %p23 = pneg %p17
    %p24 = scmp.eq.s32.totalorder %s8, 1
    %p25 = por %p23, %p24
    %p26 = scmp.ne.s32.totalorder %s18, %s21
    %p27 = scmp.eq.s32.totalorder %s8, 0
    %p28 = por %p26, %p27
    %p29 = scmp.ne.s32.totalorder %s18, %s21
    %p30 = scmp.eq.s32.totalorder %s13, 1
    %p31 = por %p29, %p30
    %p32 = scmp.ne.s32.totalorder %s21, %s22
    %p33 = scmp.eq.s32.totalorder %s13, 0
    %p34 = por %p32, %p33
    %p35 = scmp.ne.s32.totalorder %s21, %s22
    %p36 = scmp.eq.s32.totalorder %s14, 1
    %p37 = por %p35, %p36
    %p39 = scmp.ne.s32.totalorder %s22, %s38
    %p40 = scmp.eq.s32.totalorder %s14, 0
    %p41 = por %p39, %p40
    %s43 = sadd.s32 %s42, 1
    %p46 = scmp.eq.s32.totalorder %s8, 1
    %p47 = scmp.ne.s32.totalorder %s42, %s44
    %p48 = scmp.eq.s32.totalorder %s8, 0
    %p49 = por %p47, %p48
    %p50 = scmp.ne.s32.totalorder %s42, %s44
    %p51 = scmp.eq.s32.totalorder %s13, 1
    %p52 = por %p50, %p51
    %p53 = scmp.ne.s32.totalorder %s44, %s45
    %p54 = scmp.eq.s32.totalorder %s13, 0
    %p55 = por %p53, %p54
    %p56 = scmp.ne.s32.totalorder %s44, %s45
    %p57 = scmp.eq.s32.totalorder %s14, 1
    %p58 = por %p56, %p57
    %p60 = scmp.ne.s32.totalorder %s45, %s59
    %p61 = scmp.eq.s32.totalorder %s14, 0
    %p62 = por %p60, %p61
    %s63 = ssub.s32 %s8, %s15
    %p64 = scmp.eq.s32.totalorder %s63, 0
    %s66 = sadd.s32 %s65, 1
    %s67 = scalar_select %p64, %s65, %s66
    %p70 = pneg %p64
    %p71 = scmp.eq.s32.totalorder %s8, 1
    %p72 = por %p70, %p71
    %p73 = scmp.ne.s32.totalorder %s65, %s68
    %p74 = scmp.eq.s32.totalorder %s8, 0
    %p75 = por %p73, %p74
    %p76 = scmp.ne.s32.totalorder %s65, %s68
    %p77 = scmp.eq.s32.totalorder %s13, 1
    %p78 = por %p76, %p77
    %p79 = scmp.ne.s32.totalorder %s68, %s69
    %p80 = scmp.eq.s32.totalorder %s13, 0
    %p81 = por %p79, %p80
    %p82 = scmp.ne.s32.totalorder %s68, %s69
    %p83 = scmp.eq.s32.totalorder %s14, 1
    %p84 = por %p82, %p83
    %p86 = scmp.ne.s32.totalorder %s69, %s85
    %p87 = scmp.eq.s32.totalorder %s14, 0
    %p88 = por %p86, %p87
    %p89 = scmp.le.s32.totalorder 1, %s8
    %p90 = scmp.lt.s32.totalorder %s8, 3
    %p91 = pnand %p89, %p90
    %p92 = pneg %p91
    // Predicated region
    $region9: #{down_conv2d.5} parent=5 // pred_check
      _
    $region10: #{down_conv2d.5} parent=5 // pred_check_branch
      %94 = sbr.rel (%p91) target = $region12
    $region11: #{down_conv2d.5} parent=5 // pred_region
      %s95 = ssub.s32 %s8, 1
      // Predicated region
      $region13: #{down_conv2d.5} parent=11 // pred_check
        %p96 = pneg %p55
      $region14: #{down_conv2d.5} parent=11 // pred_check_branch
        %98 = sbr.rel (%p96) target = $region16
      $region15: #{down_conv2d.5} parent=11 // pred_region
        _
      $region16: #{down_conv2d.5} parent=11 // pred_fallthru
        _
    $region12: #{down_conv2d.5} parent=5 // pred_fallthru
      _
    %p99 = scmp.lt.s32.totalorder %s8, 2
    // Predicated region
    $region17: #{down_conv2d.5} parent=5 // pred_check
      %p100 = pneg %p99
    $region18: #{down_conv2d.5} parent=5 // pred_check_branch
      %102 = sbr.rel (%p100) target = $region20
    $region19: #{down_conv2d.5} parent=5 // pred_region
      // Predicated region
      $region21: #{down_conv2d.5} parent=19 // pred_check
        %p103 = pneg %p28
      $region22: #{down_conv2d.5} parent=19 // pred_check_branch
        %105 = sbr.rel (%p103) target = $region24
      $region23: #{down_conv2d.5} parent=19 // pred_region
        %p106 = scmp.lt.s32.totalorder %s8, 1
        %s107 = scalar_select %p106, %s8, 1
        %s108 = smul.addr %s107, 32
        %s109 = smul.addr %s108, 4
        %s110 = scalar_lea.vmem %s0, %s109
      $region24: #{down_conv2d.5} parent=19 // pred_fallthru
        _
    $region20: #{down_conv2d.5} parent=5 // pred_fallthru
      _
    %p111 = scmp.le.s32.totalorder 1, %s8
    %p112 = scmp.lt.s32.totalorder %s8, 3
    %p113 = pnand %p111, %p112
    %p114 = pneg %p113
    // Predicated region
    $region25: #{down_conv2d.5} parent=5 // pred_check
      _
    $region26: #{down_conv2d.5} parent=5 // pred_check_branch
      %116 = sbr.rel (%p113) target = $region28
    $region27: #{down_conv2d.5} parent=5 // pred_region
      %s117 = ssub.s32 %s8, 1
      %p118 = scmp.lt.s32.totalorder %s13, 1
      %s119 = scalar_select %p118, %s13, 1
      %s120 = smul.addr %s119, 32
      %s121 = smul.addr %s120, 4
      %s122 = scalar_lea.vmem %s0, %s121
      %p123 = pneg %p34
      %p124 = pneg %p31
      %p125 = pneg %p55
      %p126 = pneg %p52
      %p127 = pneg %p81
      %p128 = pneg %p78
      %p129 = scmp.lt.s32.totalorder %s13, 1
      %s130 = scalar_select %p129, %s13, 1
      %s131 = smul.addr %s130, 32
      %s132 = smul.addr %s131, 4
      %s133 = scalar_lea.vmem %s2, %s132
      %p134 = scmp.lt.s32.totalorder %s13, 1
      %s135 = scalar_select %p134, %s13, 1
      %s136 = smul.addr %s135, 32
      %s137 = smul.addr %s136, 4
      %s138 = scalar_lea.vmem %s0, %s137
      %p139 = scmp.lt.s32.totalorder %s13, 1
      %s140 = scalar_select %p139, %s13, 1
      %s141 = smul.addr %s140, 32
      %s142 = smul.addr %s141, 4
      %s143 = scalar_lea.vmem %s2, %s142
      %v144 = vld [vmem:[%s138] sm:$0xf]
      %v145 = vld [vmem:[%s138 + $0x4] sm:$0xf]
      %v146 = vld [vmem:[%s138 + $0x8] sm:$0xf]
      %v147 = vld [vmem:[%s138 + $0xc] sm:$0xf]
      %v148 = vld [vmem:[%s138 + $0x10] sm:$0xf]
      %v149 = vld [vmem:[%s138 + $0x14] sm:$0xf]
      %v150 = vld [vmem:[%s138 + $0x18] sm:$0xf]
      %v151 = vld [vmem:[%s138 + $0x1c] sm:$0xf]
      %v152 = vld [vmem:[%s138 + $0x20] sm:$0xf]
      %v153 = vld [vmem:[%s138 + $0x24] sm:$0xf]
      %v154 = vld [vmem:[%s138 + $0x28] sm:$0xf]
      %v155 = vld [vmem:[%s138 + $0x2c] sm:$0xf]
      %v156 = vld [vmem:[%s138 + $0x30] sm:$0xf]
      %v157 = vld [vmem:[%s138 + $0x34] sm:$0xf]
      %v158 = vld [vmem:[%s138 + $0x38] sm:$0xf]
      %v159 = vld [vmem:[%s138 + $0x3c] sm:$0xf]
      %v160 = vld [vmem:[%s138 + $0x40] sm:$0xf]
      %v161 = vld [vmem:[%s138 + $0x44] sm:$0xf]
      %v162 = vld [vmem:[%s138 + $0x48] sm:$0xf]
      %v163 = vld [vmem:[%s138 + $0x4c] sm:$0xf]
      %v164 = vld [vmem:[%s138 + $0x50] sm:$0xf]
      %v165 = vld [vmem:[%s138 + $0x54] sm:$0xf]
      %v166 = vld [vmem:[%s138 + $0x58] sm:$0xf]
      %v167 = vld [vmem:[%s138 + $0x5c] sm:$0xf]
      %v168 = vld [vmem:[%s138 + $0x60] sm:$0xf]
      %v169 = vld [vmem:[%s138 + $0x64] sm:$0xf]
      %v170 = vld [vmem:[%s138 + $0x68] sm:$0xf]
      %v171 = vld [vmem:[%s138 + $0x6c] sm:$0xf]
      %v172 = vld [vmem:[%s138 + $0x70] sm:$0xf]
      %v173 = vld [vmem:[%s138 + $0x74] sm:$0xf]
      %v174 = vld [vmem:[%s138 + $0x78] sm:$0xf]
      %v175 = vld [vmem:[%s138 + $0x7c] sm:$0xf]
      %v176 = vunpack.c.l.bf16 %v144
      %v177 = vunpack.c.l.bf16 %v145
      %v178 = vunpack.c.l.bf16 %v146
      %v179 = vunpack.c.l.bf16 %v147
      %v180 = vunpack.c.l.bf16 %v148
      %v181 = vunpack.c.l.bf16 %v149
      %v182 = vunpack.c.l.bf16 %v150
      %v183 = vunpack.c.l.bf16 %v151
      %v184 = vunpack.c.l.bf16 %v152
      %v185 = vunpack.c.l.bf16 %v153
      %v186 = vunpack.c.l.bf16 %v154
      %v187 = vunpack.c.l.bf16 %v155
      %v188 = vunpack.c.l.bf16 %v156
      %v189 = vunpack.c.l.bf16 %v157
      %v190 = vunpack.c.l.bf16 %v158
      %v191 = vunpack.c.l.bf16 %v159
      %v192 = vunpack.c.l.bf16 %v160
      %v193 = vunpack.c.l.bf16 %v161
      %v194 = vunpack.c.l.bf16 %v162
      %v195 = vunpack.c.l.bf16 %v163
      %v196 = vunpack.c.l.bf16 %v164
      %v197 = vunpack.c.l.bf16 %v165
      %v198 = vunpack.c.l.bf16 %v166
      %v199 = vunpack.c.l.bf16 %v167
      %v200 = vunpack.c.l.bf16 %v168
      %v201 = vunpack.c.l.bf16 %v169
      %v202 = vunpack.c.l.bf16 %v170
      %v203 = vunpack.c.l.bf16 %v171
      %v204 = vunpack.c.l.bf16 %v172
      %v205 = vunpack.c.l.bf16 %v173
      %v206 = vunpack.c.l.bf16 %v174
      %v207 = vunpack.c.l.bf16 %v175
      %v208 = vld [vmem:[%s1] sm:$0x1]
      %v209 = vld [vmem:[%s1 + $0x1] sm:$0x1]
      %v210 = vperm.slane %v208, 0
      %v211 = vmul.f32 %v176, %v210
      %v212 = vmul.f32 %v177, %v210
      %v213 = vmul.f32 %v178, %v210
      %v214 = vmul.f32 %v179, %v210
      %v215 = vmul.f32 %v180, %v210
      %v216 = vmul.f32 %v181, %v210
      %v217 = vmul.f32 %v182, %v210
      %v218 = vmul.f32 %v183, %v210
      %v219 = vmul.f32 %v184, %v210
      %v220 = vmul.f32 %v185, %v210
      %v221 = vmul.f32 %v186, %v210
      %v222 = vmul.f32 %v187, %v210
      %v223 = vmul.f32 %v188, %v210
      %v224 = vmul.f32 %v189, %v210
      %v225 = vmul.f32 %v190, %v210
      %v226 = vmul.f32 %v191, %v210
      %v227 = vmul.f32 %v192, %v210
      %v228 = vmul.f32 %v193, %v210
      %v229 = vmul.f32 %v194, %v210
      %v230 = vmul.f32 %v195, %v210
      %v231 = vmul.f32 %v196, %v210
      %v232 = vmul.f32 %v197, %v210
      %v233 = vmul.f32 %v198, %v210
      %v234 = vmul.f32 %v199, %v210
      %v235 = vmul.f32 %v200, %v210
      %v236 = vmul.f32 %v201, %v210
      %v237 = vmul.f32 %v202, %v210
      %v238 = vmul.f32 %v203, %v210
      %v239 = vmul.f32 %v204, %v210
      %v240 = vmul.f32 %v205, %v210
      %v241 = vmul.f32 %v206, %v210
      %v242 = vmul.f32 %v207, %v210
      %v243 = vperm.slane %v209, 0
      %v244 = vadd.f32 %v211, %v243
      %v245 = vadd.f32 %v212, %v243
      %v246 = vadd.f32 %v213, %v243
      %v247 = vadd.f32 %v214, %v243
      %v248 = vadd.f32 %v215, %v243
      %v249 = vadd.f32 %v216, %v243
      %v250 = vadd.f32 %v217, %v243
      %v251 = vadd.f32 %v218, %v243
      %v252 = vadd.f32 %v219, %v243
      %v253 = vadd.f32 %v220, %v243
      %v254 = vadd.f32 %v221, %v243
      %v255 = vadd.f32 %v222, %v243
      %v256 = vadd.f32 %v223, %v243
      %v257 = vadd.f32 %v224, %v243
      %v258 = vadd.f32 %v225, %v243
      %v259 = vadd.f32 %v226, %v243
      %v260 = vadd.f32 %v227, %v243
      %v261 = vadd.f32 %v228, %v243
      %v262 = vadd.f32 %v229, %v243
      %v263 = vadd.f32 %v230, %v243
      %v264 = vadd.f32 %v231, %v243
      %v265 = vadd.f32 %v232, %v243
      %v266 = vadd.f32 %v233, %v243
      %v267 = vadd.f32 %v234, %v243
      %v268 = vadd.f32 %v235, %v243
      %v269 = vadd.f32 %v236, %v243
      %v270 = vadd.f32 %v237, %v243
      %v271 = vadd.f32 %v238, %v243
      %v272 = vadd.f32 %v239, %v243
      %v273 = vadd.f32 %v240, %v243
      %v274 = vadd.f32 %v241, %v243
      %v275 = vadd.f32 %v242, %v243
      %v276 = vmax.f32 %v244, 0.0
      %v277 = vmax.f32 %v245, 0.0
      %v278 = vmax.f32 %v246, 0.0
      %v279 = vmax.f32 %v247, 0.0
      %v280 = vmax.f32 %v248, 0.0
      %v281 = vmax.f32 %v249, 0.0
      %v282 = vmax.f32 %v250, 0.0
      %v283 = vmax.f32 %v251, 0.0
      %v284 = vmax.f32 %v252, 0.0
      %v285 = vmax.f32 %v253, 0.0
      %v286 = vmax.f32 %v254, 0.0
      %v287 = vmax.f32 %v255, 0.0
      %v288 = vmax.f32 %v256, 0.0
      %v289 = vmax.f32 %v257, 0.0
      %v290 = vmax.f32 %v258, 0.0
      %v291 = vmax.f32 %v259, 0.0
      %v292 = vmax.f32 %v260, 0.0
      %v293 = vmax.f32 %v261, 0.0
      %v294 = vmax.f32 %v262, 0.0
      %v295 = vmax.f32 %v263, 0.0
      %v296 = vmax.f32 %v264, 0.0
      %v297 = vmax.f32 %v265, 0.0
      %v298 = vmax.f32 %v266, 0.0
      %v299 = vmax.f32 %v267, 0.0
      %v300 = vmax.f32 %v268, 0.0
      %v301 = vmax.f32 %v269, 0.0
      %v302 = vmax.f32 %v270, 0.0
      %v303 = vmax.f32 %v271, 0.0
      %v304 = vmax.f32 %v272, 0.0
      %v305 = vmax.f32 %v273, 0.0
      %v306 = vmax.f32 %v274, 0.0
      %v307 = vmax.f32 %v275, 0.0
      %v308 = vpack.c.bf16 %v276, %v276
      %v309 = vpack.c.bf16 %v277, %v277
      %v310 = vpack.c.bf16 %v278, %v278
      %v311 = vpack.c.bf16 %v279, %v279
      %v312 = vpack.c.bf16 %v280, %v280
      %v313 = vpack.c.bf16 %v281, %v281
      %v314 = vpack.c.bf16 %v282, %v282
      %v315 = vpack.c.bf16 %v283, %v283
      %v316 = vpack.c.bf16 %v284, %v284
      %v317 = vpack.c.bf16 %v285, %v285
      %v318 = vpack.c.bf16 %v286, %v286
      %v319 = vpack.c.bf16 %v287, %v287
      %v320 = vpack.c.bf16 %v288, %v288
      %v321 = vpack.c.bf16 %v289, %v289
      %v322 = vpack.c.bf16 %v290, %v290
      %v323 = vpack.c.bf16 %v291, %v291
      %v324 = vpack.c.bf16 %v292, %v292
      %v325 = vpack.c.bf16 %v293, %v293
      %v326 = vpack.c.bf16 %v294, %v294
      %v327 = vpack.c.bf16 %v295, %v295
      %v328 = vpack.c.bf16 %v296, %v296
      %v329 = vpack.c.bf16 %v297, %v297
      %v330 = vpack.c.bf16 %v298, %v298
      %v331 = vpack.c.bf16 %v299, %v299
      %v332 = vpack.c.bf16 %v300, %v300
      %v333 = vpack.c.bf16 %v301, %v301
      %v334 = vpack.c.bf16 %v302, %v302
      %v335 = vpack.c.bf16 %v303, %v303
      %v336 = vpack.c.bf16 %v304, %v304
      %v337 = vpack.c.bf16 %v305, %v305
      %v338 = vpack.c.bf16 %v306, %v306
      %v339 = vpack.c.bf16 %v307, %v307
      %340 = vst [vmem:[%s143] sm:$0xf] %v308
      %341 = vst [vmem:[%s143 + $0x4] sm:$0xf] %v309
      %342 = vst [vmem:[%s143 + $0x8] sm:$0xf] %v310
      %343 = vst [vmem:[%s143 + $0xc] sm:$0xf] %v311
      %344 = vst [vmem:[%s143 + $0x10] sm:$0xf] %v312
      %345 = vst [vmem:[%s143 + $0x14] sm:$0xf] %v313
      %346 = vst [vmem:[%s143 + $0x18] sm:$0xf] %v314
      %347 = vst [vmem:[%s143 + $0x1c] sm:$0xf] %v315
      %348 = vst [vmem:[%s143 + $0x20] sm:$0xf] %v316
      %349 = vst [vmem:[%s143 + $0x24] sm:$0xf] %v317
      %350 = vst [vmem:[%s143 + $0x28] sm:$0xf] %v318
      %351 = vst [vmem:[%s143 + $0x2c] sm:$0xf] %v319
      %352 = vst [vmem:[%s143 + $0x30] sm:$0xf] %v320
      %353 = vst [vmem:[%s143 + $0x34] sm:$0xf] %v321
      %354 = vst [vmem:[%s143 + $0x38] sm:$0xf] %v322
      %355 = vst [vmem:[%s143 + $0x3c] sm:$0xf] %v323
      %356 = vst [vmem:[%s143 + $0x40] sm:$0xf] %v324
      %357 = vst [vmem:[%s143 + $0x44] sm:$0xf] %v325
      %358 = vst [vmem:[%s143 + $0x48] sm:$0xf] %v326
      %359 = vst [vmem:[%s143 + $0x4c] sm:$0xf] %v327
      %360 = vst [vmem:[%s143 + $0x50] sm:$0xf] %v328
      %361 = vst [vmem:[%s143 + $0x54] sm:$0xf] %v329
      %362 = vst [vmem:[%s143 + $0x58] sm:$0xf] %v330
      %363 = vst [vmem:[%s143 + $0x5c] sm:$0xf] %v331
      %364 = vst [vmem:[%s143 + $0x60] sm:$0xf] %v332
      %365 = vst [vmem:[%s143 + $0x64] sm:$0xf] %v333
      %366 = vst [vmem:[%s143 + $0x68] sm:$0xf] %v334
      %367 = vst [vmem:[%s143 + $0x6c] sm:$0xf] %v335
      %368 = vst [vmem:[%s143 + $0x70] sm:$0xf] %v336
      %369 = vst [vmem:[%s143 + $0x74] sm:$0xf] %v337
      %370 = vst [vmem:[%s143 + $0x78] sm:$0xf] %v338
      %371 = vst [vmem:[%s143 + $0x7c] sm:$0xf] %v339
      %p372 = scmp.lt.s32.totalorder %s13, 1
      %s373 = scalar_select %p372, %s13, 1
      %s374 = smul.addr %s373, 32
      %s375 = smul.addr %s374, 4
      %s376 = scalar_lea.vmem %s2, %s375
      // Predicated region
      $region29: #{down_conv2d.5} parent=27 // pred_check
        %p377 = pneg %p78
      $region30: #{down_conv2d.5} parent=27 // pred_check_branch
        %379 = sbr.rel (%p377) target = $region32
      $region31: #{down_conv2d.5} parent=27 // pred_region
        _
      $region32: #{down_conv2d.5} parent=27 // pred_fallthru
        _
    $region28: #{down_conv2d.5} parent=5 // pred_fallthru
      _
    %p380 = scmp.le.s32.totalorder 2, %s8
    // Predicated region
    $region33: #{down_conv2d.5} parent=5 // pred_check
      %p381 = pneg %p380
    $region34: #{down_conv2d.5} parent=5 // pred_check_branch
      %383 = sbr.rel (%p381) target = $region36
    $region35: #{down_conv2d.5} parent=5 // pred_region
      %s384 = ssub.s32 %s8, 2
      // Predicated region
      $region37: #{down_conv2d.5} parent=35 // pred_check
        %p385 = pneg %p84
      $region38: #{down_conv2d.5} parent=35 // pred_check_branch
        %387 = sbr.rel (%p385) target = $region40
      $region39: #{down_conv2d.5} parent=35 // pred_region
        %p388 = scmp.lt.s32.totalorder %s14, 1
        %s389 = scalar_select %p388, %s14, 1
        %s390 = smul.addr %s389, 32
        %s391 = smul.addr %s390, 4
        %s392 = scalar_lea.vmem %s2, %s391
      $region40: #{down_conv2d.5} parent=35 // pred_fallthru
        _
    $region36: #{down_conv2d.5} parent=5 // pred_fallthru
      _
  $region6: #{down_conv2d.5} parent=0 // loop_footer
    %s12 = sadd.s32 1, %s8
  $region7: #{down_conv2d.5} parent=0 // loop_footer_branch
    %7 = sbr.rel target = $region3
  $region8: #{down_conv2d.5} parent=0 // loop_exit
    _

// kernel: down_conv2d.7
$region0: #{down_conv2d.7}
  #allocation0 [shape = 'u32[]', space=smem, size = 0x4, offset = 0x4, fixed_abs, tag = 'smem constant byte address 0x4 - core index']
  #allocation1 [shape = 'u32[72,128]{1,0:T(1,128)}', space=vmem, size = 0x9000, scoped, tag = 'internal scratch']
  %s0 = inlined_call_operand.vmem [shape: bf16[2,16,8,2,128], index: 0, kind: input, shape index: {}]
  %s1 = inlined_call_operand.vmem [shape: f32[2,128], index: 1, kind: input, shape index: {}]
  %s2 = inlined_call_operand.vmem [shape: f32[2,8,8,128], index: 2, kind: output, shape index: {}]
  %s3 = sld [smem:[#allocation0]]
  $region41: #{down_conv2d.7} parent=0
    _
  %s5 = ssub.s32 1, %s3
  %s6 = scalar_select 0, %s5, %s3
  loop: start=0, step=1, limit=4
  $region2: #{down_conv2d.7} parent=0 // loop_pre_header
    _
  $region3: #{down_conv2d.7} parent=0 // loop_header
    %s8 = sphi 0, %s12
    %p9 = scmp.ge.s32.totalorder %s8, 4
    %s18 = sphi 0, %s20
    %s21 = sphi 0, %s18
    %s22 = sphi 0, %s21
    %s38 = sphi 0, %s22
    %s42 = sphi 0, %s42
    %s44 = sphi 0, %s42
    %s45 = sphi 0, %s44
    %s59 = sphi 0, %s45
    %s65 = sphi 0, %s67
    %s68 = sphi 0, %s65
    %s69 = sphi 0, %s68
    %s85 = sphi 0, %s69
  $region4: #{down_conv2d.7} parent=0 // loop_header_branch
    %11 = sbr.rel (%p9) target = $region8
  $region5: #{down_conv2d.7} parent=0 // loop_body
    %s13 = ssub.s32 %s8, 1
    %s14 = ssub.s32 %s8, 2
    %s15 = sadd.s32 %s8, 1
    %s16 = ssub.s32 %s8, %s15
    %p17 = scmp.eq.s32.totalorder %s16, 0
    %s19 = sadd.s32 %s18, 1
    %s20 = scalar_select %p17, %s18, %s19
    %p23 = pneg %p17
    %p24 = scmp.eq.s32.totalorder %s8, 1
    %p25 = por %p23, %p24
    %p26 = scmp.ne.s32.totalorder %s18, %s21
    %p27 = scmp.eq.s32.totalorder %s8, 0
    %p28 = por %p26, %p27
    %p29 = scmp.ne.s32.totalorder %s18, %s21
    %p30 = scmp.eq.s32.totalorder %s13, 1
    %p31 = por %p29, %p30
    %p32 = scmp.ne.s32.totalorder %s21, %s22
    %p33 = scmp.eq.s32.totalorder %s13, 0
    %p34 = por %p32, %p33
    %p35 = scmp.ne.s32.totalorder %s21, %s22
    %p36 = scmp.eq.s32.totalorder %s14, 1
    %p37 = por %p35, %p36
    %p39 = scmp.ne.s32.totalorder %s22, %s38
    %p40 = scmp.eq.s32.totalorder %s14, 0
    %p41 = por %p39, %p40
    %s43 = sadd.s32 %s42, 1
    %p46 = scmp.eq.s32.totalorder %s8, 1
    %p47 = scmp.ne.s32.totalorder %s42, %s44
    %p48 = scmp.eq.s32.totalorder %s8, 0
    %p49 = por %p47, %p48
    %p50 = scmp.ne.s32.totalorder %s42, %s44
    %p51 = scmp.eq.s32.totalorder %s13, 1
    %p52 = por %p50, %p51
    %p53 = scmp.ne.s32.totalorder %s44, %s45
    %p54 = scmp.eq.s32.totalorder %s13, 0
    %p55 = por %p53, %p54
    %p56 = scmp.ne.s32.totalorder %s44, %s45
    %p57 = scmp.eq.s32.totalorder %s14, 1
    %p58 = por %p56, %p57
    %p60 = scmp.ne.s32.totalorder %s45, %s59
    %p61 = scmp.eq.s32.totalorder %s14, 0
    %p62 = por %p60, %p61
    %s63 = ssub.s32 %s8, %s15
    %p64 = scmp.eq.s32.totalorder %s63, 0
    %s66 = sadd.s32 %s65, 1
    %s67 = scalar_select %p64, %s65, %s66
    %p70 = pneg %p64
    %p71 = scmp.eq.s32.totalorder %s8, 1
    %p72 = por %p70, %p71
    %p73 = scmp.ne.s32.totalorder %s65, %s68
    %p74 = scmp.eq.s32.totalorder %s8, 0
    %p75 = por %p73, %p74
    %p76 = scmp.ne.s32.totalorder %s65, %s68
    %p77 = scmp.eq.s32.totalorder %s13, 1
    %p78 = por %p76, %p77
    %p79 = scmp.ne.s32.totalorder %s68, %s69
    %p80 = scmp.eq.s32.totalorder %s13, 0
    %p81 = por %p79, %p80
    %p82 = scmp.ne.s32.totalorder %s68, %s69
    %p83 = scmp.eq.s32.totalorder %s14, 1
    %p84 = por %p82, %p83
    %p86 = scmp.ne.s32.totalorder %s69, %s85
    %p87 = scmp.eq.s32.totalorder %s14, 0
    %p88 = por %p86, %p87
    %p89 = scmp.le.s32.totalorder 1, %s8
    %p90 = scmp.lt.s32.totalorder %s8, 3
    %p91 = pnand %p89, %p90
    %p92 = pneg %p91
    // Predicated region
    $region9: #{down_conv2d.7} parent=5 // pred_check
      _
    $region10: #{down_conv2d.7} parent=5 // pred_check_branch
      %94 = sbr.rel (%p91) target = $region12
    $region11: #{down_conv2d.7} parent=5 // pred_region
      %s95 = ssub.s32 %s8, 1
      // Predicated region
      $region13: #{down_conv2d.7} parent=11 // pred_check
        %p96 = pneg %p55
      $region14: #{down_conv2d.7} parent=11 // pred_check_branch
        %98 = sbr.rel (%p96) target = $region16
      $region15: #{down_conv2d.7} parent=11 // pred_region
        _
      $region16: #{down_conv2d.7} parent=11 // pred_fallthru
        _
    $region12: #{down_conv2d.7} parent=5 // pred_fallthru
      _
    %p99 = scmp.lt.s32.totalorder %s8, 2
    // Predicated region
    $region17: #{down_conv2d.7} parent=5 // pred_check
      %p100 = pneg %p99
    $region18: #{down_conv2d.7} parent=5 // pred_check_branch
      %102 = sbr.rel (%p100) target = $region20
    $region19: #{down_conv2d.7} parent=5 // pred_region
      // Predicated region
      $region21: #{down_conv2d.7} parent=19 // pred_check
        %p103 = pneg %p28
      $region22: #{down_conv2d.7} parent=19 // pred_check_branch
        %105 = sbr.rel (%p103) target = $region24
      $region23: #{down_conv2d.7} parent=19 // pred_region
        %p106 = scmp.lt.s32.totalorder %s8, 1
        %s107 = scalar_select %p106, %s8, 1
        %s108 = smul.addr %s107, 128
        %s109 = scalar_lea.vmem %s0, %s108
      $region24: #{down_conv2d.7} parent=19 // pred_fallthru
        _
    $region20: #{down_conv2d.7} parent=5 // pred_fallthru
      _
    %p110 = scmp.le.s32.totalorder 1, %s8
    %p111 = scmp.lt.s32.totalorder %s8, 3
    %p112 = pnand %p110, %p111
    %p113 = pneg %p112
    // Predicated region
    $region25: #{down_conv2d.7} parent=5 // pred_check
      _
    $region26: #{down_conv2d.7} parent=5 // pred_check_branch
      %115 = sbr.rel (%p112) target = $region28
    $region27: #{down_conv2d.7} parent=5 // pred_region
      %s116 = ssub.s32 %s8, 1
      %p117 = scmp.lt.s32.totalorder %s13, 1
      %s118 = scalar_select %p117, %s13, 1
      %s119 = smul.addr %s118, 128
      %s120 = scalar_lea.vmem %s0, %s119
      %p121 = pneg %p34
      %p122 = pneg %p31
      %p123 = pneg %p55
      %p124 = pneg %p52
      %p125 = pneg %p81
      %p126 = pneg %p78
      %p127 = scmp.lt.s32.totalorder %s13, 1
      %s128 = scalar_select %p127, %s13, 1
      %s129 = smul.addr %s128, 8
      %s130 = smul.addr %s129, 8
      %s131 = scalar_lea.vmem %s2, %s130
      %p132 = scmp.lt.s32.totalorder %s13, 1
      %s133 = scalar_select %p132, %s13, 1
      %s134 = smul.addr %s133, 128
      %s135 = scalar_lea.vmem %s0, %s134
      %p136 = scmp.lt.s32.totalorder %s13, 1
      %s137 = scalar_select %p136, %s13, 1
      %s138 = smul.addr %s137, 8
      %s139 = smul.addr %s138, 8
      %s140 = scalar_lea.vmem %s2, %s139
      %v141 = vld [vmem:[%s1] sm:$0x1]
      %v142 = vld [vmem:[%s1 + $0x1] sm:$0x1]
      %v143 = vld [vmem:[%s135] sm:$0x1]
      %v144 = vld [vmem:[%s135 + $0x1] sm:$0x1]
      %v145 = vld [vmem:[%s135 + $0x2] sm:$0x1]
      %v146 = vld [vmem:[%s135 + $0x3] sm:$0x1]
      %v147 = vld [vmem:[%s135 + $0x4] sm:$0x1]
      %v148 = vld [vmem:[%s135 + $0x5] sm:$0x1]
      %v149 = vld [vmem:[%s135 + $0x6] sm:$0x1]
      %v150 = vld [vmem:[%s135 + $0x7] sm:$0x1]
      %v151 = vld [vmem:[%s135 + $0x8] sm:$0x1]
      %v152 = vld [vmem:[%s135 + $0x9] sm:$0x1]
      %v153 = vld [vmem:[%s135 + $0xa] sm:$0x1]
      %v154 = vld [vmem:[%s135 + $0xb] sm:$0x1]
      %v155 = vld [vmem:[%s135 + $0xc] sm:$0x1]
      %v156 = vld [vmem:[%s135 + $0xd] sm:$0x1]
      %v157 = vld [vmem:[%s135 + $0xe] sm:$0x1]
      %v158 = vld [vmem:[%s135 + $0xf] sm:$0x1]
      %v159 = vld [vmem:[%s135 + $0x10] sm:$0x1]
      %v160 = vld [vmem:[%s135 + $0x11] sm:$0x1]
      %v161 = vld [vmem:[%s135 + $0x12] sm:$0x1]
      %v162 = vld [vmem:[%s135 + $0x13] sm:$0x1]
      %v163 = vld [vmem:[%s135 + $0x14] sm:$0x1]
      %v164 = vld [vmem:[%s135 + $0x15] sm:$0x1]
      %v165 = vld [vmem:[%s135 + $0x16] sm:$0x1]
      %v166 = vld [vmem:[%s135 + $0x17] sm:$0x1]
      %v167 = vld [vmem:[%s135 + $0x18] sm:$0x1]
      %v168 = vld [vmem:[%s135 + $0x19] sm:$0x1]
      %v169 = vld [vmem:[%s135 + $0x1a] sm:$0x1]
      %v170 = vld [vmem:[%s135 + $0x1b] sm:$0x1]
      %v171 = vld [vmem:[%s135 + $0x1c] sm:$0x1]
      %v172 = vld [vmem:[%s135 + $0x1d] sm:$0x1]
      %v173 = vld [vmem:[%s135 + $0x1e] sm:$0x1]
      %v174 = vld [vmem:[%s135 + $0x1f] sm:$0x1]
      %v175 = vld [vmem:[%s135 + $0x20] sm:$0x1]
      %v176 = vld [vmem:[%s135 + $0x21] sm:$0x1]
      %v177 = vld [vmem:[%s135 + $0x22] sm:$0x1]
      %v178 = vld [vmem:[%s135 + $0x23] sm:$0x1]
      %v179 = vld [vmem:[%s135 + $0x24] sm:$0x1]
      %v180 = vld [vmem:[%s135 + $0x25] sm:$0x1]
      %v181 = vld [vmem:[%s135 + $0x26] sm:$0x1]
      %v182 = vld [vmem:[%s135 + $0x27] sm:$0x1]
      %v183 = vld [vmem:[%s135 + $0x28] sm:$0x1]
      %v184 = vld [vmem:[%s135 + $0x29] sm:$0x1]
      %v185 = vld [vmem:[%s135 + $0x2a] sm:$0x1]
      %v186 = vld [vmem:[%s135 + $0x2b] sm:$0x1]
      %v187 = vld [vmem:[%s135 + $0x2c] sm:$0x1]
      %v188 = vld [vmem:[%s135 + $0x2d] sm:$0x1]
      %v189 = vld [vmem:[%s135 + $0x2e] sm:$0x1]
      %v190 = vld [vmem:[%s135 + $0x2f] sm:$0x1]
      %v191 = vld [vmem:[%s135 + $0x30] sm:$0x1]
      %v192 = vld [vmem:[%s135 + $0x31] sm:$0x1]
      %v193 = vld [vmem:[%s135 + $0x32] sm:$0x1]
      %v194 = vld [vmem:[%s135 + $0x33] sm:$0x1]
      %v195 = vld [vmem:[%s135 + $0x34] sm:$0x1]
      %v196 = vld [vmem:[%s135 + $0x35] sm:$0x1]
      %v197 = vld [vmem:[%s135 + $0x36] sm:$0x1]
      %v198 = vld [vmem:[%s135 + $0x37] sm:$0x1]
      %v199 = vld [vmem:[%s135 + $0x38] sm:$0x1]
      %v200 = vld [vmem:[%s135 + $0x39] sm:$0x1]
      %v201 = vld [vmem:[%s135 + $0x3a] sm:$0x1]
      %v202 = vld [vmem:[%s135 + $0x3b] sm:$0x1]
      %v203 = vld [vmem:[%s135 + $0x3c] sm:$0x1]
      %v204 = vld [vmem:[%s135 + $0x3d] sm:$0x1]
      %v205 = vld [vmem:[%s135 + $0x3e] sm:$0x1]
      %v206 = vld [vmem:[%s135 + $0x3f] sm:$0x1]
      %v207 = vld [vmem:[%s135 + $0x40] sm:$0x1]
      %v208 = vld [vmem:[%s135 + $0x41] sm:$0x1]
      %v209 = vld [vmem:[%s135 + $0x42] sm:$0x1]
      %v210 = vld [vmem:[%s135 + $0x43] sm:$0x1]
      %v211 = vld [vmem:[%s135 + $0x44] sm:$0x1]
      %v212 = vld [vmem:[%s135 + $0x45] sm:$0x1]
      %v213 = vld [vmem:[%s135 + $0x46] sm:$0x1]
      %v214 = vld [vmem:[%s135 + $0x47] sm:$0x1]
      %v215 = vld [vmem:[%s135 + $0x48] sm:$0x1]
      %v216 = vld [vmem:[%s135 + $0x49] sm:$0x1]
      %v217 = vld [vmem:[%s135 + $0x4a] sm:$0x1]
      %v218 = vld [vmem:[%s135 + $0x4b] sm:$0x1]
      %v219 = vld [vmem:[%s135 + $0x4c] sm:$0x1]
      %v220 = vld [vmem:[%s135 + $0x4d] sm:$0x1]
      %v221 = vld [vmem:[%s135 + $0x4e] sm:$0x1]
      %v222 = vld [vmem:[%s135 + $0x4f] sm:$0x1]
      %v223 = vld [vmem:[%s135 + $0x50] sm:$0x1]
      %v224 = vld [vmem:[%s135 + $0x51] sm:$0x1]
      %v225 = vld [vmem:[%s135 + $0x52] sm:$0x1]
      %v226 = vld [vmem:[%s135 + $0x53] sm:$0x1]
      %v227 = vld [vmem:[%s135 + $0x54] sm:$0x1]
      %v228 = vld [vmem:[%s135 + $0x55] sm:$0x1]
      %v229 = vld [vmem:[%s135 + $0x56] sm:$0x1]
      %v230 = vld [vmem:[%s135 + $0x57] sm:$0x1]
      %v231 = vld [vmem:[%s135 + $0x58] sm:$0x1]
      %v232 = vld [vmem:[%s135 + $0x59] sm:$0x1]
      %v233 = vld [vmem:[%s135 + $0x5a] sm:$0x1]
      %v234 = vld [vmem:[%s135 + $0x5b] sm:$0x1]
      %v235 = vld [vmem:[%s135 + $0x5c] sm:$0x1]
      %v236 = vld [vmem:[%s135 + $0x5d] sm:$0x1]
      %v237 = vld [vmem:[%s135 + $0x5e] sm:$0x1]
      %v238 = vld [vmem:[%s135 + $0x5f] sm:$0x1]
      %v239 = vld [vmem:[%s135 + $0x60] sm:$0x1]
      %v240 = vld [vmem:[%s135 + $0x61] sm:$0x1]
      %v241 = vld [vmem:[%s135 + $0x62] sm:$0x1]
      %v242 = vld [vmem:[%s135 + $0x63] sm:$0x1]
      %v243 = vld [vmem:[%s135 + $0x64] sm:$0x1]
      %v244 = vld [vmem:[%s135 + $0x65] sm:$0x1]
      %v245 = vld [vmem:[%s135 + $0x66] sm:$0x1]
      %v246 = vld [vmem:[%s135 + $0x67] sm:$0x1]
      %v247 = vld [vmem:[%s135 + $0x68] sm:$0x1]
      %v248 = vld [vmem:[%s135 + $0x69] sm:$0x1]
      %v249 = vld [vmem:[%s135 + $0x6a] sm:$0x1]
      %v250 = vld [vmem:[%s135 + $0x6b] sm:$0x1]
      %v251 = vld [vmem:[%s135 + $0x6c] sm:$0x1]
      %v252 = vld [vmem:[%s135 + $0x6d] sm:$0x1]
      %v253 = vld [vmem:[%s135 + $0x6e] sm:$0x1]
      %v254 = vld [vmem:[%s135 + $0x6f] sm:$0x1]
      %v255 = vld [vmem:[%s135 + $0x70] sm:$0x1]
      %v256 = vld [vmem:[%s135 + $0x71] sm:$0x1]
      %v257 = vld [vmem:[%s135 + $0x72] sm:$0x1]
      %v258 = vld [vmem:[%s135 + $0x73] sm:$0x1]
      %v259 = vld [vmem:[%s135 + $0x74] sm:$0x1]
      %v260 = vld [vmem:[%s135 + $0x75] sm:$0x1]
      %v261 = vld [vmem:[%s135 + $0x76] sm:$0x1]
      %v262 = vld [vmem:[%s135 + $0x77] sm:$0x1]
      %v263 = vld [vmem:[%s135 + $0x78] sm:$0x1]
      %v264 = vld [vmem:[%s135 + $0x79] sm:$0x1]
      %v265 = vld [vmem:[%s135 + $0x7a] sm:$0x1]
      %v266 = vld [vmem:[%s135 + $0x7b] sm:$0x1]
      %v267 = vld [vmem:[%s135 + $0x7c] sm:$0x1]
      %v268 = vld [vmem:[%s135 + $0x7d] sm:$0x1]
      %v269 = vld [vmem:[%s135 + $0x7e] sm:$0x1]
      %v270 = vld [vmem:[%s135 + $0x7f] sm:$0x1]
      %v271 = vunpack.c.l.bf16 %v143
      %v272 = vunpack.c.l.bf16 %v144
      %v273 = vunpack.c.l.bf16 %v145
      %v274 = vunpack.c.l.bf16 %v146
      %v275 = vunpack.c.l.bf16 %v147
      %v276 = vunpack.c.l.bf16 %v148
      %v277 = vunpack.c.l.bf16 %v149
      %v278 = vunpack.c.l.bf16 %v150
      %v279 = vunpack.c.l.bf16 %v151
      %v280 = vunpack.c.l.bf16 %v152
      %v281 = vunpack.c.l.bf16 %v153
      %v282 = vunpack.c.l.bf16 %v154
      %v283 = vunpack.c.l.bf16 %v155
      %v284 = vunpack.c.l.bf16 %v156
      %v285 = vunpack.c.l.bf16 %v157
      %v286 = vunpack.c.l.bf16 %v158
      %v287 = vunpack.c.l.bf16 %v159
      %v288 = vunpack.c.l.bf16 %v160
      %v289 = vunpack.c.l.bf16 %v161
      %v290 = vunpack.c.l.bf16 %v162
      %v291 = vunpack.c.l.bf16 %v163
      %v292 = vunpack.c.l.bf16 %v164
      %v293 = vunpack.c.l.bf16 %v165
      %v294 = vunpack.c.l.bf16 %v166
      %v295 = vunpack.c.l.bf16 %v167
      %v296 = vunpack.c.l.bf16 %v168
      %v297 = vunpack.c.l.bf16 %v169
      %v298 = vunpack.c.l.bf16 %v170
      %v299 = vunpack.c.l.bf16 %v171
      %v300 = vunpack.c.l.bf16 %v172
      %v301 = vunpack.c.l.bf16 %v173
      %v302 = vunpack.c.l.bf16 %v174
      %v303 = vunpack.c.l.bf16 %v175
      %v304 = vunpack.c.l.bf16 %v176
      %v305 = vunpack.c.l.bf16 %v177
      %v306 = vunpack.c.l.bf16 %v178
      %v307 = vunpack.c.l.bf16 %v179
      %v308 = vunpack.c.l.bf16 %v180
      %v309 = vunpack.c.l.bf16 %v181
      %v310 = vunpack.c.l.bf16 %v182
      %v311 = vunpack.c.l.bf16 %v183
      %v312 = vunpack.c.l.bf16 %v184
      %v313 = vunpack.c.l.bf16 %v185
      %v314 = vunpack.c.l.bf16 %v186
      %v315 = vunpack.c.l.bf16 %v187
      %v316 = vunpack.c.l.bf16 %v188
      %v317 = vunpack.c.l.bf16 %v189
      %v318 = vunpack.c.l.bf16 %v190
      %v319 = vunpack.c.l.bf16 %v191
      %v320 = vunpack.c.l.bf16 %v192
      %v321 = vunpack.c.l.bf16 %v193
      %v322 = vunpack.c.l.bf16 %v194
      %v323 = vunpack.c.l.bf16 %v195
      %v324 = vunpack.c.l.bf16 %v196
      %v325 = vunpack.c.l.bf16 %v197
      %v326 = vunpack.c.l.bf16 %v198
      %v327 = vunpack.c.l.bf16 %v199
      %v328 = vunpack.c.l.bf16 %v200
      %v329 = vunpack.c.l.bf16 %v201
      %v330 = vunpack.c.l.bf16 %v202
      %v331 = vunpack.c.l.bf16 %v203
      %v332 = vunpack.c.l.bf16 %v204
      %v333 = vunpack.c.l.bf16 %v205
      %v334 = vunpack.c.l.bf16 %v206
      %v335 = vunpack.c.l.bf16 %v207
      %v336 = vunpack.c.l.bf16 %v208
      %v337 = vunpack.c.l.bf16 %v209
      %v338 = vunpack.c.l.bf16 %v210
      %v339 = vunpack.c.l.bf16 %v211
      %v340 = vunpack.c.l.bf16 %v212
      %v341 = vunpack.c.l.bf16 %v213
      %v342 = vunpack.c.l.bf16 %v214
      %v343 = vunpack.c.l.bf16 %v215
      %v344 = vunpack.c.l.bf16 %v216
      %v345 = vunpack.c.l.bf16 %v217
      %v346 = vunpack.c.l.bf16 %v218
      %v347 = vunpack.c.l.bf16 %v219
      %v348 = vunpack.c.l.bf16 %v220
      %v349 = vunpack.c.l.bf16 %v221
      %v350 = vunpack.c.l.bf16 %v222
      %v351 = vunpack.c.l.bf16 %v223
      %v352 = vunpack.c.l.bf16 %v224
      %v353 = vunpack.c.l.bf16 %v225
      %v354 = vunpack.c.l.bf16 %v226
      %v355 = vunpack.c.l.bf16 %v227
      %v356 = vunpack.c.l.bf16 %v228
      %v357 = vunpack.c.l.bf16 %v229
      %v358 = vunpack.c.l.bf16 %v230
      %v359 = vunpack.c.l.bf16 %v231
      %v360 = vunpack.c.l.bf16 %v232
      %v361 = vunpack.c.l.bf16 %v233
      %v362 = vunpack.c.l.bf16 %v234
      %v363 = vunpack.c.l.bf16 %v235
      %v364 = vunpack.c.l.bf16 %v236
      %v365 = vunpack.c.l.bf16 %v237
      %v366 = vunpack.c.l.bf16 %v238
      %v367 = vunpack.c.l.bf16 %v239
      %v368 = vunpack.c.l.bf16 %v240
      %v369 = vunpack.c.l.bf16 %v241
      %v370 = vunpack.c.l.bf16 %v242
      %v371 = vunpack.c.l.bf16 %v243
      %v372 = vunpack.c.l.bf16 %v244
      %v373 = vunpack.c.l.bf16 %v245
      %v374 = vunpack.c.l.bf16 %v246
      %v375 = vunpack.c.l.bf16 %v247
      %v376 = vunpack.c.l.bf16 %v248
      %v377 = vunpack.c.l.bf16 %v249
      %v378 = vunpack.c.l.bf16 %v250
      %v379 = vunpack.c.l.bf16 %v251
      %v380 = vunpack.c.l.bf16 %v252
      %v381 = vunpack.c.l.bf16 %v253
      %v382 = vunpack.c.l.bf16 %v254
      %v383 = vunpack.c.l.bf16 %v255
      %v384 = vunpack.c.l.bf16 %v256
      %v385 = vunpack.c.l.bf16 %v257
      %v386 = vunpack.c.l.bf16 %v258
      %v387 = vunpack.c.l.bf16 %v259
      %v388 = vunpack.c.l.bf16 %v260
      %v389 = vunpack.c.l.bf16 %v261
      %v390 = vunpack.c.l.bf16 %v262
      %v391 = vunpack.c.l.bf16 %v263
      %v392 = vunpack.c.l.bf16 %v264
      %v393 = vunpack.c.l.bf16 %v265
      %v394 = vunpack.c.l.bf16 %v266
      %v395 = vunpack.c.l.bf16 %v267
      %v396 = vunpack.c.l.bf16 %v268
      %v397 = vunpack.c.l.bf16 %v269
      %v398 = vunpack.c.l.bf16 %v270
      %v399 = vperm.slane %v141, 0
      %v401 = vrot.slane %v399, 2
      %v402 = vrot.slane %v399, 4
      %v403 = vrot.slane %v399, 6
      %v404 = vrot.slane %v399, 1
      %v405 = vrot.slane %v401, 1
      %v406 = vrot.slane %v402, 1
      %v407 = vrot.slane %v403, 1
      %v416 = vmul.f32 %v271, %v399
      %v417 = vmul.f32 %v272, %v404
      %v418 = vmul.f32 %v273, %v401
      %v419 = vmul.f32 %v274, %v405
      %v420 = vmul.f32 %v275, %v402
      %v421 = vmul.f32 %v276, %v406
      %v422 = vmul.f32 %v277, %v403
      %v423 = vmul.f32 %v278, %v407
      %v424 = vmul.f32 %v279, %v399
      %v425 = vmul.f32 %v280, %v404
      %v426 = vmul.f32 %v281, %v401
      %v427 = vmul.f32 %v282, %v405
      %v428 = vmul.f32 %v283, %v402
      %v429 = vmul.f32 %v284, %v406
      %v430 = vmul.f32 %v285, %v403
      %v431 = vmul.f32 %v286, %v407
      %v432 = vmul.f32 %v287, %v399
      %v433 = vmul.f32 %v288, %v404
      %v434 = vmul.f32 %v289, %v401
      %v435 = vmul.f32 %v290, %v405
      %v436 = vmul.f32 %v291, %v402
      %v437 = vmul.f32 %v292, %v406
      %v438 = vmul.f32 %v293, %v403
      %v439 = vmul.f32 %v294, %v407
      %v440 = vmul.f32 %v295, %v399
      %v441 = vmul.f32 %v296, %v404
      %v442 = vmul.f32 %v297, %v401
      %v443 = vmul.f32 %v298, %v405
      %v444 = vmul.f32 %v299, %v402
      %v445 = vmul.f32 %v300, %v406
      %v446 = vmul.f32 %v301, %v403
      %v447 = vmul.f32 %v302, %v407
      %v448 = vmul.f32 %v303, %v399
      %v449 = vmul.f32 %v304, %v404
      %v450 = vmul.f32 %v305, %v401
      %v451 = vmul.f32 %v306, %v405
      %v452 = vmul.f32 %v307, %v402
      %v453 = vmul.f32 %v308, %v406
      %v454 = vmul.f32 %v309, %v403
      %v455 = vmul.f32 %v310, %v407
      %v456 = vmul.f32 %v311, %v399
      %v457 = vmul.f32 %v312, %v404
      %v458 = vmul.f32 %v313, %v401
      %v459 = vmul.f32 %v314, %v405
      %v460 = vmul.f32 %v315, %v402
      %v461 = vmul.f32 %v316, %v406
      %v462 = vmul.f32 %v317, %v403
      %v463 = vmul.f32 %v318, %v407
      %v464 = vmul.f32 %v319, %v399
      %v465 = vmul.f32 %v320, %v404
      %v466 = vmul.f32 %v321, %v401
      %v467 = vmul.f32 %v322, %v405
      %v468 = vmul.f32 %v323, %v402
      %v469 = vmul.f32 %v324, %v406
      %v470 = vmul.f32 %v325, %v403
      %v471 = vmul.f32 %v326, %v407
      %v472 = vmul.f32 %v327, %v399
      %v473 = vmul.f32 %v328, %v404
      %v474 = vmul.f32 %v329, %v401
      %v475 = vmul.f32 %v330, %v405
      %v476 = vmul.f32 %v331, %v402
      %v477 = vmul.f32 %v332, %v406
      %v478 = vmul.f32 %v333, %v403
      %v479 = vmul.f32 %v334, %v407
      %v480 = vmul.f32 %v335, %v399
      %v481 = vmul.f32 %v336, %v404
      %v482 = vmul.f32 %v337, %v401
      %v483 = vmul.f32 %v338, %v405
      %v484 = vmul.f32 %v339, %v402
      %v485 = vmul.f32 %v340, %v406
      %v486 = vmul.f32 %v341, %v403
      %v487 = vmul.f32 %v342, %v407
      %v488 = vmul.f32 %v343, %v399
      %v489 = vmul.f32 %v344, %v404
      %v490 = vmul.f32 %v345, %v401
      %v491 = vmul.f32 %v346, %v405
      %v492 = vmul.f32 %v347, %v402
      %v493 = vmul.f32 %v348, %v406
      %v494 = vmul.f32 %v349, %v403
      %v495 = vmul.f32 %v350, %v407
      %v496 = vmul.f32 %v351, %v399
      %v497 = vmul.f32 %v352, %v404
      %v498 = vmul.f32 %v353, %v401
      %v499 = vmul.f32 %v354, %v405
      %v500 = vmul.f32 %v355, %v402
      %v501 = vmul.f32 %v356, %v406
      %v502 = vmul.f32 %v357, %v403
      %v503 = vmul.f32 %v358, %v407
      %v504 = vmul.f32 %v359, %v399
      %v505 = vmul.f32 %v360, %v404
      %v506 = vmul.f32 %v361, %v401
      %v507 = vmul.f32 %v362, %v405
      %v508 = vmul.f32 %v363, %v402
      %v509 = vmul.f32 %v364, %v406
      %v510 = vmul.f32 %v365, %v403
      %v511 = vmul.f32 %v366, %v407
      %v512 = vmul.f32 %v367, %v399
      %v513 = vmul.f32 %v368, %v404
      %v514 = vmul.f32 %v369, %v401
      %v515 = vmul.f32 %v370, %v405
      %v516 = vmul.f32 %v371, %v402
      %v517 = vmul.f32 %v372, %v406
      %v518 = vmul.f32 %v373, %v403
      %v519 = vmul.f32 %v374, %v407
      %v520 = vmul.f32 %v375, %v399
      %v521 = vmul.f32 %v376, %v404
      %v522 = vmul.f32 %v377, %v401
      %v523 = vmul.f32 %v378, %v405
      %v524 = vmul.f32 %v379, %v402
      %v525 = vmul.f32 %v380, %v406
      %v526 = vmul.f32 %v381, %v403
      %v527 = vmul.f32 %v382, %v407
      %v528 = vmul.f32 %v383, %v399
      %v529 = vmul.f32 %v384, %v404
      %v530 = vmul.f32 %v385, %v401
      %v531 = vmul.f32 %v386, %v405
      %v532 = vmul.f32 %v387, %v402
      %v533 = vmul.f32 %v388, %v406
      %v534 = vmul.f32 %v389, %v403
      %v535 = vmul.f32 %v390, %v407
      %v536 = vmul.f32 %v391, %v399
      %v537 = vmul.f32 %v392, %v404
      %v538 = vmul.f32 %v393, %v401
      %v539 = vmul.f32 %v394, %v405
      %v540 = vmul.f32 %v395, %v402
      %v541 = vmul.f32 %v396, %v406
      %v542 = vmul.f32 %v397, %v403
      %v543 = vmul.f32 %v398, %v407
      %v544 = vperm.slane %v142, 0
      %v546 = vrot.slane %v544, 2
      %v547 = vrot.slane %v544, 4
      %v548 = vrot.slane %v544, 6
      %v549 = vrot.slane %v544, 1
      %v550 = vrot.slane %v546, 1
      %v551 = vrot.slane %v547, 1
      %v552 = vrot.slane %v548, 1
      %v561 = vadd.f32 %v416, %v544
      %v562 = vadd.f32 %v417, %v549
      %v563 = vadd.f32 %v418, %v546
      %v564 = vadd.f32 %v419, %v550
      %v565 = vadd.f32 %v420, %v547
      %v566 = vadd.f32 %v421, %v551
      %v567 = vadd.f32 %v422, %v548
      %v568 = vadd.f32 %v423, %v552
      %v569 = vadd.f32 %v424, %v544
      %v570 = vadd.f32 %v425, %v549
      %v571 = vadd.f32 %v426, %v546
      %v572 = vadd.f32 %v427, %v550
      %v573 = vadd.f32 %v428, %v547
      %v574 = vadd.f32 %v429, %v551
      %v575 = vadd.f32 %v430, %v548
      %v576 = vadd.f32 %v431, %v552
      %v577 = vadd.f32 %v432, %v544
      %v578 = vadd.f32 %v433, %v549
      %v579 = vadd.f32 %v434, %v546
      %v580 = vadd.f32 %v435, %v550
      %v581 = vadd.f32 %v436, %v547
      %v582 = vadd.f32 %v437, %v551
      %v583 = vadd.f32 %v438, %v548
      %v584 = vadd.f32 %v439, %v552
      %v585 = vadd.f32 %v440, %v544
      %v586 = vadd.f32 %v441, %v549
      %v587 = vadd.f32 %v442, %v546
      %v588 = vadd.f32 %v443, %v550
      %v589 = vadd.f32 %v444, %v547
      %v590 = vadd.f32 %v445, %v551
      %v591 = vadd.f32 %v446, %v548
      %v592 = vadd.f32 %v447, %v552
      %v593 = vadd.f32 %v448, %v544
      %v594 = vadd.f32 %v449, %v549
      %v595 = vadd.f32 %v450, %v546
      %v596 = vadd.f32 %v451, %v550
      %v597 = vadd.f32 %v452, %v547
      %v598 = vadd.f32 %v453, %v551
      %v599 = vadd.f32 %v454, %v548
      %v600 = vadd.f32 %v455, %v552
      %v601 = vadd.f32 %v456, %v544
      %v602 = vadd.f32 %v457, %v549
      %v603 = vadd.f32 %v458, %v546
      %v604 = vadd.f32 %v459, %v550
      %v605 = vadd.f32 %v460, %v547
      %v606 = vadd.f32 %v461, %v551
      %v607 = vadd.f32 %v462, %v548
      %v608 = vadd.f32 %v463, %v552
      %v609 = vadd.f32 %v464, %v544
      %v610 = vadd.f32 %v465, %v549
      %v611 = vadd.f32 %v466, %v546
      %v612 = vadd.f32 %v467, %v550
      %v613 = vadd.f32 %v468, %v547
      %v614 = vadd.f32 %v469, %v551
      %v615 = vadd.f32 %v470, %v548
      %v616 = vadd.f32 %v471, %v552
      %v617 = vadd.f32 %v472, %v544
      %v618 = vadd.f32 %v473, %v549
      %v619 = vadd.f32 %v474, %v546
      %v620 = vadd.f32 %v475, %v550
      %v621 = vadd.f32 %v476, %v547
      %v622 = vadd.f32 %v477, %v551
      %v623 = vadd.f32 %v478, %v548
      %v624 = vadd.f32 %v479, %v552
      %v625 = vadd.f32 %v480, %v544
      %v626 = vadd.f32 %v481, %v549
      %v627 = vadd.f32 %v482, %v546
      %v628 = vadd.f32 %v483, %v550
      %v629 = vadd.f32 %v484, %v547
      %v630 = vadd.f32 %v485, %v551
      %v631 = vadd.f32 %v486, %v548
      %v632 = vadd.f32 %v487, %v552
      %v633 = vadd.f32 %v488, %v544
      %v634 = vadd.f32 %v489, %v549
      %v635 = vadd.f32 %v490, %v546
      %v636 = vadd.f32 %v491, %v550
      %v637 = vadd.f32 %v492, %v547
      %v638 = vadd.f32 %v493, %v551
      %v639 = vadd.f32 %v494, %v548
      %v640 = vadd.f32 %v495, %v552
      %v641 = vadd.f32 %v496, %v544
      %v642 = vadd.f32 %v497, %v549
      %v643 = vadd.f32 %v498, %v546
      %v644 = vadd.f32 %v499, %v550
      %v645 = vadd.f32 %v500, %v547
      %v646 = vadd.f32 %v501, %v551
      %v647 = vadd.f32 %v502, %v548
      %v648 = vadd.f32 %v503, %v552
      %v649 = vadd.f32 %v504, %v544
      %v650 = vadd.f32 %v505, %v549
      %v651 = vadd.f32 %v506, %v546
      %v652 = vadd.f32 %v507, %v550
      %v653 = vadd.f32 %v508, %v547
      %v654 = vadd.f32 %v509, %v551
      %v655 = vadd.f32 %v510, %v548
      %v656 = vadd.f32 %v511, %v552
      %v657 = vadd.f32 %v512, %v544
      %v658 = vadd.f32 %v513, %v549
      %v659 = vadd.f32 %v514, %v546
      %v660 = vadd.f32 %v515, %v550
      %v661 = vadd.f32 %v516, %v547
      %v662 = vadd.f32 %v517, %v551
      %v663 = vadd.f32 %v518, %v548
      %v664 = vadd.f32 %v519, %v552
      %v665 = vadd.f32 %v520, %v544
      %v666 = vadd.f32 %v521, %v549
      %v667 = vadd.f32 %v522, %v546
      %v668 = vadd.f32 %v523, %v550
      %v669 = vadd.f32 %v524, %v547
      %v670 = vadd.f32 %v525, %v551
      %v671 = vadd.f32 %v526, %v548
      %v672 = vadd.f32 %v527, %v552
      %v673 = vadd.f32 %v528, %v544
      %v674 = vadd.f32 %v529, %v549
      %v675 = vadd.f32 %v530, %v546
      %v676 = vadd.f32 %v531, %v550
      %v677 = vadd.f32 %v532, %v547
      %v678 = vadd.f32 %v533, %v551
      %v679 = vadd.f32 %v534, %v548
      %v680 = vadd.f32 %v535, %v552
      %v681 = vadd.f32 %v536, %v544
      %v682 = vadd.f32 %v537, %v549
      %v683 = vadd.f32 %v538, %v546
      %v684 = vadd.f32 %v539, %v550
      %v685 = vadd.f32 %v540, %v547
      %v686 = vadd.f32 %v541, %v551
      %v687 = vadd.f32 %v542, %v548
      %v688 = vadd.f32 %v543, %v552
      %v689 = vmax.f32 %v561, 0.0
      %v690 = vmax.f32 %v562, 0.0
      %v691 = vmax.f32 %v563, 0.0
      %v692 = vmax.f32 %v564, 0.0
      %v693 = vmax.f32 %v565, 0.0
      %v694 = vmax.f32 %v566, 0.0
      %v695 = vmax.f32 %v567, 0.0
      %v696 = vmax.f32 %v568, 0.0
      %v697 = vmax.f32 %v569, 0.0
      %v698 = vmax.f32 %v570, 0.0
      %v699 = vmax.f32 %v571, 0.0
      %v700 = vmax.f32 %v572, 0.0
      %v701 = vmax.f32 %v573, 0.0
      %v702 = vmax.f32 %v574, 0.0
      %v703 = vmax.f32 %v575, 0.0
      %v704 = vmax.f32 %v576, 0.0
      %v705 = vmax.f32 %v577, 0.0
      %v706 = vmax.f32 %v578, 0.0
      %v707 = vmax.f32 %v579, 0.0
      %v708 = vmax.f32 %v580, 0.0
      %v709 = vmax.f32 %v581, 0.0
      %v710 = vmax.f32 %v582, 0.0
      %v711 = vmax.f32 %v583, 0.0
      %v712 = vmax.f32 %v584, 0.0
      %v713 = vmax.f32 %v585, 0.0
      %v714 = vmax.f32 %v586, 0.0
      %v715 = vmax.f32 %v587, 0.0
      %v716 = vmax.f32 %v588, 0.0
      %v717 = vmax.f32 %v589, 0.0
      %v718 = vmax.f32 %v590, 0.0
      %v719 = vmax.f32 %v591, 0.0
      %v720 = vmax.f32 %v592, 0.0
      %v721 = vmax.f32 %v593, 0.0
      %v722 = vmax.f32 %v594, 0.0
      %v723 = vmax.f32 %v595, 0.0
      %v724 = vmax.f32 %v596, 0.0
      %v725 = vmax.f32 %v597, 0.0
      %v726 = vmax.f32 %v598, 0.0
      %v727 = vmax.f32 %v599, 0.0
      %v728 = vmax.f32 %v600, 0.0
      %v729 = vmax.f32 %v601, 0.0
      %v730 = vmax.f32 %v602, 0.0
      %v731 = vmax.f32 %v603, 0.0
      %v732 = vmax.f32 %v604, 0.0
      %v733 = vmax.f32 %v605, 0.0
      %v734 = vmax.f32 %v606, 0.0
      %v735 = vmax.f32 %v607, 0.0
      %v736 = vmax.f32 %v608, 0.0
      %v737 = vmax.f32 %v609, 0.0
      %v738 = vmax.f32 %v610, 0.0
      %v739 = vmax.f32 %v611, 0.0
      %v740 = vmax.f32 %v612, 0.0
      %v741 = vmax.f32 %v613, 0.0
      %v742 = vmax.f32 %v614, 0.0
      %v743 = vmax.f32 %v615, 0.0
      %v744 = vmax.f32 %v616, 0.0
      %v745 = vmax.f32 %v617, 0.0
      %v746 = vmax.f32 %v618, 0.0
      %v747 = vmax.f32 %v619, 0.0
      %v748 = vmax.f32 %v620, 0.0
      %v749 = vmax.f32 %v621, 0.0
      %v750 = vmax.f32 %v622, 0.0
      %v751 = vmax.f32 %v623, 0.0
      %v752 = vmax.f32 %v624, 0.0
      %v753 = vmax.f32 %v625, 0.0
      %v754 = vmax.f32 %v626, 0.0
      %v755 = vmax.f32 %v627, 0.0
      %v756 = vmax.f32 %v628, 0.0
      %v757 = vmax.f32 %v629, 0.0
      %v758 = vmax.f32 %v630, 0.0
      %v759 = vmax.f32 %v631, 0.0
      %v760 = vmax.f32 %v632, 0.0
      %v761 = vmax.f32 %v633, 0.0
      %v762 = vmax.f32 %v634, 0.0
      %v763 = vmax.f32 %v635, 0.0
      %v764 = vmax.f32 %v636, 0.0
      %v765 = vmax.f32 %v637, 0.0
      %v766 = vmax.f32 %v638, 0.0
      %v767 = vmax.f32 %v639, 0.0
      %v768 = vmax.f32 %v640, 0.0
      %v769 = vmax.f32 %v641, 0.0
      %v770 = vmax.f32 %v642, 0.0
      %v771 = vmax.f32 %v643, 0.0
      %v772 = vmax.f32 %v644, 0.0
      %v773 = vmax.f32 %v645, 0.0
      %v774 = vmax.f32 %v646, 0.0
      %v775 = vmax.f32 %v647, 0.0
      %v776 = vmax.f32 %v648, 0.0
      %v777 = vmax.f32 %v649, 0.0
      %v778 = vmax.f32 %v650, 0.0
      %v779 = vmax.f32 %v651, 0.0
      %v780 = vmax.f32 %v652, 0.0
      %v781 = vmax.f32 %v653, 0.0
      %v782 = vmax.f32 %v654, 0.0
      %v783 = vmax.f32 %v655, 0.0
      %v784 = vmax.f32 %v656, 0.0
      %v785 = vmax.f32 %v657, 0.0
      %v786 = vmax.f32 %v658, 0.0
      %v787 = vmax.f32 %v659, 0.0
      %v788 = vmax.f32 %v660, 0.0
      %v789 = vmax.f32 %v661, 0.0
      %v790 = vmax.f32 %v662, 0.0
      %v791 = vmax.f32 %v663, 0.0
      %v792 = vmax.f32 %v664, 0.0
      %v793 = vmax.f32 %v665, 0.0
      %v794 = vmax.f32 %v666, 0.0
      %v795 = vmax.f32 %v667, 0.0
      %v796 = vmax.f32 %v668, 0.0
      %v797 = vmax.f32 %v669, 0.0
      %v798 = vmax.f32 %v670, 0.0
      %v799 = vmax.f32 %v671, 0.0
      %v800 = vmax.f32 %v672, 0.0
      %v801 = vmax.f32 %v673, 0.0
      %v802 = vmax.f32 %v674, 0.0
      %v803 = vmax.f32 %v675, 0.0
      %v804 = vmax.f32 %v676, 0.0
      %v805 = vmax.f32 %v677, 0.0
      %v806 = vmax.f32 %v678, 0.0
      %v807 = vmax.f32 %v679, 0.0
      %v808 = vmax.f32 %v680, 0.0
      %v809 = vmax.f32 %v681, 0.0
      %v810 = vmax.f32 %v682, 0.0
      %v811 = vmax.f32 %v683, 0.0
      %v812 = vmax.f32 %v684, 0.0
      %v813 = vmax.f32 %v685, 0.0
      %v814 = vmax.f32 %v686, 0.0
      %v815 = vmax.f32 %v687, 0.0
      %v816 = vmax.f32 %v688, 0.0
      %v817 = vrot.slane %v399, 7
      %v818 = vrot.slane %v401, 7
      %v819 = vrot.slane %v402, 7
      %v820 = vrot.slane %v403, 7
      %v825 = vmul.f32 %v271, %v817
      %v826 = vmul.f32 %v272, %v399
      %v827 = vmul.f32 %v273, %v818
      %v828 = vmul.f32 %v274, %v401
      %v829 = vmul.f32 %v275, %v819
      %v830 = vmul.f32 %v276, %v402
      %v831 = vmul.f32 %v277, %v820
      %v832 = vmul.f32 %v278, %v403
      %v833 = vmul.f32 %v279, %v817
      %v834 = vmul.f32 %v280, %v399
      %v835 = vmul.f32 %v281, %v818
      %v836 = vmul.f32 %v282, %v401
      %v837 = vmul.f32 %v283, %v819
      %v838 = vmul.f32 %v284, %v402
      %v839 = vmul.f32 %v285, %v820
      %v840 = vmul.f32 %v286, %v403
      %v841 = vmul.f32 %v287, %v817
      %v842 = vmul.f32 %v288, %v399
      %v843 = vmul.f32 %v289, %v818
      %v844 = vmul.f32 %v290, %v401
      %v845 = vmul.f32 %v291, %v819
      %v846 = vmul.f32 %v292, %v402
      %v847 = vmul.f32 %v293, %v820
      %v848 = vmul.f32 %v294, %v403
      %v849 = vmul.f32 %v295, %v817
      %v850 = vmul.f32 %v296, %v399
      %v851 = vmul.f32 %v297, %v818
      %v852 = vmul.f32 %v298, %v401
      %v853 = vmul.f32 %v299, %v819
      %v854 = vmul.f32 %v300, %v402
      %v855 = vmul.f32 %v301, %v820
      %v856 = vmul.f32 %v302, %v403
      %v857 = vmul.f32 %v303, %v817
      %v858 = vmul.f32 %v304, %v399
      %v859 = vmul.f32 %v305, %v818
      %v860 = vmul.f32 %v306, %v401
      %v861 = vmul.f32 %v307, %v819
      %v862 = vmul.f32 %v308, %v402
      %v863 = vmul.f32 %v309, %v820
      %v864 = vmul.f32 %v310, %v403
      %v865 = vmul.f32 %v311, %v817
      %v866 = vmul.f32 %v312, %v399
      %v867 = vmul.f32 %v313, %v818
      %v868 = vmul.f32 %v314, %v401
      %v869 = vmul.f32 %v315, %v819
      %v870 = vmul.f32 %v316, %v402
      %v871 = vmul.f32 %v317, %v820
      %v872 = vmul.f32 %v318, %v403
      %v873 = vmul.f32 %v319, %v817
      %v874 = vmul.f32 %v320, %v399
      %v875 = vmul.f32 %v321, %v818
      %v876 = vmul.f32 %v322, %v401
      %v877 = vmul.f32 %v323, %v819
      %v878 = vmul.f32 %v324, %v402
      %v879 = vmul.f32 %v325, %v820
      %v880 = vmul.f32 %v326, %v403
      %v881 = vmul.f32 %v327, %v817
      %v882 = vmul.f32 %v328, %v399
      %v883 = vmul.f32 %v329, %v818
      %v884 = vmul.f32 %v330, %v401
      %v885 = vmul.f32 %v331, %v819
      %v886 = vmul.f32 %v332, %v402
      %v887 = vmul.f32 %v333, %v820
      %v888 = vmul.f32 %v334, %v403
      %v889 = vmul.f32 %v335, %v817
      %v890 = vmul.f32 %v336, %v399
      %v891 = vmul.f32 %v337, %v818
      %v892 = vmul.f32 %v338, %v401
      %v893 = vmul.f32 %v339, %v819
      %v894 = vmul.f32 %v340, %v402
      %v895 = vmul.f32 %v341, %v820
      %v896 = vmul.f32 %v342, %v403
      %v897 = vmul.f32 %v343, %v817
      %v898 = vmul.f32 %v344, %v399
      %v899 = vmul.f32 %v345, %v818
      %v900 = vmul.f32 %v346, %v401
      %v901 = vmul.f32 %v347, %v819
      %v902 = vmul.f32 %v348, %v402
      %v903 = vmul.f32 %v349, %v820
      %v904 = vmul.f32 %v350, %v403
      %v905 = vmul.f32 %v351, %v817
      %v906 = vmul.f32 %v352, %v399
      %v907 = vmul.f32 %v353, %v818
      %v908 = vmul.f32 %v354, %v401
      %v909 = vmul.f32 %v355, %v819
      %v910 = vmul.f32 %v356, %v402
      %v911 = vmul.f32 %v357, %v820
      %v912 = vmul.f32 %v358, %v403
      %v913 = vmul.f32 %v359, %v817
      %v914 = vmul.f32 %v360, %v399
      %v915 = vmul.f32 %v361, %v818
      %v916 = vmul.f32 %v362, %v401
      %v917 = vmul.f32 %v363, %v819
      %v918 = vmul.f32 %v364, %v402
      %v919 = vmul.f32 %v365, %v820
      %v920 = vmul.f32 %v366, %v403
      %v921 = vmul.f32 %v367, %v817
      %v922 = vmul.f32 %v368, %v399
      %v923 = vmul.f32 %v369, %v818
      %v924 = vmul.f32 %v370, %v401
      %v925 = vmul.f32 %v371, %v819
      %v926 = vmul.f32 %v372, %v402
      %v927 = vmul.f32 %v373, %v820
      %v928 = vmul.f32 %v374, %v403
      %v929 = vmul.f32 %v375, %v817
      %v930 = vmul.f32 %v376, %v399
      %v931 = vmul.f32 %v377, %v818
      %v932 = vmul.f32 %v378, %v401
      %v933 = vmul.f32 %v379, %v819
      %v934 = vmul.f32 %v380, %v402
      %v935 = vmul.f32 %v381, %v820
      %v936 = vmul.f32 %v382, %v403
      %v937 = vmul.f32 %v383, %v817
      %v938 = vmul.f32 %v384, %v399
      %v939 = vmul.f32 %v385, %v818
      %v940 = vmul.f32 %v386, %v401
      %v941 = vmul.f32 %v387, %v819
      %v942 = vmul.f32 %v388, %v402
      %v943 = vmul.f32 %v389, %v820
      %v944 = vmul.f32 %v390, %v403
      %v945 = vmul.f32 %v391, %v817
      %v946 = vmul.f32 %v392, %v399
      %v947 = vmul.f32 %v393, %v818
      %v948 = vmul.f32 %v394, %v401
      %v949 = vmul.f32 %v395, %v819
      %v950 = vmul.f32 %v396, %v402
      %v951 = vmul.f32 %v397, %v820
      %v952 = vmul.f32 %v398, %v403
      %v953 = vrot.slane %v544, 7
      %v954 = vrot.slane %v546, 7
      %v955 = vrot.slane %v547, 7
      %v956 = vrot.slane %v548, 7
      %v961 = vadd.f32 %v825, %v953
      %v962 = vadd.f32 %v826, %v544
      %v963 = vadd.f32 %v827, %v954
      %v964 = vadd.f32 %v828, %v546
      %v965 = vadd.f32 %v829, %v955
      %v966 = vadd.f32 %v830, %v547
      %v967 = vadd.f32 %v831, %v956
      %v968 = vadd.f32 %v832, %v548
      %v969 = vadd.f32 %v833, %v953
      %v970 = vadd.f32 %v834, %v544
      %v971 = vadd.f32 %v835, %v954
      %v972 = vadd.f32 %v836, %v546
      %v973 = vadd.f32 %v837, %v955
      %v974 = vadd.f32 %v838, %v547
      %v975 = vadd.f32 %v839, %v956
      %v976 = vadd.f32 %v840, %v548
      %v977 = vadd.f32 %v841, %v953
      %v978 = vadd.f32 %v842, %v544
      %v979 = vadd.f32 %v843, %v954
      %v980 = vadd.f32 %v844, %v546
      %v981 = vadd.f32 %v845, %v955
      %v982 = vadd.f32 %v846, %v547
      %v983 = vadd.f32 %v847, %v956
      %v984 = vadd.f32 %v848, %v548
      %v985 = vadd.f32 %v849, %v953
      %v986 = vadd.f32 %v850, %v544
      %v987 = vadd.f32 %v851, %v954
      %v988 = vadd.f32 %v852, %v546
      %v989 = vadd.f32 %v853, %v955
      %v990 = vadd.f32 %v854, %v547
      %v991 = vadd.f32 %v855, %v956
      %v992 = vadd.f32 %v856, %v548
      %v993 = vadd.f32 %v857, %v953
      %v994 = vadd.f32 %v858, %v544
      %v995 = vadd.f32 %v859, %v954
      %v996 = vadd.f32 %v860, %v546
      %v997 = vadd.f32 %v861, %v955
      %v998 = vadd.f32 %v862, %v547
      %v999 = vadd.f32 %v863, %v956
      %v1000 = vadd.f32 %v864, %v548
      %v1001 = vadd.f32 %v865, %v953
      %v1002 = vadd.f32 %v866, %v544
      %v1003 = vadd.f32 %v867, %v954
      %v1004 = vadd.f32 %v868, %v546
      %v1005 = vadd.f32 %v869, %v955
      %v1006 = vadd.f32 %v870, %v547
      %v1007 = vadd.f32 %v871, %v956
      %v1008 = vadd.f32 %v872, %v548
      %v1009 = vadd.f32 %v873, %v953
      %v1010 = vadd.f32 %v874, %v544
      %v1011 = vadd.f32 %v875, %v954
      %v1012 = vadd.f32 %v876, %v546
      %v1013 = vadd.f32 %v877, %v955
      %v1014 = vadd.f32 %v878, %v547
      %v1015 = vadd.f32 %v879, %v956
      %v1016 = vadd.f32 %v880, %v548
      %v1017 = vadd.f32 %v881, %v953
      %v1018 = vadd.f32 %v882, %v544
      %v1019 = vadd.f32 %v883, %v954
      %v1020 = vadd.f32 %v884, %v546
      %v1021 = vadd.f32 %v885, %v955
      %v1022 = vadd.f32 %v886, %v547
      %v1023 = vadd.f32 %v887, %v956
      %v1024 = vadd.f32 %v888, %v548
      %v1025 = vadd.f32 %v889, %v953
      %v1026 = vadd.f32 %v890, %v544
      %v1027 = vadd.f32 %v891, %v954
      %v1028 = vadd.f32 %v892, %v546
      %v1029 = vadd.f32 %v893, %v955
      %v1030 = vadd.f32 %v894, %v547
      %v1031 = vadd.f32 %v895, %v956
      %v1032 = vadd.f32 %v896, %v548
      %v1033 = vadd.f32 %v897, %v953
      %v1034 = vadd.f32 %v898, %v544
      %v1035 = vadd.f32 %v899, %v954
      %v1036 = vadd.f32 %v900, %v546
      %v1037 = vadd.f32 %v901, %v955
      %v1038 = vadd.f32 %v902, %v547
      %v1039 = vadd.f32 %v903, %v956
      %v1040 = vadd.f32 %v904, %v548
      %v1041 = vadd.f32 %v905, %v953
      %v1042 = vadd.f32 %v906, %v544
      %v1043 = vadd.f32 %v907, %v954
      %v1044 = vadd.f32 %v908, %v546
      %v1045 = vadd.f32 %v909, %v955
      %v1046 = vadd.f32 %v910, %v547
      %v1047 = vadd.f32 %v911, %v956
      %v1048 = vadd.f32 %v912, %v548
      %v1049 = vadd.f32 %v913, %v953
      %v1050 = vadd.f32 %v914, %v544
      %v1051 = vadd.f32 %v915, %v954
      %v1052 = vadd.f32 %v916, %v546
      %v1053 = vadd.f32 %v917, %v955
      %v1054 = vadd.f32 %v918, %v547
      %v1055 = vadd.f32 %v919, %v956
      %v1056 = vadd.f32 %v920, %v548
      %v1057 = vadd.f32 %v921, %v953
      %v1058 = vadd.f32 %v922, %v544
      %v1059 = vadd.f32 %v923, %v954
      %v1060 = vadd.f32 %v924, %v546
      %v1061 = vadd.f32 %v925, %v955
      %v1062 = vadd.f32 %v926, %v547
      %v1063 = vadd.f32 %v927, %v956
      %v1064 = vadd.f32 %v928, %v548
      %v1065 = vadd.f32 %v929, %v953
      %v1066 = vadd.f32 %v930, %v544
      %v1067 = vadd.f32 %v931, %v954
      %v1068 = vadd.f32 %v932, %v546
      %v1069 = vadd.f32 %v933, %v955
      %v1070 = vadd.f32 %v934, %v547
      %v1071 = vadd.f32 %v935, %v956
      %v1072 = vadd.f32 %v936, %v548
      %v1073 = vadd.f32 %v937, %v953
      %v1074 = vadd.f32 %v938, %v544
      %v1075 = vadd.f32 %v939, %v954
      %v1076 = vadd.f32 %v940, %v546
      %v1077 = vadd.f32 %v941, %v955
      %v1078 = vadd.f32 %v942, %v547
      %v1079 = vadd.f32 %v943, %v956
      %v1080 = vadd.f32 %v944, %v548
      %v1081 = vadd.f32 %v945, %v953
      %v1082 = vadd.f32 %v946, %v544
      %v1083 = vadd.f32 %v947, %v954
      %v1084 = vadd.f32 %v948, %v546
      %v1085 = vadd.f32 %v949, %v955
      %v1086 = vadd.f32 %v950, %v547
      %v1087 = vadd.f32 %v951, %v956
      %v1088 = vadd.f32 %v952, %v548
      %v1089 = vmax.f32 %v961, 0.0
      %v1090 = vmax.f32 %v962, 0.0
      %v1091 = vmax.f32 %v963, 0.0
      %v1092 = vmax.f32 %v964, 0.0
      %v1093 = vmax.f32 %v965, 0.0
      %v1094 = vmax.f32 %v966, 0.0
      %v1095 = vmax.f32 %v967, 0.0
      %v1096 = vmax.f32 %v968, 0.0
      %v1097 = vmax.f32 %v969, 0.0
      %v1098 = vmax.f32 %v970, 0.0
      %v1099 = vmax.f32 %v971, 0.0
      %v1100 = vmax.f32 %v972, 0.0
      %v1101 = vmax.f32 %v973, 0.0
      %v1102 = vmax.f32 %v974, 0.0
      %v1103 = vmax.f32 %v975, 0.0
      %v1104 = vmax.f32 %v976, 0.0
      %v1105 = vmax.f32 %v977, 0.0
      %v1106 = vmax.f32 %v978, 0.0
      %v1107 = vmax.f32 %v979, 0.0
      %v1108 = vmax.f32 %v980, 0.0
      %v1109 = vmax.f32 %v981, 0.0
      %v1110 = vmax.f32 %v982, 0.0
      %v1111 = vmax.f32 %v983, 0.0
      %v1112 = vmax.f32 %v984, 0.0
      %v1113 = vmax.f32 %v985, 0.0
      %v1114 = vmax.f32 %v986, 0.0
      %v1115 = vmax.f32 %v987, 0.0
      %v1116 = vmax.f32 %v988, 0.0
      %v1117 = vmax.f32 %v989, 0.0
      %v1118 = vmax.f32 %v990, 0.0
      %v1119 = vmax.f32 %v991, 0.0
      %v1120 = vmax.f32 %v992, 0.0
      %v1121 = vmax.f32 %v993, 0.0
      %v1122 = vmax.f32 %v994, 0.0
      %v1123 = vmax.f32 %v995, 0.0
      %v1124 = vmax.f32 %v996, 0.0
      %v1125 = vmax.f32 %v997, 0.0
      %v1126 = vmax.f32 %v998, 0.0
      %v1127 = vmax.f32 %v999, 0.0
      %v1128 = vmax.f32 %v1000, 0.0
      %v1129 = vmax.f32 %v1001, 0.0
      %v1130 = vmax.f32 %v1002, 0.0
      %v1131 = vmax.f32 %v1003, 0.0
      %v1132 = vmax.f32 %v1004, 0.0
      %v1133 = vmax.f32 %v1005, 0.0
      %v1134 = vmax.f32 %v1006, 0.0
      %v1135 = vmax.f32 %v1007, 0.0
      %v1136 = vmax.f32 %v1008, 0.0
      %v1137 = vmax.f32 %v1009, 0.0
      %v1138 = vmax.f32 %v1010, 0.0
      %v1139 = vmax.f32 %v1011, 0.0
      %v1140 = vmax.f32 %v1012, 0.0
      %v1141 = vmax.f32 %v1013, 0.0
      %v1142 = vmax.f32 %v1014, 0.0
      %v1143 = vmax.f32 %v1015, 0.0
      %v1144 = vmax.f32 %v1016, 0.0
      %v1145 = vmax.f32 %v1017, 0.0
      %v1146 = vmax.f32 %v1018, 0.0
      %v1147 = vmax.f32 %v1019, 0.0
      %v1148 = vmax.f32 %v1020, 0.0
      %v1149 = vmax.f32 %v1021, 0.0
      %v1150 = vmax.f32 %v1022, 0.0
      %v1151 = vmax.f32 %v1023, 0.0
      %v1152 = vmax.f32 %v1024, 0.0
      %v1153 = vmax.f32 %v1025, 0.0
      %v1154 = vmax.f32 %v1026, 0.0
      %v1155 = vmax.f32 %v1027, 0.0
      %v1156 = vmax.f32 %v1028, 0.0
      %v1157 = vmax.f32 %v1029, 0.0
      %v1158 = vmax.f32 %v1030, 0.0
      %v1159 = vmax.f32 %v1031, 0.0
      %v1160 = vmax.f32 %v1032, 0.0
      %v1161 = vmax.f32 %v1033, 0.0
      %v1162 = vmax.f32 %v1034, 0.0
      %v1163 = vmax.f32 %v1035, 0.0
      %v1164 = vmax.f32 %v1036, 0.0
      %v1165 = vmax.f32 %v1037, 0.0
      %v1166 = vmax.f32 %v1038, 0.0
      %v1167 = vmax.f32 %v1039, 0.0
      %v1168 = vmax.f32 %v1040, 0.0
      %v1169 = vmax.f32 %v1041, 0.0
      %v1170 = vmax.f32 %v1042, 0.0
      %v1171 = vmax.f32 %v1043, 0.0
      %v1172 = vmax.f32 %v1044, 0.0
      %v1173 = vmax.f32 %v1045, 0.0
      %v1174 = vmax.f32 %v1046, 0.0
      %v1175 = vmax.f32 %v1047, 0.0
      %v1176 = vmax.f32 %v1048, 0.0
      %v1177 = vmax.f32 %v1049, 0.0
      %v1178 = vmax.f32 %v1050, 0.0
      %v1179 = vmax.f32 %v1051, 0.0
      %v1180 = vmax.f32 %v1052, 0.0
      %v1181 = vmax.f32 %v1053, 0.0
      %v1182 = vmax.f32 %v1054, 0.0
      %v1183 = vmax.f32 %v1055, 0.0
      %v1184 = vmax.f32 %v1056, 0.0
      %v1185 = vmax.f32 %v1057, 0.0
      %v1186 = vmax.f32 %v1058, 0.0
      %v1187 = vmax.f32 %v1059, 0.0
      %v1188 = vmax.f32 %v1060, 0.0
      %v1189 = vmax.f32 %v1061, 0.0
      %v1190 = vmax.f32 %v1062, 0.0
      %v1191 = vmax.f32 %v1063, 0.0
      %v1192 = vmax.f32 %v1064, 0.0
      %v1193 = vmax.f32 %v1065, 0.0
      %v1194 = vmax.f32 %v1066, 0.0
      %v1195 = vmax.f32 %v1067, 0.0
      %v1196 = vmax.f32 %v1068, 0.0
      %v1197 = vmax.f32 %v1069, 0.0
      %v1198 = vmax.f32 %v1070, 0.0
      %v1199 = vmax.f32 %v1071, 0.0
      %v1200 = vmax.f32 %v1072, 0.0
      %v1201 = vmax.f32 %v1073, 0.0
      %v1202 = vmax.f32 %v1074, 0.0
      %v1203 = vmax.f32 %v1075, 0.0
      %v1204 = vmax.f32 %v1076, 0.0
      %v1205 = vmax.f32 %v1077, 0.0
      %v1206 = vmax.f32 %v1078, 0.0
      %v1207 = vmax.f32 %v1079, 0.0
      %v1208 = vmax.f32 %v1080, 0.0
      %v1209 = vmax.f32 %v1081, 0.0
      %v1210 = vmax.f32 %v1082, 0.0
      %v1211 = vmax.f32 %v1083, 0.0
      %v1212 = vmax.f32 %v1084, 0.0
      %v1213 = vmax.f32 %v1085, 0.0
      %v1214 = vmax.f32 %v1086, 0.0
      %v1215 = vmax.f32 %v1087, 0.0
      %v1216 = vmax.f32 %v1088, 0.0
      %v1345 = vrot.slane %v1089, 7
      %v1346 = vrot.slane %v1345, 2
      %v1347 = vrot.slane %v1090, 7
      %v1348 = vrot.slane %v1347, 2
      %v1349 = vrot.slane %v1091, 7
      %v1350 = vrot.slane %v1349, 2
      %v1351 = vrot.slane %v1092, 7
      %v1352 = vrot.slane %v1351, 2
      %v1353 = vrot.slane %v1093, 7
      %v1354 = vrot.slane %v1353, 2
      %v1355 = vrot.slane %v1094, 7
      %v1356 = vrot.slane %v1355, 2
      %v1357 = vrot.slane %v1095, 7
      %v1358 = vrot.slane %v1357, 2
      %v1359 = vrot.slane %v1096, 7
      %v1360 = vrot.slane %v1359, 2
      %v1361 = vrot.slane %v1097, 7
      %v1362 = vrot.slane %v1361, 2
      %v1363 = vrot.slane %v1098, 7
      %v1364 = vrot.slane %v1363, 2
      %v1365 = vrot.slane %v1099, 7
      %v1366 = vrot.slane %v1365, 2
      %v1367 = vrot.slane %v1100, 7
      %v1368 = vrot.slane %v1367, 2
      %v1369 = vrot.slane %v1101, 7
      %v1370 = vrot.slane %v1369, 2
      %v1371 = vrot.slane %v1102, 7
      %v1372 = vrot.slane %v1371, 2
      %v1373 = vrot.slane %v1103, 7
      %v1374 = vrot.slane %v1373, 2
      %v1375 = vrot.slane %v1104, 7
      %v1376 = vrot.slane %v1375, 2
      %v1377 = vrot.slane %v1105, 7
      %v1378 = vrot.slane %v1377, 2
      %v1379 = vrot.slane %v1106, 7
      %v1380 = vrot.slane %v1379, 2
      %v1381 = vrot.slane %v1107, 7
      %v1382 = vrot.slane %v1381, 2
      %v1383 = vrot.slane %v1108, 7
      %v1384 = vrot.slane %v1383, 2
      %v1385 = vrot.slane %v1109, 7
      %v1386 = vrot.slane %v1385, 2
      %v1387 = vrot.slane %v1110, 7
      %v1388 = vrot.slane %v1387, 2
      %v1389 = vrot.slane %v1111, 7
      %v1390 = vrot.slane %v1389, 2
      %v1391 = vrot.slane %v1112, 7
      %v1392 = vrot.slane %v1391, 2
      %v1393 = vrot.slane %v1113, 7
      %v1394 = vrot.slane %v1393, 2
      %v1395 = vrot.slane %v1114, 7
      %v1396 = vrot.slane %v1395, 2
      %v1397 = vrot.slane %v1115, 7
      %v1398 = vrot.slane %v1397, 2
      %v1399 = vrot.slane %v1116, 7
      %v1400 = vrot.slane %v1399, 2
      %v1401 = vrot.slane %v1117, 7
      %v1402 = vrot.slane %v1401, 2
      %v1403 = vrot.slane %v1118, 7
      %v1404 = vrot.slane %v1403, 2
      %v1405 = vrot.slane %v1119, 7
      %v1406 = vrot.slane %v1405, 2
      %v1407 = vrot.slane %v1120, 7
      %v1408 = vrot.slane %v1407, 2
      %v1409 = vrot.slane %v1121, 7
      %v1410 = vrot.slane %v1409, 2
      %v1411 = vrot.slane %v1122, 7
      %v1412 = vrot.slane %v1411, 2
      %v1413 = vrot.slane %v1123, 7
      %v1414 = vrot.slane %v1413, 2
      %v1415 = vrot.slane %v1124, 7
      %v1416 = vrot.slane %v1415, 2
      %v1417 = vrot.slane %v1125, 7
      %v1418 = vrot.slane %v1417, 2
      %v1419 = vrot.slane %v1126, 7
      %v1420 = vrot.slane %v1419, 2
      %v1421 = vrot.slane %v1127, 7
      %v1422 = vrot.slane %v1421, 2
      %v1423 = vrot.slane %v1128, 7
      %v1424 = vrot.slane %v1423, 2
      %v1425 = vrot.slane %v1129, 7
      %v1426 = vrot.slane %v1425, 2
      %v1427 = vrot.slane %v1130, 7
      %v1428 = vrot.slane %v1427, 2
      %v1429 = vrot.slane %v1131, 7
      %v1430 = vrot.slane %v1429, 2
      %v1431 = vrot.slane %v1132, 7
      %v1432 = vrot.slane %v1431, 2
      %v1433 = vrot.slane %v1133, 7
      %v1434 = vrot.slane %v1433, 2
      %v1435 = vrot.slane %v1134, 7
      %v1436 = vrot.slane %v1435, 2
      %v1437 = vrot.slane %v1135, 7
      %v1438 = vrot.slane %v1437, 2
      %v1439 = vrot.slane %v1136, 7
      %v1440 = vrot.slane %v1439, 2
      %v1441 = vrot.slane %v1137, 7
      %v1442 = vrot.slane %v1441, 2
      %v1443 = vrot.slane %v1138, 7
      %v1444 = vrot.slane %v1443, 2
      %v1445 = vrot.slane %v1139, 7
      %v1446 = vrot.slane %v1445, 2
      %v1447 = vrot.slane %v1140, 7
      %v1448 = vrot.slane %v1447, 2
      %v1449 = vrot.slane %v1141, 7
      %v1450 = vrot.slane %v1449, 2
      %v1451 = vrot.slane %v1142, 7
      %v1452 = vrot.slane %v1451, 2
      %v1453 = vrot.slane %v1143, 7
      %v1454 = vrot.slane %v1453, 2
      %v1455 = vrot.slane %v1144, 7
      %v1456 = vrot.slane %v1455, 2
      %v1457 = vrot.slane %v1145, 7
      %v1458 = vrot.slane %v1457, 2
      %v1459 = vrot.slane %v1146, 7
      %v1460 = vrot.slane %v1459, 2
      %v1461 = vrot.slane %v1147, 7
      %v1462 = vrot.slane %v1461, 2
      %v1463 = vrot.slane %v1148, 7
      %v1464 = vrot.slane %v1463, 2
      %v1465 = vrot.slane %v1149, 7
      %v1466 = vrot.slane %v1465, 2
      %v1467 = vrot.slane %v1150, 7
      %v1468 = vrot.slane %v1467, 2
      %v1469 = vrot.slane %v1151, 7
      %v1470 = vrot.slane %v1469, 2
      %v1471 = vrot.slane %v1152, 7
      %v1472 = vrot.slane %v1471, 2
      %v1473 = vrot.slane %v1153, 7
      %v1474 = vrot.slane %v1473, 2
      %v1475 = vrot.slane %v1154, 7
      %v1476 = vrot.slane %v1475, 2
      %v1477 = vrot.slane %v1155, 7
      %v1478 = vrot.slane %v1477, 2
      %v1479 = vrot.slane %v1156, 7
      %v1480 = vrot.slane %v1479, 2
      %v1481 = vrot.slane %v1157, 7
      %v1482 = vrot.slane %v1481, 2
      %v1483 = vrot.slane %v1158, 7
      %v1484 = vrot.slane %v1483, 2
      %v1485 = vrot.slane %v1159, 7
      %v1486 = vrot.slane %v1485, 2
      %v1487 = vrot.slane %v1160, 7
      %v1488 = vrot.slane %v1487, 2
      %v1489 = vrot.slane %v1161, 7
      %v1490 = vrot.slane %v1489, 2
      %v1491 = vrot.slane %v1162, 7
      %v1492 = vrot.slane %v1491, 2
      %v1493 = vrot.slane %v1163, 7
      %v1494 = vrot.slane %v1493, 2
      %v1495 = vrot.slane %v1164, 7
      %v1496 = vrot.slane %v1495, 2
      %v1497 = vrot.slane %v1165, 7
      %v1498 = vrot.slane %v1497, 2
      %v1499 = vrot.slane %v1166, 7
      %v1500 = vrot.slane %v1499, 2
      %v1501 = vrot.slane %v1167, 7
      %v1502 = vrot.slane %v1501, 2
      %v1503 = vrot.slane %v1168, 7
      %v1504 = vrot.slane %v1503, 2
      %v1505 = vrot.slane %v1169, 7
      %v1506 = vrot.slane %v1505, 2
      %v1507 = vrot.slane %v1170, 7
      %v1508 = vrot.slane %v1507, 2
      %v1509 = vrot.slane %v1171, 7
      %v1510 = vrot.slane %v1509, 2
      %v1511 = vrot.slane %v1172, 7
      %v1512 = vrot.slane %v1511, 2
      %v1513 = vrot.slane %v1173, 7
      %v1514 = vrot.slane %v1513, 2
      %v1515 = vrot.slane %v1174, 7
      %v1516 = vrot.slane %v1515, 2
      %v1517 = vrot.slane %v1175, 7
      %v1518 = vrot.slane %v1517, 2
      %v1519 = vrot.slane %v1176, 7
      %v1520 = vrot.slane %v1519, 2
      %v1521 = vrot.slane %v1177, 7
      %v1522 = vrot.slane %v1521, 2
      %v1523 = vrot.slane %v1178, 7
      %v1524 = vrot.slane %v1523, 2
      %v1525 = vrot.slane %v1179, 7
      %v1526 = vrot.slane %v1525, 2
      %v1527 = vrot.slane %v1180, 7
      %v1528 = vrot.slane %v1527, 2
      %v1529 = vrot.slane %v1181, 7
      %v1530 = vrot.slane %v1529, 2
      %v1531 = vrot.slane %v1182, 7
      %v1532 = vrot.slane %v1531, 2
      %v1533 = vrot.slane %v1183, 7
      %v1534 = vrot.slane %v1533, 2
      %v1535 = vrot.slane %v1184, 7
      %v1536 = vrot.slane %v1535, 2
      %v1537 = vrot.slane %v1185, 7
      %v1538 = vrot.slane %v1537, 2
      %v1539 = vrot.slane %v1186, 7
      %v1540 = vrot.slane %v1539, 2
      %v1541 = vrot.slane %v1187, 7
      %v1542 = vrot.slane %v1541, 2
      %v1543 = vrot.slane %v1188, 7
      %v1544 = vrot.slane %v1543, 2
      %v1545 = vrot.slane %v1189, 7
      %v1546 = vrot.slane %v1545, 2
      %v1547 = vrot.slane %v1190, 7
      %v1548 = vrot.slane %v1547, 2
      %v1549 = vrot.slane %v1191, 7
      %v1550 = vrot.slane %v1549, 2
      %v1551 = vrot.slane %v1192, 7
      %v1552 = vrot.slane %v1551, 2
      %v1553 = vrot.slane %v1193, 7
      %v1554 = vrot.slane %v1553, 2
      %v1555 = vrot.slane %v1194, 7
      %v1556 = vrot.slane %v1555, 2
      %v1557 = vrot.slane %v1195, 7
      %v1558 = vrot.slane %v1557, 2
      %v1559 = vrot.slane %v1196, 7
      %v1560 = vrot.slane %v1559, 2
      %v1561 = vrot.slane %v1197, 7
      %v1562 = vrot.slane %v1561, 2
      %v1563 = vrot.slane %v1198, 7
      %v1564 = vrot.slane %v1563, 2
      %v1565 = vrot.slane %v1199, 7
      %v1566 = vrot.slane %v1565, 2
      %v1567 = vrot.slane %v1200, 7
      %v1568 = vrot.slane %v1567, 2
      %v1569 = vrot.slane %v1201, 7
      %v1570 = vrot.slane %v1569, 2
      %v1571 = vrot.slane %v1202, 7
      %v1572 = vrot.slane %v1571, 2
      %v1573 = vrot.slane %v1203, 7
      %v1574 = vrot.slane %v1573, 2
      %v1575 = vrot.slane %v1204, 7
      %v1576 = vrot.slane %v1575, 2
      %v1577 = vrot.slane %v1205, 7
      %v1578 = vrot.slane %v1577, 2
      %v1579 = vrot.slane %v1206, 7
      %v1580 = vrot.slane %v1579, 2
      %v1581 = vrot.slane %v1207, 7
      %v1582 = vrot.slane %v1581, 2
      %v1583 = vrot.slane %v1208, 7
      %v1584 = vrot.slane %v1583, 2
      %v1585 = vrot.slane %v1209, 7
      %v1586 = vrot.slane %v1585, 2
      %v1587 = vrot.slane %v1210, 7
      %v1588 = vrot.slane %v1587, 2
      %v1589 = vrot.slane %v1211, 7
      %v1590 = vrot.slane %v1589, 2
      %v1591 = vrot.slane %v1212, 7
      %v1592 = vrot.slane %v1591, 2
      %v1593 = vrot.slane %v1213, 7
      %v1594 = vrot.slane %v1593, 2
      %v1595 = vrot.slane %v1214, 7
      %v1596 = vrot.slane %v1595, 2
      %v1597 = vrot.slane %v1215, 7
      %v1598 = vrot.slane %v1597, 2
      %v1599 = vrot.slane %v1216, 7
      %v1600 = vrot.slane %v1599, 2
      %v1729 = vmax.f32 %v689, %v1346
      %v1730 = vmax.f32 %v690, %v1348
      %v1731 = vmax.f32 %v691, %v1350
      %v1732 = vmax.f32 %v692, %v1352
      %v1733 = vmax.f32 %v693, %v1354
      %v1734 = vmax.f32 %v694, %v1356
      %v1735 = vmax.f32 %v695, %v1358
      %v1736 = vmax.f32 %v696, %v1360
      %v1737 = vmax.f32 %v697, %v1362
      %v1738 = vmax.f32 %v698, %v1364
      %v1739 = vmax.f32 %v699, %v1366
      %v1740 = vmax.f32 %v700, %v1368
      %v1741 = vmax.f32 %v701, %v1370
      %v1742 = vmax.f32 %v702, %v1372
      %v1743 = vmax.f32 %v703, %v1374
      %v1744 = vmax.f32 %v704, %v1376
      %v1745 = vmax.f32 %v705, %v1378
      %v1746 = vmax.f32 %v706, %v1380
      %v1747 = vmax.f32 %v707, %v1382
      %v1748 = vmax.f32 %v708, %v1384
      %v1749 = vmax.f32 %v709, %v1386
      %v1750 = vmax.f32 %v710, %v1388
      %v1751 = vmax.f32 %v711, %v1390
      %v1752 = vmax.f32 %v712, %v1392
      %v1753 = vmax.f32 %v713, %v1394
      %v1754 = vmax.f32 %v714, %v1396
      %v1755 = vmax.f32 %v715, %v1398
      %v1756 = vmax.f32 %v716, %v1400
      %v1757 = vmax.f32 %v717, %v1402
      %v1758 = vmax.f32 %v718, %v1404
      %v1759 = vmax.f32 %v719, %v1406
      %v1760 = vmax.f32 %v720, %v1408
      %v1761 = vmax.f32 %v721, %v1410
      %v1762 = vmax.f32 %v722, %v1412
      %v1763 = vmax.f32 %v723, %v1414
      %v1764 = vmax.f32 %v724, %v1416
      %v1765 = vmax.f32 %v725, %v1418
      %v1766 = vmax.f32 %v726, %v1420
      %v1767 = vmax.f32 %v727, %v1422
      %v1768 = vmax.f32 %v728, %v1424
      %v1769 = vmax.f32 %v729, %v1426
      %v1770 = vmax.f32 %v730, %v1428
      %v1771 = vmax.f32 %v731, %v1430
      %v1772 = vmax.f32 %v732, %v1432
      %v1773 = vmax.f32 %v733, %v1434
      %v1774 = vmax.f32 %v734, %v1436
      %v1775 = vmax.f32 %v735, %v1438
      %v1776 = vmax.f32 %v736, %v1440
      %v1777 = vmax.f32 %v737, %v1442
      %v1778 = vmax.f32 %v738, %v1444
      %v1779 = vmax.f32 %v739, %v1446
      %v1780 = vmax.f32 %v740, %v1448
      %v1781 = vmax.f32 %v741, %v1450
      %v1782 = vmax.f32 %v742, %v1452
      %v1783 = vmax.f32 %v743, %v1454
      %v1784 = vmax.f32 %v744, %v1456
      %v1785 = vmax.f32 %v745, %v1458
      %v1786 = vmax.f32 %v746, %v1460
      %v1787 = vmax.f32 %v747, %v1462
      %v1788 = vmax.f32 %v748, %v1464
      %v1789 = vmax.f32 %v749, %v1466
      %v1790 = vmax.f32 %v750, %v1468
      %v1791 = vmax.f32 %v751, %v1470
      %v1792 = vmax.f32 %v752, %v1472
      %v1793 = vmax.f32 %v753, %v1474
      %v1794 = vmax.f32 %v754, %v1476
      %v1795 = vmax.f32 %v755, %v1478
      %v1796 = vmax.f32 %v756, %v1480
      %v1797 = vmax.f32 %v757, %v1482
      %v1798 = vmax.f32 %v758, %v1484
      %v1799 = vmax.f32 %v759, %v1486
      %v1800 = vmax.f32 %v760, %v1488
      %v1801 = vmax.f32 %v761, %v1490
      %v1802 = vmax.f32 %v762, %v1492
      %v1803 = vmax.f32 %v763, %v1494
      %v1804 = vmax.f32 %v764, %v1496
      %v1805 = vmax.f32 %v765, %v1498
      %v1806 = vmax.f32 %v766, %v1500
      %v1807 = vmax.f32 %v767, %v1502
      %v1808 = vmax.f32 %v768, %v1504
      %v1809 = vmax.f32 %v769, %v1506
      %v1810 = vmax.f32 %v770, %v1508
      %v1811 = vmax.f32 %v771, %v1510
      %v1812 = vmax.f32 %v772, %v1512
      %v1813 = vmax.f32 %v773, %v1514
      %v1814 = vmax.f32 %v774, %v1516
      %v1815 = vmax.f32 %v775, %v1518
      %v1816 = vmax.f32 %v776, %v1520
      %v1817 = vmax.f32 %v777, %v1522
      %v1818 = vmax.f32 %v778, %v1524
      %v1819 = vmax.f32 %v779, %v1526
      %v1820 = vmax.f32 %v780, %v1528
      %v1821 = vmax.f32 %v781, %v1530
      %v1822 = vmax.f32 %v782, %v1532
      %v1823 = vmax.f32 %v783, %v1534
      %v1824 = vmax.f32 %v784, %v1536
      %v1825 = vmax.f32 %v785, %v1538
      %v1826 = vmax.f32 %v786, %v1540
      %v1827 = vmax.f32 %v787, %v1542
      %v1828 = vmax.f32 %v788, %v1544
      %v1829 = vmax.f32 %v789, %v1546
      %v1830 = vmax.f32 %v790, %v1548
      %v1831 = vmax.f32 %v791, %v1550
      %v1832 = vmax.f32 %v792, %v1552
      %v1833 = vmax.f32 %v793, %v1554
      %v1834 = vmax.f32 %v794, %v1556
      %v1835 = vmax.f32 %v795, %v1558
      %v1836 = vmax.f32 %v796, %v1560
      %v1837 = vmax.f32 %v797, %v1562
      %v1838 = vmax.f32 %v798, %v1564
      %v1839 = vmax.f32 %v799, %v1566
      %v1840 = vmax.f32 %v800, %v1568
      %v1841 = vmax.f32 %v801, %v1570
      %v1842 = vmax.f32 %v802, %v1572
      %v1843 = vmax.f32 %v803, %v1574
      %v1844 = vmax.f32 %v804, %v1576
      %v1845 = vmax.f32 %v805, %v1578
      %v1846 = vmax.f32 %v806, %v1580
      %v1847 = vmax.f32 %v807, %v1582
      %v1848 = vmax.f32 %v808, %v1584
      %v1849 = vmax.f32 %v809, %v1586
      %v1850 = vmax.f32 %v810, %v1588
      %v1851 = vmax.f32 %v811, %v1590
      %v1852 = vmax.f32 %v812, %v1592
      %v1853 = vmax.f32 %v813, %v1594
      %v1854 = vmax.f32 %v814, %v1596
      %v1855 = vmax.f32 %v815, %v1598
      %v1856 = vmax.f32 %v816, %v1600
      %v1857 = vmax.f32 %v1729, %v1737
      %v1858 = vmax.f32 %v1730, %v1738
      %v1859 = vmax.f32 %v1731, %v1739
      %v1860 = vmax.f32 %v1732, %v1740
      %v1861 = vmax.f32 %v1733, %v1741
      %v1862 = vmax.f32 %v1734, %v1742
      %v1863 = vmax.f32 %v1735, %v1743
      %v1864 = vmax.f32 %v1736, %v1744
      %v1865 = vmax.f32 %v1745, %v1753
      %v1866 = vmax.f32 %v1746, %v1754
      %v1867 = vmax.f32 %v1747, %v1755
      %v1868 = vmax.f32 %v1748, %v1756
      %v1869 = vmax.f32 %v1749, %v1757
      %v1870 = vmax.f32 %v1750, %v1758
      %v1871 = vmax.f32 %v1751, %v1759
      %v1872 = vmax.f32 %v1752, %v1760
      %v1873 = vmax.f32 %v1761, %v1769
      %v1874 = vmax.f32 %v1762, %v1770
      %v1875 = vmax.f32 %v1763, %v1771
      %v1876 = vmax.f32 %v1764, %v1772
      %v1877 = vmax.f32 %v1765, %v1773
      %v1878 = vmax.f32 %v1766, %v1774
      %v1879 = vmax.f32 %v1767, %v1775
      %v1880 = vmax.f32 %v1768, %v1776
      %v1881 = vmax.f32 %v1777, %v1785
      %v1882 = vmax.f32 %v1778, %v1786
      %v1883 = vmax.f32 %v1779, %v1787
      %v1884 = vmax.f32 %v1780, %v1788
      %v1885 = vmax.f32 %v1781, %v1789
      %v1886 = vmax.f32 %v1782, %v1790
      %v1887 = vmax.f32 %v1783, %v1791
      %v1888 = vmax.f32 %v1784, %v1792
      %v1889 = vmax.f32 %v1793, %v1801
      %v1890 = vmax.f32 %v1794, %v1802
      %v1891 = vmax.f32 %v1795, %v1803
      %v1892 = vmax.f32 %v1796, %v1804
      %v1893 = vmax.f32 %v1797, %v1805
      %v1894 = vmax.f32 %v1798, %v1806
      %v1895 = vmax.f32 %v1799, %v1807
      %v1896 = vmax.f32 %v1800, %v1808
      %v1897 = vmax.f32 %v1809, %v1817
      %v1898 = vmax.f32 %v1810, %v1818
      %v1899 = vmax.f32 %v1811, %v1819
      %v1900 = vmax.f32 %v1812, %v1820
      %v1901 = vmax.f32 %v1813, %v1821
      %v1902 = vmax.f32 %v1814, %v1822
      %v1903 = vmax.f32 %v1815, %v1823
      %v1904 = vmax.f32 %v1816, %v1824
      %v1905 = vmax.f32 %v1825, %v1833
      %v1906 = vmax.f32 %v1826, %v1834
      %v1907 = vmax.f32 %v1827, %v1835
      %v1908 = vmax.f32 %v1828, %v1836
      %v1909 = vmax.f32 %v1829, %v1837
      %v1910 = vmax.f32 %v1830, %v1838
      %v1911 = vmax.f32 %v1831, %v1839
      %v1912 = vmax.f32 %v1832, %v1840
      %v1913 = vmax.f32 %v1841, %v1849
      %v1914 = vmax.f32 %v1842, %v1850
      %v1915 = vmax.f32 %v1843, %v1851
      %v1916 = vmax.f32 %v1844, %v1852
      %v1917 = vmax.f32 %v1845, %v1853
      %v1918 = vmax.f32 %v1846, %v1854
      %v1919 = vmax.f32 %v1847, %v1855
      %v1920 = vmax.f32 %v1848, %v1856
      %v1985 = vperm.slane %v1857, 0
      %v1986 = vperm.slane %v1858, 0
      %v1987 = vperm.slane %v1859, 0
      %v1988 = vperm.slane %v1860, 0
      %v1989 = vperm.slane %v1861, 0
      %v1990 = vperm.slane %v1862, 0
      %v1991 = vperm.slane %v1863, 0
      %v1992 = vperm.slane %v1864, 0
      %v1993 = vperm.slane %v1865, 0
      %v1994 = vperm.slane %v1866, 0
      %v1995 = vperm.slane %v1867, 0
      %v1996 = vperm.slane %v1868, 0
      %v1997 = vperm.slane %v1869, 0
      %v1998 = vperm.slane %v1870, 0
      %v1999 = vperm.slane %v1871, 0
      %v2000 = vperm.slane %v1872, 0
      %v2001 = vperm.slane %v1873, 0
      %v2002 = vperm.slane %v1874, 0
      %v2003 = vperm.slane %v1875, 0
      %v2004 = vperm.slane %v1876, 0
      %v2005 = vperm.slane %v1877, 0
      %v2006 = vperm.slane %v1878, 0
      %v2007 = vperm.slane %v1879, 0
      %v2008 = vperm.slane %v1880, 0
      %v2009 = vperm.slane %v1881, 0
      %v2010 = vperm.slane %v1882, 0
      %v2011 = vperm.slane %v1883, 0
      %v2012 = vperm.slane %v1884, 0
      %v2013 = vperm.slane %v1885, 0
      %v2014 = vperm.slane %v1886, 0
      %v2015 = vperm.slane %v1887, 0
      %v2016 = vperm.slane %v1888, 0
      %v2017 = vperm.slane %v1889, 0
      %v2018 = vperm.slane %v1890, 0
      %v2019 = vperm.slane %v1891, 0
      %v2020 = vperm.slane %v1892, 0
      %v2021 = vperm.slane %v1893, 0
      %v2022 = vperm.slane %v1894, 0
      %v2023 = vperm.slane %v1895, 0
      %v2024 = vperm.slane %v1896, 0
      %v2025 = vperm.slane %v1897, 0
      %v2026 = vperm.slane %v1898, 0
      %v2027 = vperm.slane %v1899, 0
      %v2028 = vperm.slane %v1900, 0
      %v2029 = vperm.slane %v1901, 0
      %v2030 = vperm.slane %v1902, 0
      %v2031 = vperm.slane %v1903, 0
      %v2032 = vperm.slane %v1904, 0
      %v2033 = vperm.slane %v1905, 0
      %v2034 = vperm.slane %v1906, 0
      %v2035 = vperm.slane %v1907, 0
      %v2036 = vperm.slane %v1908, 0
      %v2037 = vperm.slane %v1909, 0
      %v2038 = vperm.slane %v1910, 0
      %v2039 = vperm.slane %v1911, 0
      %v2040 = vperm.slane %v1912, 0
      %v2041 = vperm.slane %v1913, 0
      %v2042 = vperm.slane %v1914, 0
      %v2043 = vperm.slane %v1915, 0
      %v2044 = vperm.slane %v1916, 0
      %v2045 = vperm.slane %v1917, 0
      %v2046 = vperm.slane %v1918, 0
      %v2047 = vperm.slane %v1919, 0
      %v2048 = vperm.slane %v1920, 0
      %vm2049 = vcmask 1041409
      %v2050 = vsel %vm2049, %v1986, %v1985
      %vm2051 = vcmask 1042434
      %v2052 = vsel %vm2051, %v1987, %v2050
      %vm2053 = vcmask 1043459
      %v2054 = vsel %vm2053, %v1988, %v2052
      %vm2055 = vcmask 1044484
      %v2056 = vsel %vm2055, %v1989, %v2054
      %vm2057 = vcmask 1045509
      %v2058 = vsel %vm2057, %v1990, %v2056
      %vm2059 = vcmask 1046534
      %v2060 = vsel %vm2059, %v1991, %v2058
      %vm2061 = vcmask 1047559
      %v2062 = vsel %vm2061, %v1992, %v2060
      %v2063 = vsel %vm2049, %v1994, %v1993
      %v2064 = vsel %vm2051, %v1995, %v2063
      %v2065 = vsel %vm2053, %v1996, %v2064
      %v2066 = vsel %vm2055, %v1997, %v2065
      %v2067 = vsel %vm2057, %v1998, %v2066
      %v2068 = vsel %vm2059, %v1999, %v2067
      %v2069 = vsel %vm2061, %v2000, %v2068
      %v2070 = vsel %vm2049, %v2002, %v2001
      %v2071 = vsel %vm2051, %v2003, %v2070
      %v2072 = vsel %vm2053, %v2004, %v2071
      %v2073 = vsel %vm2055, %v2005, %v2072
      %v2074 = vsel %vm2057, %v2006, %v2073
      %v2075 = vsel %vm2059, %v2007, %v2074
      %v2076 = vsel %vm2061, %v2008, %v2075
      %v2077 = vsel %vm2049, %v2010, %v2009
      %v2078 = vsel %vm2051, %v2011, %v2077
      %v2079 = vsel %vm2053, %v2012, %v2078
      %v2080 = vsel %vm2055, %v2013, %v2079
      %v2081 = vsel %vm2057, %v2014, %v2080
      %v2082 = vsel %vm2059, %v2015, %v2081
      %v2083 = vsel %vm2061, %v2016, %v2082
      %v2084 = vsel %vm2049, %v2018, %v2017
      %v2085 = vsel %vm2051, %v2019, %v2084
      %v2086 = vsel %vm2053, %v2020, %v2085
      %v2087 = vsel %vm2055, %v2021, %v2086
      %v2088 = vsel %vm2057, %v2022, %v2087
      %v2089 = vsel %vm2059, %v2023, %v2088
      %v2090 = vsel %vm2061, %v2024, %v2089
      %v2091 = vsel %vm2049, %v2026, %v2025
      %v2092 = vsel %vm2051, %v2027, %v2091
      %v2093 = vsel %vm2053, %v2028, %v2092
      %v2094 = vsel %vm2055, %v2029, %v2093
      %v2095 = vsel %vm2057, %v2030, %v2094
      %v2096 = vsel %vm2059, %v2031, %v2095
      %v2097 = vsel %vm2061, %v2032, %v2096
      %v2098 = vsel %vm2049, %v2034, %v2033
      %v2099 = vsel %vm2051, %v2035, %v2098
      %v2100 = vsel %vm2053, %v2036, %v2099
      %v2101 = vsel %vm2055, %v2037, %v2100
      %v2102 = vsel %vm2057, %v2038, %v2101
      %v2103 = vsel %vm2059, %v2039, %v2102
      %v2104 = vsel %vm2061, %v2040, %v2103
      %v2105 = vsel %vm2049, %v2042, %v2041
      %v2106 = vsel %vm2051, %v2043, %v2105
      %v2107 = vsel %vm2053, %v2044, %v2106
      %v2108 = vsel %vm2055, %v2045, %v2107
      %v2109 = vsel %vm2057, %v2046, %v2108
      %v2110 = vsel %vm2059, %v2047, %v2109
      %v2111 = vsel %vm2061, %v2048, %v2110
      %2120 = vst [vmem:[%s140] sm:$0xff] %v2062
      %2121 = vst [vmem:[%s140 + $0x8] sm:$0xff] %v2069
      %2122 = vst [vmem:[%s140 + $0x10] sm:$0xff] %v2076
      %2123 = vst [vmem:[%s140 + $0x18] sm:$0xff] %v2083
      %2124 = vst [vmem:[%s140 + $0x20] sm:$0xff] %v2090
      %2125 = vst [vmem:[%s140 + $0x28] sm:$0xff] %v2097
      %2126 = vst [vmem:[%s140 + $0x30] sm:$0xff] %v2104
      %2127 = vst [vmem:[%s140 + $0x38] sm:$0xff] %v2111
      %p2128 = scmp.lt.s32.totalorder %s13, 1
      %s2129 = scalar_select %p2128, %s13, 1
      %s2130 = smul.addr %s2129, 8
      %s2131 = smul.addr %s2130, 8
      %s2132 = scalar_lea.vmem %s2, %s2131
      // Predicated region
      $region29: #{down_conv2d.7} parent=27 // pred_check
        %p2133 = pneg %p78
      $region30: #{down_conv2d.7} parent=27 // pred_check_branch
        %2135 = sbr.rel (%p2133) target = $region32
      $region31: #{down_conv2d.7} parent=27 // pred_region
        _
      $region32: #{down_conv2d.7} parent=27 // pred_fallthru
        _
    $region28: #{down_conv2d.7} parent=5 // pred_fallthru
      _
    %p2136 = scmp.le.s32.totalorder 2, %s8
    // Predicated region
    $region33: #{down_conv2d.7} parent=5 // pred_check
      %p2137 = pneg %p2136
    $region34: #{down_conv2d.7} parent=5 // pred_check_branch
      %2139 = sbr.rel (%p2137) target = $region36
    $region35: #{down_conv2d.7} parent=5 // pred_region
      %s2140 = ssub.s32 %s8, 2
      // Predicated region
      $region37: #{down_conv2d.7} parent=35 // pred_check
        %p2141 = pneg %p84
      $region38: #{down_conv2d.7} parent=35 // pred_check_branch
        %2143 = sbr.rel (%p2141) target = $region40
      $region39: #{down_conv2d.7} parent=35 // pred_region
        %p2144 = scmp.lt.s32.totalorder %s14, 1
        %s2145 = scalar_select %p2144, %s14, 1
        %s2146 = smul.addr %s2145, 8
        %s2147 = smul.addr %s2146, 8
        %s2148 = scalar_lea.vmem %s2, %s2147
      $region40: #{down_conv2d.7} parent=35 // pred_fallthru
        _
    $region36: #{down_conv2d.7} parent=5 // pred_fallthru
      _
  $region6: #{down_conv2d.7} parent=0 // loop_footer
    %s12 = sadd.s32 1, %s8
  $region7: #{down_conv2d.7} parent=0 // loop_footer_branch
    %7 = sbr.rel target = $region3
  $region8: #{down_conv2d.7} parent=0 // loop_exit
    _

// kernel: down_conv2d.6
$region0: #{down_conv2d.6}
  #allocation0 [shape = 'u32[]', space=smem, size = 0x4, offset = 0x4, fixed_abs, tag = 'smem constant byte address 0x4 - core index']
  #allocation1 [shape = 'u32[72,128]{1,0:T(1,128)}', space=vmem, size = 0x9000, scoped, tag = 'internal scratch']
  %s0 = inlined_call_operand.vmem [shape: bf16[2,18,18,128], index: 0, kind: input, shape index: {}]
  %s1 = inlined_call_operand.vmem [shape: bf16[9,128,128], index: 1, kind: input, shape index: {}]
  %s2 = inlined_call_operand.vmem [shape: bf16[2,256,128], index: 2, kind: output, shape index: {0}]
  %s3 = inlined_call_operand.vmem [shape: f32[2,2,128], index: 3, kind: output, shape index: {1}]
  %4 = xla_tuple %s2, %s3
  %s5 = sld [smem:[#allocation0]]
  $region49: #{down_conv2d.6} parent=0
    _
  %s7 = ssub.s32 1, %s5
  %s8 = scalar_select 0, %s7, %s5
  loop: start=0, step=1, limit=4
  $region2: #{down_conv2d.6} parent=0 // loop_pre_header
    _
  $region3: #{down_conv2d.6} parent=0 // loop_header
    %s10 = sphi 0, %s14
    %p11 = scmp.ge.s32.totalorder %s10, 4
    %s20 = sphi 0, %s22
    %s23 = sphi 0, %s20
    %s24 = sphi 0, %s23
    %s40 = sphi 0, %s24
    %s44 = sphi 0, %s44
    %s46 = sphi 0, %s44
    %s47 = sphi 0, %s46
    %s61 = sphi 0, %s47
    %s67 = sphi 0, %s69
    %s70 = sphi 0, %s67
    %s71 = sphi 0, %s70
    %s87 = sphi 0, %s71
    %s93 = sphi 0, %s95
    %s96 = sphi 0, %s93
    %s97 = sphi 0, %s96
    %s113 = sphi 0, %s97
  $region4: #{down_conv2d.6} parent=0 // loop_header_branch
    %13 = sbr.rel (%p11) target = $region8
  $region5: #{down_conv2d.6} parent=0 // loop_body
    %s15 = ssub.s32 %s10, 1
    %s16 = ssub.s32 %s10, 2
    %s17 = sadd.s32 %s10, 1
    %s18 = ssub.s32 %s10, %s17
    %p19 = scmp.eq.s32.totalorder %s18, 0
    %s21 = sadd.s32 %s20, 1
    %s22 = scalar_select %p19, %s20, %s21
    %p25 = pneg %p19
    %p26 = scmp.eq.s32.totalorder %s10, 1
    %p27 = por %p25, %p26
    %p28 = scmp.ne.s32.totalorder %s20, %s23
    %p29 = scmp.eq.s32.totalorder %s10, 0
    %p30 = por %p28, %p29
    %p31 = scmp.ne.s32.totalorder %s20, %s23
    %p32 = scmp.eq.s32.totalorder %s15, 1
    %p33 = por %p31, %p32
    %p34 = scmp.ne.s32.totalorder %s23, %s24
    %p35 = scmp.eq.s32.totalorder %s15, 0
    %p36 = por %p34, %p35
    %p37 = scmp.ne.s32.totalorder %s23, %s24
    %p38 = scmp.eq.s32.totalorder %s16, 1
    %p39 = por %p37, %p38
    %p41 = scmp.ne.s32.totalorder %s24, %s40
    %p42 = scmp.eq.s32.totalorder %s16, 0
    %p43 = por %p41, %p42
    %s45 = sadd.s32 %s44, 1
    %p48 = scmp.eq.s32.totalorder %s10, 1
    %p49 = scmp.ne.s32.totalorder %s44, %s46
    %p50 = scmp.eq.s32.totalorder %s10, 0
    %p51 = por %p49, %p50
    %p52 = scmp.ne.s32.totalorder %s44, %s46
    %p53 = scmp.eq.s32.totalorder %s15, 1
    %p54 = por %p52, %p53
    %p55 = scmp.ne.s32.totalorder %s46, %s47
    %p56 = scmp.eq.s32.totalorder %s15, 0
    %p57 = por %p55, %p56
    %p58 = scmp.ne.s32.totalorder %s46, %s47
    %p59 = scmp.eq.s32.totalorder %s16, 1
    %p60 = por %p58, %p59
    %p62 = scmp.ne.s32.totalorder %s47, %s61
    %p63 = scmp.eq.s32.totalorder %s16, 0
    %p64 = por %p62, %p63
    %s65 = ssub.s32 %s10, %s17
    %p66 = scmp.eq.s32.totalorder %s65, 0
    %s68 = sadd.s32 %s67, 1
    %s69 = scalar_select %p66, %s67, %s68
    %p72 = pneg %p66
    %p73 = scmp.eq.s32.totalorder %s10, 1
    %p74 = por %p72, %p73
    %p75 = scmp.ne.s32.totalorder %s67, %s70
    %p76 = scmp.eq.s32.totalorder %s10, 0
    %p77 = por %p75, %p76
    %p78 = scmp.ne.s32.totalorder %s67, %s70
    %p79 = scmp.eq.s32.totalorder %s15, 1
    %p80 = por %p78, %p79
    %p81 = scmp.ne.s32.totalorder %s70, %s71
    %p82 = scmp.eq.s32.totalorder %s15, 0
    %p83 = por %p81, %p82
    %p84 = scmp.ne.s32.totalorder %s70, %s71
    %p85 = scmp.eq.s32.totalorder %s16, 1
    %p86 = por %p84, %p85
    %p88 = scmp.ne.s32.totalorder %s71, %s87
    %p89 = scmp.eq.s32.totalorder %s16, 0
    %p90 = por %p88, %p89
    %s91 = ssub.s32 %s10, %s17
    %p92 = scmp.eq.s32.totalorder %s91, 0
    %s94 = sadd.s32 %s93, 1
    %s95 = scalar_select %p92, %s93, %s94
    %p98 = pneg %p92
    %p99 = scmp.eq.s32.totalorder %s10, 1
    %p100 = por %p98, %p99
    %p101 = scmp.ne.s32.totalorder %s93, %s96
    %p102 = scmp.eq.s32.totalorder %s10, 0
    %p103 = por %p101, %p102
    %p104 = scmp.ne.s32.totalorder %s93, %s96
    %p105 = scmp.eq.s32.totalorder %s15, 1
    %p106 = por %p104, %p105
    %p107 = scmp.ne.s32.totalorder %s96, %s97
    %p108 = scmp.eq.s32.totalorder %s15, 0
    %p109 = por %p107, %p108
    %p110 = scmp.ne.s32.totalorder %s96, %s97
    %p111 = scmp.eq.s32.totalorder %s16, 1
    %p112 = por %p110, %p111
    %p114 = scmp.ne.s32.totalorder %s97, %s113
    %p115 = scmp.eq.s32.totalorder %s16, 0
    %p116 = por %p114, %p115
    %p117 = scmp.le.s32.totalorder 1, %s10
    %p118 = scmp.lt.s32.totalorder %s10, 3
    %p119 = pnand %p117, %p118
    %p120 = pneg %p119
    // Predicated region
    $region9: #{down_conv2d.6} parent=5 // pred_check
      _
    $region10: #{down_conv2d.6} parent=5 // pred_check_branch
      %122 = sbr.rel (%p119) target = $region12
    $region11: #{down_conv2d.6} parent=5 // pred_region
      %s123 = ssub.s32 %s10, 1
      // Predicated region
      $region13: #{down_conv2d.6} parent=11 // pred_check
        %p124 = pneg %p57
      $region14: #{down_conv2d.6} parent=11 // pred_check_branch
        %126 = sbr.rel (%p124) target = $region16
      $region15: #{down_conv2d.6} parent=11 // pred_region
        _
      $region16: #{down_conv2d.6} parent=11 // pred_fallthru
        _
    $region12: #{down_conv2d.6} parent=5 // pred_fallthru
      _
    %p127 = scmp.lt.s32.totalorder %s10, 2
    // Predicated region
    $region17: #{down_conv2d.6} parent=5 // pred_check
      %p128 = pneg %p127
    $region18: #{down_conv2d.6} parent=5 // pred_check_branch
      %130 = sbr.rel (%p128) target = $region20
    $region19: #{down_conv2d.6} parent=5 // pred_region
      // Predicated region
      $region21: #{down_conv2d.6} parent=19 // pred_check
        %p131 = pneg %p30
      $region22: #{down_conv2d.6} parent=19 // pred_check_branch
        %133 = sbr.rel (%p131) target = $region24
      $region23: #{down_conv2d.6} parent=19 // pred_region
        %p134 = scmp.lt.s32.totalorder %s10, 1
        %s135 = scalar_select %p134, %s10, 1
        %s136 = smul.addr %s135, 54
        %s137 = smul.addr %s136, 4
        %s138 = scalar_lea.vmem %s0, %s137
      $region24: #{down_conv2d.6} parent=19 // pred_fallthru
        _
    $region20: #{down_conv2d.6} parent=5 // pred_fallthru
      _
    %p139 = scmp.le.s32.totalorder 1, %s10
    %p140 = scmp.lt.s32.totalorder %s10, 3
    %p141 = pnand %p139, %p140
    %p142 = pneg %p141
    // Predicated region
    $region25: #{down_conv2d.6} parent=5 // pred_check
      _
    $region26: #{down_conv2d.6} parent=5 // pred_check_branch
      %144 = sbr.rel (%p141) target = $region28
    $region27: #{down_conv2d.6} parent=5 // pred_region
      %s145 = ssub.s32 %s10, 1
      %p146 = scmp.lt.s32.totalorder %s15, 1
      %s147 = scalar_select %p146, %s15, 1
      %s148 = smul.addr %s147, 54
      %s149 = smul.addr %s148, 4
      %s150 = scalar_lea.vmem %s0, %s149
      %p151 = pneg %p36
      %p152 = pneg %p33
      %p153 = pneg %p57
      %p154 = pneg %p54
      %p155 = pneg %p83
      %p156 = pneg %p80
      %p157 = scmp.lt.s32.totalorder %s15, 1
      %s158 = scalar_select %p157, %s15, 1
      %s159 = smul.addr %s158, 32
      %s160 = smul.addr %s159, 4
      %s161 = scalar_lea.vmem %s2, %s160
      %p162 = pneg %p109
      %p163 = pneg %p106
      %p164 = scmp.lt.s32.totalorder %s15, 1
      %s165 = scalar_select %p164, %s15, 1
      %s166 = smul.addr %s165, 2
      %s167 = scalar_lea.vmem %s3, %s166
      %p168 = scmp.lt.s32.totalorder %s15, 1
      %s169 = scalar_select %p168, %s15, 1
      %s170 = smul.addr %s169, 54
      %s171 = smul.addr %s170, 4
      %s172 = scalar_lea.vmem %s0, %s171
      %p173 = scmp.lt.s32.totalorder %s15, 1
      %s174 = scalar_select %p173, %s15, 1
      %s175 = smul.addr %s174, 32
      %s176 = smul.addr %s175, 4
      %s177 = scalar_lea.vmem %s2, %s176
      %p178 = scmp.lt.s32.totalorder %s15, 1
      %s179 = scalar_select %p178, %s15, 1
      %s180 = smul.addr %s179, 2
      %s181 = scalar_lea.vmem %s3, %s180
      %v182 = vld [vmem:[%s172] sm:$0xf]
      %v183 = vld [vmem:[%s172 + $0x4] sm:$0xf]
      %v184 = vld [vmem:[%s172 + $0xc] sm:$0xf]
      %v185 = vld [vmem:[%s172 + $0x10] sm:$0xf]
      %v186 = vld [vmem:[%s172 + $0x18] sm:$0xf]
      %v187 = vld [vmem:[%s172 + $0x1c] sm:$0xf]
      %v188 = vld [vmem:[%s172 + $0x24] sm:$0xf]
      %v189 = vld [vmem:[%s172 + $0x28] sm:$0xf]
      %v190 = vld [vmem:[%s172 + $0x30] sm:$0xf]
      %v191 = vld [vmem:[%s172 + $0x34] sm:$0xf]
      %v192 = vld [vmem:[%s172 + $0x3c] sm:$0xf]
      %v193 = vld [vmem:[%s172 + $0x40] sm:$0xf]
      %v194 = vld [vmem:[%s172 + $0x48] sm:$0xf]
      %v195 = vld [vmem:[%s172 + $0x4c] sm:$0xf]
      %v196 = vld [vmem:[%s172 + $0x54] sm:$0xf]
      %v197 = vld [vmem:[%s172 + $0x58] sm:$0xf]
      %v198 = vld [vmem:[%s172 + $0x60] sm:$0xf]
      %v199 = vld [vmem:[%s172 + $0x64] sm:$0xf]
      %v200 = vld [vmem:[%s172 + $0x6c] sm:$0xf]
      %v201 = vld [vmem:[%s172 + $0x70] sm:$0xf]
      %v202 = vld [vmem:[%s172 + $0x78] sm:$0xf]
      %v203 = vld [vmem:[%s172 + $0x7c] sm:$0xf]
      %v204 = vld [vmem:[%s172 + $0x84] sm:$0xf]
      %v205 = vld [vmem:[%s172 + $0x88] sm:$0xf]
      %v206 = vld [vmem:[%s172 + $0x90] sm:$0xf]
      %v207 = vld [vmem:[%s172 + $0x94] sm:$0xf]
      %v208 = vld [vmem:[%s172 + $0x9c] sm:$0xf]
      %v209 = vld [vmem:[%s172 + $0xa0] sm:$0xf]
      %v210 = vld [vmem:[%s172 + $0xa8] sm:$0xf]
      %v211 = vld [vmem:[%s172 + $0xac] sm:$0xf]
      %v212 = vld [vmem:[%s172 + $0xb4] sm:$0xf]
      %v213 = vld [vmem:[%s172 + $0xb8] sm:$0xf]
      %v214 = vld [vmem:[%s1] sm:$0xf]
      %v215 = vld [vmem:[%s1 + $0x4] sm:$0xf]
      %v216 = vld [vmem:[%s1 + $0x8] sm:$0xf]
      %v217 = vld [vmem:[%s1 + $0xc] sm:$0xf]
      %v218 = vld [vmem:[%s1 + $0x10] sm:$0xf]
      %v219 = vld [vmem:[%s1 + $0x14] sm:$0xf]
      %v220 = vld [vmem:[%s1 + $0x18] sm:$0xf]
      %v221 = vld [vmem:[%s1 + $0x1c] sm:$0xf]
      %v222 = vld [vmem:[%s1 + $0x20] sm:$0xf]
      %v223 = vld [vmem:[%s1 + $0x24] sm:$0xf]
      %v224 = vld [vmem:[%s1 + $0x28] sm:$0xf]
      %v225 = vld [vmem:[%s1 + $0x2c] sm:$0xf]
      %v226 = vld [vmem:[%s1 + $0x30] sm:$0xf]
      %v227 = vld [vmem:[%s1 + $0x34] sm:$0xf]
      %v228 = vld [vmem:[%s1 + $0x38] sm:$0xf]
      %v229 = vld [vmem:[%s1 + $0x3c] sm:$0xf]
      %v230 = vld [vmem:[%s172 + $0x8] sm:$0x1]
      %v231 = vld [vmem:[%s172 + $0x14] sm:$0x1]
      %v232 = vld [vmem:[%s172 + $0x20] sm:$0x1]
      %v233 = vld [vmem:[%s172 + $0x2c] sm:$0x1]
      %v234 = vld [vmem:[%s172 + $0x38] sm:$0x1]
      %v235 = vld [vmem:[%s172 + $0x44] sm:$0x1]
      %v236 = vld [vmem:[%s172 + $0x50] sm:$0x1]
      %v237 = vld [vmem:[%s172 + $0x5c] sm:$0x1]
      %v238 = vld [vmem:[%s172 + $0x68] sm:$0x1]
      %v239 = vld [vmem:[%s172 + $0x74] sm:$0x1]
      %v240 = vld [vmem:[%s172 + $0x80] sm:$0x1]
      %v241 = vld [vmem:[%s172 + $0x8c] sm:$0x1]
      %v242 = vld [vmem:[%s172 + $0x98] sm:$0x1]
      %v243 = vld [vmem:[%s172 + $0xa4] sm:$0x1]
      %v244 = vld [vmem:[%s172 + $0xb0] sm:$0x1]
      %v245 = vld [vmem:[%s172 + $0xbc] sm:$0x1]
      %vm246 = vsmask.f32 3328
      %vm247 = vsmask.f32 7440
      %vm248 = vmor %vm246, %vm247
      %v250 = vshrl.u32 %v182, 16
      %v252 = vrot.slane %v250, 4
      %v253 = vshll.u32 %v182, 16
      %v255 = vrot.slane %v253, 5
      %v256 = vor.u32 %v252, %v255
      %v257 = vrot.slane %v256, 4
      %v259 = vshll.u32 %v183, 16
      %v261 = vrot.slane %v259, 5
      %v262 = vsel %vm248, %v257, %v261
      %v263 = vshrl.u32 %v183, 16
      %v265 = vrot.slane %v263, 4
      %v266 = vor.u32 %v265, %v261
      %v267 = vrot.slane %v266, 4
      %v269 = vshll.u32 %v230, 16
      %v271 = vrot.slane %v269, 5
      %v272 = vsel %vm248, %v267, %v271
      %v274 = vshrl.u32 %v184, 16
      %v276 = vrot.slane %v274, 4
      %v277 = vshll.u32 %v184, 16
      %v279 = vrot.slane %v277, 5
      %v280 = vor.u32 %v276, %v279
      %v281 = vrot.slane %v280, 4
      %v283 = vshll.u32 %v185, 16
      %v285 = vrot.slane %v283, 5
      %v286 = vsel %vm248, %v281, %v285
      %v287 = vshrl.u32 %v185, 16
      %v289 = vrot.slane %v287, 4
      %v290 = vor.u32 %v289, %v285
      %v291 = vrot.slane %v290, 4
      %v293 = vshll.u32 %v231, 16
      %v295 = vrot.slane %v293, 5
      %v296 = vsel %vm248, %v291, %v295
      %v298 = vshrl.u32 %v186, 16
      %v300 = vrot.slane %v298, 4
      %v301 = vshll.u32 %v186, 16
      %v303 = vrot.slane %v301, 5
      %v304 = vor.u32 %v300, %v303
      %v305 = vrot.slane %v304, 4
      %v307 = vshll.u32 %v187, 16
      %v309 = vrot.slane %v307, 5
      %v310 = vsel %vm248, %v305, %v309
      %v311 = vshrl.u32 %v187, 16
      %v313 = vrot.slane %v311, 4
      %v314 = vor.u32 %v313, %v309
      %v315 = vrot.slane %v314, 4
      %v317 = vshll.u32 %v232, 16
      %v319 = vrot.slane %v317, 5
      %v320 = vsel %vm248, %v315, %v319
      %v322 = vshrl.u32 %v188, 16
      %v324 = vrot.slane %v322, 4
      %v325 = vshll.u32 %v188, 16
      %v327 = vrot.slane %v325, 5
      %v328 = vor.u32 %v324, %v327
      %v329 = vrot.slane %v328, 4
      %v331 = vshll.u32 %v189, 16
      %v333 = vrot.slane %v331, 5
      %v334 = vsel %vm248, %v329, %v333
      %v335 = vshrl.u32 %v189, 16
      %v337 = vrot.slane %v335, 4
      %v338 = vor.u32 %v337, %v333
      %v339 = vrot.slane %v338, 4
      %v341 = vshll.u32 %v233, 16
      %v343 = vrot.slane %v341, 5
      %v344 = vsel %vm248, %v339, %v343
      %v346 = vshrl.u32 %v190, 16
      %v348 = vrot.slane %v346, 4
      %v349 = vshll.u32 %v190, 16
      %v351 = vrot.slane %v349, 5
      %v352 = vor.u32 %v348, %v351
      %v353 = vrot.slane %v352, 4
      %v355 = vshll.u32 %v191, 16
      %v357 = vrot.slane %v355, 5
      %v358 = vsel %vm248, %v353, %v357
      %v359 = vshrl.u32 %v191, 16
      %v361 = vrot.slane %v359, 4
      %v362 = vor.u32 %v361, %v357
      %v363 = vrot.slane %v362, 4
      %v365 = vshll.u32 %v234, 16
      %v367 = vrot.slane %v365, 5
      %v368 = vsel %vm248, %v363, %v367
      %v370 = vshrl.u32 %v192, 16
      %v372 = vrot.slane %v370, 4
      %v373 = vshll.u32 %v192, 16
      %v375 = vrot.slane %v373, 5
      %v376 = vor.u32 %v372, %v375
      %v377 = vrot.slane %v376, 4
      %v379 = vshll.u32 %v193, 16
      %v381 = vrot.slane %v379, 5
      %v382 = vsel %vm248, %v377, %v381
      %v383 = vshrl.u32 %v193, 16
      %v385 = vrot.slane %v383, 4
      %v386 = vor.u32 %v385, %v381
      %v387 = vrot.slane %v386, 4
      %v389 = vshll.u32 %v235, 16
      %v391 = vrot.slane %v389, 5
      %v392 = vsel %vm248, %v387, %v391
      %v394 = vshrl.u32 %v194, 16
      %v396 = vrot.slane %v394, 4
      %v397 = vshll.u32 %v194, 16
      %v399 = vrot.slane %v397, 5
      %v400 = vor.u32 %v396, %v399
      %v401 = vrot.slane %v400, 4
      %v403 = vshll.u32 %v195, 16
      %v405 = vrot.slane %v403, 5
      %v406 = vsel %vm248, %v401, %v405
      %v407 = vshrl.u32 %v195, 16
      %v409 = vrot.slane %v407, 4
      %v410 = vor.u32 %v409, %v405
      %v411 = vrot.slane %v410, 4
      %v413 = vshll.u32 %v236, 16
      %v415 = vrot.slane %v413, 5
      %v416 = vsel %vm248, %v411, %v415
      %v418 = vshrl.u32 %v196, 16
      %v420 = vrot.slane %v418, 4
      %v421 = vshll.u32 %v196, 16
      %v423 = vrot.slane %v421, 5
      %v424 = vor.u32 %v420, %v423
      %v425 = vrot.slane %v424, 4
      %v427 = vshll.u32 %v197, 16
      %v429 = vrot.slane %v427, 5
      %v430 = vsel %vm248, %v425, %v429
      %v431 = vshrl.u32 %v197, 16
      %v433 = vrot.slane %v431, 4
      %v434 = vor.u32 %v433, %v429
      %v435 = vrot.slane %v434, 4
      %v437 = vshll.u32 %v237, 16
      %v439 = vrot.slane %v437, 5
      %v440 = vsel %vm248, %v435, %v439
      %v442 = vshrl.u32 %v198, 16
      %v444 = vrot.slane %v442, 4
      %v445 = vshll.u32 %v198, 16
      %v447 = vrot.slane %v445, 5
      %v448 = vor.u32 %v444, %v447
      %v449 = vrot.slane %v448, 4
      %v451 = vshll.u32 %v199, 16
      %v453 = vrot.slane %v451, 5
      %v454 = vsel %vm248, %v449, %v453
      %v455 = vshrl.u32 %v199, 16
      %v457 = vrot.slane %v455, 4
      %v458 = vor.u32 %v457, %v453
      %v459 = vrot.slane %v458, 4
      %v461 = vshll.u32 %v238, 16
      %v463 = vrot.slane %v461, 5
      %v464 = vsel %vm248, %v459, %v463
      %v466 = vshrl.u32 %v200, 16
      %v468 = vrot.slane %v466, 4
      %v469 = vshll.u32 %v200, 16
      %v471 = vrot.slane %v469, 5
      %v472 = vor.u32 %v468, %v471
      %v473 = vrot.slane %v472, 4
      %v475 = vshll.u32 %v201, 16
      %v477 = vrot.slane %v475, 5
      %v478 = vsel %vm248, %v473, %v477
      %v479 = vshrl.u32 %v201, 16
      %v481 = vrot.slane %v479, 4
      %v482 = vor.u32 %v481, %v477
      %v483 = vrot.slane %v482, 4
      %v485 = vshll.u32 %v239, 16
      %v487 = vrot.slane %v485, 5
      %v488 = vsel %vm248, %v483, %v487
      %v490 = vshrl.u32 %v202, 16
      %v492 = vrot.slane %v490, 4
      %v493 = vshll.u32 %v202, 16
      %v495 = vrot.slane %v493, 5
      %v496 = vor.u32 %v492, %v495
      %v497 = vrot.slane %v496, 4
      %v499 = vshll.u32 %v203, 16
      %v501 = vrot.slane %v499, 5
      %v502 = vsel %vm248, %v497, %v501
      %v503 = vshrl.u32 %v203, 16
      %v505 = vrot.slane %v503, 4
      %v506 = vor.u32 %v505, %v501
      %v507 = vrot.slane %v506, 4
      %v509 = vshll.u32 %v240, 16
      %v511 = vrot.slane %v509, 5
      %v512 = vsel %vm248, %v507, %v511
      %v514 = vshrl.u32 %v204, 16
      %v516 = vrot.slane %v514, 4
      %v517 = vshll.u32 %v204, 16
      %v519 = vrot.slane %v517, 5
      %v520 = vor.u32 %v516, %v519
      %v521 = vrot.slane %v520, 4
      %v523 = vshll.u32 %v205, 16
      %v525 = vrot.slane %v523, 5
      %v526 = vsel %vm248, %v521, %v525
      %v527 = vshrl.u32 %v205, 16
      %v529 = vrot.slane %v527, 4
      %v530 = vor.u32 %v529, %v525
      %v531 = vrot.slane %v530, 4
      %v533 = vshll.u32 %v241, 16
      %v535 = vrot.slane %v533, 5
      %v536 = vsel %vm248, %v531, %v535
      %v538 = vshrl.u32 %v206, 16
      %v540 = vrot.slane %v538, 4
      %v541 = vshll.u32 %v206, 16
      %v543 = vrot.slane %v541, 5
      %v544 = vor.u32 %v540, %v543
      %v545 = vrot.slane %v544, 4
      %v547 = vshll.u32 %v207, 16
      %v549 = vrot.slane %v547, 5
      %v550 = vsel %vm248, %v545, %v549
      %v551 = vshrl.u32 %v207, 16
      %v553 = vrot.slane %v551, 4
      %v554 = vor.u32 %v553, %v549
      %v555 = vrot.slane %v554, 4
      %v557 = vshll.u32 %v242, 16
      %v559 = vrot.slane %v557, 5
      %v560 = vsel %vm248, %v555, %v559
      %v562 = vshrl.u32 %v208, 16
      %v564 = vrot.slane %v562, 4
      %v565 = vshll.u32 %v208, 16
      %v567 = vrot.slane %v565, 5
      %v568 = vor.u32 %v564, %v567
      %v569 = vrot.slane %v568, 4
      %v571 = vshll.u32 %v209, 16
      %v573 = vrot.slane %v571, 5
      %v574 = vsel %vm248, %v569, %v573
      %v575 = vshrl.u32 %v209, 16
      %v577 = vrot.slane %v575, 4
      %v578 = vor.u32 %v577, %v573
      %v579 = vrot.slane %v578, 4
      %v581 = vshll.u32 %v243, 16
      %v583 = vrot.slane %v581, 5
      %v584 = vsel %vm248, %v579, %v583
      %v586 = vshrl.u32 %v210, 16
      %v588 = vrot.slane %v586, 4
      %v589 = vshll.u32 %v210, 16
      %v591 = vrot.slane %v589, 5
      %v592 = vor.u32 %v588, %v591
      %v593 = vrot.slane %v592, 4
      %v595 = vshll.u32 %v211, 16
      %v597 = vrot.slane %v595, 5
      %v598 = vsel %vm248, %v593, %v597
      %v599 = vshrl.u32 %v211, 16
      %v601 = vrot.slane %v599, 4
      %v602 = vor.u32 %v601, %v597
      %v603 = vrot.slane %v602, 4
      %v605 = vshll.u32 %v244, 16
      %v607 = vrot.slane %v605, 5
      %v608 = vsel %vm248, %v603, %v607
      %v610 = vshrl.u32 %v212, 16
      %v612 = vrot.slane %v610, 4
      %v613 = vshll.u32 %v212, 16
      %v615 = vrot.slane %v613, 5
      %v616 = vor.u32 %v612, %v615
      %v617 = vrot.slane %v616, 4
      %v619 = vshll.u32 %v213, 16
      %v621 = vrot.slane %v619, 5
      %v622 = vsel %vm248, %v617, %v621
      %v623 = vshrl.u32 %v213, 16
      %v625 = vrot.slane %v623, 4
      %v626 = vor.u32 %v625, %v621
      %v627 = vrot.slane %v626, 4
      %v629 = vshll.u32 %v245, 16
      %v631 = vrot.slane %v629, 5
      %v632 = vsel %vm248, %v627, %v631
      %s633 = scalar_lea.vmem %s1, 64
      %v634 = vld [vmem:[%s633] sm:$0xf]
      %v635 = vld [vmem:[%s633 + $0x4] sm:$0xf]
      %v636 = vld [vmem:[%s633 + $0x8] sm:$0xf]
      %v637 = vld [vmem:[%s633 + $0xc] sm:$0xf]
      %v638 = vld [vmem:[%s633 + $0x10] sm:$0xf]
      %v639 = vld [vmem:[%s633 + $0x14] sm:$0xf]
      %v640 = vld [vmem:[%s633 + $0x18] sm:$0xf]
      %v641 = vld [vmem:[%s633 + $0x1c] sm:$0xf]
      %v642 = vld [vmem:[%s633 + $0x20] sm:$0xf]
      %v643 = vld [vmem:[%s633 + $0x24] sm:$0xf]
      %v644 = vld [vmem:[%s633 + $0x28] sm:$0xf]
      %v645 = vld [vmem:[%s633 + $0x2c] sm:$0xf]
      %v646 = vld [vmem:[%s633 + $0x30] sm:$0xf]
      %v647 = vld [vmem:[%s633 + $0x34] sm:$0xf]
      %v648 = vld [vmem:[%s633 + $0x38] sm:$0xf]
      %v649 = vld [vmem:[%s633 + $0x3c] sm:$0xf]
      %v650 = vunpack.c.l.b16 %v262
      %v651 = vunpack.c.l.b16 %v272
      %v652 = vunpack.c.l.b16 %v286
      %v653 = vunpack.c.l.b16 %v296
      %v654 = vunpack.c.l.b16 %v310
      %v655 = vunpack.c.l.b16 %v320
      %v656 = vunpack.c.l.b16 %v334
      %v657 = vunpack.c.l.b16 %v344
      %v658 = vunpack.c.l.b16 %v358
      %v659 = vunpack.c.l.b16 %v368
      %v660 = vunpack.c.l.b16 %v382
      %v661 = vunpack.c.l.b16 %v392
      %v662 = vunpack.c.l.b16 %v406
      %v663 = vunpack.c.l.b16 %v416
      %v664 = vunpack.c.l.b16 %v430
      %v665 = vunpack.c.l.b16 %v440
      %v666 = vunpack.c.l.b16 %v454
      %v667 = vunpack.c.l.b16 %v464
      %v668 = vunpack.c.l.b16 %v478
      %v669 = vunpack.c.l.b16 %v488
      %v670 = vunpack.c.l.b16 %v502
      %v671 = vunpack.c.l.b16 %v512
      %v672 = vunpack.c.l.b16 %v526
      %v673 = vunpack.c.l.b16 %v536
      %v674 = vunpack.c.l.b16 %v550
      %v675 = vunpack.c.l.b16 %v560
      %v676 = vunpack.c.l.b16 %v574
      %v677 = vunpack.c.l.b16 %v584
      %v678 = vunpack.c.l.b16 %v598
      %v679 = vunpack.c.l.b16 %v608
      %v680 = vunpack.c.l.b16 %v622
      %v681 = vunpack.c.l.b16 %v632
      %v682 = vpack.c.b16 %v651, %v650
      %v683 = vpack.c.b16 %v653, %v652
      %v684 = vpack.c.b16 %v655, %v654
      %v685 = vpack.c.b16 %v657, %v656
      %v686 = vpack.c.b16 %v659, %v658
      %v687 = vpack.c.b16 %v661, %v660
      %v688 = vpack.c.b16 %v663, %v662
      %v689 = vpack.c.b16 %v665, %v664
      %v690 = vpack.c.b16 %v667, %v666
      %v691 = vpack.c.b16 %v669, %v668
      %v692 = vpack.c.b16 %v671, %v670
      %v693 = vpack.c.b16 %v673, %v672
      %v694 = vpack.c.b16 %v675, %v674
      %v695 = vpack.c.b16 %v677, %v676
      %v696 = vpack.c.b16 %v679, %v678
      %v697 = vpack.c.b16 %v681, %v680
      %v730 = vunpack.c.l.b16 %v634
      %v731 = vunpack.c.l.b16 %v635
      %v732 = vunpack.c.l.b16 %v636
      %v733 = vunpack.c.l.b16 %v637
      %v734 = vunpack.c.l.b16 %v638
      %v735 = vunpack.c.l.b16 %v639
      %v736 = vunpack.c.l.b16 %v640
      %v737 = vunpack.c.l.b16 %v641
      %v738 = vunpack.c.l.b16 %v642
      %v739 = vunpack.c.l.b16 %v643
      %v740 = vunpack.c.l.b16 %v644
      %v741 = vunpack.c.l.b16 %v645
      %v742 = vunpack.c.l.b16 %v646
      %v743 = vunpack.c.l.b16 %v647
      %v744 = vunpack.c.l.b16 %v648
      %v745 = vunpack.c.l.b16 %v649
      %v746 = vpack.c.b16 %v731, %v730
      %v747 = vpack.c.b16 %v733, %v732
      %v748 = vpack.c.b16 %v735, %v734
      %v749 = vpack.c.b16 %v737, %v736
      %v750 = vpack.c.b16 %v739, %v738
      %v751 = vpack.c.b16 %v741, %v740
      %v752 = vpack.c.b16 %v743, %v742
      %v753 = vpack.c.b16 %v745, %v744
      %762 = vmatpush.bf16.msra.mxu0 %v753
      %763 = vmatpush.bf16.msra.mxu0 %v752
      %764 = vmatpush.bf16.msra.mxu0 %v751
      %765 = vmatpush.bf16.msra.mxu0 %v750
      %766 = vmatpush.bf16.msra.mxu0 %v749
      %767 = vmatpush.bf16.msra.mxu0 %v748
      %768 = vmatpush.bf16.msra.mxu0 %v747
      %769 = vmatpush.bf16.msra.mxu0 %v746
      %770 = vmatmul.bf16.gmra.mxu0 %v682
      %v771 = vpop.f32.mrf.mxu0
      %v772 = vadd.f32 0.0, %v771
      %v773 = vpop.f32.mrf.mxu0
      %v774 = vadd.f32 0.0, %v773
      %775 = vmatmul.bf16.gmra.mxu0 %v683
      %v776 = vpop.f32.mrf.mxu0
      %v777 = vadd.f32 0.0, %v776
      %v778 = vpop.f32.mrf.mxu0
      %v779 = vadd.f32 0.0, %v778
      %780 = vmatmul.bf16.gmra.mxu0 %v684
      %v781 = vpop.f32.mrf.mxu0
      %v782 = vadd.f32 0.0, %v781
      %v783 = vpop.f32.mrf.mxu0
      %v784 = vadd.f32 0.0, %v783
      %785 = vmatmul.bf16.gmra.mxu0 %v685
      %v786 = vpop.f32.mrf.mxu0
      %v787 = vadd.f32 0.0, %v786
      %v788 = vpop.f32.mrf.mxu0
      %v789 = vadd.f32 0.0, %v788
      %790 = vmatmul.bf16.gmra.mxu0 %v686
      %v791 = vpop.f32.mrf.mxu0
      %v792 = vadd.f32 0.0, %v791
      %v793 = vpop.f32.mrf.mxu0
      %v794 = vadd.f32 0.0, %v793
      %795 = vmatmul.bf16.gmra.mxu0 %v687
      %v796 = vpop.f32.mrf.mxu0
      %v797 = vadd.f32 0.0, %v796
      %v798 = vpop.f32.mrf.mxu0
      %v799 = vadd.f32 0.0, %v798
      %800 = vmatmul.bf16.gmra.mxu0 %v688
      %v801 = vpop.f32.mrf.mxu0
      %v802 = vadd.f32 0.0, %v801
      %v803 = vpop.f32.mrf.mxu0
      %v804 = vadd.f32 0.0, %v803
      %805 = vmatmul.bf16.gmra.mxu0 %v689
      %v806 = vpop.f32.mrf.mxu0
      %v807 = vadd.f32 0.0, %v806
      %v808 = vpop.f32.mrf.mxu0
      %v809 = vadd.f32 0.0, %v808
      %810 = vmatmul.bf16.gmra.mxu0 %v690
      %v811 = vpop.f32.mrf.mxu0
      %v812 = vadd.f32 0.0, %v811
      %v813 = vpop.f32.mrf.mxu0
      %v814 = vadd.f32 0.0, %v813
      %815 = vmatmul.bf16.gmra.mxu0 %v691
      %v816 = vpop.f32.mrf.mxu0
      %v817 = vadd.f32 0.0, %v816
      %v818 = vpop.f32.mrf.mxu0
      %v819 = vadd.f32 0.0, %v818
      %820 = vmatmul.bf16.gmra.mxu0 %v692
      %v821 = vpop.f32.mrf.mxu0
      %v822 = vadd.f32 0.0, %v821
      %v823 = vpop.f32.mrf.mxu0
      %v824 = vadd.f32 0.0, %v823
      %825 = vmatmul.bf16.gmra.mxu0 %v693
      %v826 = vpop.f32.mrf.mxu0
      %v827 = vadd.f32 0.0, %v826
      %v828 = vpop.f32.mrf.mxu0
      %v829 = vadd.f32 0.0, %v828
      %830 = vmatmul.bf16.gmra.mxu0 %v694
      %v831 = vpop.f32.mrf.mxu0
      %v832 = vadd.f32 0.0, %v831
      %v833 = vpop.f32.mrf.mxu0
      %v834 = vadd.f32 0.0, %v833
      %835 = vmatmul.bf16.gmra.mxu0 %v695
      %v836 = vpop.f32.mrf.mxu0
      %v837 = vadd.f32 0.0, %v836
      %v838 = vpop.f32.mrf.mxu0
      %v839 = vadd.f32 0.0, %v838
      %840 = vmatmul.bf16.gmra.mxu0 %v696
      %v841 = vpop.f32.mrf.mxu0
      %v842 = vadd.f32 0.0, %v841
      %v843 = vpop.f32.mrf.mxu0
      %v844 = vadd.f32 0.0, %v843
      %845 = vmatmul.bf16.gmra.mxu0 %v697
      %v846 = vpop.f32.mrf.mxu0
      %v847 = vadd.f32 0.0, %v846
      %v848 = vpop.f32.mrf.mxu0
      %v849 = vadd.f32 0.0, %v848
      %850 = vdwg.mxu0
      %v883 = vunpack.c.l.b16 %v182
      %v884 = vunpack.c.l.b16 %v183
      %v885 = vunpack.c.l.b16 %v184
      %v886 = vunpack.c.l.b16 %v185
      %v887 = vunpack.c.l.b16 %v186
      %v888 = vunpack.c.l.b16 %v187
      %v889 = vunpack.c.l.b16 %v188
      %v890 = vunpack.c.l.b16 %v189
      %v891 = vunpack.c.l.b16 %v190
      %v892 = vunpack.c.l.b16 %v191
      %v893 = vunpack.c.l.b16 %v192
      %v894 = vunpack.c.l.b16 %v193
      %v895 = vunpack.c.l.b16 %v194
      %v896 = vunpack.c.l.b16 %v195
      %v897 = vunpack.c.l.b16 %v196
      %v898 = vunpack.c.l.b16 %v197
      %v899 = vunpack.c.l.b16 %v198
      %v900 = vunpack.c.l.b16 %v199
      %v901 = vunpack.c.l.b16 %v200
      %v902 = vunpack.c.l.b16 %v201
      %v903 = vunpack.c.l.b16 %v202
      %v904 = vunpack.c.l.b16 %v203
      %v905 = vunpack.c.l.b16 %v204
      %v906 = vunpack.c.l.b16 %v205
      %v907 = vunpack.c.l.b16 %v206
      %v908 = vunpack.c.l.b16 %v207
      %v909 = vunpack.c.l.b16 %v208
      %v910 = vunpack.c.l.b16 %v209
      %v911 = vunpack.c.l.b16 %v210
      %v912 = vunpack.c.l.b16 %v211
      %v913 = vunpack.c.l.b16 %v212
      %v914 = vunpack.c.l.b16 %v213
      %v915 = vpack.c.b16 %v884, %v883
      %v916 = vpack.c.b16 %v886, %v885
      %v917 = vpack.c.b16 %v888, %v887
      %v918 = vpack.c.b16 %v890, %v889
      %v919 = vpack.c.b16 %v892, %v891
      %v920 = vpack.c.b16 %v894, %v893
      %v921 = vpack.c.b16 %v896, %v895
      %v922 = vpack.c.b16 %v898, %v897
      %v923 = vpack.c.b16 %v900, %v899
      %v924 = vpack.c.b16 %v902, %v901
      %v925 = vpack.c.b16 %v904, %v903
      %v926 = vpack.c.b16 %v906, %v905
      %v927 = vpack.c.b16 %v908, %v907
      %v928 = vpack.c.b16 %v910, %v909
      %v929 = vpack.c.b16 %v912, %v911
      %v930 = vpack.c.b16 %v914, %v913
      %v963 = vunpack.c.l.b16 %v214
      %v964 = vunpack.c.l.b16 %v215
      %v965 = vunpack.c.l.b16 %v216
      %v966 = vunpack.c.l.b16 %v217
      %v967 = vunpack.c.l.b16 %v218
      %v968 = vunpack.c.l.b16 %v219
      %v969 = vunpack.c.l.b16 %v220
      %v970 = vunpack.c.l.b16 %v221
      %v971 = vunpack.c.l.b16 %v222
      %v972 = vunpack.c.l.b16 %v223
      %v973 = vunpack.c.l.b16 %v224
      %v974 = vunpack.c.l.b16 %v225
      %v975 = vunpack.c.l.b16 %v226
      %v976 = vunpack.c.l.b16 %v227
      %v977 = vunpack.c.l.b16 %v228
      %v978 = vunpack.c.l.b16 %v229
      %v979 = vpack.c.b16 %v964, %v963
      %v980 = vpack.c.b16 %v966, %v965
      %v981 = vpack.c.b16 %v968, %v967
      %v982 = vpack.c.b16 %v970, %v969
      %v983 = vpack.c.b16 %v972, %v971
      %v984 = vpack.c.b16 %v974, %v973
      %v985 = vpack.c.b16 %v976, %v975
      %v986 = vpack.c.b16 %v978, %v977
      %995 = vmatpush.bf16.msra.mxu0 %v986
      %996 = vmatpush.bf16.msra.mxu0 %v985
      %997 = vmatpush.bf16.msra.mxu0 %v984
      %998 = vmatpush.bf16.msra.mxu0 %v983
      %999 = vmatpush.bf16.msra.mxu0 %v982
      %1000 = vmatpush.bf16.msra.mxu0 %v981
      %1001 = vmatpush.bf16.msra.mxu0 %v980
      %1002 = vmatpush.bf16.msra.mxu0 %v979
      %1003 = vmatmul.bf16.gmra.mxu0 %v915
      %v1004 = vpop.f32.mrf.mxu0
      %v1005 = vadd.f32 %v772, %v1004
      %v1006 = vpop.f32.mrf.mxu0
      %v1007 = vadd.f32 %v774, %v1006
      %1008 = vmatmul.bf16.gmra.mxu0 %v916
      %v1009 = vpop.f32.mrf.mxu0
      %v1010 = vadd.f32 %v777, %v1009
      %v1011 = vpop.f32.mrf.mxu0
      %v1012 = vadd.f32 %v779, %v1011
      %1013 = vmatmul.bf16.gmra.mxu0 %v917
      %v1014 = vpop.f32.mrf.mxu0
      %v1015 = vadd.f32 %v782, %v1014
      %v1016 = vpop.f32.mrf.mxu0
      %v1017 = vadd.f32 %v784, %v1016
      %1018 = vmatmul.bf16.gmra.mxu0 %v918
      %v1019 = vpop.f32.mrf.mxu0
      %v1020 = vadd.f32 %v787, %v1019
      %v1021 = vpop.f32.mrf.mxu0
      %v1022 = vadd.f32 %v789, %v1021
      %1023 = vmatmul.bf16.gmra.mxu0 %v919
      %v1024 = vpop.f32.mrf.mxu0
      %v1025 = vadd.f32 %v792, %v1024
      %v1026 = vpop.f32.mrf.mxu0
      %v1027 = vadd.f32 %v794, %v1026
      %1028 = vmatmul.bf16.gmra.mxu0 %v920
      %v1029 = vpop.f32.mrf.mxu0
      %v1030 = vadd.f32 %v797, %v1029
      %v1031 = vpop.f32.mrf.mxu0
      %v1032 = vadd.f32 %v799, %v1031
      %1033 = vmatmul.bf16.gmra.mxu0 %v921
      %v1034 = vpop.f32.mrf.mxu0
      %v1035 = vadd.f32 %v802, %v1034
      %v1036 = vpop.f32.mrf.mxu0
      %v1037 = vadd.f32 %v804, %v1036
      %1038 = vmatmul.bf16.gmra.mxu0 %v922
      %v1039 = vpop.f32.mrf.mxu0
      %v1040 = vadd.f32 %v807, %v1039
      %v1041 = vpop.f32.mrf.mxu0
      %v1042 = vadd.f32 %v809, %v1041
      %1043 = vmatmul.bf16.gmra.mxu0 %v923
      %v1044 = vpop.f32.mrf.mxu0
      %v1045 = vadd.f32 %v812, %v1044
      %v1046 = vpop.f32.mrf.mxu0
      %v1047 = vadd.f32 %v814, %v1046
      %1048 = vmatmul.bf16.gmra.mxu0 %v924
      %v1049 = vpop.f32.mrf.mxu0
      %v1050 = vadd.f32 %v817, %v1049
      %v1051 = vpop.f32.mrf.mxu0
      %v1052 = vadd.f32 %v819, %v1051
      %1053 = vmatmul.bf16.gmra.mxu0 %v925
      %v1054 = vpop.f32.mrf.mxu0
      %v1055 = vadd.f32 %v822, %v1054
      %v1056 = vpop.f32.mrf.mxu0
      %v1057 = vadd.f32 %v824, %v1056
      %1058 = vmatmul.bf16.gmra.mxu0 %v926
      %v1059 = vpop.f32.mrf.mxu0
      %v1060 = vadd.f32 %v827, %v1059
      %v1061 = vpop.f32.mrf.mxu0
      %v1062 = vadd.f32 %v829, %v1061
      %1063 = vmatmul.bf16.gmra.mxu0 %v927
      %v1064 = vpop.f32.mrf.mxu0
      %v1065 = vadd.f32 %v832, %v1064
      %v1066 = vpop.f32.mrf.mxu0
      %v1067 = vadd.f32 %v834, %v1066
      %1068 = vmatmul.bf16.gmra.mxu0 %v928
      %v1069 = vpop.f32.mrf.mxu0
      %v1070 = vadd.f32 %v837, %v1069
      %v1071 = vpop.f32.mrf.mxu0
      %v1072 = vadd.f32 %v839, %v1071
      %1073 = vmatmul.bf16.gmra.mxu0 %v929
      %v1074 = vpop.f32.mrf.mxu0
      %v1075 = vadd.f32 %v842, %v1074
      %v1076 = vpop.f32.mrf.mxu0
      %v1077 = vadd.f32 %v844, %v1076
      %1078 = vmatmul.bf16.gmra.mxu0 %v930
      %v1079 = vpop.f32.mrf.mxu0
      %v1080 = vadd.f32 %v847, %v1079
      %v1081 = vpop.f32.mrf.mxu0
      %v1082 = vadd.f32 %v849, %v1081
      %1083 = vdwg.mxu0
      %v1084 = vld [vmem:[%s172] sm:$0xe]
      %v1085 = vld [vmem:[%s172 + $0xc] sm:$0xe]
      %v1086 = vld [vmem:[%s172 + $0x18] sm:$0xe]
      %v1087 = vld [vmem:[%s172 + $0x24] sm:$0xe]
      %v1088 = vld [vmem:[%s172 + $0x30] sm:$0xe]
      %v1089 = vld [vmem:[%s172 + $0x3c] sm:$0xe]
      %v1090 = vld [vmem:[%s172 + $0x48] sm:$0xe]
      %v1091 = vld [vmem:[%s172 + $0x54] sm:$0xe]
      %v1092 = vld [vmem:[%s172 + $0x60] sm:$0xe]
      %v1093 = vld [vmem:[%s172 + $0x6c] sm:$0xe]
      %v1094 = vld [vmem:[%s172 + $0x78] sm:$0xe]
      %v1095 = vld [vmem:[%s172 + $0x84] sm:$0xe]
      %v1096 = vld [vmem:[%s172 + $0x90] sm:$0xe]
      %v1097 = vld [vmem:[%s172 + $0x9c] sm:$0xe]
      %v1098 = vld [vmem:[%s172 + $0xa8] sm:$0xe]
      %v1099 = vld [vmem:[%s172 + $0xb4] sm:$0xe]
      %vm1132 = vcmask 1042432
      %vm1133 = vcmask 1046532
      %vm1134 = vmor %vm1132, %vm1133
      %v1135 = vrot.slane %v1084, 5
      %v1136 = vrot.slane %v1135, 4
      %v1137 = vrot.slane %v183, 5
      %v1138 = vsel %vm1134, %v1136, %v1137
      %v1139 = vrot.slane %v1137, 4
      %v1140 = vrot.slane %v230, 5
      %v1141 = vsel %vm1134, %v1139, %v1140
      %v1142 = vrot.slane %v1085, 5
      %v1143 = vrot.slane %v1142, 4
      %v1144 = vrot.slane %v185, 5
      %v1145 = vsel %vm1134, %v1143, %v1144
      %v1146 = vrot.slane %v1144, 4
      %v1147 = vrot.slane %v231, 5
      %v1148 = vsel %vm1134, %v1146, %v1147
      %v1149 = vrot.slane %v1086, 5
      %v1150 = vrot.slane %v1149, 4
      %v1151 = vrot.slane %v187, 5
      %v1152 = vsel %vm1134, %v1150, %v1151
      %v1153 = vrot.slane %v1151, 4
      %v1154 = vrot.slane %v232, 5
      %v1155 = vsel %vm1134, %v1153, %v1154
      %v1156 = vrot.slane %v1087, 5
      %v1157 = vrot.slane %v1156, 4
      %v1158 = vrot.slane %v189, 5
      %v1159 = vsel %vm1134, %v1157, %v1158
      %v1160 = vrot.slane %v1158, 4
      %v1161 = vrot.slane %v233, 5
      %v1162 = vsel %vm1134, %v1160, %v1161
      %v1163 = vrot.slane %v1088, 5
      %v1164 = vrot.slane %v1163, 4
      %v1165 = vrot.slane %v191, 5
      %v1166 = vsel %vm1134, %v1164, %v1165
      %v1167 = vrot.slane %v1165, 4
      %v1168 = vrot.slane %v234, 5
      %v1169 = vsel %vm1134, %v1167, %v1168
      %v1170 = vrot.slane %v1089, 5
      %v1171 = vrot.slane %v1170, 4
      %v1172 = vrot.slane %v193, 5
      %v1173 = vsel %vm1134, %v1171, %v1172
      %v1174 = vrot.slane %v1172, 4
      %v1175 = vrot.slane %v235, 5
      %v1176 = vsel %vm1134, %v1174, %v1175
      %v1177 = vrot.slane %v1090, 5
      %v1178 = vrot.slane %v1177, 4
      %v1179 = vrot.slane %v195, 5
      %v1180 = vsel %vm1134, %v1178, %v1179
      %v1181 = vrot.slane %v1179, 4
      %v1182 = vrot.slane %v236, 5
      %v1183 = vsel %vm1134, %v1181, %v1182
      %v1184 = vrot.slane %v1091, 5
      %v1185 = vrot.slane %v1184, 4
      %v1186 = vrot.slane %v197, 5
      %v1187 = vsel %vm1134, %v1185, %v1186
      %v1188 = vrot.slane %v1186, 4
      %v1189 = vrot.slane %v237, 5
      %v1190 = vsel %vm1134, %v1188, %v1189
      %v1191 = vrot.slane %v1092, 5
      %v1192 = vrot.slane %v1191, 4
      %v1193 = vrot.slane %v199, 5
      %v1194 = vsel %vm1134, %v1192, %v1193
      %v1195 = vrot.slane %v1193, 4
      %v1196 = vrot.slane %v238, 5
      %v1197 = vsel %vm1134, %v1195, %v1196
      %v1198 = vrot.slane %v1093, 5
      %v1199 = vrot.slane %v1198, 4
      %v1200 = vrot.slane %v201, 5
      %v1201 = vsel %vm1134, %v1199, %v1200
      %v1202 = vrot.slane %v1200, 4
      %v1203 = vrot.slane %v239, 5
      %v1204 = vsel %vm1134, %v1202, %v1203
      %v1205 = vrot.slane %v1094, 5
      %v1206 = vrot.slane %v1205, 4
      %v1207 = vrot.slane %v203, 5
      %v1208 = vsel %vm1134, %v1206, %v1207
      %v1209 = vrot.slane %v1207, 4
      %v1210 = vrot.slane %v240, 5
      %v1211 = vsel %vm1134, %v1209, %v1210
      %v1212 = vrot.slane %v1095, 5
      %v1213 = vrot.slane %v1212, 4
      %v1214 = vrot.slane %v205, 5
      %v1215 = vsel %vm1134, %v1213, %v1214
      %v1216 = vrot.slane %v1214, 4
      %v1217 = vrot.slane %v241, 5
      %v1218 = vsel %vm1134, %v1216, %v1217
      %v1219 = vrot.slane %v1096, 5
      %v1220 = vrot.slane %v1219, 4
      %v1221 = vrot.slane %v207, 5
      %v1222 = vsel %vm1134, %v1220, %v1221
      %v1223 = vrot.slane %v1221, 4
      %v1224 = vrot.slane %v242, 5
      %v1225 = vsel %vm1134, %v1223, %v1224
      %v1226 = vrot.slane %v1097, 5
      %v1227 = vrot.slane %v1226, 4
      %v1228 = vrot.slane %v209, 5
      %v1229 = vsel %vm1134, %v1227, %v1228
      %v1230 = vrot.slane %v1228, 4
      %v1231 = vrot.slane %v243, 5
      %v1232 = vsel %vm1134, %v1230, %v1231
      %v1233 = vrot.slane %v1098, 5
      %v1234 = vrot.slane %v1233, 4
      %v1235 = vrot.slane %v211, 5
      %v1236 = vsel %vm1134, %v1234, %v1235
      %v1237 = vrot.slane %v1235, 4
      %v1238 = vrot.slane %v244, 5
      %v1239 = vsel %vm1134, %v1237, %v1238
      %v1240 = vrot.slane %v1099, 5
      %v1241 = vrot.slane %v1240, 4
      %v1242 = vrot.slane %v213, 5
      %v1243 = vsel %vm1134, %v1241, %v1242
      %v1244 = vrot.slane %v1242, 4
      %v1245 = vrot.slane %v245, 5
      %v1246 = vsel %vm1134, %v1244, %v1245
      %s1247 = scalar_lea.vmem %s1, 128
      %v1248 = vld [vmem:[%s1247] sm:$0xf]
      %v1249 = vld [vmem:[%s1247 + $0x4] sm:$0xf]
      %v1250 = vld [vmem:[%s1247 + $0x8] sm:$0xf]
      %v1251 = vld [vmem:[%s1247 + $0xc] sm:$0xf]
      %v1252 = vld [vmem:[%s1247 + $0x10] sm:$0xf]
      %v1253 = vld [vmem:[%s1247 + $0x14] sm:$0xf]
      %v1254 = vld [vmem:[%s1247 + $0x18] sm:$0xf]
      %v1255 = vld [vmem:[%s1247 + $0x1c] sm:$0xf]
      %v1256 = vld [vmem:[%s1247 + $0x20] sm:$0xf]
      %v1257 = vld [vmem:[%s1247 + $0x24] sm:$0xf]
      %v1258 = vld [vmem:[%s1247 + $0x28] sm:$0xf]
      %v1259 = vld [vmem:[%s1247 + $0x2c] sm:$0xf]
      %v1260 = vld [vmem:[%s1247 + $0x30] sm:$0xf]
      %v1261 = vld [vmem:[%s1247 + $0x34] sm:$0xf]
      %v1262 = vld [vmem:[%s1247 + $0x38] sm:$0xf]
      %v1263 = vld [vmem:[%s1247 + $0x3c] sm:$0xf]
      %v1264 = vunpack.c.l.b16 %v1138
      %v1265 = vunpack.c.l.b16 %v1141
      %v1266 = vunpack.c.l.b16 %v1145
      %v1267 = vunpack.c.l.b16 %v1148
      %v1268 = vunpack.c.l.b16 %v1152
      %v1269 = vunpack.c.l.b16 %v1155
      %v1270 = vunpack.c.l.b16 %v1159
      %v1271 = vunpack.c.l.b16 %v1162
      %v1272 = vunpack.c.l.b16 %v1166
      %v1273 = vunpack.c.l.b16 %v1169
      %v1274 = vunpack.c.l.b16 %v1173
      %v1275 = vunpack.c.l.b16 %v1176
      %v1276 = vunpack.c.l.b16 %v1180
      %v1277 = vunpack.c.l.b16 %v1183
      %v1278 = vunpack.c.l.b16 %v1187
      %v1279 = vunpack.c.l.b16 %v1190
      %v1280 = vunpack.c.l.b16 %v1194
      %v1281 = vunpack.c.l.b16 %v1197
      %v1282 = vunpack.c.l.b16 %v1201
      %v1283 = vunpack.c.l.b16 %v1204
      %v1284 = vunpack.c.l.b16 %v1208
      %v1285 = vunpack.c.l.b16 %v1211
      %v1286 = vunpack.c.l.b16 %v1215
      %v1287 = vunpack.c.l.b16 %v1218
      %v1288 = vunpack.c.l.b16 %v1222
      %v1289 = vunpack.c.l.b16 %v1225
      %v1290 = vunpack.c.l.b16 %v1229
      %v1291 = vunpack.c.l.b16 %v1232
      %v1292 = vunpack.c.l.b16 %v1236
      %v1293 = vunpack.c.l.b16 %v1239
      %v1294 = vunpack.c.l.b16 %v1243
      %v1295 = vunpack.c.l.b16 %v1246
      %v1296 = vpack.c.b16 %v1265, %v1264
      %v1297 = vpack.c.b16 %v1267, %v1266
      %v1298 = vpack.c.b16 %v1269, %v1268
      %v1299 = vpack.c.b16 %v1271, %v1270
      %v1300 = vpack.c.b16 %v1273, %v1272
      %v1301 = vpack.c.b16 %v1275, %v1274
      %v1302 = vpack.c.b16 %v1277, %v1276
      %v1303 = vpack.c.b16 %v1279, %v1278
      %v1304 = vpack.c.b16 %v1281, %v1280
      %v1305 = vpack.c.b16 %v1283, %v1282
      %v1306 = vpack.c.b16 %v1285, %v1284
      %v1307 = vpack.c.b16 %v1287, %v1286
      %v1308 = vpack.c.b16 %v1289, %v1288
      %v1309 = vpack.c.b16 %v1291, %v1290
      %v1310 = vpack.c.b16 %v1293, %v1292
      %v1311 = vpack.c.b16 %v1295, %v1294
      %v1344 = vunpack.c.l.b16 %v1248
      %v1345 = vunpack.c.l.b16 %v1249
      %v1346 = vunpack.c.l.b16 %v1250
      %v1347 = vunpack.c.l.b16 %v1251
      %v1348 = vunpack.c.l.b16 %v1252
      %v1349 = vunpack.c.l.b16 %v1253
      %v1350 = vunpack.c.l.b16 %v1254
      %v1351 = vunpack.c.l.b16 %v1255
      %v1352 = vunpack.c.l.b16 %v1256
      %v1353 = vunpack.c.l.b16 %v1257
      %v1354 = vunpack.c.l.b16 %v1258
      %v1355 = vunpack.c.l.b16 %v1259
      %v1356 = vunpack.c.l.b16 %v1260
      %v1357 = vunpack.c.l.b16 %v1261
      %v1358 = vunpack.c.l.b16 %v1262
      %v1359 = vunpack.c.l.b16 %v1263
      %v1360 = vpack.c.b16 %v1345, %v1344
      %v1361 = vpack.c.b16 %v1347, %v1346
      %v1362 = vpack.c.b16 %v1349, %v1348
      %v1363 = vpack.c.b16 %v1351, %v1350
      %v1364 = vpack.c.b16 %v1353, %v1352
      %v1365 = vpack.c.b16 %v1355, %v1354
      %v1366 = vpack.c.b16 %v1357, %v1356
      %v1367 = vpack.c.b16 %v1359, %v1358
      %1376 = vmatpush.bf16.msra.mxu0 %v1367
      %1377 = vmatpush.bf16.msra.mxu0 %v1366
      %1378 = vmatpush.bf16.msra.mxu0 %v1365
      %1379 = vmatpush.bf16.msra.mxu0 %v1364
      %1380 = vmatpush.bf16.msra.mxu0 %v1363
      %1381 = vmatpush.bf16.msra.mxu0 %v1362
      %1382 = vmatpush.bf16.msra.mxu0 %v1361
      %1383 = vmatpush.bf16.msra.mxu0 %v1360
      %1384 = vmatmul.bf16.gmra.mxu0 %v1296
      %v1385 = vpop.f32.mrf.mxu0
      %v1386 = vadd.f32 0.0, %v1385
      %v1387 = vpop.f32.mrf.mxu0
      %v1388 = vadd.f32 0.0, %v1387
      %1389 = vmatmul.bf16.gmra.mxu0 %v1297
      %v1390 = vpop.f32.mrf.mxu0
      %v1391 = vadd.f32 0.0, %v1390
      %v1392 = vpop.f32.mrf.mxu0
      %v1393 = vadd.f32 0.0, %v1392
      %1394 = vmatmul.bf16.gmra.mxu0 %v1298
      %v1395 = vpop.f32.mrf.mxu0
      %v1396 = vadd.f32 0.0, %v1395
      %v1397 = vpop.f32.mrf.mxu0
      %v1398 = vadd.f32 0.0, %v1397
      %1399 = vmatmul.bf16.gmra.mxu0 %v1299
      %v1400 = vpop.f32.mrf.mxu0
      %v1401 = vadd.f32 0.0, %v1400
      %v1402 = vpop.f32.mrf.mxu0
      %v1403 = vadd.f32 0.0, %v1402
      %1404 = vmatmul.bf16.gmra.mxu0 %v1300
      %v1405 = vpop.f32.mrf.mxu0
      %v1406 = vadd.f32 0.0, %v1405
      %v1407 = vpop.f32.mrf.mxu0
      %v1408 = vadd.f32 0.0, %v1407
      %1409 = vmatmul.bf16.gmra.mxu0 %v1301
      %v1410 = vpop.f32.mrf.mxu0
      %v1411 = vadd.f32 0.0, %v1410
      %v1412 = vpop.f32.mrf.mxu0
      %v1413 = vadd.f32 0.0, %v1412
      %1414 = vmatmul.bf16.gmra.mxu0 %v1302
      %v1415 = vpop.f32.mrf.mxu0
      %v1416 = vadd.f32 0.0, %v1415
      %v1417 = vpop.f32.mrf.mxu0
      %v1418 = vadd.f32 0.0, %v1417
      %1419 = vmatmul.bf16.gmra.mxu0 %v1303
      %v1420 = vpop.f32.mrf.mxu0
      %v1421 = vadd.f32 0.0, %v1420
      %v1422 = vpop.f32.mrf.mxu0
      %v1423 = vadd.f32 0.0, %v1422
      %1424 = vmatmul.bf16.gmra.mxu0 %v1304
      %v1425 = vpop.f32.mrf.mxu0
      %v1426 = vadd.f32 0.0, %v1425
      %v1427 = vpop.f32.mrf.mxu0
      %v1428 = vadd.f32 0.0, %v1427
      %1429 = vmatmul.bf16.gmra.mxu0 %v1305
      %v1430 = vpop.f32.mrf.mxu0
      %v1431 = vadd.f32 0.0, %v1430
      %v1432 = vpop.f32.mrf.mxu0
      %v1433 = vadd.f32 0.0, %v1432
      %1434 = vmatmul.bf16.gmra.mxu0 %v1306
      %v1435 = vpop.f32.mrf.mxu0
      %v1436 = vadd.f32 0.0, %v1435
      %v1437 = vpop.f32.mrf.mxu0
      %v1438 = vadd.f32 0.0, %v1437
      %1439 = vmatmul.bf16.gmra.mxu0 %v1307
      %v1440 = vpop.f32.mrf.mxu0
      %v1441 = vadd.f32 0.0, %v1440
      %v1442 = vpop.f32.mrf.mxu0
      %v1443 = vadd.f32 0.0, %v1442
      %1444 = vmatmul.bf16.gmra.mxu0 %v1308
      %v1445 = vpop.f32.mrf.mxu0
      %v1446 = vadd.f32 0.0, %v1445
      %v1447 = vpop.f32.mrf.mxu0
      %v1448 = vadd.f32 0.0, %v1447
      %1449 = vmatmul.bf16.gmra.mxu0 %v1309
      %v1450 = vpop.f32.mrf.mxu0
      %v1451 = vadd.f32 0.0, %v1450
      %v1452 = vpop.f32.mrf.mxu0
      %v1453 = vadd.f32 0.0, %v1452
      %1454 = vmatmul.bf16.gmra.mxu0 %v1310
      %v1455 = vpop.f32.mrf.mxu0
      %v1456 = vadd.f32 0.0, %v1455
      %v1457 = vpop.f32.mrf.mxu0
      %v1458 = vadd.f32 0.0, %v1457
      %1459 = vmatmul.bf16.gmra.mxu0 %v1311
      %v1460 = vpop.f32.mrf.mxu0
      %v1461 = vadd.f32 0.0, %v1460
      %v1462 = vpop.f32.mrf.mxu0
      %v1463 = vadd.f32 0.0, %v1462
      %1464 = vdwg.mxu0
      %v1465 = vadd.f32 %v1005, %v1386
      %v1466 = vadd.f32 %v1007, %v1388
      %v1467 = vadd.f32 %v1010, %v1391
      %v1468 = vadd.f32 %v1012, %v1393
      %v1469 = vadd.f32 %v1015, %v1396
      %v1470 = vadd.f32 %v1017, %v1398
      %v1471 = vadd.f32 %v1020, %v1401
      %v1472 = vadd.f32 %v1022, %v1403
      %v1473 = vadd.f32 %v1025, %v1406
      %v1474 = vadd.f32 %v1027, %v1408
      %v1475 = vadd.f32 %v1030, %v1411
      %v1476 = vadd.f32 %v1032, %v1413
      %v1477 = vadd.f32 %v1035, %v1416
      %v1478 = vadd.f32 %v1037, %v1418
      %v1479 = vadd.f32 %v1040, %v1421
      %v1480 = vadd.f32 %v1042, %v1423
      %v1481 = vadd.f32 %v1045, %v1426
      %v1482 = vadd.f32 %v1047, %v1428
      %v1483 = vadd.f32 %v1050, %v1431
      %v1484 = vadd.f32 %v1052, %v1433
      %v1485 = vadd.f32 %v1055, %v1436
      %v1486 = vadd.f32 %v1057, %v1438
      %v1487 = vadd.f32 %v1060, %v1441
      %v1488 = vadd.f32 %v1062, %v1443
      %v1489 = vadd.f32 %v1065, %v1446
      %v1490 = vadd.f32 %v1067, %v1448
      %v1491 = vadd.f32 %v1070, %v1451
      %v1492 = vadd.f32 %v1072, %v1453
      %v1493 = vadd.f32 %v1075, %v1456
      %v1494 = vadd.f32 %v1077, %v1458
      %v1495 = vadd.f32 %v1080, %v1461
      %v1496 = vadd.f32 %v1082, %v1463
      %s1497 = scalar_lea.vmem %s172, 12
      %v1498 = vld [vmem:[%s1497] sm:$0xf]
      %v1499 = vld [vmem:[%s1497 + $0x4] sm:$0xf]
      %v1500 = vld [vmem:[%s1497 + $0xc] sm:$0xf]
      %v1501 = vld [vmem:[%s1497 + $0x10] sm:$0xf]
      %v1502 = vld [vmem:[%s1497 + $0x18] sm:$0xf]
      %v1503 = vld [vmem:[%s1497 + $0x1c] sm:$0xf]
      %v1504 = vld [vmem:[%s1497 + $0x24] sm:$0xf]
      %v1505 = vld [vmem:[%s1497 + $0x28] sm:$0xf]
      %v1506 = vld [vmem:[%s1497 + $0x30] sm:$0xf]
      %v1507 = vld [vmem:[%s1497 + $0x34] sm:$0xf]
      %v1508 = vld [vmem:[%s1497 + $0x3c] sm:$0xf]
      %v1509 = vld [vmem:[%s1497 + $0x40] sm:$0xf]
      %v1510 = vld [vmem:[%s1497 + $0x48] sm:$0xf]
      %v1511 = vld [vmem:[%s1497 + $0x4c] sm:$0xf]
      %v1512 = vld [vmem:[%s1497 + $0x54] sm:$0xf]
      %v1513 = vld [vmem:[%s1497 + $0x58] sm:$0xf]
      %v1514 = vld [vmem:[%s1497 + $0x60] sm:$0xf]
      %v1515 = vld [vmem:[%s1497 + $0x64] sm:$0xf]
      %v1516 = vld [vmem:[%s1497 + $0x6c] sm:$0xf]
      %v1517 = vld [vmem:[%s1497 + $0x70] sm:$0xf]
      %v1518 = vld [vmem:[%s1497 + $0x78] sm:$0xf]
      %v1519 = vld [vmem:[%s1497 + $0x7c] sm:$0xf]
      %v1520 = vld [vmem:[%s1497 + $0x84] sm:$0xf]
      %v1521 = vld [vmem:[%s1497 + $0x88] sm:$0xf]
      %v1522 = vld [vmem:[%s1497 + $0x90] sm:$0xf]
      %v1523 = vld [vmem:[%s1497 + $0x94] sm:$0xf]
      %v1524 = vld [vmem:[%s1497 + $0x9c] sm:$0xf]
      %v1525 = vld [vmem:[%s1497 + $0xa0] sm:$0xf]
      %v1526 = vld [vmem:[%s1497 + $0xa8] sm:$0xf]
      %v1527 = vld [vmem:[%s1497 + $0xac] sm:$0xf]
      %v1528 = vld [vmem:[%s1497 + $0xb4] sm:$0xf]
      %v1529 = vld [vmem:[%s1497 + $0xb8] sm:$0xf]
      %s1530 = scalar_lea.vmem %s1, 192
      %v1531 = vld [vmem:[%s1530] sm:$0xf]
      %v1532 = vld [vmem:[%s1530 + $0x4] sm:$0xf]
      %v1533 = vld [vmem:[%s1530 + $0x8] sm:$0xf]
      %v1534 = vld [vmem:[%s1530 + $0xc] sm:$0xf]
      %v1535 = vld [vmem:[%s1530 + $0x10] sm:$0xf]
      %v1536 = vld [vmem:[%s1530 + $0x14] sm:$0xf]
      %v1537 = vld [vmem:[%s1530 + $0x18] sm:$0xf]
      %v1538 = vld [vmem:[%s1530 + $0x1c] sm:$0xf]
      %v1539 = vld [vmem:[%s1530 + $0x20] sm:$0xf]
      %v1540 = vld [vmem:[%s1530 + $0x24] sm:$0xf]
      %v1541 = vld [vmem:[%s1530 + $0x28] sm:$0xf]
      %v1542 = vld [vmem:[%s1530 + $0x2c] sm:$0xf]
      %v1543 = vld [vmem:[%s1530 + $0x30] sm:$0xf]
      %v1544 = vld [vmem:[%s1530 + $0x34] sm:$0xf]
      %v1545 = vld [vmem:[%s1530 + $0x38] sm:$0xf]
      %v1546 = vld [vmem:[%s1530 + $0x3c] sm:$0xf]
      %v1579 = vunpack.c.l.b16 %v1498
      %v1580 = vunpack.c.l.b16 %v1499
      %v1581 = vunpack.c.l.b16 %v1500
      %v1582 = vunpack.c.l.b16 %v1501
      %v1583 = vunpack.c.l.b16 %v1502
      %v1584 = vunpack.c.l.b16 %v1503
      %v1585 = vunpack.c.l.b16 %v1504
      %v1586 = vunpack.c.l.b16 %v1505
      %v1587 = vunpack.c.l.b16 %v1506
      %v1588 = vunpack.c.l.b16 %v1507
      %v1589 = vunpack.c.l.b16 %v1508
      %v1590 = vunpack.c.l.b16 %v1509
      %v1591 = vunpack.c.l.b16 %v1510
      %v1592 = vunpack.c.l.b16 %v1511
      %v1593 = vunpack.c.l.b16 %v1512
      %v1594 = vunpack.c.l.b16 %v1513
      %v1595 = vunpack.c.l.b16 %v1514
      %v1596 = vunpack.c.l.b16 %v1515
      %v1597 = vunpack.c.l.b16 %v1516
      %v1598 = vunpack.c.l.b16 %v1517
      %v1599 = vunpack.c.l.b16 %v1518
      %v1600 = vunpack.c.l.b16 %v1519
      %v1601 = vunpack.c.l.b16 %v1520
      %v1602 = vunpack.c.l.b16 %v1521
      %v1603 = vunpack.c.l.b16 %v1522
      %v1604 = vunpack.c.l.b16 %v1523
      %v1605 = vunpack.c.l.b16 %v1524
      %v1606 = vunpack.c.l.b16 %v1525
      %v1607 = vunpack.c.l.b16 %v1526
      %v1608 = vunpack.c.l.b16 %v1527
      %v1609 = vunpack.c.l.b16 %v1528
      %v1610 = vunpack.c.l.b16 %v1529
      %v1611 = vpack.c.b16 %v1580, %v1579
      %v1612 = vpack.c.b16 %v1582, %v1581
      %v1613 = vpack.c.b16 %v1584, %v1583
      %v1614 = vpack.c.b16 %v1586, %v1585
      %v1615 = vpack.c.b16 %v1588, %v1587
      %v1616 = vpack.c.b16 %v1590, %v1589
      %v1617 = vpack.c.b16 %v1592, %v1591
      %v1618 = vpack.c.b16 %v1594, %v1593
      %v1619 = vpack.c.b16 %v1596, %v1595
      %v1620 = vpack.c.b16 %v1598, %v1597
      %v1621 = vpack.c.b16 %v1600, %v1599
      %v1622 = vpack.c.b16 %v1602, %v1601
      %v1623 = vpack.c.b16 %v1604, %v1603
      %v1624 = vpack.c.b16 %v1606, %v1605
      %v1625 = vpack.c.b16 %v1608, %v1607
      %v1626 = vpack.c.b16 %v1610, %v1609
      %v1659 = vunpack.c.l.b16 %v1531
      %v1660 = vunpack.c.l.b16 %v1532
      %v1661 = vunpack.c.l.b16 %v1533
      %v1662 = vunpack.c.l.b16 %v1534
      %v1663 = vunpack.c.l.b16 %v1535
      %v1664 = vunpack.c.l.b16 %v1536
      %v1665 = vunpack.c.l.b16 %v1537
      %v1666 = vunpack.c.l.b16 %v1538
      %v1667 = vunpack.c.l.b16 %v1539
      %v1668 = vunpack.c.l.b16 %v1540
      %v1669 = vunpack.c.l.b16 %v1541
      %v1670 = vunpack.c.l.b16 %v1542
      %v1671 = vunpack.c.l.b16 %v1543
      %v1672 = vunpack.c.l.b16 %v1544
      %v1673 = vunpack.c.l.b16 %v1545
      %v1674 = vunpack.c.l.b16 %v1546
      %v1675 = vpack.c.b16 %v1660, %v1659
      %v1676 = vpack.c.b16 %v1662, %v1661
      %v1677 = vpack.c.b16 %v1664, %v1663
      %v1678 = vpack.c.b16 %v1666, %v1665
      %v1679 = vpack.c.b16 %v1668, %v1667
      %v1680 = vpack.c.b16 %v1670, %v1669
      %v1681 = vpack.c.b16 %v1672, %v1671
      %v1682 = vpack.c.b16 %v1674, %v1673
      %1691 = vmatpush.bf16.msra.mxu0 %v1682
      %1692 = vmatpush.bf16.msra.mxu0 %v1681
      %1693 = vmatpush.bf16.msra.mxu0 %v1680
      %1694 = vmatpush.bf16.msra.mxu0 %v1679
      %1695 = vmatpush.bf16.msra.mxu0 %v1678
      %1696 = vmatpush.bf16.msra.mxu0 %v1677
      %1697 = vmatpush.bf16.msra.mxu0 %v1676
      %1698 = vmatpush.bf16.msra.mxu0 %v1675
      %1699 = vmatmul.bf16.gmra.mxu0 %v1611
      %v1700 = vpop.f32.mrf.mxu0
      %v1701 = vadd.f32 0.0, %v1700
      %v1702 = vpop.f32.mrf.mxu0
      %v1703 = vadd.f32 0.0, %v1702
      %1704 = vmatmul.bf16.gmra.mxu0 %v1612
      %v1705 = vpop.f32.mrf.mxu0
      %v1706 = vadd.f32 0.0, %v1705
      %v1707 = vpop.f32.mrf.mxu0
      %v1708 = vadd.f32 0.0, %v1707
      %1709 = vmatmul.bf16.gmra.mxu0 %v1613
      %v1710 = vpop.f32.mrf.mxu0
      %v1711 = vadd.f32 0.0, %v1710
      %v1712 = vpop.f32.mrf.mxu0
      %v1713 = vadd.f32 0.0, %v1712
      %1714 = vmatmul.bf16.gmra.mxu0 %v1614
      %v1715 = vpop.f32.mrf.mxu0
      %v1716 = vadd.f32 0.0, %v1715
      %v1717 = vpop.f32.mrf.mxu0
      %v1718 = vadd.f32 0.0, %v1717
      %1719 = vmatmul.bf16.gmra.mxu0 %v1615
      %v1720 = vpop.f32.mrf.mxu0
      %v1721 = vadd.f32 0.0, %v1720
      %v1722 = vpop.f32.mrf.mxu0
      %v1723 = vadd.f32 0.0, %v1722
      %1724 = vmatmul.bf16.gmra.mxu0 %v1616
      %v1725 = vpop.f32.mrf.mxu0
      %v1726 = vadd.f32 0.0, %v1725
      %v1727 = vpop.f32.mrf.mxu0
      %v1728 = vadd.f32 0.0, %v1727
      %1729 = vmatmul.bf16.gmra.mxu0 %v1617
      %v1730 = vpop.f32.mrf.mxu0
      %v1731 = vadd.f32 0.0, %v1730
      %v1732 = vpop.f32.mrf.mxu0
      %v1733 = vadd.f32 0.0, %v1732
      %1734 = vmatmul.bf16.gmra.mxu0 %v1618
      %v1735 = vpop.f32.mrf.mxu0
      %v1736 = vadd.f32 0.0, %v1735
      %v1737 = vpop.f32.mrf.mxu0
      %v1738 = vadd.f32 0.0, %v1737
      %1739 = vmatmul.bf16.gmra.mxu0 %v1619
      %v1740 = vpop.f32.mrf.mxu0
      %v1741 = vadd.f32 0.0, %v1740
      %v1742 = vpop.f32.mrf.mxu0
      %v1743 = vadd.f32 0.0, %v1742
      %1744 = vmatmul.bf16.gmra.mxu0 %v1620
      %v1745 = vpop.f32.mrf.mxu0
      %v1746 = vadd.f32 0.0, %v1745
      %v1747 = vpop.f32.mrf.mxu0
      %v1748 = vadd.f32 0.0, %v1747
      %1749 = vmatmul.bf16.gmra.mxu0 %v1621
      %v1750 = vpop.f32.mrf.mxu0
      %v1751 = vadd.f32 0.0, %v1750
      %v1752 = vpop.f32.mrf.mxu0
      %v1753 = vadd.f32 0.0, %v1752
      %1754 = vmatmul.bf16.gmra.mxu0 %v1622
      %v1755 = vpop.f32.mrf.mxu0
      %v1756 = vadd.f32 0.0, %v1755
      %v1757 = vpop.f32.mrf.mxu0
      %v1758 = vadd.f32 0.0, %v1757
      %1759 = vmatmul.bf16.gmra.mxu0 %v1623
      %v1760 = vpop.f32.mrf.mxu0
      %v1761 = vadd.f32 0.0, %v1760
      %v1762 = vpop.f32.mrf.mxu0
      %v1763 = vadd.f32 0.0, %v1762
      %1764 = vmatmul.bf16.gmra.mxu0 %v1624
      %v1765 = vpop.f32.mrf.mxu0
      %v1766 = vadd.f32 0.0, %v1765
      %v1767 = vpop.f32.mrf.mxu0
      %v1768 = vadd.f32 0.0, %v1767
      %1769 = vmatmul.bf16.gmra.mxu0 %v1625
      %v1770 = vpop.f32.mrf.mxu0
      %v1771 = vadd.f32 0.0, %v1770
      %v1772 = vpop.f32.mrf.mxu0
      %v1773 = vadd.f32 0.0, %v1772
      %1774 = vmatmul.bf16.gmra.mxu0 %v1626
      %v1775 = vpop.f32.mrf.mxu0
      %v1776 = vadd.f32 0.0, %v1775
      %v1777 = vpop.f32.mrf.mxu0
      %v1778 = vadd.f32 0.0, %v1777
      %1779 = vdwg.mxu0
      %v1780 = vadd.f32 %v1465, %v1701
      %v1781 = vadd.f32 %v1466, %v1703
      %v1782 = vadd.f32 %v1467, %v1706
      %v1783 = vadd.f32 %v1468, %v1708
      %v1784 = vadd.f32 %v1469, %v1711
      %v1785 = vadd.f32 %v1470, %v1713
      %v1786 = vadd.f32 %v1471, %v1716
      %v1787 = vadd.f32 %v1472, %v1718
      %v1788 = vadd.f32 %v1473, %v1721
      %v1789 = vadd.f32 %v1474, %v1723
      %v1790 = vadd.f32 %v1475, %v1726
      %v1791 = vadd.f32 %v1476, %v1728
      %v1792 = vadd.f32 %v1477, %v1731
      %v1793 = vadd.f32 %v1478, %v1733
      %v1794 = vadd.f32 %v1479, %v1736
      %v1795 = vadd.f32 %v1480, %v1738
      %v1796 = vadd.f32 %v1481, %v1741
      %v1797 = vadd.f32 %v1482, %v1743
      %v1798 = vadd.f32 %v1483, %v1746
      %v1799 = vadd.f32 %v1484, %v1748
      %v1800 = vadd.f32 %v1485, %v1751
      %v1801 = vadd.f32 %v1486, %v1753
      %v1802 = vadd.f32 %v1487, %v1756
      %v1803 = vadd.f32 %v1488, %v1758
      %v1804 = vadd.f32 %v1489, %v1761
      %v1805 = vadd.f32 %v1490, %v1763
      %v1806 = vadd.f32 %v1491, %v1766
      %v1807 = vadd.f32 %v1492, %v1768
      %v1808 = vadd.f32 %v1493, %v1771
      %v1809 = vadd.f32 %v1494, %v1773
      %v1810 = vadd.f32 %v1495, %v1776
      %v1811 = vadd.f32 %v1496, %v1778
      %v1812 = vld [vmem:[%s1497] sm:$0xf]
      %v1813 = vld [vmem:[%s1497 + $0x4] sm:$0xf]
      %v1814 = vld [vmem:[%s1497 + $0x8] sm:$0x1]
      %v1815 = vld [vmem:[%s1497 + $0xc] sm:$0xf]
      %v1816 = vld [vmem:[%s1497 + $0x10] sm:$0xf]
      %v1817 = vld [vmem:[%s1497 + $0x14] sm:$0x1]
      %v1818 = vld [vmem:[%s1497 + $0x18] sm:$0xf]
      %v1819 = vld [vmem:[%s1497 + $0x1c] sm:$0xf]
      %v1820 = vld [vmem:[%s1497 + $0x20] sm:$0x1]
      %v1821 = vld [vmem:[%s1497 + $0x24] sm:$0xf]
      %v1822 = vld [vmem:[%s1497 + $0x28] sm:$0xf]
      %v1823 = vld [vmem:[%s1497 + $0x2c] sm:$0x1]
      %v1824 = vld [vmem:[%s1497 + $0x30] sm:$0xf]
      %v1825 = vld [vmem:[%s1497 + $0x34] sm:$0xf]
      %v1826 = vld [vmem:[%s1497 + $0x38] sm:$0x1]
      %v1827 = vld [vmem:[%s1497 + $0x3c] sm:$0xf]
      %v1828 = vld [vmem:[%s1497 + $0x40] sm:$0xf]
      %v1829 = vld [vmem:[%s1497 + $0x44] sm:$0x1]
      %v1830 = vld [vmem:[%s1497 + $0x48] sm:$0xf]
      %v1831 = vld [vmem:[%s1497 + $0x4c] sm:$0xf]
      %v1832 = vld [vmem:[%s1497 + $0x50] sm:$0x1]
      %v1833 = vld [vmem:[%s1497 + $0x54] sm:$0xf]
      %v1834 = vld [vmem:[%s1497 + $0x58] sm:$0xf]
      %v1835 = vld [vmem:[%s1497 + $0x5c] sm:$0x1]
      %v1836 = vld [vmem:[%s1497 + $0x60] sm:$0xf]
      %v1837 = vld [vmem:[%s1497 + $0x64] sm:$0xf]
      %v1838 = vld [vmem:[%s1497 + $0x68] sm:$0x1]
      %v1839 = vld [vmem:[%s1497 + $0x6c] sm:$0xf]
      %v1840 = vld [vmem:[%s1497 + $0x70] sm:$0xf]
      %v1841 = vld [vmem:[%s1497 + $0x74] sm:$0x1]
      %v1842 = vld [vmem:[%s1497 + $0x78] sm:$0xf]
      %v1843 = vld [vmem:[%s1497 + $0x7c] sm:$0xf]
      %v1844 = vld [vmem:[%s1497 + $0x80] sm:$0x1]
      %v1845 = vld [vmem:[%s1497 + $0x84] sm:$0xf]
      %v1846 = vld [vmem:[%s1497 + $0x88] sm:$0xf]
      %v1847 = vld [vmem:[%s1497 + $0x8c] sm:$0x1]
      %v1848 = vld [vmem:[%s1497 + $0x90] sm:$0xf]
      %v1849 = vld [vmem:[%s1497 + $0x94] sm:$0xf]
      %v1850 = vld [vmem:[%s1497 + $0x98] sm:$0x1]
      %v1851 = vld [vmem:[%s1497 + $0x9c] sm:$0xf]
      %v1852 = vld [vmem:[%s1497 + $0xa0] sm:$0xf]
      %v1853 = vld [vmem:[%s1497 + $0xa4] sm:$0x1]
      %v1854 = vld [vmem:[%s1497 + $0xa8] sm:$0xf]
      %v1855 = vld [vmem:[%s1497 + $0xac] sm:$0xf]
      %v1856 = vld [vmem:[%s1497 + $0xb0] sm:$0x1]
      %v1857 = vld [vmem:[%s1497 + $0xb4] sm:$0xf]
      %v1858 = vld [vmem:[%s1497 + $0xb8] sm:$0xf]
      %v1859 = vld [vmem:[%s1497 + $0xbc] sm:$0x1]
      %v1861 = vshrl.u32 %v1812, 16
      %v1863 = vrot.slane %v1861, 4
      %v1864 = vshll.u32 %v1812, 16
      %v1866 = vrot.slane %v1864, 5
      %v1867 = vor.u32 %v1863, %v1866
      %v1868 = vrot.slane %v1867, 4
      %v1870 = vshll.u32 %v1813, 16
      %v1872 = vrot.slane %v1870, 5
      %v1873 = vsel %vm248, %v1868, %v1872
      %v1874 = vshrl.u32 %v1813, 16
      %v1876 = vrot.slane %v1874, 4
      %v1877 = vor.u32 %v1876, %v1872
      %v1878 = vrot.slane %v1877, 4
      %v1880 = vshll.u32 %v1814, 16
      %v1882 = vrot.slane %v1880, 5
      %v1883 = vsel %vm248, %v1878, %v1882
      %v1885 = vshrl.u32 %v1815, 16
      %v1887 = vrot.slane %v1885, 4
      %v1888 = vshll.u32 %v1815, 16
      %v1890 = vrot.slane %v1888, 5
      %v1891 = vor.u32 %v1887, %v1890
      %v1892 = vrot.slane %v1891, 4
      %v1894 = vshll.u32 %v1816, 16
      %v1896 = vrot.slane %v1894, 5
      %v1897 = vsel %vm248, %v1892, %v1896
      %v1898 = vshrl.u32 %v1816, 16
      %v1900 = vrot.slane %v1898, 4
      %v1901 = vor.u32 %v1900, %v1896
      %v1902 = vrot.slane %v1901, 4
      %v1904 = vshll.u32 %v1817, 16
      %v1906 = vrot.slane %v1904, 5
      %v1907 = vsel %vm248, %v1902, %v1906
      %v1909 = vshrl.u32 %v1818, 16
      %v1911 = vrot.slane %v1909, 4
      %v1912 = vshll.u32 %v1818, 16
      %v1914 = vrot.slane %v1912, 5
      %v1915 = vor.u32 %v1911, %v1914
      %v1916 = vrot.slane %v1915, 4
      %v1918 = vshll.u32 %v1819, 16
      %v1920 = vrot.slane %v1918, 5
      %v1921 = vsel %vm248, %v1916, %v1920
      %v1922 = vshrl.u32 %v1819, 16
      %v1924 = vrot.slane %v1922, 4
      %v1925 = vor.u32 %v1924, %v1920
      %v1926 = vrot.slane %v1925, 4
      %v1928 = vshll.u32 %v1820, 16
      %v1930 = vrot.slane %v1928, 5
      %v1931 = vsel %vm248, %v1926, %v1930
      %v1933 = vshrl.u32 %v1821, 16
      %v1935 = vrot.slane %v1933, 4
      %v1936 = vshll.u32 %v1821, 16
      %v1938 = vrot.slane %v1936, 5
      %v1939 = vor.u32 %v1935, %v1938
      %v1940 = vrot.slane %v1939, 4
      %v1942 = vshll.u32 %v1822, 16
      %v1944 = vrot.slane %v1942, 5
      %v1945 = vsel %vm248, %v1940, %v1944
      %v1946 = vshrl.u32 %v1822, 16
      %v1948 = vrot.slane %v1946, 4
      %v1949 = vor.u32 %v1948, %v1944
      %v1950 = vrot.slane %v1949, 4
      %v1952 = vshll.u32 %v1823, 16
      %v1954 = vrot.slane %v1952, 5
      %v1955 = vsel %vm248, %v1950, %v1954
      %v1957 = vshrl.u32 %v1824, 16
      %v1959 = vrot.slane %v1957, 4
      %v1960 = vshll.u32 %v1824, 16
      %v1962 = vrot.slane %v1960, 5
      %v1963 = vor.u32 %v1959, %v1962
      %v1964 = vrot.slane %v1963, 4
      %v1966 = vshll.u32 %v1825, 16
      %v1968 = vrot.slane %v1966, 5
      %v1969 = vsel %vm248, %v1964, %v1968
      %v1970 = vshrl.u32 %v1825, 16
      %v1972 = vrot.slane %v1970, 4
      %v1973 = vor.u32 %v1972, %v1968
      %v1974 = vrot.slane %v1973, 4
      %v1976 = vshll.u32 %v1826, 16
      %v1978 = vrot.slane %v1976, 5
      %v1979 = vsel %vm248, %v1974, %v1978
      %v1981 = vshrl.u32 %v1827, 16
      %v1983 = vrot.slane %v1981, 4
      %v1984 = vshll.u32 %v1827, 16
      %v1986 = vrot.slane %v1984, 5
      %v1987 = vor.u32 %v1983, %v1986
      %v1988 = vrot.slane %v1987, 4
      %v1990 = vshll.u32 %v1828, 16
      %v1992 = vrot.slane %v1990, 5
      %v1993 = vsel %vm248, %v1988, %v1992
      %v1994 = vshrl.u32 %v1828, 16
      %v1996 = vrot.slane %v1994, 4
      %v1997 = vor.u32 %v1996, %v1992
      %v1998 = vrot.slane %v1997, 4
      %v2000 = vshll.u32 %v1829, 16
      %v2002 = vrot.slane %v2000, 5
      %v2003 = vsel %vm248, %v1998, %v2002
      %v2005 = vshrl.u32 %v1830, 16
      %v2007 = vrot.slane %v2005, 4
      %v2008 = vshll.u32 %v1830, 16
      %v2010 = vrot.slane %v2008, 5
      %v2011 = vor.u32 %v2007, %v2010
      %v2012 = vrot.slane %v2011, 4
      %v2014 = vshll.u32 %v1831, 16
      %v2016 = vrot.slane %v2014, 5
      %v2017 = vsel %vm248, %v2012, %v2016
      %v2018 = vshrl.u32 %v1831, 16
      %v2020 = vrot.slane %v2018, 4
      %v2021 = vor.u32 %v2020, %v2016
      %v2022 = vrot.slane %v2021, 4
      %v2024 = vshll.u32 %v1832, 16
      %v2026 = vrot.slane %v2024, 5
      %v2027 = vsel %vm248, %v2022, %v2026
      %v2029 = vshrl.u32 %v1833, 16
      %v2031 = vrot.slane %v2029, 4
      %v2032 = vshll.u32 %v1833, 16
      %v2034 = vrot.slane %v2032, 5
      %v2035 = vor.u32 %v2031, %v2034
      %v2036 = vrot.slane %v2035, 4
      %v2038 = vshll.u32 %v1834, 16
      %v2040 = vrot.slane %v2038, 5
      %v2041 = vsel %vm248, %v2036, %v2040
      %v2042 = vshrl.u32 %v1834, 16
      %v2044 = vrot.slane %v2042, 4
      %v2045 = vor.u32 %v2044, %v2040
      %v2046 = vrot.slane %v2045, 4
      %v2048 = vshll.u32 %v1835, 16
      %v2050 = vrot.slane %v2048, 5
      %v2051 = vsel %vm248, %v2046, %v2050
      %v2053 = vshrl.u32 %v1836, 16
      %v2055 = vrot.slane %v2053, 4
      %v2056 = vshll.u32 %v1836, 16
      %v2058 = vrot.slane %v2056, 5
      %v2059 = vor.u32 %v2055, %v2058
      %v2060 = vrot.slane %v2059, 4
      %v2062 = vshll.u32 %v1837, 16
      %v2064 = vrot.slane %v2062, 5
      %v2065 = vsel %vm248, %v2060, %v2064
      %v2066 = vshrl.u32 %v1837, 16
      %v2068 = vrot.slane %v2066, 4
      %v2069 = vor.u32 %v2068, %v2064
      %v2070 = vrot.slane %v2069, 4
      %v2072 = vshll.u32 %v1838, 16
      %v2074 = vrot.slane %v2072, 5
      %v2075 = vsel %vm248, %v2070, %v2074
      %v2077 = vshrl.u32 %v1839, 16
      %v2079 = vrot.slane %v2077, 4
      %v2080 = vshll.u32 %v1839, 16
      %v2082 = vrot.slane %v2080, 5
      %v2083 = vor.u32 %v2079, %v2082
      %v2084 = vrot.slane %v2083, 4
      %v2086 = vshll.u32 %v1840, 16
      %v2088 = vrot.slane %v2086, 5
      %v2089 = vsel %vm248, %v2084, %v2088
      %v2090 = vshrl.u32 %v1840, 16
      %v2092 = vrot.slane %v2090, 4
      %v2093 = vor.u32 %v2092, %v2088
      %v2094 = vrot.slane %v2093, 4
      %v2096 = vshll.u32 %v1841, 16
      %v2098 = vrot.slane %v2096, 5
      %v2099 = vsel %vm248, %v2094, %v2098
      %v2101 = vshrl.u32 %v1842, 16
      %v2103 = vrot.slane %v2101, 4
      %v2104 = vshll.u32 %v1842, 16
      %v2106 = vrot.slane %v2104, 5
      %v2107 = vor.u32 %v2103, %v2106
      %v2108 = vrot.slane %v2107, 4
      %v2110 = vshll.u32 %v1843, 16
      %v2112 = vrot.slane %v2110, 5
      %v2113 = vsel %vm248, %v2108, %v2112
      %v2114 = vshrl.u32 %v1843, 16
      %v2116 = vrot.slane %v2114, 4
      %v2117 = vor.u32 %v2116, %v2112
      %v2118 = vrot.slane %v2117, 4
      %v2120 = vshll.u32 %v1844, 16
      %v2122 = vrot.slane %v2120, 5
      %v2123 = vsel %vm248, %v2118, %v2122
      %v2125 = vshrl.u32 %v1845, 16
      %v2127 = vrot.slane %v2125, 4
      %v2128 = vshll.u32 %v1845, 16
      %v2130 = vrot.slane %v2128, 5
      %v2131 = vor.u32 %v2127, %v2130
      %v2132 = vrot.slane %v2131, 4
      %v2134 = vshll.u32 %v1846, 16
      %v2136 = vrot.slane %v2134, 5
      %v2137 = vsel %vm248, %v2132, %v2136
      %v2138 = vshrl.u32 %v1846, 16
      %v2140 = vrot.slane %v2138, 4
      %v2141 = vor.u32 %v2140, %v2136
      %v2142 = vrot.slane %v2141, 4
      %v2144 = vshll.u32 %v1847, 16
      %v2146 = vrot.slane %v2144, 5
      %v2147 = vsel %vm248, %v2142, %v2146
      %v2149 = vshrl.u32 %v1848, 16
      %v2151 = vrot.slane %v2149, 4
      %v2152 = vshll.u32 %v1848, 16
      %v2154 = vrot.slane %v2152, 5
      %v2155 = vor.u32 %v2151, %v2154
      %v2156 = vrot.slane %v2155, 4
      %v2158 = vshll.u32 %v1849, 16
      %v2160 = vrot.slane %v2158, 5
      %v2161 = vsel %vm248, %v2156, %v2160
      %v2162 = vshrl.u32 %v1849, 16
      %v2164 = vrot.slane %v2162, 4
      %v2165 = vor.u32 %v2164, %v2160
      %v2166 = vrot.slane %v2165, 4
      %v2168 = vshll.u32 %v1850, 16
      %v2170 = vrot.slane %v2168, 5
      %v2171 = vsel %vm248, %v2166, %v2170
      %v2173 = vshrl.u32 %v1851, 16
      %v2175 = vrot.slane %v2173, 4
      %v2176 = vshll.u32 %v1851, 16
      %v2178 = vrot.slane %v2176, 5
      %v2179 = vor.u32 %v2175, %v2178
      %v2180 = vrot.slane %v2179, 4
      %v2182 = vshll.u32 %v1852, 16
      %v2184 = vrot.slane %v2182, 5
      %v2185 = vsel %vm248, %v2180, %v2184
      %v2186 = vshrl.u32 %v1852, 16
      %v2188 = vrot.slane %v2186, 4
      %v2189 = vor.u32 %v2188, %v2184
      %v2190 = vrot.slane %v2189, 4
      %v2192 = vshll.u32 %v1853, 16
      %v2194 = vrot.slane %v2192, 5
      %v2195 = vsel %vm248, %v2190, %v2194
      %v2197 = vshrl.u32 %v1854, 16
      %v2199 = vrot.slane %v2197, 4
      %v2200 = vshll.u32 %v1854, 16
      %v2202 = vrot.slane %v2200, 5
      %v2203 = vor.u32 %v2199, %v2202
      %v2204 = vrot.slane %v2203, 4
      %v2206 = vshll.u32 %v1855, 16
      %v2208 = vrot.slane %v2206, 5
      %v2209 = vsel %vm248, %v2204, %v2208
      %v2210 = vshrl.u32 %v1855, 16
      %v2212 = vrot.slane %v2210, 4
      %v2213 = vor.u32 %v2212, %v2208
      %v2214 = vrot.slane %v2213, 4
      %v2216 = vshll.u32 %v1856, 16
      %v2218 = vrot.slane %v2216, 5
      %v2219 = vsel %vm248, %v2214, %v2218
      %v2221 = vshrl.u32 %v1857, 16
      %v2223 = vrot.slane %v2221, 4
      %v2224 = vshll.u32 %v1857, 16
      %v2226 = vrot.slane %v2224, 5
      %v2227 = vor.u32 %v2223, %v2226
      %v2228 = vrot.slane %v2227, 4
      %v2230 = vshll.u32 %v1858, 16
      %v2232 = vrot.slane %v2230, 5
      %v2233 = vsel %vm248, %v2228, %v2232
      %v2234 = vshrl.u32 %v1858, 16
      %v2236 = vrot.slane %v2234, 4
      %v2237 = vor.u32 %v2236, %v2232
      %v2238 = vrot.slane %v2237, 4
      %v2240 = vshll.u32 %v1859, 16
      %v2242 = vrot.slane %v2240, 5
      %v2243 = vsel %vm248, %v2238, %v2242
      %s2244 = scalar_lea.vmem %s1, 256
      %v2245 = vld [vmem:[%s2244] sm:$0xf]
      %v2246 = vld [vmem:[%s2244 + $0x4] sm:$0xf]
      %v2247 = vld [vmem:[%s2244 + $0x8] sm:$0xf]
      %v2248 = vld [vmem:[%s2244 + $0xc] sm:$0xf]
      %v2249 = vld [vmem:[%s2244 + $0x10] sm:$0xf]
      %v2250 = vld [vmem:[%s2244 + $0x14] sm:$0xf]
      %v2251 = vld [vmem:[%s2244 + $0x18] sm:$0xf]
      %v2252 = vld [vmem:[%s2244 + $0x1c] sm:$0xf]
      %v2253 = vld [vmem:[%s2244 + $0x20] sm:$0xf]
      %v2254 = vld [vmem:[%s2244 + $0x24] sm:$0xf]
      %v2255 = vld [vmem:[%s2244 + $0x28] sm:$0xf]
      %v2256 = vld [vmem:[%s2244 + $0x2c] sm:$0xf]
      %v2257 = vld [vmem:[%s2244 + $0x30] sm:$0xf]
      %v2258 = vld [vmem:[%s2244 + $0x34] sm:$0xf]
      %v2259 = vld [vmem:[%s2244 + $0x38] sm:$0xf]
      %v2260 = vld [vmem:[%s2244 + $0x3c] sm:$0xf]
      %v2261 = vunpack.c.l.b16 %v1873
      %v2262 = vunpack.c.l.b16 %v1883
      %v2263 = vunpack.c.l.b16 %v1897
      %v2264 = vunpack.c.l.b16 %v1907
      %v2265 = vunpack.c.l.b16 %v1921
      %v2266 = vunpack.c.l.b16 %v1931
      %v2267 = vunpack.c.l.b16 %v1945
      %v2268 = vunpack.c.l.b16 %v1955
      %v2269 = vunpack.c.l.b16 %v1969
      %v2270 = vunpack.c.l.b16 %v1979
      %v2271 = vunpack.c.l.b16 %v1993
      %v2272 = vunpack.c.l.b16 %v2003
      %v2273 = vunpack.c.l.b16 %v2017
      %v2274 = vunpack.c.l.b16 %v2027
      %v2275 = vunpack.c.l.b16 %v2041
      %v2276 = vunpack.c.l.b16 %v2051
      %v2277 = vunpack.c.l.b16 %v2065
      %v2278 = vunpack.c.l.b16 %v2075
      %v2279 = vunpack.c.l.b16 %v2089
      %v2280 = vunpack.c.l.b16 %v2099
      %v2281 = vunpack.c.l.b16 %v2113
      %v2282 = vunpack.c.l.b16 %v2123
      %v2283 = vunpack.c.l.b16 %v2137
      %v2284 = vunpack.c.l.b16 %v2147
      %v2285 = vunpack.c.l.b16 %v2161
      %v2286 = vunpack.c.l.b16 %v2171
      %v2287 = vunpack.c.l.b16 %v2185
      %v2288 = vunpack.c.l.b16 %v2195
      %v2289 = vunpack.c.l.b16 %v2209
      %v2290 = vunpack.c.l.b16 %v2219
      %v2291 = vunpack.c.l.b16 %v2233
      %v2292 = vunpack.c.l.b16 %v2243
      %v2293 = vpack.c.b16 %v2262, %v2261
      %v2294 = vpack.c.b16 %v2264, %v2263
      %v2295 = vpack.c.b16 %v2266, %v2265
      %v2296 = vpack.c.b16 %v2268, %v2267
      %v2297 = vpack.c.b16 %v2270, %v2269
      %v2298 = vpack.c.b16 %v2272, %v2271
      %v2299 = vpack.c.b16 %v2274, %v2273
      %v2300 = vpack.c.b16 %v2276, %v2275
      %v2301 = vpack.c.b16 %v2278, %v2277
      %v2302 = vpack.c.b16 %v2280, %v2279
      %v2303 = vpack.c.b16 %v2282, %v2281
      %v2304 = vpack.c.b16 %v2284, %v2283
      %v2305 = vpack.c.b16 %v2286, %v2285
      %v2306 = vpack.c.b16 %v2288, %v2287
      %v2307 = vpack.c.b16 %v2290, %v2289
      %v2308 = vpack.c.b16 %v2292, %v2291
      %v2341 = vunpack.c.l.b16 %v2245
      %v2342 = vunpack.c.l.b16 %v2246
      %v2343 = vunpack.c.l.b16 %v2247
      %v2344 = vunpack.c.l.b16 %v2248
      %v2345 = vunpack.c.l.b16 %v2249
      %v2346 = vunpack.c.l.b16 %v2250
      %v2347 = vunpack.c.l.b16 %v2251
      %v2348 = vunpack.c.l.b16 %v2252
      %v2349 = vunpack.c.l.b16 %v2253
      %v2350 = vunpack.c.l.b16 %v2254
      %v2351 = vunpack.c.l.b16 %v2255
      %v2352 = vunpack.c.l.b16 %v2256
      %v2353 = vunpack.c.l.b16 %v2257
      %v2354 = vunpack.c.l.b16 %v2258
      %v2355 = vunpack.c.l.b16 %v2259
      %v2356 = vunpack.c.l.b16 %v2260
      %v2357 = vpack.c.b16 %v2342, %v2341
      %v2358 = vpack.c.b16 %v2344, %v2343
      %v2359 = vpack.c.b16 %v2346, %v2345
      %v2360 = vpack.c.b16 %v2348, %v2347
      %v2361 = vpack.c.b16 %v2350, %v2349
      %v2362 = vpack.c.b16 %v2352, %v2351
      %v2363 = vpack.c.b16 %v2354, %v2353
      %v2364 = vpack.c.b16 %v2356, %v2355
      %2373 = vmatpush.bf16.msra.mxu0 %v2364
      %2374 = vmatpush.bf16.msra.mxu0 %v2363
      %2375 = vmatpush.bf16.msra.mxu0 %v2362
      %2376 = vmatpush.bf16.msra.mxu0 %v2361
      %2377 = vmatpush.bf16.msra.mxu0 %v2360
      %2378 = vmatpush.bf16.msra.mxu0 %v2359
      %2379 = vmatpush.bf16.msra.mxu0 %v2358
      %2380 = vmatpush.bf16.msra.mxu0 %v2357
      %2381 = vmatmul.bf16.gmra.mxu0 %v2293
      %v2382 = vpop.f32.mrf.mxu0
      %v2383 = vadd.f32 0.0, %v2382
      %v2384 = vpop.f32.mrf.mxu0
      %v2385 = vadd.f32 0.0, %v2384
      %2386 = vmatmul.bf16.gmra.mxu0 %v2294
      %v2387 = vpop.f32.mrf.mxu0
      %v2388 = vadd.f32 0.0, %v2387
      %v2389 = vpop.f32.mrf.mxu0
      %v2390 = vadd.f32 0.0, %v2389
      %2391 = vmatmul.bf16.gmra.mxu0 %v2295
      %v2392 = vpop.f32.mrf.mxu0
      %v2393 = vadd.f32 0.0, %v2392
      %v2394 = vpop.f32.mrf.mxu0
      %v2395 = vadd.f32 0.0, %v2394
      %2396 = vmatmul.bf16.gmra.mxu0 %v2296
      %v2397 = vpop.f32.mrf.mxu0
      %v2398 = vadd.f32 0.0, %v2397
      %v2399 = vpop.f32.mrf.mxu0
      %v2400 = vadd.f32 0.0, %v2399
      %2401 = vmatmul.bf16.gmra.mxu0 %v2297
      %v2402 = vpop.f32.mrf.mxu0
      %v2403 = vadd.f32 0.0, %v2402
      %v2404 = vpop.f32.mrf.mxu0
      %v2405 = vadd.f32 0.0, %v2404
      %2406 = vmatmul.bf16.gmra.mxu0 %v2298
      %v2407 = vpop.f32.mrf.mxu0
      %v2408 = vadd.f32 0.0, %v2407
      %v2409 = vpop.f32.mrf.mxu0
      %v2410 = vadd.f32 0.0, %v2409
      %2411 = vmatmul.bf16.gmra.mxu0 %v2299
      %v2412 = vpop.f32.mrf.mxu0
      %v2413 = vadd.f32 0.0, %v2412
      %v2414 = vpop.f32.mrf.mxu0
      %v2415 = vadd.f32 0.0, %v2414
      %2416 = vmatmul.bf16.gmra.mxu0 %v2300
      %v2417 = vpop.f32.mrf.mxu0
      %v2418 = vadd.f32 0.0, %v2417
      %v2419 = vpop.f32.mrf.mxu0
      %v2420 = vadd.f32 0.0, %v2419
      %2421 = vmatmul.bf16.gmra.mxu0 %v2301
      %v2422 = vpop.f32.mrf.mxu0
      %v2423 = vadd.f32 0.0, %v2422
      %v2424 = vpop.f32.mrf.mxu0
      %v2425 = vadd.f32 0.0, %v2424
      %2426 = vmatmul.bf16.gmra.mxu0 %v2302
      %v2427 = vpop.f32.mrf.mxu0
      %v2428 = vadd.f32 0.0, %v2427
      %v2429 = vpop.f32.mrf.mxu0
      %v2430 = vadd.f32 0.0, %v2429
      %2431 = vmatmul.bf16.gmra.mxu0 %v2303
      %v2432 = vpop.f32.mrf.mxu0
      %v2433 = vadd.f32 0.0, %v2432
      %v2434 = vpop.f32.mrf.mxu0
      %v2435 = vadd.f32 0.0, %v2434
      %2436 = vmatmul.bf16.gmra.mxu0 %v2304
      %v2437 = vpop.f32.mrf.mxu0
      %v2438 = vadd.f32 0.0, %v2437
      %v2439 = vpop.f32.mrf.mxu0
      %v2440 = vadd.f32 0.0, %v2439
      %2441 = vmatmul.bf16.gmra.mxu0 %v2305
      %v2442 = vpop.f32.mrf.mxu0
      %v2443 = vadd.f32 0.0, %v2442
      %v2444 = vpop.f32.mrf.mxu0
      %v2445 = vadd.f32 0.0, %v2444
      %2446 = vmatmul.bf16.gmra.mxu0 %v2306
      %v2447 = vpop.f32.mrf.mxu0
      %v2448 = vadd.f32 0.0, %v2447
      %v2449 = vpop.f32.mrf.mxu0
      %v2450 = vadd.f32 0.0, %v2449
      %2451 = vmatmul.bf16.gmra.mxu0 %v2307
      %v2452 = vpop.f32.mrf.mxu0
      %v2453 = vadd.f32 0.0, %v2452
      %v2454 = vpop.f32.mrf.mxu0
      %v2455 = vadd.f32 0.0, %v2454
      %2456 = vmatmul.bf16.gmra.mxu0 %v2308
      %v2457 = vpop.f32.mrf.mxu0
      %v2458 = vadd.f32 0.0, %v2457
      %v2459 = vpop.f32.mrf.mxu0
      %v2460 = vadd.f32 0.0, %v2459
      %2461 = vdwg.mxu0
      %v2462 = vadd.f32 %v1780, %v2383
      %v2463 = vadd.f32 %v1781, %v2385
      %v2464 = vadd.f32 %v1782, %v2388
      %v2465 = vadd.f32 %v1783, %v2390
      %v2466 = vadd.f32 %v1784, %v2393
      %v2467 = vadd.f32 %v1785, %v2395
      %v2468 = vadd.f32 %v1786, %v2398
      %v2469 = vadd.f32 %v1787, %v2400
      %v2470 = vadd.f32 %v1788, %v2403
      %v2471 = vadd.f32 %v1789, %v2405
      %v2472 = vadd.f32 %v1790, %v2408
      %v2473 = vadd.f32 %v1791, %v2410
      %v2474 = vadd.f32 %v1792, %v2413
      %v2475 = vadd.f32 %v1793, %v2415
      %v2476 = vadd.f32 %v1794, %v2418
      %v2477 = vadd.f32 %v1795, %v2420
      %v2478 = vadd.f32 %v1796, %v2423
      %v2479 = vadd.f32 %v1797, %v2425
      %v2480 = vadd.f32 %v1798, %v2428
      %v2481 = vadd.f32 %v1799, %v2430
      %v2482 = vadd.f32 %v1800, %v2433
      %v2483 = vadd.f32 %v1801, %v2435
      %v2484 = vadd.f32 %v1802, %v2438
      %v2485 = vadd.f32 %v1803, %v2440
      %v2486 = vadd.f32 %v1804, %v2443
      %v2487 = vadd.f32 %v1805, %v2445
      %v2488 = vadd.f32 %v1806, %v2448
      %v2489 = vadd.f32 %v1807, %v2450
      %v2490 = vadd.f32 %v1808, %v2453
      %v2491 = vadd.f32 %v1809, %v2455
      %v2492 = vadd.f32 %v1810, %v2458
      %v2493 = vadd.f32 %v1811, %v2460
      %v2494 = vld [vmem:[%s1497] sm:$0xe]
      %v2495 = vld [vmem:[%s1497 + $0xc] sm:$0xe]
      %v2496 = vld [vmem:[%s1497 + $0x18] sm:$0xe]
      %v2497 = vld [vmem:[%s1497 + $0x24] sm:$0xe]
      %v2498 = vld [vmem:[%s1497 + $0x30] sm:$0xe]
      %v2499 = vld [vmem:[%s1497 + $0x3c] sm:$0xe]
      %v2500 = vld [vmem:[%s1497 + $0x48] sm:$0xe]
      %v2501 = vld [vmem:[%s1497 + $0x54] sm:$0xe]
      %v2502 = vld [vmem:[%s1497 + $0x60] sm:$0xe]
      %v2503 = vld [vmem:[%s1497 + $0x6c] sm:$0xe]
      %v2504 = vld [vmem:[%s1497 + $0x78] sm:$0xe]
      %v2505 = vld [vmem:[%s1497 + $0x84] sm:$0xe]
      %v2506 = vld [vmem:[%s1497 + $0x90] sm:$0xe]
      %v2507 = vld [vmem:[%s1497 + $0x9c] sm:$0xe]
      %v2508 = vld [vmem:[%s1497 + $0xa8] sm:$0xe]
      %v2509 = vld [vmem:[%s1497 + $0xb4] sm:$0xe]
      %v2558 = vrot.slane %v2494, 5
      %v2559 = vrot.slane %v2558, 4
      %v2560 = vrot.slane %v1813, 5
      %v2561 = vsel %vm1134, %v2559, %v2560
      %v2562 = vrot.slane %v2560, 4
      %v2563 = vrot.slane %v1814, 5
      %v2564 = vsel %vm1134, %v2562, %v2563
      %v2565 = vrot.slane %v2495, 5
      %v2566 = vrot.slane %v2565, 4
      %v2567 = vrot.slane %v1816, 5
      %v2568 = vsel %vm1134, %v2566, %v2567
      %v2569 = vrot.slane %v2567, 4
      %v2570 = vrot.slane %v1817, 5
      %v2571 = vsel %vm1134, %v2569, %v2570
      %v2572 = vrot.slane %v2496, 5
      %v2573 = vrot.slane %v2572, 4
      %v2574 = vrot.slane %v1819, 5
      %v2575 = vsel %vm1134, %v2573, %v2574
      %v2576 = vrot.slane %v2574, 4
      %v2577 = vrot.slane %v1820, 5
      %v2578 = vsel %vm1134, %v2576, %v2577
      %v2579 = vrot.slane %v2497, 5
      %v2580 = vrot.slane %v2579, 4
      %v2581 = vrot.slane %v1822, 5
      %v2582 = vsel %vm1134, %v2580, %v2581
      %v2583 = vrot.slane %v2581, 4
      %v2584 = vrot.slane %v1823, 5
      %v2585 = vsel %vm1134, %v2583, %v2584
      %v2586 = vrot.slane %v2498, 5
      %v2587 = vrot.slane %v2586, 4
      %v2588 = vrot.slane %v1825, 5
      %v2589 = vsel %vm1134, %v2587, %v2588
      %v2590 = vrot.slane %v2588, 4
      %v2591 = vrot.slane %v1826, 5
      %v2592 = vsel %vm1134, %v2590, %v2591
      %v2593 = vrot.slane %v2499, 5
      %v2594 = vrot.slane %v2593, 4
      %v2595 = vrot.slane %v1828, 5
      %v2596 = vsel %vm1134, %v2594, %v2595
      %v2597 = vrot.slane %v2595, 4
      %v2598 = vrot.slane %v1829, 5
      %v2599 = vsel %vm1134, %v2597, %v2598
      %v2600 = vrot.slane %v2500, 5
      %v2601 = vrot.slane %v2600, 4
      %v2602 = vrot.slane %v1831, 5
      %v2603 = vsel %vm1134, %v2601, %v2602
      %v2604 = vrot.slane %v2602, 4
      %v2605 = vrot.slane %v1832, 5
      %v2606 = vsel %vm1134, %v2604, %v2605
      %v2607 = vrot.slane %v2501, 5
      %v2608 = vrot.slane %v2607, 4
      %v2609 = vrot.slane %v1834, 5
      %v2610 = vsel %vm1134, %v2608, %v2609
      %v2611 = vrot.slane %v2609, 4
      %v2612 = vrot.slane %v1835, 5
      %v2613 = vsel %vm1134, %v2611, %v2612
      %v2614 = vrot.slane %v2502, 5
      %v2615 = vrot.slane %v2614, 4
      %v2616 = vrot.slane %v1837, 5
      %v2617 = vsel %vm1134, %v2615, %v2616
      %v2618 = vrot.slane %v2616, 4
      %v2619 = vrot.slane %v1838, 5
      %v2620 = vsel %vm1134, %v2618, %v2619
      %v2621 = vrot.slane %v2503, 5
      %v2622 = vrot.slane %v2621, 4
      %v2623 = vrot.slane %v1840, 5
      %v2624 = vsel %vm1134, %v2622, %v2623
      %v2625 = vrot.slane %v2623, 4
      %v2626 = vrot.slane %v1841, 5
      %v2627 = vsel %vm1134, %v2625, %v2626
      %v2628 = vrot.slane %v2504, 5
      %v2629 = vrot.slane %v2628, 4
      %v2630 = vrot.slane %v1843, 5
      %v2631 = vsel %vm1134, %v2629, %v2630
      %v2632 = vrot.slane %v2630, 4
      %v2633 = vrot.slane %v1844, 5
      %v2634 = vsel %vm1134, %v2632, %v2633
      %v2635 = vrot.slane %v2505, 5
      %v2636 = vrot.slane %v2635, 4
      %v2637 = vrot.slane %v1846, 5
      %v2638 = vsel %vm1134, %v2636, %v2637
      %v2639 = vrot.slane %v2637, 4
      %v2640 = vrot.slane %v1847, 5
      %v2641 = vsel %vm1134, %v2639, %v2640
      %v2642 = vrot.slane %v2506, 5
      %v2643 = vrot.slane %v2642, 4
      %v2644 = vrot.slane %v1849, 5
      %v2645 = vsel %vm1134, %v2643, %v2644
      %v2646 = vrot.slane %v2644, 4
      %v2647 = vrot.slane %v1850, 5
      %v2648 = vsel %vm1134, %v2646, %v2647
      %v2649 = vrot.slane %v2507, 5
      %v2650 = vrot.slane %v2649, 4
      %v2651 = vrot.slane %v1852, 5
      %v2652 = vsel %vm1134, %v2650, %v2651
      %v2653 = vrot.slane %v2651, 4
      %v2654 = vrot.slane %v1853, 5
      %v2655 = vsel %vm1134, %v2653, %v2654
      %v2656 = vrot.slane %v2508, 5
      %v2657 = vrot.slane %v2656, 4
      %v2658 = vrot.slane %v1855, 5
      %v2659 = vsel %vm1134, %v2657, %v2658
      %v2660 = vrot.slane %v2658, 4
      %v2661 = vrot.slane %v1856, 5
      %v2662 = vsel %vm1134, %v2660, %v2661
      %v2663 = vrot.slane %v2509, 5
      %v2664 = vrot.slane %v2663, 4
      %v2665 = vrot.slane %v1858, 5
      %v2666 = vsel %vm1134, %v2664, %v2665
      %v2667 = vrot.slane %v2665, 4
      %v2668 = vrot.slane %v1859, 5
      %v2669 = vsel %vm1134, %v2667, %v2668
      %s2670 = scalar_lea.vmem %s1, 320
      %v2671 = vld [vmem:[%s2670] sm:$0xf]
      %v2672 = vld [vmem:[%s2670 + $0x4] sm:$0xf]
      %v2673 = vld [vmem:[%s2670 + $0x8] sm:$0xf]
      %v2674 = vld [vmem:[%s2670 + $0xc] sm:$0xf]
      %v2675 = vld [vmem:[%s2670 + $0x10] sm:$0xf]
      %v2676 = vld [vmem:[%s2670 + $0x14] sm:$0xf]
      %v2677 = vld [vmem:[%s2670 + $0x18] sm:$0xf]
      %v2678 = vld [vmem:[%s2670 + $0x1c] sm:$0xf]
      %v2679 = vld [vmem:[%s2670 + $0x20] sm:$0xf]
      %v2680 = vld [vmem:[%s2670 + $0x24] sm:$0xf]
      %v2681 = vld [vmem:[%s2670 + $0x28] sm:$0xf]
      %v2682 = vld [vmem:[%s2670 + $0x2c] sm:$0xf]
      %v2683 = vld [vmem:[%s2670 + $0x30] sm:$0xf]
      %v2684 = vld [vmem:[%s2670 + $0x34] sm:$0xf]
      %v2685 = vld [vmem:[%s2670 + $0x38] sm:$0xf]
      %v2686 = vld [vmem:[%s2670 + $0x3c] sm:$0xf]
      %v2687 = vunpack.c.l.b16 %v2561
      %v2688 = vunpack.c.l.b16 %v2564
      %v2689 = vunpack.c.l.b16 %v2568
      %v2690 = vunpack.c.l.b16 %v2571
      %v2691 = vunpack.c.l.b16 %v2575
      %v2692 = vunpack.c.l.b16 %v2578
      %v2693 = vunpack.c.l.b16 %v2582
      %v2694 = vunpack.c.l.b16 %v2585
      %v2695 = vunpack.c.l.b16 %v2589
      %v2696 = vunpack.c.l.b16 %v2592
      %v2697 = vunpack.c.l.b16 %v2596
      %v2698 = vunpack.c.l.b16 %v2599
      %v2699 = vunpack.c.l.b16 %v2603
      %v2700 = vunpack.c.l.b16 %v2606
      %v2701 = vunpack.c.l.b16 %v2610
      %v2702 = vunpack.c.l.b16 %v2613
      %v2703 = vunpack.c.l.b16 %v2617
      %v2704 = vunpack.c.l.b16 %v2620
      %v2705 = vunpack.c.l.b16 %v2624
      %v2706 = vunpack.c.l.b16 %v2627
      %v2707 = vunpack.c.l.b16 %v2631
      %v2708 = vunpack.c.l.b16 %v2634
      %v2709 = vunpack.c.l.b16 %v2638
      %v2710 = vunpack.c.l.b16 %v2641
      %v2711 = vunpack.c.l.b16 %v2645
      %v2712 = vunpack.c.l.b16 %v2648
      %v2713 = vunpack.c.l.b16 %v2652
      %v2714 = vunpack.c.l.b16 %v2655
      %v2715 = vunpack.c.l.b16 %v2659
      %v2716 = vunpack.c.l.b16 %v2662
      %v2717 = vunpack.c.l.b16 %v2666
      %v2718 = vunpack.c.l.b16 %v2669
      %v2719 = vpack.c.b16 %v2688, %v2687
      %v2720 = vpack.c.b16 %v2690, %v2689
      %v2721 = vpack.c.b16 %v2692, %v2691
      %v2722 = vpack.c.b16 %v2694, %v2693
      %v2723 = vpack.c.b16 %v2696, %v2695
      %v2724 = vpack.c.b16 %v2698, %v2697
      %v2725 = vpack.c.b16 %v2700, %v2699
      %v2726 = vpack.c.b16 %v2702, %v2701
      %v2727 = vpack.c.b16 %v2704, %v2703
      %v2728 = vpack.c.b16 %v2706, %v2705
      %v2729 = vpack.c.b16 %v2708, %v2707
      %v2730 = vpack.c.b16 %v2710, %v2709
      %v2731 = vpack.c.b16 %v2712, %v2711
      %v2732 = vpack.c.b16 %v2714, %v2713
      %v2733 = vpack.c.b16 %v2716, %v2715
      %v2734 = vpack.c.b16 %v2718, %v2717
      %v2767 = vunpack.c.l.b16 %v2671
      %v2768 = vunpack.c.l.b16 %v2672
      %v2769 = vunpack.c.l.b16 %v2673
      %v2770 = vunpack.c.l.b16 %v2674
      %v2771 = vunpack.c.l.b16 %v2675
      %v2772 = vunpack.c.l.b16 %v2676
      %v2773 = vunpack.c.l.b16 %v2677
      %v2774 = vunpack.c.l.b16 %v2678
      %v2775 = vunpack.c.l.b16 %v2679
      %v2776 = vunpack.c.l.b16 %v2680
      %v2777 = vunpack.c.l.b16 %v2681
      %v2778 = vunpack.c.l.b16 %v2682
      %v2779 = vunpack.c.l.b16 %v2683
      %v2780 = vunpack.c.l.b16 %v2684
      %v2781 = vunpack.c.l.b16 %v2685
      %v2782 = vunpack.c.l.b16 %v2686
      %v2783 = vpack.c.b16 %v2768, %v2767
      %v2784 = vpack.c.b16 %v2770, %v2769
      %v2785 = vpack.c.b16 %v2772, %v2771
      %v2786 = vpack.c.b16 %v2774, %v2773
      %v2787 = vpack.c.b16 %v2776, %v2775
      %v2788 = vpack.c.b16 %v2778, %v2777
      %v2789 = vpack.c.b16 %v2780, %v2779
      %v2790 = vpack.c.b16 %v2782, %v2781
      %2799 = vmatpush.bf16.msra.mxu0 %v2790
      %2800 = vmatpush.bf16.msra.mxu0 %v2789
      %2801 = vmatpush.bf16.msra.mxu0 %v2788
      %2802 = vmatpush.bf16.msra.mxu0 %v2787
      %2803 = vmatpush.bf16.msra.mxu0 %v2786
      %2804 = vmatpush.bf16.msra.mxu0 %v2785
      %2805 = vmatpush.bf16.msra.mxu0 %v2784
      %2806 = vmatpush.bf16.msra.mxu0 %v2783
      %2807 = vmatmul.bf16.gmra.mxu0 %v2719
      %v2808 = vpop.f32.mrf.mxu0
      %v2809 = vadd.f32 0.0, %v2808
      %v2810 = vpop.f32.mrf.mxu0
      %v2811 = vadd.f32 0.0, %v2810
      %2812 = vmatmul.bf16.gmra.mxu0 %v2720
      %v2813 = vpop.f32.mrf.mxu0
      %v2814 = vadd.f32 0.0, %v2813
      %v2815 = vpop.f32.mrf.mxu0
      %v2816 = vadd.f32 0.0, %v2815
      %2817 = vmatmul.bf16.gmra.mxu0 %v2721
      %v2818 = vpop.f32.mrf.mxu0
      %v2819 = vadd.f32 0.0, %v2818
      %v2820 = vpop.f32.mrf.mxu0
      %v2821 = vadd.f32 0.0, %v2820
      %2822 = vmatmul.bf16.gmra.mxu0 %v2722
      %v2823 = vpop.f32.mrf.mxu0
      %v2824 = vadd.f32 0.0, %v2823
      %v2825 = vpop.f32.mrf.mxu0
      %v2826 = vadd.f32 0.0, %v2825
      %2827 = vmatmul.bf16.gmra.mxu0 %v2723
      %v2828 = vpop.f32.mrf.mxu0
      %v2829 = vadd.f32 0.0, %v2828
      %v2830 = vpop.f32.mrf.mxu0
      %v2831 = vadd.f32 0.0, %v2830
      %2832 = vmatmul.bf16.gmra.mxu0 %v2724
      %v2833 = vpop.f32.mrf.mxu0
      %v2834 = vadd.f32 0.0, %v2833
      %v2835 = vpop.f32.mrf.mxu0
      %v2836 = vadd.f32 0.0, %v2835
      %2837 = vmatmul.bf16.gmra.mxu0 %v2725
      %v2838 = vpop.f32.mrf.mxu0
      %v2839 = vadd.f32 0.0, %v2838
      %v2840 = vpop.f32.mrf.mxu0
      %v2841 = vadd.f32 0.0, %v2840
      %2842 = vmatmul.bf16.gmra.mxu0 %v2726
      %v2843 = vpop.f32.mrf.mxu0
      %v2844 = vadd.f32 0.0, %v2843
      %v2845 = vpop.f32.mrf.mxu0
      %v2846 = vadd.f32 0.0, %v2845
      %2847 = vmatmul.bf16.gmra.mxu0 %v2727
      %v2848 = vpop.f32.mrf.mxu0
      %v2849 = vadd.f32 0.0, %v2848
      %v2850 = vpop.f32.mrf.mxu0
      %v2851 = vadd.f32 0.0, %v2850
      %2852 = vmatmul.bf16.gmra.mxu0 %v2728
      %v2853 = vpop.f32.mrf.mxu0
      %v2854 = vadd.f32 0.0, %v2853
      %v2855 = vpop.f32.mrf.mxu0
      %v2856 = vadd.f32 0.0, %v2855
      %2857 = vmatmul.bf16.gmra.mxu0 %v2729
      %v2858 = vpop.f32.mrf.mxu0
      %v2859 = vadd.f32 0.0, %v2858
      %v2860 = vpop.f32.mrf.mxu0
      %v2861 = vadd.f32 0.0, %v2860
      %2862 = vmatmul.bf16.gmra.mxu0 %v2730
      %v2863 = vpop.f32.mrf.mxu0
      %v2864 = vadd.f32 0.0, %v2863
      %v2865 = vpop.f32.mrf.mxu0
      %v2866 = vadd.f32 0.0, %v2865
      %2867 = vmatmul.bf16.gmra.mxu0 %v2731
      %v2868 = vpop.f32.mrf.mxu0
      %v2869 = vadd.f32 0.0, %v2868
      %v2870 = vpop.f32.mrf.mxu0
      %v2871 = vadd.f32 0.0, %v2870
      %2872 = vmatmul.bf16.gmra.mxu0 %v2732
      %v2873 = vpop.f32.mrf.mxu0
      %v2874 = vadd.f32 0.0, %v2873
      %v2875 = vpop.f32.mrf.mxu0
      %v2876 = vadd.f32 0.0, %v2875
      %2877 = vmatmul.bf16.gmra.mxu0 %v2733
      %v2878 = vpop.f32.mrf.mxu0
      %v2879 = vadd.f32 0.0, %v2878
      %v2880 = vpop.f32.mrf.mxu0
      %v2881 = vadd.f32 0.0, %v2880
      %2882 = vmatmul.bf16.gmra.mxu0 %v2734
      %v2883 = vpop.f32.mrf.mxu0
      %v2884 = vadd.f32 0.0, %v2883
      %v2885 = vpop.f32.mrf.mxu0
      %v2886 = vadd.f32 0.0, %v2885
      %2887 = vdwg.mxu0
      %v2888 = vadd.f32 %v2462, %v2809
      %v2889 = vadd.f32 %v2463, %v2811
      %v2890 = vadd.f32 %v2464, %v2814
      %v2891 = vadd.f32 %v2465, %v2816
      %v2892 = vadd.f32 %v2466, %v2819
      %v2893 = vadd.f32 %v2467, %v2821
      %v2894 = vadd.f32 %v2468, %v2824
      %v2895 = vadd.f32 %v2469, %v2826
      %v2896 = vadd.f32 %v2470, %v2829
      %v2897 = vadd.f32 %v2471, %v2831
      %v2898 = vadd.f32 %v2472, %v2834
      %v2899 = vadd.f32 %v2473, %v2836
      %v2900 = vadd.f32 %v2474, %v2839
      %v2901 = vadd.f32 %v2475, %v2841
      %v2902 = vadd.f32 %v2476, %v2844
      %v2903 = vadd.f32 %v2477, %v2846
      %v2904 = vadd.f32 %v2478, %v2849
      %v2905 = vadd.f32 %v2479, %v2851
      %v2906 = vadd.f32 %v2480, %v2854
      %v2907 = vadd.f32 %v2481, %v2856
      %v2908 = vadd.f32 %v2482, %v2859
      %v2909 = vadd.f32 %v2483, %v2861
      %v2910 = vadd.f32 %v2484, %v2864
      %v2911 = vadd.f32 %v2485, %v2866
      %v2912 = vadd.f32 %v2486, %v2869
      %v2913 = vadd.f32 %v2487, %v2871
      %v2914 = vadd.f32 %v2488, %v2874
      %v2915 = vadd.f32 %v2489, %v2876
      %v2916 = vadd.f32 %v2490, %v2879
      %v2917 = vadd.f32 %v2491, %v2881
      %v2918 = vadd.f32 %v2492, %v2884
      %v2919 = vadd.f32 %v2493, %v2886
      %s2920 = scalar_lea.vmem %s172, 24
      %v2921 = vld [vmem:[%s2920] sm:$0xf]
      %v2922 = vld [vmem:[%s2920 + $0x4] sm:$0xf]
      %v2923 = vld [vmem:[%s2920 + $0xc] sm:$0xf]
      %v2924 = vld [vmem:[%s2920 + $0x10] sm:$0xf]
      %v2925 = vld [vmem:[%s2920 + $0x18] sm:$0xf]
      %v2926 = vld [vmem:[%s2920 + $0x1c] sm:$0xf]
      %v2927 = vld [vmem:[%s2920 + $0x24] sm:$0xf]
      %v2928 = vld [vmem:[%s2920 + $0x28] sm:$0xf]
      %v2929 = vld [vmem:[%s2920 + $0x30] sm:$0xf]
      %v2930 = vld [vmem:[%s2920 + $0x34] sm:$0xf]
      %v2931 = vld [vmem:[%s2920 + $0x3c] sm:$0xf]
      %v2932 = vld [vmem:[%s2920 + $0x40] sm:$0xf]
      %v2933 = vld [vmem:[%s2920 + $0x48] sm:$0xf]
      %v2934 = vld [vmem:[%s2920 + $0x4c] sm:$0xf]
      %v2935 = vld [vmem:[%s2920 + $0x54] sm:$0xf]
      %v2936 = vld [vmem:[%s2920 + $0x58] sm:$0xf]
      %v2937 = vld [vmem:[%s2920 + $0x60] sm:$0xf]
      %v2938 = vld [vmem:[%s2920 + $0x64] sm:$0xf]
      %v2939 = vld [vmem:[%s2920 + $0x6c] sm:$0xf]
      %v2940 = vld [vmem:[%s2920 + $0x70] sm:$0xf]
      %v2941 = vld [vmem:[%s2920 + $0x78] sm:$0xf]
      %v2942 = vld [vmem:[%s2920 + $0x7c] sm:$0xf]
      %v2943 = vld [vmem:[%s2920 + $0x84] sm:$0xf]
      %v2944 = vld [vmem:[%s2920 + $0x88] sm:$0xf]
      %v2945 = vld [vmem:[%s2920 + $0x90] sm:$0xf]
      %v2946 = vld [vmem:[%s2920 + $0x94] sm:$0xf]
      %v2947 = vld [vmem:[%s2920 + $0x9c] sm:$0xf]
      %v2948 = vld [vmem:[%s2920 + $0xa0] sm:$0xf]
      %v2949 = vld [vmem:[%s2920 + $0xa8] sm:$0xf]
      %v2950 = vld [vmem:[%s2920 + $0xac] sm:$0xf]
      %v2951 = vld [vmem:[%s2920 + $0xb4] sm:$0xf]
      %v2952 = vld [vmem:[%s2920 + $0xb8] sm:$0xf]
      %s2953 = scalar_lea.vmem %s1, 384
      %v2954 = vld [vmem:[%s2953] sm:$0xf]
      %v2955 = vld [vmem:[%s2953 + $0x4] sm:$0xf]
      %v2956 = vld [vmem:[%s2953 + $0x8] sm:$0xf]
      %v2957 = vld [vmem:[%s2953 + $0xc] sm:$0xf]
      %v2958 = vld [vmem:[%s2953 + $0x10] sm:$0xf]
      %v2959 = vld [vmem:[%s2953 + $0x14] sm:$0xf]
      %v2960 = vld [vmem:[%s2953 + $0x18] sm:$0xf]
      %v2961 = vld [vmem:[%s2953 + $0x1c] sm:$0xf]
      %v2962 = vld [vmem:[%s2953 + $0x20] sm:$0xf]
      %v2963 = vld [vmem:[%s2953 + $0x24] sm:$0xf]
      %v2964 = vld [vmem:[%s2953 + $0x28] sm:$0xf]
      %v2965 = vld [vmem:[%s2953 + $0x2c] sm:$0xf]
      %v2966 = vld [vmem:[%s2953 + $0x30] sm:$0xf]
      %v2967 = vld [vmem:[%s2953 + $0x34] sm:$0xf]
      %v2968 = vld [vmem:[%s2953 + $0x38] sm:$0xf]
      %v2969 = vld [vmem:[%s2953 + $0x3c] sm:$0xf]
      %v3002 = vunpack.c.l.b16 %v2921
      %v3003 = vunpack.c.l.b16 %v2922
      %v3004 = vunpack.c.l.b16 %v2923
      %v3005 = vunpack.c.l.b16 %v2924
      %v3006 = vunpack.c.l.b16 %v2925
      %v3007 = vunpack.c.l.b16 %v2926
      %v3008 = vunpack.c.l.b16 %v2927
      %v3009 = vunpack.c.l.b16 %v2928
      %v3010 = vunpack.c.l.b16 %v2929
      %v3011 = vunpack.c.l.b16 %v2930
      %v3012 = vunpack.c.l.b16 %v2931
      %v3013 = vunpack.c.l.b16 %v2932
      %v3014 = vunpack.c.l.b16 %v2933
      %v3015 = vunpack.c.l.b16 %v2934
      %v3016 = vunpack.c.l.b16 %v2935
      %v3017 = vunpack.c.l.b16 %v2936
      %v3018 = vunpack.c.l.b16 %v2937
      %v3019 = vunpack.c.l.b16 %v2938
      %v3020 = vunpack.c.l.b16 %v2939
      %v3021 = vunpack.c.l.b16 %v2940
      %v3022 = vunpack.c.l.b16 %v2941
      %v3023 = vunpack.c.l.b16 %v2942
      %v3024 = vunpack.c.l.b16 %v2943
      %v3025 = vunpack.c.l.b16 %v2944
      %v3026 = vunpack.c.l.b16 %v2945
      %v3027 = vunpack.c.l.b16 %v2946
      %v3028 = vunpack.c.l.b16 %v2947
      %v3029 = vunpack.c.l.b16 %v2948
      %v3030 = vunpack.c.l.b16 %v2949
      %v3031 = vunpack.c.l.b16 %v2950
      %v3032 = vunpack.c.l.b16 %v2951
      %v3033 = vunpack.c.l.b16 %v2952
      %v3034 = vpack.c.b16 %v3003, %v3002
      %v3035 = vpack.c.b16 %v3005, %v3004
      %v3036 = vpack.c.b16 %v3007, %v3006
      %v3037 = vpack.c.b16 %v3009, %v3008
      %v3038 = vpack.c.b16 %v3011, %v3010
      %v3039 = vpack.c.b16 %v3013, %v3012
      %v3040 = vpack.c.b16 %v3015, %v3014
      %v3041 = vpack.c.b16 %v3017, %v3016
      %v3042 = vpack.c.b16 %v3019, %v3018
      %v3043 = vpack.c.b16 %v3021, %v3020
      %v3044 = vpack.c.b16 %v3023, %v3022
      %v3045 = vpack.c.b16 %v3025, %v3024
      %v3046 = vpack.c.b16 %v3027, %v3026
      %v3047 = vpack.c.b16 %v3029, %v3028
      %v3048 = vpack.c.b16 %v3031, %v3030
      %v3049 = vpack.c.b16 %v3033, %v3032
      %v3082 = vunpack.c.l.b16 %v2954
      %v3083 = vunpack.c.l.b16 %v2955
      %v3084 = vunpack.c.l.b16 %v2956
      %v3085 = vunpack.c.l.b16 %v2957
      %v3086 = vunpack.c.l.b16 %v2958
      %v3087 = vunpack.c.l.b16 %v2959
      %v3088 = vunpack.c.l.b16 %v2960
      %v3089 = vunpack.c.l.b16 %v2961
      %v3090 = vunpack.c.l.b16 %v2962
      %v3091 = vunpack.c.l.b16 %v2963
      %v3092 = vunpack.c.l.b16 %v2964
      %v3093 = vunpack.c.l.b16 %v2965
      %v3094 = vunpack.c.l.b16 %v2966
      %v3095 = vunpack.c.l.b16 %v2967
      %v3096 = vunpack.c.l.b16 %v2968
      %v3097 = vunpack.c.l.b16 %v2969
      %v3098 = vpack.c.b16 %v3083, %v3082
      %v3099 = vpack.c.b16 %v3085, %v3084
      %v3100 = vpack.c.b16 %v3087, %v3086
      %v3101 = vpack.c.b16 %v3089, %v3088
      %v3102 = vpack.c.b16 %v3091, %v3090
      %v3103 = vpack.c.b16 %v3093, %v3092
      %v3104 = vpack.c.b16 %v3095, %v3094
      %v3105 = vpack.c.b16 %v3097, %v3096
      %3114 = vmatpush.bf16.msra.mxu0 %v3105
      %3115 = vmatpush.bf16.msra.mxu0 %v3104
      %3116 = vmatpush.bf16.msra.mxu0 %v3103
      %3117 = vmatpush.bf16.msra.mxu0 %v3102
      %3118 = vmatpush.bf16.msra.mxu0 %v3101
      %3119 = vmatpush.bf16.msra.mxu0 %v3100
      %3120 = vmatpush.bf16.msra.mxu0 %v3099
      %3121 = vmatpush.bf16.msra.mxu0 %v3098
      %3122 = vmatmul.bf16.gmra.mxu0 %v3034
      %v3123 = vpop.f32.mrf.mxu0
      %v3124 = vadd.f32 0.0, %v3123
      %v3125 = vpop.f32.mrf.mxu0
      %v3126 = vadd.f32 0.0, %v3125
      %3127 = vmatmul.bf16.gmra.mxu0 %v3035
      %v3128 = vpop.f32.mrf.mxu0
      %v3129 = vadd.f32 0.0, %v3128
      %v3130 = vpop.f32.mrf.mxu0
      %v3131 = vadd.f32 0.0, %v3130
      %3132 = vmatmul.bf16.gmra.mxu0 %v3036
      %v3133 = vpop.f32.mrf.mxu0
      %v3134 = vadd.f32 0.0, %v3133
      %v3135 = vpop.f32.mrf.mxu0
      %v3136 = vadd.f32 0.0, %v3135
      %3137 = vmatmul.bf16.gmra.mxu0 %v3037
      %v3138 = vpop.f32.mrf.mxu0
      %v3139 = vadd.f32 0.0, %v3138
      %v3140 = vpop.f32.mrf.mxu0
      %v3141 = vadd.f32 0.0, %v3140
      %3142 = vmatmul.bf16.gmra.mxu0 %v3038
      %v3143 = vpop.f32.mrf.mxu0
      %v3144 = vadd.f32 0.0, %v3143
      %v3145 = vpop.f32.mrf.mxu0
      %v3146 = vadd.f32 0.0, %v3145
      %3147 = vmatmul.bf16.gmra.mxu0 %v3039
      %v3148 = vpop.f32.mrf.mxu0
      %v3149 = vadd.f32 0.0, %v3148
      %v3150 = vpop.f32.mrf.mxu0
      %v3151 = vadd.f32 0.0, %v3150
      %3152 = vmatmul.bf16.gmra.mxu0 %v3040
      %v3153 = vpop.f32.mrf.mxu0
      %v3154 = vadd.f32 0.0, %v3153
      %v3155 = vpop.f32.mrf.mxu0
      %v3156 = vadd.f32 0.0, %v3155
      %3157 = vmatmul.bf16.gmra.mxu0 %v3041
      %v3158 = vpop.f32.mrf.mxu0
      %v3159 = vadd.f32 0.0, %v3158
      %v3160 = vpop.f32.mrf.mxu0
      %v3161 = vadd.f32 0.0, %v3160
      %3162 = vmatmul.bf16.gmra.mxu0 %v3042
      %v3163 = vpop.f32.mrf.mxu0
      %v3164 = vadd.f32 0.0, %v3163
      %v3165 = vpop.f32.mrf.mxu0
      %v3166 = vadd.f32 0.0, %v3165
      %3167 = vmatmul.bf16.gmra.mxu0 %v3043
      %v3168 = vpop.f32.mrf.mxu0
      %v3169 = vadd.f32 0.0, %v3168
      %v3170 = vpop.f32.mrf.mxu0
      %v3171 = vadd.f32 0.0, %v3170
      %3172 = vmatmul.bf16.gmra.mxu0 %v3044
      %v3173 = vpop.f32.mrf.mxu0
      %v3174 = vadd.f32 0.0, %v3173
      %v3175 = vpop.f32.mrf.mxu0
      %v3176 = vadd.f32 0.0, %v3175
      %3177 = vmatmul.bf16.gmra.mxu0 %v3045
      %v3178 = vpop.f32.mrf.mxu0
      %v3179 = vadd.f32 0.0, %v3178
      %v3180 = vpop.f32.mrf.mxu0
      %v3181 = vadd.f32 0.0, %v3180
      %3182 = vmatmul.bf16.gmra.mxu0 %v3046
      %v3183 = vpop.f32.mrf.mxu0
      %v3184 = vadd.f32 0.0, %v3183
      %v3185 = vpop.f32.mrf.mxu0
      %v3186 = vadd.f32 0.0, %v3185
      %3187 = vmatmul.bf16.gmra.mxu0 %v3047
      %v3188 = vpop.f32.mrf.mxu0
      %v3189 = vadd.f32 0.0, %v3188
      %v3190 = vpop.f32.mrf.mxu0
      %v3191 = vadd.f32 0.0, %v3190
      %3192 = vmatmul.bf16.gmra.mxu0 %v3048
      %v3193 = vpop.f32.mrf.mxu0
      %v3194 = vadd.f32 0.0, %v3193
      %v3195 = vpop.f32.mrf.mxu0
      %v3196 = vadd.f32 0.0, %v3195
      %3197 = vmatmul.bf16.gmra.mxu0 %v3049
      %v3198 = vpop.f32.mrf.mxu0
      %v3199 = vadd.f32 0.0, %v3198
      %v3200 = vpop.f32.mrf.mxu0
      %v3201 = vadd.f32 0.0, %v3200
      %3202 = vdwg.mxu0
      %v3203 = vadd.f32 %v2888, %v3124
      %v3204 = vadd.f32 %v2889, %v3126
      %v3205 = vadd.f32 %v2890, %v3129
      %v3206 = vadd.f32 %v2891, %v3131
      %v3207 = vadd.f32 %v2892, %v3134
      %v3208 = vadd.f32 %v2893, %v3136
      %v3209 = vadd.f32 %v2894, %v3139
      %v3210 = vadd.f32 %v2895, %v3141
      %v3211 = vadd.f32 %v2896, %v3144
      %v3212 = vadd.f32 %v2897, %v3146
      %v3213 = vadd.f32 %v2898, %v3149
      %v3214 = vadd.f32 %v2899, %v3151
      %v3215 = vadd.f32 %v2900, %v3154
      %v3216 = vadd.f32 %v2901, %v3156
      %v3217 = vadd.f32 %v2902, %v3159
      %v3218 = vadd.f32 %v2903, %v3161
      %v3219 = vadd.f32 %v2904, %v3164
      %v3220 = vadd.f32 %v2905, %v3166
      %v3221 = vadd.f32 %v2906, %v3169
      %v3222 = vadd.f32 %v2907, %v3171
      %v3223 = vadd.f32 %v2908, %v3174
      %v3224 = vadd.f32 %v2909, %v3176
      %v3225 = vadd.f32 %v2910, %v3179
      %v3226 = vadd.f32 %v2911, %v3181
      %v3227 = vadd.f32 %v2912, %v3184
      %v3228 = vadd.f32 %v2913, %v3186
      %v3229 = vadd.f32 %v2914, %v3189
      %v3230 = vadd.f32 %v2915, %v3191
      %v3231 = vadd.f32 %v2916, %v3194
      %v3232 = vadd.f32 %v2917, %v3196
      %v3233 = vadd.f32 %v2918, %v3199
      %v3234 = vadd.f32 %v2919, %v3201
      %v3235 = vld [vmem:[%s2920] sm:$0xf]
      %v3236 = vld [vmem:[%s2920 + $0x4] sm:$0xf]
      %v3237 = vld [vmem:[%s2920 + $0x8] sm:$0x1]
      %v3238 = vld [vmem:[%s2920 + $0xc] sm:$0xf]
      %v3239 = vld [vmem:[%s2920 + $0x10] sm:$0xf]
      %v3240 = vld [vmem:[%s2920 + $0x14] sm:$0x1]
      %v3241 = vld [vmem:[%s2920 + $0x18] sm:$0xf]
      %v3242 = vld [vmem:[%s2920 + $0x1c] sm:$0xf]
      %v3243 = vld [vmem:[%s2920 + $0x20] sm:$0x1]
      %v3244 = vld [vmem:[%s2920 + $0x24] sm:$0xf]
      %v3245 = vld [vmem:[%s2920 + $0x28] sm:$0xf]
      %v3246 = vld [vmem:[%s2920 + $0x2c] sm:$0x1]
      %v3247 = vld [vmem:[%s2920 + $0x30] sm:$0xf]
      %v3248 = vld [vmem:[%s2920 + $0x34] sm:$0xf]
      %v3249 = vld [vmem:[%s2920 + $0x38] sm:$0x1]
      %v3250 = vld [vmem:[%s2920 + $0x3c] sm:$0xf]
      %v3251 = vld [vmem:[%s2920 + $0x40] sm:$0xf]
      %v3252 = vld [vmem:[%s2920 + $0x44] sm:$0x1]
      %v3253 = vld [vmem:[%s2920 + $0x48] sm:$0xf]
      %v3254 = vld [vmem:[%s2920 + $0x4c] sm:$0xf]
      %v3255 = vld [vmem:[%s2920 + $0x50] sm:$0x1]
      %v3256 = vld [vmem:[%s2920 + $0x54] sm:$0xf]
      %v3257 = vld [vmem:[%s2920 + $0x58] sm:$0xf]
      %v3258 = vld [vmem:[%s2920 + $0x5c] sm:$0x1]
      %v3259 = vld [vmem:[%s2920 + $0x60] sm:$0xf]
      %v3260 = vld [vmem:[%s2920 + $0x64] sm:$0xf]
      %v3261 = vld [vmem:[%s2920 + $0x68] sm:$0x1]
      %v3262 = vld [vmem:[%s2920 + $0x6c] sm:$0xf]
      %v3263 = vld [vmem:[%s2920 + $0x70] sm:$0xf]
      %v3264 = vld [vmem:[%s2920 + $0x74] sm:$0x1]
      %v3265 = vld [vmem:[%s2920 + $0x78] sm:$0xf]
      %v3266 = vld [vmem:[%s2920 + $0x7c] sm:$0xf]
      %v3267 = vld [vmem:[%s2920 + $0x80] sm:$0x1]
      %v3268 = vld [vmem:[%s2920 + $0x84] sm:$0xf]
      %v3269 = vld [vmem:[%s2920 + $0x88] sm:$0xf]
      %v3270 = vld [vmem:[%s2920 + $0x8c] sm:$0x1]
      %v3271 = vld [vmem:[%s2920 + $0x90] sm:$0xf]
      %v3272 = vld [vmem:[%s2920 + $0x94] sm:$0xf]
      %v3273 = vld [vmem:[%s2920 + $0x98] sm:$0x1]
      %v3274 = vld [vmem:[%s2920 + $0x9c] sm:$0xf]
      %v3275 = vld [vmem:[%s2920 + $0xa0] sm:$0xf]
      %v3276 = vld [vmem:[%s2920 + $0xa4] sm:$0x1]
      %v3277 = vld [vmem:[%s2920 + $0xa8] sm:$0xf]
      %v3278 = vld [vmem:[%s2920 + $0xac] sm:$0xf]
      %v3279 = vld [vmem:[%s2920 + $0xb0] sm:$0x1]
      %v3280 = vld [vmem:[%s2920 + $0xb4] sm:$0xf]
      %v3281 = vld [vmem:[%s2920 + $0xb8] sm:$0xf]
      %v3282 = vld [vmem:[%s2920 + $0xbc] sm:$0x1]
      %v3284 = vshrl.u32 %v3235, 16
      %v3286 = vrot.slane %v3284, 4
      %v3287 = vshll.u32 %v3235, 16
      %v3289 = vrot.slane %v3287, 5
      %v3290 = vor.u32 %v3286, %v3289
      %v3291 = vrot.slane %v3290, 4
      %v3293 = vshll.u32 %v3236, 16
      %v3295 = vrot.slane %v3293, 5
      %v3296 = vsel %vm248, %v3291, %v3295
      %v3297 = vshrl.u32 %v3236, 16
      %v3299 = vrot.slane %v3297, 4
      %v3300 = vor.u32 %v3299, %v3295
      %v3301 = vrot.slane %v3300, 4
      %v3303 = vshll.u32 %v3237, 16
      %v3305 = vrot.slane %v3303, 5
      %v3306 = vsel %vm248, %v3301, %v3305
      %v3308 = vshrl.u32 %v3238, 16
      %v3310 = vrot.slane %v3308, 4
      %v3311 = vshll.u32 %v3238, 16
      %v3313 = vrot.slane %v3311, 5
      %v3314 = vor.u32 %v3310, %v3313
      %v3315 = vrot.slane %v3314, 4
      %v3317 = vshll.u32 %v3239, 16
      %v3319 = vrot.slane %v3317, 5
      %v3320 = vsel %vm248, %v3315, %v3319
      %v3321 = vshrl.u32 %v3239, 16
      %v3323 = vrot.slane %v3321, 4
      %v3324 = vor.u32 %v3323, %v3319
      %v3325 = vrot.slane %v3324, 4
      %v3327 = vshll.u32 %v3240, 16
      %v3329 = vrot.slane %v3327, 5
      %v3330 = vsel %vm248, %v3325, %v3329
      %v3332 = vshrl.u32 %v3241, 16
      %v3334 = vrot.slane %v3332, 4
      %v3335 = vshll.u32 %v3241, 16
      %v3337 = vrot.slane %v3335, 5
      %v3338 = vor.u32 %v3334, %v3337
      %v3339 = vrot.slane %v3338, 4
      %v3341 = vshll.u32 %v3242, 16
      %v3343 = vrot.slane %v3341, 5
      %v3344 = vsel %vm248, %v3339, %v3343
      %v3345 = vshrl.u32 %v3242, 16
      %v3347 = vrot.slane %v3345, 4
      %v3348 = vor.u32 %v3347, %v3343
      %v3349 = vrot.slane %v3348, 4
      %v3351 = vshll.u32 %v3243, 16
      %v3353 = vrot.slane %v3351, 5
      %v3354 = vsel %vm248, %v3349, %v3353
      %v3356 = vshrl.u32 %v3244, 16
      %v3358 = vrot.slane %v3356, 4
      %v3359 = vshll.u32 %v3244, 16
      %v3361 = vrot.slane %v3359, 5
      %v3362 = vor.u32 %v3358, %v3361
      %v3363 = vrot.slane %v3362, 4
      %v3365 = vshll.u32 %v3245, 16
      %v3367 = vrot.slane %v3365, 5
      %v3368 = vsel %vm248, %v3363, %v3367
      %v3369 = vshrl.u32 %v3245, 16
      %v3371 = vrot.slane %v3369, 4
      %v3372 = vor.u32 %v3371, %v3367
      %v3373 = vrot.slane %v3372, 4
      %v3375 = vshll.u32 %v3246, 16
      %v3377 = vrot.slane %v3375, 5
      %v3378 = vsel %vm248, %v3373, %v3377
      %v3380 = vshrl.u32 %v3247, 16
      %v3382 = vrot.slane %v3380, 4
      %v3383 = vshll.u32 %v3247, 16
      %v3385 = vrot.slane %v3383, 5
      %v3386 = vor.u32 %v3382, %v3385
      %v3387 = vrot.slane %v3386, 4
      %v3389 = vshll.u32 %v3248, 16
      %v3391 = vrot.slane %v3389, 5
      %v3392 = vsel %vm248, %v3387, %v3391
      %v3393 = vshrl.u32 %v3248, 16
      %v3395 = vrot.slane %v3393, 4
      %v3396 = vor.u32 %v3395, %v3391
      %v3397 = vrot.slane %v3396, 4
      %v3399 = vshll.u32 %v3249, 16
      %v3401 = vrot.slane %v3399, 5
      %v3402 = vsel %vm248, %v3397, %v3401
      %v3404 = vshrl.u32 %v3250, 16
      %v3406 = vrot.slane %v3404, 4
      %v3407 = vshll.u32 %v3250, 16
      %v3409 = vrot.slane %v3407, 5
      %v3410 = vor.u32 %v3406, %v3409
      %v3411 = vrot.slane %v3410, 4
      %v3413 = vshll.u32 %v3251, 16
      %v3415 = vrot.slane %v3413, 5
      %v3416 = vsel %vm248, %v3411, %v3415
      %v3417 = vshrl.u32 %v3251, 16
      %v3419 = vrot.slane %v3417, 4
      %v3420 = vor.u32 %v3419, %v3415
      %v3421 = vrot.slane %v3420, 4
      %v3423 = vshll.u32 %v3252, 16
      %v3425 = vrot.slane %v3423, 5
      %v3426 = vsel %vm248, %v3421, %v3425
      %v3428 = vshrl.u32 %v3253, 16
      %v3430 = vrot.slane %v3428, 4
      %v3431 = vshll.u32 %v3253, 16
      %v3433 = vrot.slane %v3431, 5
      %v3434 = vor.u32 %v3430, %v3433
      %v3435 = vrot.slane %v3434, 4
      %v3437 = vshll.u32 %v3254, 16
      %v3439 = vrot.slane %v3437, 5
      %v3440 = vsel %vm248, %v3435, %v3439
      %v3441 = vshrl.u32 %v3254, 16
      %v3443 = vrot.slane %v3441, 4
      %v3444 = vor.u32 %v3443, %v3439
      %v3445 = vrot.slane %v3444, 4
      %v3447 = vshll.u32 %v3255, 16
      %v3449 = vrot.slane %v3447, 5
      %v3450 = vsel %vm248, %v3445, %v3449
      %v3452 = vshrl.u32 %v3256, 16
      %v3454 = vrot.slane %v3452, 4
      %v3455 = vshll.u32 %v3256, 16
      %v3457 = vrot.slane %v3455, 5
      %v3458 = vor.u32 %v3454, %v3457
      %v3459 = vrot.slane %v3458, 4
      %v3461 = vshll.u32 %v3257, 16
      %v3463 = vrot.slane %v3461, 5
      %v3464 = vsel %vm248, %v3459, %v3463
      %v3465 = vshrl.u32 %v3257, 16
      %v3467 = vrot.slane %v3465, 4
      %v3468 = vor.u32 %v3467, %v3463
      %v3469 = vrot.slane %v3468, 4
      %v3471 = vshll.u32 %v3258, 16
      %v3473 = vrot.slane %v3471, 5
      %v3474 = vsel %vm248, %v3469, %v3473
      %v3476 = vshrl.u32 %v3259, 16
      %v3478 = vrot.slane %v3476, 4
      %v3479 = vshll.u32 %v3259, 16
      %v3481 = vrot.slane %v3479, 5
      %v3482 = vor.u32 %v3478, %v3481
      %v3483 = vrot.slane %v3482, 4
      %v3485 = vshll.u32 %v3260, 16
      %v3487 = vrot.slane %v3485, 5
      %v3488 = vsel %vm248, %v3483, %v3487
      %v3489 = vshrl.u32 %v3260, 16
      %v3491 = vrot.slane %v3489, 4
      %v3492 = vor.u32 %v3491, %v3487
      %v3493 = vrot.slane %v3492, 4
      %v3495 = vshll.u32 %v3261, 16
      %v3497 = vrot.slane %v3495, 5
      %v3498 = vsel %vm248, %v3493, %v3497
      %v3500 = vshrl.u32 %v3262, 16
      %v3502 = vrot.slane %v3500, 4
      %v3503 = vshll.u32 %v3262, 16
      %v3505 = vrot.slane %v3503, 5
      %v3506 = vor.u32 %v3502, %v3505
      %v3507 = vrot.slane %v3506, 4
      %v3509 = vshll.u32 %v3263, 16
      %v3511 = vrot.slane %v3509, 5
      %v3512 = vsel %vm248, %v3507, %v3511
      %v3513 = vshrl.u32 %v3263, 16
      %v3515 = vrot.slane %v3513, 4
      %v3516 = vor.u32 %v3515, %v3511
      %v3517 = vrot.slane %v3516, 4
      %v3519 = vshll.u32 %v3264, 16
      %v3521 = vrot.slane %v3519, 5
      %v3522 = vsel %vm248, %v3517, %v3521
      %v3524 = vshrl.u32 %v3265, 16
      %v3526 = vrot.slane %v3524, 4
      %v3527 = vshll.u32 %v3265, 16
      %v3529 = vrot.slane %v3527, 5
      %v3530 = vor.u32 %v3526, %v3529
      %v3531 = vrot.slane %v3530, 4
      %v3533 = vshll.u32 %v3266, 16
      %v3535 = vrot.slane %v3533, 5
      %v3536 = vsel %vm248, %v3531, %v3535
      %v3537 = vshrl.u32 %v3266, 16
      %v3539 = vrot.slane %v3537, 4
      %v3540 = vor.u32 %v3539, %v3535
      %v3541 = vrot.slane %v3540, 4
      %v3543 = vshll.u32 %v3267, 16
      %v3545 = vrot.slane %v3543, 5
      %v3546 = vsel %vm248, %v3541, %v3545
      %v3548 = vshrl.u32 %v3268, 16
      %v3550 = vrot.slane %v3548, 4
      %v3551 = vshll.u32 %v3268, 16
      %v3553 = vrot.slane %v3551, 5
      %v3554 = vor.u32 %v3550, %v3553
      %v3555 = vrot.slane %v3554, 4
      %v3557 = vshll.u32 %v3269, 16
      %v3559 = vrot.slane %v3557, 5
      %v3560 = vsel %vm248, %v3555, %v3559
      %v3561 = vshrl.u32 %v3269, 16
      %v3563 = vrot.slane %v3561, 4
      %v3564 = vor.u32 %v3563, %v3559
      %v3565 = vrot.slane %v3564, 4
      %v3567 = vshll.u32 %v3270, 16
      %v3569 = vrot.slane %v3567, 5
      %v3570 = vsel %vm248, %v3565, %v3569
      %v3572 = vshrl.u32 %v3271, 16
      %v3574 = vrot.slane %v3572, 4
      %v3575 = vshll.u32 %v3271, 16
      %v3577 = vrot.slane %v3575, 5
      %v3578 = vor.u32 %v3574, %v3577
      %v3579 = vrot.slane %v3578, 4
      %v3581 = vshll.u32 %v3272, 16
      %v3583 = vrot.slane %v3581, 5
      %v3584 = vsel %vm248, %v3579, %v3583
      %v3585 = vshrl.u32 %v3272, 16
      %v3587 = vrot.slane %v3585, 4
      %v3588 = vor.u32 %v3587, %v3583
      %v3589 = vrot.slane %v3588, 4
      %v3591 = vshll.u32 %v3273, 16
      %v3593 = vrot.slane %v3591, 5
      %v3594 = vsel %vm248, %v3589, %v3593
      %v3596 = vshrl.u32 %v3274, 16
      %v3598 = vrot.slane %v3596, 4
      %v3599 = vshll.u32 %v3274, 16
      %v3601 = vrot.slane %v3599, 5
      %v3602 = vor.u32 %v3598, %v3601
      %v3603 = vrot.slane %v3602, 4
      %v3605 = vshll.u32 %v3275, 16
      %v3607 = vrot.slane %v3605, 5
      %v3608 = vsel %vm248, %v3603, %v3607
      %v3609 = vshrl.u32 %v3275, 16
      %v3611 = vrot.slane %v3609, 4
      %v3612 = vor.u32 %v3611, %v3607
      %v3613 = vrot.slane %v3612, 4
      %v3615 = vshll.u32 %v3276, 16
      %v3617 = vrot.slane %v3615, 5
      %v3618 = vsel %vm248, %v3613, %v3617
      %v3620 = vshrl.u32 %v3277, 16
      %v3622 = vrot.slane %v3620, 4
      %v3623 = vshll.u32 %v3277, 16
      %v3625 = vrot.slane %v3623, 5
      %v3626 = vor.u32 %v3622, %v3625
      %v3627 = vrot.slane %v3626, 4
      %v3629 = vshll.u32 %v3278, 16
      %v3631 = vrot.slane %v3629, 5
      %v3632 = vsel %vm248, %v3627, %v3631
      %v3633 = vshrl.u32 %v3278, 16
      %v3635 = vrot.slane %v3633, 4
      %v3636 = vor.u32 %v3635, %v3631
      %v3637 = vrot.slane %v3636, 4
      %v3639 = vshll.u32 %v3279, 16
      %v3641 = vrot.slane %v3639, 5
      %v3642 = vsel %vm248, %v3637, %v3641
      %v3644 = vshrl.u32 %v3280, 16
      %v3646 = vrot.slane %v3644, 4
      %v3647 = vshll.u32 %v3280, 16
      %v3649 = vrot.slane %v3647, 5
      %v3650 = vor.u32 %v3646, %v3649
      %v3651 = vrot.slane %v3650, 4
      %v3653 = vshll.u32 %v3281, 16
      %v3655 = vrot.slane %v3653, 5
      %v3656 = vsel %vm248, %v3651, %v3655
      %v3657 = vshrl.u32 %v3281, 16
      %v3659 = vrot.slane %v3657, 4
      %v3660 = vor.u32 %v3659, %v3655
      %v3661 = vrot.slane %v3660, 4
      %v3663 = vshll.u32 %v3282, 16
      %v3665 = vrot.slane %v3663, 5
      %v3666 = vsel %vm248, %v3661, %v3665
      %s3667 = scalar_lea.vmem %s1, 448
      %v3668 = vld [vmem:[%s3667] sm:$0xf]
      %v3669 = vld [vmem:[%s3667 + $0x4] sm:$0xf]
      %v3670 = vld [vmem:[%s3667 + $0x8] sm:$0xf]
      %v3671 = vld [vmem:[%s3667 + $0xc] sm:$0xf]
      %v3672 = vld [vmem:[%s3667 + $0x10] sm:$0xf]
      %v3673 = vld [vmem:[%s3667 + $0x14] sm:$0xf]
      %v3674 = vld [vmem:[%s3667 + $0x18] sm:$0xf]
      %v3675 = vld [vmem:[%s3667 + $0x1c] sm:$0xf]
      %v3676 = vld [vmem:[%s3667 + $0x20] sm:$0xf]
      %v3677 = vld [vmem:[%s3667 + $0x24] sm:$0xf]
      %v3678 = vld [vmem:[%s3667 + $0x28] sm:$0xf]
      %v3679 = vld [vmem:[%s3667 + $0x2c] sm:$0xf]
      %v3680 = vld [vmem:[%s3667 + $0x30] sm:$0xf]
      %v3681 = vld [vmem:[%s3667 + $0x34] sm:$0xf]
      %v3682 = vld [vmem:[%s3667 + $0x38] sm:$0xf]
      %v3683 = vld [vmem:[%s3667 + $0x3c] sm:$0xf]
      %v3684 = vunpack.c.l.b16 %v3296
      %v3685 = vunpack.c.l.b16 %v3306
      %v3686 = vunpack.c.l.b16 %v3320
      %v3687 = vunpack.c.l.b16 %v3330
      %v3688 = vunpack.c.l.b16 %v3344
      %v3689 = vunpack.c.l.b16 %v3354
      %v3690 = vunpack.c.l.b16 %v3368
      %v3691 = vunpack.c.l.b16 %v3378
      %v3692 = vunpack.c.l.b16 %v3392
      %v3693 = vunpack.c.l.b16 %v3402
      %v3694 = vunpack.c.l.b16 %v3416
      %v3695 = vunpack.c.l.b16 %v3426
      %v3696 = vunpack.c.l.b16 %v3440
      %v3697 = vunpack.c.l.b16 %v3450
      %v3698 = vunpack.c.l.b16 %v3464
      %v3699 = vunpack.c.l.b16 %v3474
      %v3700 = vunpack.c.l.b16 %v3488
      %v3701 = vunpack.c.l.b16 %v3498
      %v3702 = vunpack.c.l.b16 %v3512
      %v3703 = vunpack.c.l.b16 %v3522
      %v3704 = vunpack.c.l.b16 %v3536
      %v3705 = vunpack.c.l.b16 %v3546
      %v3706 = vunpack.c.l.b16 %v3560
      %v3707 = vunpack.c.l.b16 %v3570
      %v3708 = vunpack.c.l.b16 %v3584
      %v3709 = vunpack.c.l.b16 %v3594
      %v3710 = vunpack.c.l.b16 %v3608
      %v3711 = vunpack.c.l.b16 %v3618
      %v3712 = vunpack.c.l.b16 %v3632
      %v3713 = vunpack.c.l.b16 %v3642
      %v3714 = vunpack.c.l.b16 %v3656
      %v3715 = vunpack.c.l.b16 %v3666
      %v3716 = vpack.c.b16 %v3685, %v3684
      %v3717 = vpack.c.b16 %v3687, %v3686
      %v3718 = vpack.c.b16 %v3689, %v3688
      %v3719 = vpack.c.b16 %v3691, %v3690
      %v3720 = vpack.c.b16 %v3693, %v3692
      %v3721 = vpack.c.b16 %v3695, %v3694
      %v3722 = vpack.c.b16 %v3697, %v3696
      %v3723 = vpack.c.b16 %v3699, %v3698
      %v3724 = vpack.c.b16 %v3701, %v3700
      %v3725 = vpack.c.b16 %v3703, %v3702
      %v3726 = vpack.c.b16 %v3705, %v3704
      %v3727 = vpack.c.b16 %v3707, %v3706
      %v3728 = vpack.c.b16 %v3709, %v3708
      %v3729 = vpack.c.b16 %v3711, %v3710
      %v3730 = vpack.c.b16 %v3713, %v3712
      %v3731 = vpack.c.b16 %v3715, %v3714
      %v3764 = vunpack.c.l.b16 %v3668
      %v3765 = vunpack.c.l.b16 %v3669
      %v3766 = vunpack.c.l.b16 %v3670
      %v3767 = vunpack.c.l.b16 %v3671
      %v3768 = vunpack.c.l.b16 %v3672
      %v3769 = vunpack.c.l.b16 %v3673
      %v3770 = vunpack.c.l.b16 %v3674
      %v3771 = vunpack.c.l.b16 %v3675
      %v3772 = vunpack.c.l.b16 %v3676
      %v3773 = vunpack.c.l.b16 %v3677
      %v3774 = vunpack.c.l.b16 %v3678
      %v3775 = vunpack.c.l.b16 %v3679
      %v3776 = vunpack.c.l.b16 %v3680
      %v3777 = vunpack.c.l.b16 %v3681
      %v3778 = vunpack.c.l.b16 %v3682
      %v3779 = vunpack.c.l.b16 %v3683
      %v3780 = vpack.c.b16 %v3765, %v3764
      %v3781 = vpack.c.b16 %v3767, %v3766
      %v3782 = vpack.c.b16 %v3769, %v3768
      %v3783 = vpack.c.b16 %v3771, %v3770
      %v3784 = vpack.c.b16 %v3773, %v3772
      %v3785 = vpack.c.b16 %v3775, %v3774
      %v3786 = vpack.c.b16 %v3777, %v3776
      %v3787 = vpack.c.b16 %v3779, %v3778
      %3796 = vmatpush.bf16.msra.mxu0 %v3787
      %3797 = vmatpush.bf16.msra.mxu0 %v3786
      %3798 = vmatpush.bf16.msra.mxu0 %v3785
      %3799 = vmatpush.bf16.msra.mxu0 %v3784
      %3800 = vmatpush.bf16.msra.mxu0 %v3783
      %3801 = vmatpush.bf16.msra.mxu0 %v3782
      %3802 = vmatpush.bf16.msra.mxu0 %v3781
      %3803 = vmatpush.bf16.msra.mxu0 %v3780
      %3804 = vmatmul.bf16.gmra.mxu0 %v3716
      %v3805 = vpop.f32.mrf.mxu0
      %v3806 = vadd.f32 0.0, %v3805
      %v3807 = vpop.f32.mrf.mxu0
      %v3808 = vadd.f32 0.0, %v3807
      %3809 = vmatmul.bf16.gmra.mxu0 %v3717
      %v3810 = vpop.f32.mrf.mxu0
      %v3811 = vadd.f32 0.0, %v3810
      %v3812 = vpop.f32.mrf.mxu0
      %v3813 = vadd.f32 0.0, %v3812
      %3814 = vmatmul.bf16.gmra.mxu0 %v3718
      %v3815 = vpop.f32.mrf.mxu0
      %v3816 = vadd.f32 0.0, %v3815
      %v3817 = vpop.f32.mrf.mxu0
      %v3818 = vadd.f32 0.0, %v3817
      %3819 = vmatmul.bf16.gmra.mxu0 %v3719
      %v3820 = vpop.f32.mrf.mxu0
      %v3821 = vadd.f32 0.0, %v3820
      %v3822 = vpop.f32.mrf.mxu0
      %v3823 = vadd.f32 0.0, %v3822
      %3824 = vmatmul.bf16.gmra.mxu0 %v3720
      %v3825 = vpop.f32.mrf.mxu0
      %v3826 = vadd.f32 0.0, %v3825
      %v3827 = vpop.f32.mrf.mxu0
      %v3828 = vadd.f32 0.0, %v3827
      %3829 = vmatmul.bf16.gmra.mxu0 %v3721
      %v3830 = vpop.f32.mrf.mxu0
      %v3831 = vadd.f32 0.0, %v3830
      %v3832 = vpop.f32.mrf.mxu0
      %v3833 = vadd.f32 0.0, %v3832
      %3834 = vmatmul.bf16.gmra.mxu0 %v3722
      %v3835 = vpop.f32.mrf.mxu0
      %v3836 = vadd.f32 0.0, %v3835
      %v3837 = vpop.f32.mrf.mxu0
      %v3838 = vadd.f32 0.0, %v3837
      %3839 = vmatmul.bf16.gmra.mxu0 %v3723
      %v3840 = vpop.f32.mrf.mxu0
      %v3841 = vadd.f32 0.0, %v3840
      %v3842 = vpop.f32.mrf.mxu0
      %v3843 = vadd.f32 0.0, %v3842
      %3844 = vmatmul.bf16.gmra.mxu0 %v3724
      %v3845 = vpop.f32.mrf.mxu0
      %v3846 = vadd.f32 0.0, %v3845
      %v3847 = vpop.f32.mrf.mxu0
      %v3848 = vadd.f32 0.0, %v3847
      %3849 = vmatmul.bf16.gmra.mxu0 %v3725
      %v3850 = vpop.f32.mrf.mxu0
      %v3851 = vadd.f32 0.0, %v3850
      %v3852 = vpop.f32.mrf.mxu0
      %v3853 = vadd.f32 0.0, %v3852
      %3854 = vmatmul.bf16.gmra.mxu0 %v3726
      %v3855 = vpop.f32.mrf.mxu0
      %v3856 = vadd.f32 0.0, %v3855
      %v3857 = vpop.f32.mrf.mxu0
      %v3858 = vadd.f32 0.0, %v3857
      %3859 = vmatmul.bf16.gmra.mxu0 %v3727
      %v3860 = vpop.f32.mrf.mxu0
      %v3861 = vadd.f32 0.0, %v3860
      %v3862 = vpop.f32.mrf.mxu0
      %v3863 = vadd.f32 0.0, %v3862
      %3864 = vmatmul.bf16.gmra.mxu0 %v3728
      %v3865 = vpop.f32.mrf.mxu0
      %v3866 = vadd.f32 0.0, %v3865
      %v3867 = vpop.f32.mrf.mxu0
      %v3868 = vadd.f32 0.0, %v3867
      %3869 = vmatmul.bf16.gmra.mxu0 %v3729
      %v3870 = vpop.f32.mrf.mxu0
      %v3871 = vadd.f32 0.0, %v3870
      %v3872 = vpop.f32.mrf.mxu0
      %v3873 = vadd.f32 0.0, %v3872
      %3874 = vmatmul.bf16.gmra.mxu0 %v3730
      %v3875 = vpop.f32.mrf.mxu0
      %v3876 = vadd.f32 0.0, %v3875
      %v3877 = vpop.f32.mrf.mxu0
      %v3878 = vadd.f32 0.0, %v3877
      %3879 = vmatmul.bf16.gmra.mxu0 %v3731
      %v3880 = vpop.f32.mrf.mxu0
      %v3881 = vadd.f32 0.0, %v3880
      %v3882 = vpop.f32.mrf.mxu0
      %v3883 = vadd.f32 0.0, %v3882
      %3884 = vdwg.mxu0
      %v3885 = vadd.f32 %v3203, %v3806
      %v3886 = vadd.f32 %v3204, %v3808
      %v3887 = vadd.f32 %v3205, %v3811
      %v3888 = vadd.f32 %v3206, %v3813
      %v3889 = vadd.f32 %v3207, %v3816
      %v3890 = vadd.f32 %v3208, %v3818
      %v3891 = vadd.f32 %v3209, %v3821
      %v3892 = vadd.f32 %v3210, %v3823
      %v3893 = vadd.f32 %v3211, %v3826
      %v3894 = vadd.f32 %v3212, %v3828
      %v3895 = vadd.f32 %v3213, %v3831
      %v3896 = vadd.f32 %v3214, %v3833
      %v3897 = vadd.f32 %v3215, %v3836
      %v3898 = vadd.f32 %v3216, %v3838
      %v3899 = vadd.f32 %v3217, %v3841
      %v3900 = vadd.f32 %v3218, %v3843
      %v3901 = vadd.f32 %v3219, %v3846
      %v3902 = vadd.f32 %v3220, %v3848
      %v3903 = vadd.f32 %v3221, %v3851
      %v3904 = vadd.f32 %v3222, %v3853
      %v3905 = vadd.f32 %v3223, %v3856
      %v3906 = vadd.f32 %v3224, %v3858
      %v3907 = vadd.f32 %v3225, %v3861
      %v3908 = vadd.f32 %v3226, %v3863
      %v3909 = vadd.f32 %v3227, %v3866
      %v3910 = vadd.f32 %v3228, %v3868
      %v3911 = vadd.f32 %v3229, %v3871
      %v3912 = vadd.f32 %v3230, %v3873
      %v3913 = vadd.f32 %v3231, %v3876
      %v3914 = vadd.f32 %v3232, %v3878
      %v3915 = vadd.f32 %v3233, %v3881
      %v3916 = vadd.f32 %v3234, %v3883
      %v3917 = vld [vmem:[%s2920] sm:$0xe]
      %v3918 = vld [vmem:[%s2920 + $0xc] sm:$0xe]
      %v3919 = vld [vmem:[%s2920 + $0x18] sm:$0xe]
      %v3920 = vld [vmem:[%s2920 + $0x24] sm:$0xe]
      %v3921 = vld [vmem:[%s2920 + $0x30] sm:$0xe]
      %v3922 = vld [vmem:[%s2920 + $0x3c] sm:$0xe]
      %v3923 = vld [vmem:[%s2920 + $0x48] sm:$0xe]
      %v3924 = vld [vmem:[%s2920 + $0x54] sm:$0xe]
      %v3925 = vld [vmem:[%s2920 + $0x60] sm:$0xe]
      %v3926 = vld [vmem:[%s2920 + $0x6c] sm:$0xe]
      %v3927 = vld [vmem:[%s2920 + $0x78] sm:$0xe]
      %v3928 = vld [vmem:[%s2920 + $0x84] sm:$0xe]
      %v3929 = vld [vmem:[%s2920 + $0x90] sm:$0xe]
      %v3930 = vld [vmem:[%s2920 + $0x9c] sm:$0xe]
      %v3931 = vld [vmem:[%s2920 + $0xa8] sm:$0xe]
      %v3932 = vld [vmem:[%s2920 + $0xb4] sm:$0xe]
      %v3981 = vrot.slane %v3917, 5
      %v3982 = vrot.slane %v3981, 4
      %v3983 = vrot.slane %v3236, 5
      %v3984 = vsel %vm1134, %v3982, %v3983
      %v3985 = vrot.slane %v3983, 4
      %v3986 = vrot.slane %v3237, 5
      %v3987 = vsel %vm1134, %v3985, %v3986
      %v3988 = vrot.slane %v3918, 5
      %v3989 = vrot.slane %v3988, 4
      %v3990 = vrot.slane %v3239, 5
      %v3991 = vsel %vm1134, %v3989, %v3990
      %v3992 = vrot.slane %v3990, 4
      %v3993 = vrot.slane %v3240, 5
      %v3994 = vsel %vm1134, %v3992, %v3993
      %v3995 = vrot.slane %v3919, 5
      %v3996 = vrot.slane %v3995, 4
      %v3997 = vrot.slane %v3242, 5
      %v3998 = vsel %vm1134, %v3996, %v3997
      %v3999 = vrot.slane %v3997, 4
      %v4000 = vrot.slane %v3243, 5
      %v4001 = vsel %vm1134, %v3999, %v4000
      %v4002 = vrot.slane %v3920, 5
      %v4003 = vrot.slane %v4002, 4
      %v4004 = vrot.slane %v3245, 5
      %v4005 = vsel %vm1134, %v4003, %v4004
      %v4006 = vrot.slane %v4004, 4
      %v4007 = vrot.slane %v3246, 5
      %v4008 = vsel %vm1134, %v4006, %v4007
      %v4009 = vrot.slane %v3921, 5
      %v4010 = vrot.slane %v4009, 4
      %v4011 = vrot.slane %v3248, 5
      %v4012 = vsel %vm1134, %v4010, %v4011
      %v4013 = vrot.slane %v4011, 4
      %v4014 = vrot.slane %v3249, 5
      %v4015 = vsel %vm1134, %v4013, %v4014
      %v4016 = vrot.slane %v3922, 5
      %v4017 = vrot.slane %v4016, 4
      %v4018 = vrot.slane %v3251, 5
      %v4019 = vsel %vm1134, %v4017, %v4018
      %v4020 = vrot.slane %v4018, 4
      %v4021 = vrot.slane %v3252, 5
      %v4022 = vsel %vm1134, %v4020, %v4021
      %v4023 = vrot.slane %v3923, 5
      %v4024 = vrot.slane %v4023, 4
      %v4025 = vrot.slane %v3254, 5
      %v4026 = vsel %vm1134, %v4024, %v4025
      %v4027 = vrot.slane %v4025, 4
      %v4028 = vrot.slane %v3255, 5
      %v4029 = vsel %vm1134, %v4027, %v4028
      %v4030 = vrot.slane %v3924, 5
      %v4031 = vrot.slane %v4030, 4
      %v4032 = vrot.slane %v3257, 5
      %v4033 = vsel %vm1134, %v4031, %v4032
      %v4034 = vrot.slane %v4032, 4
      %v4035 = vrot.slane %v3258, 5
      %v4036 = vsel %vm1134, %v4034, %v4035
      %v4037 = vrot.slane %v3925, 5
      %v4038 = vrot.slane %v4037, 4
      %v4039 = vrot.slane %v3260, 5
      %v4040 = vsel %vm1134, %v4038, %v4039
      %v4041 = vrot.slane %v4039, 4
      %v4042 = vrot.slane %v3261, 5
      %v4043 = vsel %vm1134, %v4041, %v4042
      %v4044 = vrot.slane %v3926, 5
      %v4045 = vrot.slane %v4044, 4
      %v4046 = vrot.slane %v3263, 5
      %v4047 = vsel %vm1134, %v4045, %v4046
      %v4048 = vrot.slane %v4046, 4
      %v4049 = vrot.slane %v3264, 5
      %v4050 = vsel %vm1134, %v4048, %v4049
      %v4051 = vrot.slane %v3927, 5
      %v4052 = vrot.slane %v4051, 4
      %v4053 = vrot.slane %v3266, 5
      %v4054 = vsel %vm1134, %v4052, %v4053
      %v4055 = vrot.slane %v4053, 4
      %v4056 = vrot.slane %v3267, 5
      %v4057 = vsel %vm1134, %v4055, %v4056
      %v4058 = vrot.slane %v3928, 5
      %v4059 = vrot.slane %v4058, 4
      %v4060 = vrot.slane %v3269, 5
      %v4061 = vsel %vm1134, %v4059, %v4060
      %v4062 = vrot.slane %v4060, 4
      %v4063 = vrot.slane %v3270, 5
      %v4064 = vsel %vm1134, %v4062, %v4063
      %v4065 = vrot.slane %v3929, 5
      %v4066 = vrot.slane %v4065, 4
      %v4067 = vrot.slane %v3272, 5
      %v4068 = vsel %vm1134, %v4066, %v4067
      %v4069 = vrot.slane %v4067, 4
      %v4070 = vrot.slane %v3273, 5
      %v4071 = vsel %vm1134, %v4069, %v4070
      %v4072 = vrot.slane %v3930, 5
      %v4073 = vrot.slane %v4072, 4
      %v4074 = vrot.slane %v3275, 5
      %v4075 = vsel %vm1134, %v4073, %v4074
      %v4076 = vrot.slane %v4074, 4
      %v4077 = vrot.slane %v3276, 5
      %v4078 = vsel %vm1134, %v4076, %v4077
      %v4079 = vrot.slane %v3931, 5
      %v4080 = vrot.slane %v4079, 4
      %v4081 = vrot.slane %v3278, 5
      %v4082 = vsel %vm1134, %v4080, %v4081
      %v4083 = vrot.slane %v4081, 4
      %v4084 = vrot.slane %v3279, 5
      %v4085 = vsel %vm1134, %v4083, %v4084
      %v4086 = vrot.slane %v3932, 5
      %v4087 = vrot.slane %v4086, 4
      %v4088 = vrot.slane %v3281, 5
      %v4089 = vsel %vm1134, %v4087, %v4088
      %v4090 = vrot.slane %v4088, 4
      %v4091 = vrot.slane %v3282, 5
      %v4092 = vsel %vm1134, %v4090, %v4091
      %s4093 = scalar_lea.vmem %s1, 512
      %v4094 = vld [vmem:[%s4093] sm:$0xf]
      %v4095 = vld [vmem:[%s4093 + $0x4] sm:$0xf]
      %v4096 = vld [vmem:[%s4093 + $0x8] sm:$0xf]
      %v4097 = vld [vmem:[%s4093 + $0xc] sm:$0xf]
      %v4098 = vld [vmem:[%s4093 + $0x10] sm:$0xf]
      %v4099 = vld [vmem:[%s4093 + $0x14] sm:$0xf]
      %v4100 = vld [vmem:[%s4093 + $0x18] sm:$0xf]
      %v4101 = vld [vmem:[%s4093 + $0x1c] sm:$0xf]
      %v4102 = vld [vmem:[%s4093 + $0x20] sm:$0xf]
      %v4103 = vld [vmem:[%s4093 + $0x24] sm:$0xf]
      %v4104 = vld [vmem:[%s4093 + $0x28] sm:$0xf]
      %v4105 = vld [vmem:[%s4093 + $0x2c] sm:$0xf]
      %v4106 = vld [vmem:[%s4093 + $0x30] sm:$0xf]
      %v4107 = vld [vmem:[%s4093 + $0x34] sm:$0xf]
      %v4108 = vld [vmem:[%s4093 + $0x38] sm:$0xf]
      %v4109 = vld [vmem:[%s4093 + $0x3c] sm:$0xf]
      %v4110 = vunpack.c.l.b16 %v3984
      %v4111 = vunpack.c.l.b16 %v3987
      %v4112 = vunpack.c.l.b16 %v3991
      %v4113 = vunpack.c.l.b16 %v3994
      %v4114 = vunpack.c.l.b16 %v3998
      %v4115 = vunpack.c.l.b16 %v4001
      %v4116 = vunpack.c.l.b16 %v4005
      %v4117 = vunpack.c.l.b16 %v4008
      %v4118 = vunpack.c.l.b16 %v4012
      %v4119 = vunpack.c.l.b16 %v4015
      %v4120 = vunpack.c.l.b16 %v4019
      %v4121 = vunpack.c.l.b16 %v4022
      %v4122 = vunpack.c.l.b16 %v4026
      %v4123 = vunpack.c.l.b16 %v4029
      %v4124 = vunpack.c.l.b16 %v4033
      %v4125 = vunpack.c.l.b16 %v4036
      %v4126 = vunpack.c.l.b16 %v4040
      %v4127 = vunpack.c.l.b16 %v4043
      %v4128 = vunpack.c.l.b16 %v4047
      %v4129 = vunpack.c.l.b16 %v4050
      %v4130 = vunpack.c.l.b16 %v4054
      %v4131 = vunpack.c.l.b16 %v4057
      %v4132 = vunpack.c.l.b16 %v4061
      %v4133 = vunpack.c.l.b16 %v4064
      %v4134 = vunpack.c.l.b16 %v4068
      %v4135 = vunpack.c.l.b16 %v4071
      %v4136 = vunpack.c.l.b16 %v4075
      %v4137 = vunpack.c.l.b16 %v4078
      %v4138 = vunpack.c.l.b16 %v4082
      %v4139 = vunpack.c.l.b16 %v4085
      %v4140 = vunpack.c.l.b16 %v4089
      %v4141 = vunpack.c.l.b16 %v4092
      %v4142 = vpack.c.b16 %v4111, %v4110
      %v4143 = vpack.c.b16 %v4113, %v4112
      %v4144 = vpack.c.b16 %v4115, %v4114
      %v4145 = vpack.c.b16 %v4117, %v4116
      %v4146 = vpack.c.b16 %v4119, %v4118
      %v4147 = vpack.c.b16 %v4121, %v4120
      %v4148 = vpack.c.b16 %v4123, %v4122
      %v4149 = vpack.c.b16 %v4125, %v4124
      %v4150 = vpack.c.b16 %v4127, %v4126
      %v4151 = vpack.c.b16 %v4129, %v4128
      %v4152 = vpack.c.b16 %v4131, %v4130
      %v4153 = vpack.c.b16 %v4133, %v4132
      %v4154 = vpack.c.b16 %v4135, %v4134
      %v4155 = vpack.c.b16 %v4137, %v4136
      %v4156 = vpack.c.b16 %v4139, %v4138
      %v4157 = vpack.c.b16 %v4141, %v4140
      %v4190 = vunpack.c.l.b16 %v4094
      %v4191 = vunpack.c.l.b16 %v4095
      %v4192 = vunpack.c.l.b16 %v4096
      %v4193 = vunpack.c.l.b16 %v4097
      %v4194 = vunpack.c.l.b16 %v4098
      %v4195 = vunpack.c.l.b16 %v4099
      %v4196 = vunpack.c.l.b16 %v4100
      %v4197 = vunpack.c.l.b16 %v4101
      %v4198 = vunpack.c.l.b16 %v4102
      %v4199 = vunpack.c.l.b16 %v4103
      %v4200 = vunpack.c.l.b16 %v4104
      %v4201 = vunpack.c.l.b16 %v4105
      %v4202 = vunpack.c.l.b16 %v4106
      %v4203 = vunpack.c.l.b16 %v4107
      %v4204 = vunpack.c.l.b16 %v4108
      %v4205 = vunpack.c.l.b16 %v4109
      %v4206 = vpack.c.b16 %v4191, %v4190
      %v4207 = vpack.c.b16 %v4193, %v4192
      %v4208 = vpack.c.b16 %v4195, %v4194
      %v4209 = vpack.c.b16 %v4197, %v4196
      %v4210 = vpack.c.b16 %v4199, %v4198
      %v4211 = vpack.c.b16 %v4201, %v4200
      %v4212 = vpack.c.b16 %v4203, %v4202
      %v4213 = vpack.c.b16 %v4205, %v4204
      %4222 = vmatpush.bf16.msra.mxu0 %v4213
      %4223 = vmatpush.bf16.msra.mxu0 %v4212
      %4224 = vmatpush.bf16.msra.mxu0 %v4211
      %4225 = vmatpush.bf16.msra.mxu0 %v4210
      %4226 = vmatpush.bf16.msra.mxu0 %v4209
      %4227 = vmatpush.bf16.msra.mxu0 %v4208
      %4228 = vmatpush.bf16.msra.mxu0 %v4207
      %4229 = vmatpush.bf16.msra.mxu0 %v4206
      %4230 = vmatmul.bf16.gmra.mxu0 %v4142
      %v4231 = vpop.f32.mrf.mxu0
      %v4232 = vadd.f32 0.0, %v4231
      %v4233 = vpop.f32.mrf.mxu0
      %v4234 = vadd.f32 0.0, %v4233
      %4235 = vmatmul.bf16.gmra.mxu0 %v4143
      %v4236 = vpop.f32.mrf.mxu0
      %v4237 = vadd.f32 0.0, %v4236
      %v4238 = vpop.f32.mrf.mxu0
      %v4239 = vadd.f32 0.0, %v4238
      %4240 = vmatmul.bf16.gmra.mxu0 %v4144
      %v4241 = vpop.f32.mrf.mxu0
      %v4242 = vadd.f32 0.0, %v4241
      %v4243 = vpop.f32.mrf.mxu0
      %v4244 = vadd.f32 0.0, %v4243
      %4245 = vmatmul.bf16.gmra.mxu0 %v4145
      %v4246 = vpop.f32.mrf.mxu0
      %v4247 = vadd.f32 0.0, %v4246
      %v4248 = vpop.f32.mrf.mxu0
      %v4249 = vadd.f32 0.0, %v4248
      %4250 = vmatmul.bf16.gmra.mxu0 %v4146
      %v4251 = vpop.f32.mrf.mxu0
      %v4252 = vadd.f32 0.0, %v4251
      %v4253 = vpop.f32.mrf.mxu0
      %v4254 = vadd.f32 0.0, %v4253
      %4255 = vmatmul.bf16.gmra.mxu0 %v4147
      %v4256 = vpop.f32.mrf.mxu0
      %v4257 = vadd.f32 0.0, %v4256
      %v4258 = vpop.f32.mrf.mxu0
      %v4259 = vadd.f32 0.0, %v4258
      %4260 = vmatmul.bf16.gmra.mxu0 %v4148
      %v4261 = vpop.f32.mrf.mxu0
      %v4262 = vadd.f32 0.0, %v4261
      %v4263 = vpop.f32.mrf.mxu0
      %v4264 = vadd.f32 0.0, %v4263
      %4265 = vmatmul.bf16.gmra.mxu0 %v4149
      %v4266 = vpop.f32.mrf.mxu0
      %v4267 = vadd.f32 0.0, %v4266
      %v4268 = vpop.f32.mrf.mxu0
      %v4269 = vadd.f32 0.0, %v4268
      %4270 = vmatmul.bf16.gmra.mxu0 %v4150
      %v4271 = vpop.f32.mrf.mxu0
      %v4272 = vadd.f32 0.0, %v4271
      %v4273 = vpop.f32.mrf.mxu0
      %v4274 = vadd.f32 0.0, %v4273
      %4275 = vmatmul.bf16.gmra.mxu0 %v4151
      %v4276 = vpop.f32.mrf.mxu0
      %v4277 = vadd.f32 0.0, %v4276
      %v4278 = vpop.f32.mrf.mxu0
      %v4279 = vadd.f32 0.0, %v4278
      %4280 = vmatmul.bf16.gmra.mxu0 %v4152
      %v4281 = vpop.f32.mrf.mxu0
      %v4282 = vadd.f32 0.0, %v4281
      %v4283 = vpop.f32.mrf.mxu0
      %v4284 = vadd.f32 0.0, %v4283
      %4285 = vmatmul.bf16.gmra.mxu0 %v4153
      %v4286 = vpop.f32.mrf.mxu0
      %v4287 = vadd.f32 0.0, %v4286
      %v4288 = vpop.f32.mrf.mxu0
      %v4289 = vadd.f32 0.0, %v4288
      %4290 = vmatmul.bf16.gmra.mxu0 %v4154
      %v4291 = vpop.f32.mrf.mxu0
      %v4292 = vadd.f32 0.0, %v4291
      %v4293 = vpop.f32.mrf.mxu0
      %v4294 = vadd.f32 0.0, %v4293
      %4295 = vmatmul.bf16.gmra.mxu0 %v4155
      %v4296 = vpop.f32.mrf.mxu0
      %v4297 = vadd.f32 0.0, %v4296
      %v4298 = vpop.f32.mrf.mxu0
      %v4299 = vadd.f32 0.0, %v4298
      %4300 = vmatmul.bf16.gmra.mxu0 %v4156
      %v4301 = vpop.f32.mrf.mxu0
      %v4302 = vadd.f32 0.0, %v4301
      %v4303 = vpop.f32.mrf.mxu0
      %v4304 = vadd.f32 0.0, %v4303
      %4305 = vmatmul.bf16.gmra.mxu0 %v4157
      %v4306 = vpop.f32.mrf.mxu0
      %v4307 = vadd.f32 0.0, %v4306
      %v4308 = vpop.f32.mrf.mxu0
      %v4309 = vadd.f32 0.0, %v4308
      %4310 = vdwg.mxu0
      %v4311 = vadd.f32 %v3885, %v4232
      %v4312 = vadd.f32 %v3886, %v4234
      %v4313 = vadd.f32 %v3887, %v4237
      %v4314 = vadd.f32 %v3888, %v4239
      %v4315 = vadd.f32 %v3889, %v4242
      %v4316 = vadd.f32 %v3890, %v4244
      %v4317 = vadd.f32 %v3891, %v4247
      %v4318 = vadd.f32 %v3892, %v4249
      %v4319 = vadd.f32 %v3893, %v4252
      %v4320 = vadd.f32 %v3894, %v4254
      %v4321 = vadd.f32 %v3895, %v4257
      %v4322 = vadd.f32 %v3896, %v4259
      %v4323 = vadd.f32 %v3897, %v4262
      %v4324 = vadd.f32 %v3898, %v4264
      %v4325 = vadd.f32 %v3899, %v4267
      %v4326 = vadd.f32 %v3900, %v4269
      %v4327 = vadd.f32 %v3901, %v4272
      %v4328 = vadd.f32 %v3902, %v4274
      %v4329 = vadd.f32 %v3903, %v4277
      %v4330 = vadd.f32 %v3904, %v4279
      %v4331 = vadd.f32 %v3905, %v4282
      %v4332 = vadd.f32 %v3906, %v4284
      %v4333 = vadd.f32 %v3907, %v4287
      %v4334 = vadd.f32 %v3908, %v4289
      %v4335 = vadd.f32 %v3909, %v4292
      %v4336 = vadd.f32 %v3910, %v4294
      %v4337 = vadd.f32 %v3911, %v4297
      %v4338 = vadd.f32 %v3912, %v4299
      %v4339 = vadd.f32 %v3913, %v4302
      %v4340 = vadd.f32 %v3914, %v4304
      %v4341 = vadd.f32 %v3915, %v4307
      %v4342 = vadd.f32 %v3916, %v4309
      %v4343 = vpack.c.bf16 %v4311, %v4311
      %v4344 = vpack.c.bf16 %v4312, %v4312
      %v4345 = vpack.c.bf16 %v4313, %v4313
      %v4346 = vpack.c.bf16 %v4314, %v4314
      %v4347 = vpack.c.bf16 %v4315, %v4315
      %v4348 = vpack.c.bf16 %v4316, %v4316
      %v4349 = vpack.c.bf16 %v4317, %v4317
      %v4350 = vpack.c.bf16 %v4318, %v4318
      %v4351 = vpack.c.bf16 %v4319, %v4319
      %v4352 = vpack.c.bf16 %v4320, %v4320
      %v4353 = vpack.c.bf16 %v4321, %v4321
      %v4354 = vpack.c.bf16 %v4322, %v4322
      %v4355 = vpack.c.bf16 %v4323, %v4323
      %v4356 = vpack.c.bf16 %v4324, %v4324
      %v4357 = vpack.c.bf16 %v4325, %v4325
      %v4358 = vpack.c.bf16 %v4326, %v4326
      %v4359 = vpack.c.bf16 %v4327, %v4327
      %v4360 = vpack.c.bf16 %v4328, %v4328
      %v4361 = vpack.c.bf16 %v4329, %v4329
      %v4362 = vpack.c.bf16 %v4330, %v4330
      %v4363 = vpack.c.bf16 %v4331, %v4331
      %v4364 = vpack.c.bf16 %v4332, %v4332
      %v4365 = vpack.c.bf16 %v4333, %v4333
      %v4366 = vpack.c.bf16 %v4334, %v4334
      %v4367 = vpack.c.bf16 %v4335, %v4335
      %v4368 = vpack.c.bf16 %v4336, %v4336
      %v4369 = vpack.c.bf16 %v4337, %v4337
      %v4370 = vpack.c.bf16 %v4338, %v4338
      %v4371 = vpack.c.bf16 %v4339, %v4339
      %v4372 = vpack.c.bf16 %v4340, %v4340
      %v4373 = vpack.c.bf16 %v4341, %v4341
      %v4374 = vpack.c.bf16 %v4342, %v4342
      %4375 = vst [vmem:[%s177] sm:$0xf] %v4343
      %4376 = vst [vmem:[%s177 + $0x4] sm:$0xf] %v4344
      %4377 = vst [vmem:[%s177 + $0x8] sm:$0xf] %v4345
      %4378 = vst [vmem:[%s177 + $0xc] sm:$0xf] %v4346
      %4379 = vst [vmem:[%s177 + $0x10] sm:$0xf] %v4347
      %4380 = vst [vmem:[%s177 + $0x14] sm:$0xf] %v4348
      %4381 = vst [vmem:[%s177 + $0x18] sm:$0xf] %v4349
      %4382 = vst [vmem:[%s177 + $0x1c] sm:$0xf] %v4350
      %4383 = vst [vmem:[%s177 + $0x20] sm:$0xf] %v4351
      %4384 = vst [vmem:[%s177 + $0x24] sm:$0xf] %v4352
      %4385 = vst [vmem:[%s177 + $0x28] sm:$0xf] %v4353
      %4386 = vst [vmem:[%s177 + $0x2c] sm:$0xf] %v4354
      %4387 = vst [vmem:[%s177 + $0x30] sm:$0xf] %v4355
      %4388 = vst [vmem:[%s177 + $0x34] sm:$0xf] %v4356
      %4389 = vst [vmem:[%s177 + $0x38] sm:$0xf] %v4357
      %4390 = vst [vmem:[%s177 + $0x3c] sm:$0xf] %v4358
      %4391 = vst [vmem:[%s177 + $0x40] sm:$0xf] %v4359
      %4392 = vst [vmem:[%s177 + $0x44] sm:$0xf] %v4360
      %4393 = vst [vmem:[%s177 + $0x48] sm:$0xf] %v4361
      %4394 = vst [vmem:[%s177 + $0x4c] sm:$0xf] %v4362
      %4395 = vst [vmem:[%s177 + $0x50] sm:$0xf] %v4363
      %4396 = vst [vmem:[%s177 + $0x54] sm:$0xf] %v4364
      %4397 = vst [vmem:[%s177 + $0x58] sm:$0xf] %v4365
      %4398 = vst [vmem:[%s177 + $0x5c] sm:$0xf] %v4366
      %4399 = vst [vmem:[%s177 + $0x60] sm:$0xf] %v4367
      %4400 = vst [vmem:[%s177 + $0x64] sm:$0xf] %v4368
      %4401 = vst [vmem:[%s177 + $0x68] sm:$0xf] %v4369
      %4402 = vst [vmem:[%s177 + $0x6c] sm:$0xf] %v4370
      %4403 = vst [vmem:[%s177 + $0x70] sm:$0xf] %v4371
      %4404 = vst [vmem:[%s177 + $0x74] sm:$0xf] %v4372
      %4405 = vst [vmem:[%s177 + $0x78] sm:$0xf] %v4373
      %4406 = vst [vmem:[%s177 + $0x7c] sm:$0xf] %v4374
      %v4407 = vadd.f32 %v4311, %v4312
      %v4408 = vadd.f32 %v4407, %v4313
      %v4409 = vadd.f32 %v4408, %v4314
      %v4410 = vadd.f32 %v4409, %v4315
      %v4411 = vadd.f32 %v4410, %v4316
      %v4412 = vadd.f32 %v4411, %v4317
      %v4413 = vadd.f32 %v4412, %v4318
      %v4414 = vadd.f32 %v4413, %v4319
      %v4415 = vadd.f32 %v4414, %v4320
      %v4416 = vadd.f32 %v4415, %v4321
      %v4417 = vadd.f32 %v4416, %v4322
      %v4418 = vadd.f32 %v4417, %v4323
      %v4419 = vadd.f32 %v4418, %v4324
      %v4420 = vadd.f32 %v4419, %v4325
      %v4421 = vadd.f32 %v4420, %v4326
      %v4422 = vadd.f32 %v4421, %v4327
      %v4423 = vadd.f32 %v4422, %v4328
      %v4424 = vadd.f32 %v4423, %v4329
      %v4425 = vadd.f32 %v4424, %v4330
      %v4426 = vadd.f32 %v4425, %v4331
      %v4427 = vadd.f32 %v4426, %v4332
      %v4428 = vadd.f32 %v4427, %v4333
      %v4429 = vadd.f32 %v4428, %v4334
      %v4430 = vadd.f32 %v4429, %v4335
      %v4431 = vadd.f32 %v4430, %v4336
      %v4432 = vadd.f32 %v4431, %v4337
      %v4433 = vadd.f32 %v4432, %v4338
      %v4434 = vadd.f32 %v4433, %v4339
      %v4435 = vadd.f32 %v4434, %v4340
      %v4436 = vadd.f32 %v4435, %v4341
      %v4437 = vadd.f32 %v4436, %v4342
      %v4438 = vrot.slane %v4437, 4
      %v4439 = vadd.f32 %v4437, %v4438
      %v4440 = vrot.slane %v4439, 2
      %v4441 = vadd.f32 %v4439, %v4440
      %v4442 = vrot.slane %v4441, 1
      %v4443 = vadd.f32 %v4441, %v4442
      %v4444 = vmul.f32 %v4311, %v4311
      %v4445 = vmul.f32 %v4312, %v4312
      %v4446 = vmul.f32 %v4313, %v4313
      %v4447 = vmul.f32 %v4314, %v4314
      %v4448 = vmul.f32 %v4315, %v4315
      %v4449 = vmul.f32 %v4316, %v4316
      %v4450 = vmul.f32 %v4317, %v4317
      %v4451 = vmul.f32 %v4318, %v4318
      %v4452 = vmul.f32 %v4319, %v4319
      %v4453 = vmul.f32 %v4320, %v4320
      %v4454 = vmul.f32 %v4321, %v4321
      %v4455 = vmul.f32 %v4322, %v4322
      %v4456 = vmul.f32 %v4323, %v4323
      %v4457 = vmul.f32 %v4324, %v4324
      %v4458 = vmul.f32 %v4325, %v4325
      %v4459 = vmul.f32 %v4326, %v4326
      %v4460 = vmul.f32 %v4327, %v4327
      %v4461 = vmul.f32 %v4328, %v4328
      %v4462 = vmul.f32 %v4329, %v4329
      %v4463 = vmul.f32 %v4330, %v4330
      %v4464 = vmul.f32 %v4331, %v4331
      %v4465 = vmul.f32 %v4332, %v4332
      %v4466 = vmul.f32 %v4333, %v4333
      %v4467 = vmul.f32 %v4334, %v4334
      %v4468 = vmul.f32 %v4335, %v4335
      %v4469 = vmul.f32 %v4336, %v4336
      %v4470 = vmul.f32 %v4337, %v4337
      %v4471 = vmul.f32 %v4338, %v4338
      %v4472 = vmul.f32 %v4339, %v4339
      %v4473 = vmul.f32 %v4340, %v4340
      %v4474 = vmul.f32 %v4341, %v4341
      %v4475 = vmul.f32 %v4342, %v4342
      %v4476 = vadd.f32 %v4444, %v4445
      %v4477 = vadd.f32 %v4476, %v4446
      %v4478 = vadd.f32 %v4477, %v4447
      %v4479 = vadd.f32 %v4478, %v4448
      %v4480 = vadd.f32 %v4479, %v4449
      %v4481 = vadd.f32 %v4480, %v4450
      %v4482 = vadd.f32 %v4481, %v4451
      %v4483 = vadd.f32 %v4482, %v4452
      %v4484 = vadd.f32 %v4483, %v4453
      %v4485 = vadd.f32 %v4484, %v4454
      %v4486 = vadd.f32 %v4485, %v4455
      %v4487 = vadd.f32 %v4486, %v4456
      %v4488 = vadd.f32 %v4487, %v4457
      %v4489 = vadd.f32 %v4488, %v4458
      %v4490 = vadd.f32 %v4489, %v4459
      %v4491 = vadd.f32 %v4490, %v4460
      %v4492 = vadd.f32 %v4491, %v4461
      %v4493 = vadd.f32 %v4492, %v4462
      %v4494 = vadd.f32 %v4493, %v4463
      %v4495 = vadd.f32 %v4494, %v4464
      %v4496 = vadd.f32 %v4495, %v4465
      %v4497 = vadd.f32 %v4496, %v4466
      %v4498 = vadd.f32 %v4497, %v4467
      %v4499 = vadd.f32 %v4498, %v4468
      %v4500 = vadd.f32 %v4499, %v4469
      %v4501 = vadd.f32 %v4500, %v4470
      %v4502 = vadd.f32 %v4501, %v4471
      %v4503 = vadd.f32 %v4502, %v4472
      %v4504 = vadd.f32 %v4503, %v4473
      %v4505 = vadd.f32 %v4504, %v4474
      %v4506 = vadd.f32 %v4505, %v4475
      %v4507 = vrot.slane %v4506, 4
      %v4508 = vadd.f32 %v4506, %v4507
      %v4509 = vrot.slane %v4508, 2
      %v4510 = vadd.f32 %v4508, %v4509
      %v4511 = vrot.slane %v4510, 1
      %v4512 = vadd.f32 %v4510, %v4511
      %vm4513 = vcmask 1040384
      %v4514 = vsel %vm4513, %v4443, %v4512
      %4515 = vst [vmem:[%s181] sm:$0x3] %v4514
      %p4516 = scmp.lt.s32.totalorder %s15, 1
      %s4517 = scalar_select %p4516, %s15, 1
      %s4518 = smul.addr %s4517, 32
      %s4519 = smul.addr %s4518, 4
      %s4520 = scalar_lea.vmem %s2, %s4519
      %p4521 = scmp.lt.s32.totalorder %s15, 1
      %s4522 = scalar_select %p4521, %s15, 1
      %s4523 = smul.addr %s4522, 2
      %s4524 = scalar_lea.vmem %s3, %s4523
      // Predicated region
      $region29: #{down_conv2d.6} parent=27 // pred_check
        %p4525 = pneg %p80
      $region30: #{down_conv2d.6} parent=27 // pred_check_branch
        %4527 = sbr.rel (%p4525) target = $region32
      $region31: #{down_conv2d.6} parent=27 // pred_region
        _
      $region32: #{down_conv2d.6} parent=27 // pred_fallthru
        _
      // Predicated region
      $region33: #{down_conv2d.6} parent=27 // pred_check
        %p4528 = pneg %p106
      $region34: #{down_conv2d.6} parent=27 // pred_check_branch
        %4530 = sbr.rel (%p4528) target = $region36
      $region35: #{down_conv2d.6} parent=27 // pred_region
        _
      $region36: #{down_conv2d.6} parent=27 // pred_fallthru
        _
    $region28: #{down_conv2d.6} parent=5 // pred_fallthru
      _
    %p4531 = scmp.le.s32.totalorder 2, %s10
    // Predicated region
    $region37: #{down_conv2d.6} parent=5 // pred_check
      %p4532 = pneg %p4531
    $region38: #{down_conv2d.6} parent=5 // pred_check_branch
      %4534 = sbr.rel (%p4532) target = $region40
    $region39: #{down_conv2d.6} parent=5 // pred_region
      %s4535 = ssub.s32 %s10, 2
      // Predicated region
      $region41: #{down_conv2d.6} parent=39 // pred_check
        %p4536 = pneg %p86
      $region42: #{down_conv2d.6} parent=39 // pred_check_branch
        %4538 = sbr.rel (%p4536) target = $region44
      $region43: #{down_conv2d.6} parent=39 // pred_region
        %p4539 = scmp.lt.s32.totalorder %s16, 1
        %s4540 = scalar_select %p4539, %s16, 1
        %s4541 = smul.addr %s4540, 32
        %s4542 = smul.addr %s4541, 4
        %s4543 = scalar_lea.vmem %s2, %s4542
      $region44: #{down_conv2d.6} parent=39 // pred_fallthru
        _
      // Predicated region
      $region45: #{down_conv2d.6} parent=39 // pred_check
        %p4544 = pneg %p112
      $region46: #{down_conv2d.6} parent=39 // pred_check_branch
        %4546 = sbr.rel (%p4544) target = $region48
      $region47: #{down_conv2d.6} parent=39 // pred_region
        %p4547 = scmp.lt.s32.totalorder %s16, 1
        %s4548 = scalar_select %p4547, %s16, 1
        %s4549 = smul.addr %s4548, 2
        %s4550 = scalar_lea.vmem %s3, %s4549
      $region48: #{down_conv2d.6} parent=39 // pred_fallthru
        _
    $region40: #{down_conv2d.6} parent=5 // pred_fallthru
      _
  $region6: #{down_conv2d.6} parent=0 // loop_footer
    %s14 = sadd.s32 1, %s10
  $region7: #{down_conv2d.6} parent=0 // loop_footer_branch
    %9 = sbr.rel target = $region3
  $region8: #{down_conv2d.6} parent=0 // loop_exit
    _

// kernel: down_conv2d.4
$region0: #{down_conv2d.4}
  #allocation0 [shape = 'u32[]', space=smem, size = 0x4, offset = 0x4, fixed_abs, tag = 'smem constant byte address 0x4 - core index']
  #allocation1 [shape = 'u32[72,128]{1,0:T(1,128)}', space=vmem, size = 0x9000, scoped, tag = 'internal scratch']
  %s0 = inlined_call_operand.vmem [shape: bf16[2,18,18,4], index: 0, kind: input, shape index: {}]
  %s1 = inlined_call_operand.vmem [shape: bf16[9,4,128], index: 1, kind: input, shape index: {}]
  %s2 = inlined_call_operand.vmem [shape: bf16[2,256,128], index: 2, kind: output, shape index: {0}]
  %s3 = inlined_call_operand.vmem [shape: f32[2,2,128], index: 3, kind: output, shape index: {1}]
  %4 = xla_tuple %s2, %s3
  %s5 = sld [smem:[#allocation0]]
  $region49: #{down_conv2d.4} parent=0
    _
  %s7 = ssub.s32 1, %s5
  %s8 = scalar_select 0, %s7, %s5
  loop: start=0, step=1, limit=4
  $region2: #{down_conv2d.4} parent=0 // loop_pre_header
    _
  $region3: #{down_conv2d.4} parent=0 // loop_header
    %s10 = sphi 0, %s14
    %p11 = scmp.ge.s32.totalorder %s10, 4
    %s20 = sphi 0, %s22
    %s23 = sphi 0, %s20
    %s24 = sphi 0, %s23
    %s40 = sphi 0, %s24
    %s44 = sphi 0, %s44
    %s46 = sphi 0, %s44
    %s47 = sphi 0, %s46
    %s61 = sphi 0, %s47
    %s67 = sphi 0, %s69
    %s70 = sphi 0, %s67
    %s71 = sphi 0, %s70
    %s87 = sphi 0, %s71
    %s93 = sphi 0, %s95
    %s96 = sphi 0, %s93
    %s97 = sphi 0, %s96
    %s113 = sphi 0, %s97
  $region4: #{down_conv2d.4} parent=0 // loop_header_branch
    %13 = sbr.rel (%p11) target = $region8
  $region5: #{down_conv2d.4} parent=0 // loop_body
    %s15 = ssub.s32 %s10, 1
    %s16 = ssub.s32 %s10, 2
    %s17 = sadd.s32 %s10, 1
    %s18 = ssub.s32 %s10, %s17
    %p19 = scmp.eq.s32.totalorder %s18, 0
    %s21 = sadd.s32 %s20, 1
    %s22 = scalar_select %p19, %s20, %s21
    %p25 = pneg %p19
    %p26 = scmp.eq.s32.totalorder %s10, 1
    %p27 = por %p25, %p26
    %p28 = scmp.ne.s32.totalorder %s20, %s23
    %p29 = scmp.eq.s32.totalorder %s10, 0
    %p30 = por %p28, %p29
    %p31 = scmp.ne.s32.totalorder %s20, %s23
    %p32 = scmp.eq.s32.totalorder %s15, 1
    %p33 = por %p31, %p32
    %p34 = scmp.ne.s32.totalorder %s23, %s24
    %p35 = scmp.eq.s32.totalorder %s15, 0
    %p36 = por %p34, %p35
    %p37 = scmp.ne.s32.totalorder %s23, %s24
    %p38 = scmp.eq.s32.totalorder %s16, 1
    %p39 = por %p37, %p38
    %p41 = scmp.ne.s32.totalorder %s24, %s40
    %p42 = scmp.eq.s32.totalorder %s16, 0
    %p43 = por %p41, %p42
    %s45 = sadd.s32 %s44, 1
    %p48 = scmp.eq.s32.totalorder %s10, 1
    %p49 = scmp.ne.s32.totalorder %s44, %s46
    %p50 = scmp.eq.s32.totalorder %s10, 0
    %p51 = por %p49, %p50
    %p52 = scmp.ne.s32.totalorder %s44, %s46
    %p53 = scmp.eq.s32.totalorder %s15, 1
    %p54 = por %p52, %p53
    %p55 = scmp.ne.s32.totalorder %s46, %s47
    %p56 = scmp.eq.s32.totalorder %s15, 0
    %p57 = por %p55, %p56
    %p58 = scmp.ne.s32.totalorder %s46, %s47
    %p59 = scmp.eq.s32.totalorder %s16, 1
    %p60 = por %p58, %p59
    %p62 = scmp.ne.s32.totalorder %s47, %s61
    %p63 = scmp.eq.s32.totalorder %s16, 0
    %p64 = por %p62, %p63
    %s65 = ssub.s32 %s10, %s17
    %p66 = scmp.eq.s32.totalorder %s65, 0
    %s68 = sadd.s32 %s67, 1
    %s69 = scalar_select %p66, %s67, %s68
    %p72 = pneg %p66
    %p73 = scmp.eq.s32.totalorder %s10, 1
    %p74 = por %p72, %p73
    %p75 = scmp.ne.s32.totalorder %s67, %s70
    %p76 = scmp.eq.s32.totalorder %s10, 0
    %p77 = por %p75, %p76
    %p78 = scmp.ne.s32.totalorder %s67, %s70
    %p79 = scmp.eq.s32.totalorder %s15, 1
    %p80 = por %p78, %p79
    %p81 = scmp.ne.s32.totalorder %s70, %s71
    %p82 = scmp.eq.s32.totalorder %s15, 0
    %p83 = por %p81, %p82
    %p84 = scmp.ne.s32.totalorder %s70, %s71
    %p85 = scmp.eq.s32.totalorder %s16, 1
    %p86 = por %p84, %p85
    %p88 = scmp.ne.s32.totalorder %s71, %s87
    %p89 = scmp.eq.s32.totalorder %s16, 0
    %p90 = por %p88, %p89
    %s91 = ssub.s32 %s10, %s17
    %p92 = scmp.eq.s32.totalorder %s91, 0
    %s94 = sadd.s32 %s93, 1
    %s95 = scalar_select %p92, %s93, %s94
    %p98 = pneg %p92
    %p99 = scmp.eq.s32.totalorder %s10, 1
    %p100 = por %p98, %p99
    %p101 = scmp.ne.s32.totalorder %s93, %s96
    %p102 = scmp.eq.s32.totalorder %s10, 0
    %p103 = por %p101, %p102
    %p104 = scmp.ne.s32.totalorder %s93, %s96
    %p105 = scmp.eq.s32.totalorder %s15, 1
    %p106 = por %p104, %p105
    %p107 = scmp.ne.s32.totalorder %s96, %s97
    %p108 = scmp.eq.s32.totalorder %s15, 0
    %p109 = por %p107, %p108
    %p110 = scmp.ne.s32.totalorder %s96, %s97
    %p111 = scmp.eq.s32.totalorder %s16, 1
    %p112 = por %p110, %p111
    %p114 = scmp.ne.s32.totalorder %s97, %s113
    %p115 = scmp.eq.s32.totalorder %s16, 0
    %p116 = por %p114, %p115
    %p117 = scmp.le.s32.totalorder 1, %s10
    %p118 = scmp.lt.s32.totalorder %s10, 3
    %p119 = pnand %p117, %p118
    %p120 = pneg %p119
    // Predicated region
    $region9: #{down_conv2d.4} parent=5 // pred_check
      _
    $region10: #{down_conv2d.4} parent=5 // pred_check_branch
      %122 = sbr.rel (%p119) target = $region12
    $region11: #{down_conv2d.4} parent=5 // pred_region
      %s123 = ssub.s32 %s10, 1
      // Predicated region
      $region13: #{down_conv2d.4} parent=11 // pred_check
        %p124 = pneg %p57
      $region14: #{down_conv2d.4} parent=11 // pred_check_branch
        %126 = sbr.rel (%p124) target = $region16
      $region15: #{down_conv2d.4} parent=11 // pred_region
        _
      $region16: #{down_conv2d.4} parent=11 // pred_fallthru
        _
    $region12: #{down_conv2d.4} parent=5 // pred_fallthru
      _
    %p127 = scmp.lt.s32.totalorder %s10, 2
    // Predicated region
    $region17: #{down_conv2d.4} parent=5 // pred_check
      %p128 = pneg %p127
    $region18: #{down_conv2d.4} parent=5 // pred_check_branch
      %130 = sbr.rel (%p128) target = $region20
    $region19: #{down_conv2d.4} parent=5 // pred_region
      // Predicated region
      $region21: #{down_conv2d.4} parent=19 // pred_check
        %p131 = pneg %p30
      $region22: #{down_conv2d.4} parent=19 // pred_check_branch
        %133 = sbr.rel (%p131) target = $region24
      $region23: #{down_conv2d.4} parent=19 // pred_region
        %p134 = scmp.lt.s32.totalorder %s10, 1
        %s135 = scalar_select %p134, %s10, 1
        %s136 = smul.addr %s135, 54
        %s137 = smul.addr %s136, 4
        %s138 = scalar_lea.vmem %s0, %s137
      $region24: #{down_conv2d.4} parent=19 // pred_fallthru
        _
    $region20: #{down_conv2d.4} parent=5 // pred_fallthru
      _
    %p139 = scmp.le.s32.totalorder 1, %s10
    %p140 = scmp.lt.s32.totalorder %s10, 3
    %p141 = pnand %p139, %p140
    %p142 = pneg %p141
    // Predicated region
    $region25: #{down_conv2d.4} parent=5 // pred_check
      _
    $region26: #{down_conv2d.4} parent=5 // pred_check_branch
      %144 = sbr.rel (%p141) target = $region28
    $region27: #{down_conv2d.4} parent=5 // pred_region
      %s145 = ssub.s32 %s10, 1
      %p146 = scmp.lt.s32.totalorder %s15, 1
      %s147 = scalar_select %p146, %s15, 1
      %s148 = smul.addr %s147, 54
      %s149 = smul.addr %s148, 4
      %s150 = scalar_lea.vmem %s0, %s149
      %p151 = pneg %p36
      %p152 = pneg %p33
      %p153 = pneg %p57
      %p154 = pneg %p54
      %p155 = pneg %p83
      %p156 = pneg %p80
      %p157 = scmp.lt.s32.totalorder %s15, 1
      %s158 = scalar_select %p157, %s15, 1
      %s159 = smul.addr %s158, 32
      %s160 = smul.addr %s159, 4
      %s161 = scalar_lea.vmem %s2, %s160
      %p162 = pneg %p109
      %p163 = pneg %p106
      %p164 = scmp.lt.s32.totalorder %s15, 1
      %s165 = scalar_select %p164, %s15, 1
      %s166 = smul.addr %s165, 2
      %s167 = scalar_lea.vmem %s3, %s166
      %p168 = scmp.lt.s32.totalorder %s15, 1
      %s169 = scalar_select %p168, %s15, 1
      %s170 = smul.addr %s169, 54
      %s171 = smul.addr %s170, 4
      %s172 = scalar_lea.vmem %s0, %s171
      %p173 = scmp.lt.s32.totalorder %s15, 1
      %s174 = scalar_select %p173, %s15, 1
      %s175 = smul.addr %s174, 32
      %s176 = smul.addr %s175, 4
      %s177 = scalar_lea.vmem %s2, %s176
      %p178 = scmp.lt.s32.totalorder %s15, 1
      %s179 = scalar_select %p178, %s15, 1
      %s180 = smul.addr %s179, 2
      %s181 = scalar_lea.vmem %s3, %s180
      %v183 = vld [vmem:[%s172] sm:$0xf]
      %v184 = vld [vmem:[%s172 + $0x4] sm:$0xf]
      %v185 = vld [vmem:[%s172 + $0xc] sm:$0xf]
      %v186 = vld [vmem:[%s172 + $0x10] sm:$0xf]
      %v187 = vld [vmem:[%s172 + $0x18] sm:$0xf]
      %v188 = vld [vmem:[%s172 + $0x1c] sm:$0xf]
      %v189 = vld [vmem:[%s172 + $0x24] sm:$0xf]
      %v190 = vld [vmem:[%s172 + $0x28] sm:$0xf]
      %v191 = vld [vmem:[%s172 + $0x30] sm:$0xf]
      %v192 = vld [vmem:[%s172 + $0x34] sm:$0xf]
      %v193 = vld [vmem:[%s172 + $0x3c] sm:$0xf]
      %v194 = vld [vmem:[%s172 + $0x40] sm:$0xf]
      %v195 = vld [vmem:[%s172 + $0x48] sm:$0xf]
      %v196 = vld [vmem:[%s172 + $0x4c] sm:$0xf]
      %v197 = vld [vmem:[%s172 + $0x54] sm:$0xf]
      %v198 = vld [vmem:[%s172 + $0x58] sm:$0xf]
      %v199 = vld [vmem:[%s172 + $0x60] sm:$0xf]
      %v200 = vld [vmem:[%s172 + $0x64] sm:$0xf]
      %v201 = vld [vmem:[%s172 + $0x6c] sm:$0xf]
      %v202 = vld [vmem:[%s172 + $0x70] sm:$0xf]
      %v203 = vld [vmem:[%s172 + $0x78] sm:$0xf]
      %v204 = vld [vmem:[%s172 + $0x7c] sm:$0xf]
      %v205 = vld [vmem:[%s172 + $0x84] sm:$0xf]
      %v206 = vld [vmem:[%s172 + $0x88] sm:$0xf]
      %v207 = vld [vmem:[%s172 + $0x90] sm:$0xf]
      %v208 = vld [vmem:[%s172 + $0x94] sm:$0xf]
      %v209 = vld [vmem:[%s172 + $0x9c] sm:$0xf]
      %v210 = vld [vmem:[%s172 + $0xa0] sm:$0xf]
      %v211 = vld [vmem:[%s172 + $0xa8] sm:$0xf]
      %v212 = vld [vmem:[%s172 + $0xac] sm:$0xf]
      %v213 = vld [vmem:[%s172 + $0xb4] sm:$0xf]
      %v214 = vld [vmem:[%s172 + $0xb8] sm:$0xf]
      %v215 = vld [vmem:[%s1] sm:$0x3]
      %v216 = vld [vmem:[%s172 + $0x8] sm:$0x1]
      %v217 = vld [vmem:[%s172 + $0x14] sm:$0x1]
      %v218 = vld [vmem:[%s172 + $0x20] sm:$0x1]
      %v219 = vld [vmem:[%s172 + $0x2c] sm:$0x1]
      %v220 = vld [vmem:[%s172 + $0x38] sm:$0x1]
      %v221 = vld [vmem:[%s172 + $0x44] sm:$0x1]
      %v222 = vld [vmem:[%s172 + $0x50] sm:$0x1]
      %v223 = vld [vmem:[%s172 + $0x5c] sm:$0x1]
      %v224 = vld [vmem:[%s172 + $0x68] sm:$0x1]
      %v225 = vld [vmem:[%s172 + $0x74] sm:$0x1]
      %v226 = vld [vmem:[%s172 + $0x80] sm:$0x1]
      %v227 = vld [vmem:[%s172 + $0x8c] sm:$0x1]
      %v228 = vld [vmem:[%s172 + $0x98] sm:$0x1]
      %v229 = vld [vmem:[%s172 + $0xa4] sm:$0x1]
      %v230 = vld [vmem:[%s172 + $0xb0] sm:$0x1]
      %v231 = vld [vmem:[%s172 + $0xbc] sm:$0x1]
      %vm232 = vsmask.f32 3328
      %vm233 = vsmask.f32 7440
      %vm234 = vmor %vm232, %vm233
      %v236 = vshrl.u32 %v183, 16
      %v238 = vrot.slane %v236, 4
      %v239 = vshll.u32 %v183, 16
      %v241 = vrot.slane %v239, 5
      %v242 = vor.u32 %v238, %v241
      %v243 = vrot.slane %v242, 4
      %v245 = vshll.u32 %v184, 16
      %v247 = vrot.slane %v245, 5
      %v248 = vsel %vm234, %v243, %v247
      %v249 = vshrl.u32 %v184, 16
      %v251 = vrot.slane %v249, 4
      %v252 = vor.u32 %v251, %v247
      %v253 = vrot.slane %v252, 4
      %v255 = vshll.u32 %v216, 16
      %v257 = vrot.slane %v255, 5
      %v258 = vsel %vm234, %v253, %v257
      %v260 = vshrl.u32 %v185, 16
      %v262 = vrot.slane %v260, 4
      %v263 = vshll.u32 %v185, 16
      %v265 = vrot.slane %v263, 5
      %v266 = vor.u32 %v262, %v265
      %v267 = vrot.slane %v266, 4
      %v269 = vshll.u32 %v186, 16
      %v271 = vrot.slane %v269, 5
      %v272 = vsel %vm234, %v267, %v271
      %v273 = vshrl.u32 %v186, 16
      %v275 = vrot.slane %v273, 4
      %v276 = vor.u32 %v275, %v271
      %v277 = vrot.slane %v276, 4
      %v279 = vshll.u32 %v217, 16
      %v281 = vrot.slane %v279, 5
      %v282 = vsel %vm234, %v277, %v281
      %v284 = vshrl.u32 %v187, 16
      %v286 = vrot.slane %v284, 4
      %v287 = vshll.u32 %v187, 16
      %v289 = vrot.slane %v287, 5
      %v290 = vor.u32 %v286, %v289
      %v291 = vrot.slane %v290, 4
      %v293 = vshll.u32 %v188, 16
      %v295 = vrot.slane %v293, 5
      %v296 = vsel %vm234, %v291, %v295
      %v297 = vshrl.u32 %v188, 16
      %v299 = vrot.slane %v297, 4
      %v300 = vor.u32 %v299, %v295
      %v301 = vrot.slane %v300, 4
      %v303 = vshll.u32 %v218, 16
      %v305 = vrot.slane %v303, 5
      %v306 = vsel %vm234, %v301, %v305
      %v308 = vshrl.u32 %v189, 16
      %v310 = vrot.slane %v308, 4
      %v311 = vshll.u32 %v189, 16
      %v313 = vrot.slane %v311, 5
      %v314 = vor.u32 %v310, %v313
      %v315 = vrot.slane %v314, 4
      %v317 = vshll.u32 %v190, 16
      %v319 = vrot.slane %v317, 5
      %v320 = vsel %vm234, %v315, %v319
      %v321 = vshrl.u32 %v190, 16
      %v323 = vrot.slane %v321, 4
      %v324 = vor.u32 %v323, %v319
      %v325 = vrot.slane %v324, 4
      %v327 = vshll.u32 %v219, 16
      %v329 = vrot.slane %v327, 5
      %v330 = vsel %vm234, %v325, %v329
      %v332 = vshrl.u32 %v191, 16
      %v334 = vrot.slane %v332, 4
      %v335 = vshll.u32 %v191, 16
      %v337 = vrot.slane %v335, 5
      %v338 = vor.u32 %v334, %v337
      %v339 = vrot.slane %v338, 4
      %v341 = vshll.u32 %v192, 16
      %v343 = vrot.slane %v341, 5
      %v344 = vsel %vm234, %v339, %v343
      %v345 = vshrl.u32 %v192, 16
      %v347 = vrot.slane %v345, 4
      %v348 = vor.u32 %v347, %v343
      %v349 = vrot.slane %v348, 4
      %v351 = vshll.u32 %v220, 16
      %v353 = vrot.slane %v351, 5
      %v354 = vsel %vm234, %v349, %v353
      %v356 = vshrl.u32 %v193, 16
      %v358 = vrot.slane %v356, 4
      %v359 = vshll.u32 %v193, 16
      %v361 = vrot.slane %v359, 5
      %v362 = vor.u32 %v358, %v361
      %v363 = vrot.slane %v362, 4
      %v365 = vshll.u32 %v194, 16
      %v367 = vrot.slane %v365, 5
      %v368 = vsel %vm234, %v363, %v367
      %v369 = vshrl.u32 %v194, 16
      %v371 = vrot.slane %v369, 4
      %v372 = vor.u32 %v371, %v367
      %v373 = vrot.slane %v372, 4
      %v375 = vshll.u32 %v221, 16
      %v377 = vrot.slane %v375, 5
      %v378 = vsel %vm234, %v373, %v377
      %v380 = vshrl.u32 %v195, 16
      %v382 = vrot.slane %v380, 4
      %v383 = vshll.u32 %v195, 16
      %v385 = vrot.slane %v383, 5
      %v386 = vor.u32 %v382, %v385
      %v387 = vrot.slane %v386, 4
      %v389 = vshll.u32 %v196, 16
      %v391 = vrot.slane %v389, 5
      %v392 = vsel %vm234, %v387, %v391
      %v393 = vshrl.u32 %v196, 16
      %v395 = vrot.slane %v393, 4
      %v396 = vor.u32 %v395, %v391
      %v397 = vrot.slane %v396, 4
      %v399 = vshll.u32 %v222, 16
      %v401 = vrot.slane %v399, 5
      %v402 = vsel %vm234, %v397, %v401
      %v404 = vshrl.u32 %v197, 16
      %v406 = vrot.slane %v404, 4
      %v407 = vshll.u32 %v197, 16
      %v409 = vrot.slane %v407, 5
      %v410 = vor.u32 %v406, %v409
      %v411 = vrot.slane %v410, 4
      %v413 = vshll.u32 %v198, 16
      %v415 = vrot.slane %v413, 5
      %v416 = vsel %vm234, %v411, %v415
      %v417 = vshrl.u32 %v198, 16
      %v419 = vrot.slane %v417, 4
      %v420 = vor.u32 %v419, %v415
      %v421 = vrot.slane %v420, 4
      %v423 = vshll.u32 %v223, 16
      %v425 = vrot.slane %v423, 5
      %v426 = vsel %vm234, %v421, %v425
      %v428 = vshrl.u32 %v199, 16
      %v430 = vrot.slane %v428, 4
      %v431 = vshll.u32 %v199, 16
      %v433 = vrot.slane %v431, 5
      %v434 = vor.u32 %v430, %v433
      %v435 = vrot.slane %v434, 4
      %v437 = vshll.u32 %v200, 16
      %v439 = vrot.slane %v437, 5
      %v440 = vsel %vm234, %v435, %v439
      %v441 = vshrl.u32 %v200, 16
      %v443 = vrot.slane %v441, 4
      %v444 = vor.u32 %v443, %v439
      %v445 = vrot.slane %v444, 4
      %v447 = vshll.u32 %v224, 16
      %v449 = vrot.slane %v447, 5
      %v450 = vsel %vm234, %v445, %v449
      %v452 = vshrl.u32 %v201, 16
      %v454 = vrot.slane %v452, 4
      %v455 = vshll.u32 %v201, 16
      %v457 = vrot.slane %v455, 5
      %v458 = vor.u32 %v454, %v457
      %v459 = vrot.slane %v458, 4
      %v461 = vshll.u32 %v202, 16
      %v463 = vrot.slane %v461, 5
      %v464 = vsel %vm234, %v459, %v463
      %v465 = vshrl.u32 %v202, 16
      %v467 = vrot.slane %v465, 4
      %v468 = vor.u32 %v467, %v463
      %v469 = vrot.slane %v468, 4
      %v471 = vshll.u32 %v225, 16
      %v473 = vrot.slane %v471, 5
      %v474 = vsel %vm234, %v469, %v473
      %v476 = vshrl.u32 %v203, 16
      %v478 = vrot.slane %v476, 4
      %v479 = vshll.u32 %v203, 16
      %v481 = vrot.slane %v479, 5
      %v482 = vor.u32 %v478, %v481
      %v483 = vrot.slane %v482, 4
      %v485 = vshll.u32 %v204, 16
      %v487 = vrot.slane %v485, 5
      %v488 = vsel %vm234, %v483, %v487
      %v489 = vshrl.u32 %v204, 16
      %v491 = vrot.slane %v489, 4
      %v492 = vor.u32 %v491, %v487
      %v493 = vrot.slane %v492, 4
      %v495 = vshll.u32 %v226, 16
      %v497 = vrot.slane %v495, 5
      %v498 = vsel %vm234, %v493, %v497
      %v500 = vshrl.u32 %v205, 16
      %v502 = vrot.slane %v500, 4
      %v503 = vshll.u32 %v205, 16
      %v505 = vrot.slane %v503, 5
      %v506 = vor.u32 %v502, %v505
      %v507 = vrot.slane %v506, 4
      %v509 = vshll.u32 %v206, 16
      %v511 = vrot.slane %v509, 5
      %v512 = vsel %vm234, %v507, %v511
      %v513 = vshrl.u32 %v206, 16
      %v515 = vrot.slane %v513, 4
      %v516 = vor.u32 %v515, %v511
      %v517 = vrot.slane %v516, 4
      %v519 = vshll.u32 %v227, 16
      %v521 = vrot.slane %v519, 5
      %v522 = vsel %vm234, %v517, %v521
      %v524 = vshrl.u32 %v207, 16
      %v526 = vrot.slane %v524, 4
      %v527 = vshll.u32 %v207, 16
      %v529 = vrot.slane %v527, 5
      %v530 = vor.u32 %v526, %v529
      %v531 = vrot.slane %v530, 4
      %v533 = vshll.u32 %v208, 16
      %v535 = vrot.slane %v533, 5
      %v536 = vsel %vm234, %v531, %v535
      %v537 = vshrl.u32 %v208, 16
      %v539 = vrot.slane %v537, 4
      %v540 = vor.u32 %v539, %v535
      %v541 = vrot.slane %v540, 4
      %v543 = vshll.u32 %v228, 16
      %v545 = vrot.slane %v543, 5
      %v546 = vsel %vm234, %v541, %v545
      %v548 = vshrl.u32 %v209, 16
      %v550 = vrot.slane %v548, 4
      %v551 = vshll.u32 %v209, 16
      %v553 = vrot.slane %v551, 5
      %v554 = vor.u32 %v550, %v553
      %v555 = vrot.slane %v554, 4
      %v557 = vshll.u32 %v210, 16
      %v559 = vrot.slane %v557, 5
      %v560 = vsel %vm234, %v555, %v559
      %v561 = vshrl.u32 %v210, 16
      %v563 = vrot.slane %v561, 4
      %v564 = vor.u32 %v563, %v559
      %v565 = vrot.slane %v564, 4
      %v567 = vshll.u32 %v229, 16
      %v569 = vrot.slane %v567, 5
      %v570 = vsel %vm234, %v565, %v569
      %v572 = vshrl.u32 %v211, 16
      %v574 = vrot.slane %v572, 4
      %v575 = vshll.u32 %v211, 16
      %v577 = vrot.slane %v575, 5
      %v578 = vor.u32 %v574, %v577
      %v579 = vrot.slane %v578, 4
      %v581 = vshll.u32 %v212, 16
      %v583 = vrot.slane %v581, 5
      %v584 = vsel %vm234, %v579, %v583
      %v585 = vshrl.u32 %v212, 16
      %v587 = vrot.slane %v585, 4
      %v588 = vor.u32 %v587, %v583
      %v589 = vrot.slane %v588, 4
      %v591 = vshll.u32 %v230, 16
      %v593 = vrot.slane %v591, 5
      %v594 = vsel %vm234, %v589, %v593
      %v596 = vshrl.u32 %v213, 16
      %v598 = vrot.slane %v596, 4
      %v599 = vshll.u32 %v213, 16
      %v601 = vrot.slane %v599, 5
      %v602 = vor.u32 %v598, %v601
      %v603 = vrot.slane %v602, 4
      %v605 = vshll.u32 %v214, 16
      %v607 = vrot.slane %v605, 5
      %v608 = vsel %vm234, %v603, %v607
      %v609 = vshrl.u32 %v214, 16
      %v611 = vrot.slane %v609, 4
      %v612 = vor.u32 %v611, %v607
      %v613 = vrot.slane %v612, 4
      %v615 = vshll.u32 %v231, 16
      %v617 = vrot.slane %v615, 5
      %v618 = vsel %vm234, %v613, %v617
      %s619 = scalar_lea.vmem %s1, 2
      %v620 = vld [vmem:[%s619] sm:$0x3]
      %v621 = vunpack.c.l.b16 %v248
      %v622 = vunpack.c.l.b16 %v258
      %v623 = vunpack.c.l.b16 %v272
      %v624 = vunpack.c.l.b16 %v282
      %v625 = vunpack.c.l.b16 %v296
      %v626 = vunpack.c.l.b16 %v306
      %v627 = vunpack.c.l.b16 %v320
      %v628 = vunpack.c.l.b16 %v330
      %v629 = vunpack.c.l.b16 %v344
      %v630 = vunpack.c.l.b16 %v354
      %v631 = vunpack.c.l.b16 %v368
      %v632 = vunpack.c.l.b16 %v378
      %v633 = vunpack.c.l.b16 %v392
      %v634 = vunpack.c.l.b16 %v402
      %v635 = vunpack.c.l.b16 %v416
      %v636 = vunpack.c.l.b16 %v426
      %v637 = vunpack.c.l.b16 %v440
      %v638 = vunpack.c.l.b16 %v450
      %v639 = vunpack.c.l.b16 %v464
      %v640 = vunpack.c.l.b16 %v474
      %v641 = vunpack.c.l.b16 %v488
      %v642 = vunpack.c.l.b16 %v498
      %v643 = vunpack.c.l.b16 %v512
      %v644 = vunpack.c.l.b16 %v522
      %v645 = vunpack.c.l.b16 %v536
      %v646 = vunpack.c.l.b16 %v546
      %v647 = vunpack.c.l.b16 %v560
      %v648 = vunpack.c.l.b16 %v570
      %v649 = vunpack.c.l.b16 %v584
      %v650 = vunpack.c.l.b16 %v594
      %v651 = vunpack.c.l.b16 %v608
      %v652 = vunpack.c.l.b16 %v618
      %v653 = vpack.c.b16 %v622, %v621
      %v654 = vpack.c.b16 %v624, %v623
      %v655 = vpack.c.b16 %v626, %v625
      %v656 = vpack.c.b16 %v628, %v627
      %v657 = vpack.c.b16 %v630, %v629
      %v658 = vpack.c.b16 %v632, %v631
      %v659 = vpack.c.b16 %v634, %v633
      %v660 = vpack.c.b16 %v636, %v635
      %v661 = vpack.c.b16 %v638, %v637
      %v662 = vpack.c.b16 %v640, %v639
      %v663 = vpack.c.b16 %v642, %v641
      %v664 = vpack.c.b16 %v644, %v643
      %v665 = vpack.c.b16 %v646, %v645
      %v666 = vpack.c.b16 %v648, %v647
      %v667 = vpack.c.b16 %v650, %v649
      %v668 = vpack.c.b16 %v652, %v651
      %vm669 = vcmask 31744
      %v671 = vsel %vm669, %v653, 0
      %v674 = vsel %vm669, %v654, 0
      %v677 = vsel %vm669, %v655, 0
      %v680 = vsel %vm669, %v656, 0
      %v683 = vsel %vm669, %v657, 0
      %v686 = vsel %vm669, %v658, 0
      %v689 = vsel %vm669, %v659, 0
      %v692 = vsel %vm669, %v660, 0
      %v695 = vsel %vm669, %v661, 0
      %v698 = vsel %vm669, %v662, 0
      %v701 = vsel %vm669, %v663, 0
      %v704 = vsel %vm669, %v664, 0
      %v707 = vsel %vm669, %v665, 0
      %v710 = vsel %vm669, %v666, 0
      %v713 = vsel %vm669, %v667, 0
      %v716 = vsel %vm669, %v668, 0
      %vm718 = vcmask 1041408
      %v720 = vsel %vm718, %v620, 0
      %722 = vmatpush.bf16.msra.mxu0 0
      %723 = vmatpush.bf16.msra.mxu0 0
      %724 = vmatpush.bf16.msra.mxu0 0
      %725 = vmatpush.bf16.msra.mxu0 0
      %726 = vmatpush.bf16.msra.mxu0 0
      %727 = vmatpush.bf16.msra.mxu0 0
      %728 = vmatpush.bf16.msra.mxu0 0
      %729 = vmatpush.bf16.msra.mxu0 %v720
      %730 = vmatmul.bf16.gmra.mxu0 %v671
      %v731 = vpop.f32.mrf.mxu0
      %v732 = vadd.f32 0.0, %v731
      %v733 = vpop.f32.mrf.mxu0
      %v734 = vadd.f32 0.0, %v733
      %735 = vmatmul.bf16.gmra.mxu0 %v674
      %v736 = vpop.f32.mrf.mxu0
      %v737 = vadd.f32 0.0, %v736
      %v738 = vpop.f32.mrf.mxu0
      %v739 = vadd.f32 0.0, %v738
      %740 = vmatmul.bf16.gmra.mxu0 %v677
      %v741 = vpop.f32.mrf.mxu0
      %v742 = vadd.f32 0.0, %v741
      %v743 = vpop.f32.mrf.mxu0
      %v744 = vadd.f32 0.0, %v743
      %745 = vmatmul.bf16.gmra.mxu0 %v680
      %v746 = vpop.f32.mrf.mxu0
      %v747 = vadd.f32 0.0, %v746
      %v748 = vpop.f32.mrf.mxu0
      %v749 = vadd.f32 0.0, %v748
      %750 = vmatmul.bf16.gmra.mxu0 %v683
      %v751 = vpop.f32.mrf.mxu0
      %v752 = vadd.f32 0.0, %v751
      %v753 = vpop.f32.mrf.mxu0
      %v754 = vadd.f32 0.0, %v753
      %755 = vmatmul.bf16.gmra.mxu0 %v686
      %v756 = vpop.f32.mrf.mxu0
      %v757 = vadd.f32 0.0, %v756
      %v758 = vpop.f32.mrf.mxu0
      %v759 = vadd.f32 0.0, %v758
      %760 = vmatmul.bf16.gmra.mxu0 %v689
      %v761 = vpop.f32.mrf.mxu0
      %v762 = vadd.f32 0.0, %v761
      %v763 = vpop.f32.mrf.mxu0
      %v764 = vadd.f32 0.0, %v763
      %765 = vmatmul.bf16.gmra.mxu0 %v692
      %v766 = vpop.f32.mrf.mxu0
      %v767 = vadd.f32 0.0, %v766
      %v768 = vpop.f32.mrf.mxu0
      %v769 = vadd.f32 0.0, %v768
      %770 = vmatmul.bf16.gmra.mxu0 %v695
      %v771 = vpop.f32.mrf.mxu0
      %v772 = vadd.f32 0.0, %v771
      %v773 = vpop.f32.mrf.mxu0
      %v774 = vadd.f32 0.0, %v773
      %775 = vmatmul.bf16.gmra.mxu0 %v698
      %v776 = vpop.f32.mrf.mxu0
      %v777 = vadd.f32 0.0, %v776
      %v778 = vpop.f32.mrf.mxu0
      %v779 = vadd.f32 0.0, %v778
      %780 = vmatmul.bf16.gmra.mxu0 %v701
      %v781 = vpop.f32.mrf.mxu0
      %v782 = vadd.f32 0.0, %v781
      %v783 = vpop.f32.mrf.mxu0
      %v784 = vadd.f32 0.0, %v783
      %785 = vmatmul.bf16.gmra.mxu0 %v704
      %v786 = vpop.f32.mrf.mxu0
      %v787 = vadd.f32 0.0, %v786
      %v788 = vpop.f32.mrf.mxu0
      %v789 = vadd.f32 0.0, %v788
      %790 = vmatmul.bf16.gmra.mxu0 %v707
      %v791 = vpop.f32.mrf.mxu0
      %v792 = vadd.f32 0.0, %v791
      %v793 = vpop.f32.mrf.mxu0
      %v794 = vadd.f32 0.0, %v793
      %795 = vmatmul.bf16.gmra.mxu0 %v710
      %v796 = vpop.f32.mrf.mxu0
      %v797 = vadd.f32 0.0, %v796
      %v798 = vpop.f32.mrf.mxu0
      %v799 = vadd.f32 0.0, %v798
      %800 = vmatmul.bf16.gmra.mxu0 %v713
      %v801 = vpop.f32.mrf.mxu0
      %v802 = vadd.f32 0.0, %v801
      %v803 = vpop.f32.mrf.mxu0
      %v804 = vadd.f32 0.0, %v803
      %805 = vmatmul.bf16.gmra.mxu0 %v716
      %v806 = vpop.f32.mrf.mxu0
      %v807 = vadd.f32 0.0, %v806
      %v808 = vpop.f32.mrf.mxu0
      %v809 = vadd.f32 0.0, %v808
      %810 = vdwg.mxu0
      %v843 = vunpack.c.l.b16 %v183
      %v844 = vunpack.c.l.b16 %v184
      %v845 = vunpack.c.l.b16 %v185
      %v846 = vunpack.c.l.b16 %v186
      %v847 = vunpack.c.l.b16 %v187
      %v848 = vunpack.c.l.b16 %v188
      %v849 = vunpack.c.l.b16 %v189
      %v850 = vunpack.c.l.b16 %v190
      %v851 = vunpack.c.l.b16 %v191
      %v852 = vunpack.c.l.b16 %v192
      %v853 = vunpack.c.l.b16 %v193
      %v854 = vunpack.c.l.b16 %v194
      %v855 = vunpack.c.l.b16 %v195
      %v856 = vunpack.c.l.b16 %v196
      %v857 = vunpack.c.l.b16 %v197
      %v858 = vunpack.c.l.b16 %v198
      %v859 = vunpack.c.l.b16 %v199
      %v860 = vunpack.c.l.b16 %v200
      %v861 = vunpack.c.l.b16 %v201
      %v862 = vunpack.c.l.b16 %v202
      %v863 = vunpack.c.l.b16 %v203
      %v864 = vunpack.c.l.b16 %v204
      %v865 = vunpack.c.l.b16 %v205
      %v866 = vunpack.c.l.b16 %v206
      %v867 = vunpack.c.l.b16 %v207
      %v868 = vunpack.c.l.b16 %v208
      %v869 = vunpack.c.l.b16 %v209
      %v870 = vunpack.c.l.b16 %v210
      %v871 = vunpack.c.l.b16 %v211
      %v872 = vunpack.c.l.b16 %v212
      %v873 = vunpack.c.l.b16 %v213
      %v874 = vunpack.c.l.b16 %v214
      %v875 = vpack.c.b16 %v844, %v843
      %v876 = vpack.c.b16 %v846, %v845
      %v877 = vpack.c.b16 %v848, %v847
      %v878 = vpack.c.b16 %v850, %v849
      %v879 = vpack.c.b16 %v852, %v851
      %v880 = vpack.c.b16 %v854, %v853
      %v881 = vpack.c.b16 %v856, %v855
      %v882 = vpack.c.b16 %v858, %v857
      %v883 = vpack.c.b16 %v860, %v859
      %v884 = vpack.c.b16 %v862, %v861
      %v885 = vpack.c.b16 %v864, %v863
      %v886 = vpack.c.b16 %v866, %v865
      %v887 = vpack.c.b16 %v868, %v867
      %v888 = vpack.c.b16 %v870, %v869
      %v889 = vpack.c.b16 %v872, %v871
      %v890 = vpack.c.b16 %v874, %v873
      %v892 = vsel %vm669, %v875, 0
      %v895 = vsel %vm669, %v876, 0
      %v898 = vsel %vm669, %v877, 0
      %v901 = vsel %vm669, %v878, 0
      %v904 = vsel %vm669, %v879, 0
      %v907 = vsel %vm669, %v880, 0
      %v910 = vsel %vm669, %v881, 0
      %v913 = vsel %vm669, %v882, 0
      %v916 = vsel %vm669, %v883, 0
      %v919 = vsel %vm669, %v884, 0
      %v922 = vsel %vm669, %v885, 0
      %v925 = vsel %vm669, %v886, 0
      %v928 = vsel %vm669, %v887, 0
      %v931 = vsel %vm669, %v888, 0
      %v934 = vsel %vm669, %v889, 0
      %v937 = vsel %vm669, %v890, 0
      %v940 = vsel %vm718, %v215, 0
      %942 = vmatpush.bf16.msra.mxu0 0
      %943 = vmatpush.bf16.msra.mxu0 0
      %944 = vmatpush.bf16.msra.mxu0 0
      %945 = vmatpush.bf16.msra.mxu0 0
      %946 = vmatpush.bf16.msra.mxu0 0
      %947 = vmatpush.bf16.msra.mxu0 0
      %948 = vmatpush.bf16.msra.mxu0 0
      %949 = vmatpush.bf16.msra.mxu0 %v940
      %950 = vmatmul.bf16.gmra.mxu0 %v892
      %v951 = vpop.f32.mrf.mxu0
      %v952 = vadd.f32 %v732, %v951
      %v953 = vpop.f32.mrf.mxu0
      %v954 = vadd.f32 %v734, %v953
      %955 = vmatmul.bf16.gmra.mxu0 %v895
      %v956 = vpop.f32.mrf.mxu0
      %v957 = vadd.f32 %v737, %v956
      %v958 = vpop.f32.mrf.mxu0
      %v959 = vadd.f32 %v739, %v958
      %960 = vmatmul.bf16.gmra.mxu0 %v898
      %v961 = vpop.f32.mrf.mxu0
      %v962 = vadd.f32 %v742, %v961
      %v963 = vpop.f32.mrf.mxu0
      %v964 = vadd.f32 %v744, %v963
      %965 = vmatmul.bf16.gmra.mxu0 %v901
      %v966 = vpop.f32.mrf.mxu0
      %v967 = vadd.f32 %v747, %v966
      %v968 = vpop.f32.mrf.mxu0
      %v969 = vadd.f32 %v749, %v968
      %970 = vmatmul.bf16.gmra.mxu0 %v904
      %v971 = vpop.f32.mrf.mxu0
      %v972 = vadd.f32 %v752, %v971
      %v973 = vpop.f32.mrf.mxu0
      %v974 = vadd.f32 %v754, %v973
      %975 = vmatmul.bf16.gmra.mxu0 %v907
      %v976 = vpop.f32.mrf.mxu0
      %v977 = vadd.f32 %v757, %v976
      %v978 = vpop.f32.mrf.mxu0
      %v979 = vadd.f32 %v759, %v978
      %980 = vmatmul.bf16.gmra.mxu0 %v910
      %v981 = vpop.f32.mrf.mxu0
      %v982 = vadd.f32 %v762, %v981
      %v983 = vpop.f32.mrf.mxu0
      %v984 = vadd.f32 %v764, %v983
      %985 = vmatmul.bf16.gmra.mxu0 %v913
      %v986 = vpop.f32.mrf.mxu0
      %v987 = vadd.f32 %v767, %v986
      %v988 = vpop.f32.mrf.mxu0
      %v989 = vadd.f32 %v769, %v988
      %990 = vmatmul.bf16.gmra.mxu0 %v916
      %v991 = vpop.f32.mrf.mxu0
      %v992 = vadd.f32 %v772, %v991
      %v993 = vpop.f32.mrf.mxu0
      %v994 = vadd.f32 %v774, %v993
      %995 = vmatmul.bf16.gmra.mxu0 %v919
      %v996 = vpop.f32.mrf.mxu0
      %v997 = vadd.f32 %v777, %v996
      %v998 = vpop.f32.mrf.mxu0
      %v999 = vadd.f32 %v779, %v998
      %1000 = vmatmul.bf16.gmra.mxu0 %v922
      %v1001 = vpop.f32.mrf.mxu0
      %v1002 = vadd.f32 %v782, %v1001
      %v1003 = vpop.f32.mrf.mxu0
      %v1004 = vadd.f32 %v784, %v1003
      %1005 = vmatmul.bf16.gmra.mxu0 %v925
      %v1006 = vpop.f32.mrf.mxu0
      %v1007 = vadd.f32 %v787, %v1006
      %v1008 = vpop.f32.mrf.mxu0
      %v1009 = vadd.f32 %v789, %v1008
      %1010 = vmatmul.bf16.gmra.mxu0 %v928
      %v1011 = vpop.f32.mrf.mxu0
      %v1012 = vadd.f32 %v792, %v1011
      %v1013 = vpop.f32.mrf.mxu0
      %v1014 = vadd.f32 %v794, %v1013
      %1015 = vmatmul.bf16.gmra.mxu0 %v931
      %v1016 = vpop.f32.mrf.mxu0
      %v1017 = vadd.f32 %v797, %v1016
      %v1018 = vpop.f32.mrf.mxu0
      %v1019 = vadd.f32 %v799, %v1018
      %1020 = vmatmul.bf16.gmra.mxu0 %v934
      %v1021 = vpop.f32.mrf.mxu0
      %v1022 = vadd.f32 %v802, %v1021
      %v1023 = vpop.f32.mrf.mxu0
      %v1024 = vadd.f32 %v804, %v1023
      %1025 = vmatmul.bf16.gmra.mxu0 %v937
      %v1026 = vpop.f32.mrf.mxu0
      %v1027 = vadd.f32 %v807, %v1026
      %v1028 = vpop.f32.mrf.mxu0
      %v1029 = vadd.f32 %v809, %v1028
      %1030 = vdwg.mxu0
      %v1031 = vld [vmem:[%s172] sm:$0xe]
      %v1032 = vld [vmem:[%s172 + $0xc] sm:$0xe]
      %v1033 = vld [vmem:[%s172 + $0x18] sm:$0xe]
      %v1034 = vld [vmem:[%s172 + $0x24] sm:$0xe]
      %v1035 = vld [vmem:[%s172 + $0x30] sm:$0xe]
      %v1036 = vld [vmem:[%s172 + $0x3c] sm:$0xe]
      %v1037 = vld [vmem:[%s172 + $0x48] sm:$0xe]
      %v1038 = vld [vmem:[%s172 + $0x54] sm:$0xe]
      %v1039 = vld [vmem:[%s172 + $0x60] sm:$0xe]
      %v1040 = vld [vmem:[%s172 + $0x6c] sm:$0xe]
      %v1041 = vld [vmem:[%s172 + $0x78] sm:$0xe]
      %v1042 = vld [vmem:[%s172 + $0x84] sm:$0xe]
      %v1043 = vld [vmem:[%s172 + $0x90] sm:$0xe]
      %v1044 = vld [vmem:[%s172 + $0x9c] sm:$0xe]
      %v1045 = vld [vmem:[%s172 + $0xa8] sm:$0xe]
      %v1046 = vld [vmem:[%s172 + $0xb4] sm:$0xe]
      %vm1079 = vcmask 1042432
      %vm1080 = vcmask 1046532
      %vm1081 = vmor %vm1079, %vm1080
      %v1082 = vrot.slane %v1031, 5
      %v1083 = vrot.slane %v1082, 4
      %v1084 = vrot.slane %v184, 5
      %v1085 = vsel %vm1081, %v1083, %v1084
      %v1086 = vrot.slane %v1084, 4
      %v1087 = vrot.slane %v216, 5
      %v1088 = vsel %vm1081, %v1086, %v1087
      %v1089 = vrot.slane %v1032, 5
      %v1090 = vrot.slane %v1089, 4
      %v1091 = vrot.slane %v186, 5
      %v1092 = vsel %vm1081, %v1090, %v1091
      %v1093 = vrot.slane %v1091, 4
      %v1094 = vrot.slane %v217, 5
      %v1095 = vsel %vm1081, %v1093, %v1094
      %v1096 = vrot.slane %v1033, 5
      %v1097 = vrot.slane %v1096, 4
      %v1098 = vrot.slane %v188, 5
      %v1099 = vsel %vm1081, %v1097, %v1098
      %v1100 = vrot.slane %v1098, 4
      %v1101 = vrot.slane %v218, 5
      %v1102 = vsel %vm1081, %v1100, %v1101
      %v1103 = vrot.slane %v1034, 5
      %v1104 = vrot.slane %v1103, 4
      %v1105 = vrot.slane %v190, 5
      %v1106 = vsel %vm1081, %v1104, %v1105
      %v1107 = vrot.slane %v1105, 4
      %v1108 = vrot.slane %v219, 5
      %v1109 = vsel %vm1081, %v1107, %v1108
      %v1110 = vrot.slane %v1035, 5
      %v1111 = vrot.slane %v1110, 4
      %v1112 = vrot.slane %v192, 5
      %v1113 = vsel %vm1081, %v1111, %v1112
      %v1114 = vrot.slane %v1112, 4
      %v1115 = vrot.slane %v220, 5
      %v1116 = vsel %vm1081, %v1114, %v1115
      %v1117 = vrot.slane %v1036, 5
      %v1118 = vrot.slane %v1117, 4
      %v1119 = vrot.slane %v194, 5
      %v1120 = vsel %vm1081, %v1118, %v1119
      %v1121 = vrot.slane %v1119, 4
      %v1122 = vrot.slane %v221, 5
      %v1123 = vsel %vm1081, %v1121, %v1122
      %v1124 = vrot.slane %v1037, 5
      %v1125 = vrot.slane %v1124, 4
      %v1126 = vrot.slane %v196, 5
      %v1127 = vsel %vm1081, %v1125, %v1126
      %v1128 = vrot.slane %v1126, 4
      %v1129 = vrot.slane %v222, 5
      %v1130 = vsel %vm1081, %v1128, %v1129
      %v1131 = vrot.slane %v1038, 5
      %v1132 = vrot.slane %v1131, 4
      %v1133 = vrot.slane %v198, 5
      %v1134 = vsel %vm1081, %v1132, %v1133
      %v1135 = vrot.slane %v1133, 4
      %v1136 = vrot.slane %v223, 5
      %v1137 = vsel %vm1081, %v1135, %v1136
      %v1138 = vrot.slane %v1039, 5
      %v1139 = vrot.slane %v1138, 4
      %v1140 = vrot.slane %v200, 5
      %v1141 = vsel %vm1081, %v1139, %v1140
      %v1142 = vrot.slane %v1140, 4
      %v1143 = vrot.slane %v224, 5
      %v1144 = vsel %vm1081, %v1142, %v1143
      %v1145 = vrot.slane %v1040, 5
      %v1146 = vrot.slane %v1145, 4
      %v1147 = vrot.slane %v202, 5
      %v1148 = vsel %vm1081, %v1146, %v1147
      %v1149 = vrot.slane %v1147, 4
      %v1150 = vrot.slane %v225, 5
      %v1151 = vsel %vm1081, %v1149, %v1150
      %v1152 = vrot.slane %v1041, 5
      %v1153 = vrot.slane %v1152, 4
      %v1154 = vrot.slane %v204, 5
      %v1155 = vsel %vm1081, %v1153, %v1154
      %v1156 = vrot.slane %v1154, 4
      %v1157 = vrot.slane %v226, 5
      %v1158 = vsel %vm1081, %v1156, %v1157
      %v1159 = vrot.slane %v1042, 5
      %v1160 = vrot.slane %v1159, 4
      %v1161 = vrot.slane %v206, 5
      %v1162 = vsel %vm1081, %v1160, %v1161
      %v1163 = vrot.slane %v1161, 4
      %v1164 = vrot.slane %v227, 5
      %v1165 = vsel %vm1081, %v1163, %v1164
      %v1166 = vrot.slane %v1043, 5
      %v1167 = vrot.slane %v1166, 4
      %v1168 = vrot.slane %v208, 5
      %v1169 = vsel %vm1081, %v1167, %v1168
      %v1170 = vrot.slane %v1168, 4
      %v1171 = vrot.slane %v228, 5
      %v1172 = vsel %vm1081, %v1170, %v1171
      %v1173 = vrot.slane %v1044, 5
      %v1174 = vrot.slane %v1173, 4
      %v1175 = vrot.slane %v210, 5
      %v1176 = vsel %vm1081, %v1174, %v1175
      %v1177 = vrot.slane %v1175, 4
      %v1178 = vrot.slane %v229, 5
      %v1179 = vsel %vm1081, %v1177, %v1178
      %v1180 = vrot.slane %v1045, 5
      %v1181 = vrot.slane %v1180, 4
      %v1182 = vrot.slane %v212, 5
      %v1183 = vsel %vm1081, %v1181, %v1182
      %v1184 = vrot.slane %v1182, 4
      %v1185 = vrot.slane %v230, 5
      %v1186 = vsel %vm1081, %v1184, %v1185
      %v1187 = vrot.slane %v1046, 5
      %v1188 = vrot.slane %v1187, 4
      %v1189 = vrot.slane %v214, 5
      %v1190 = vsel %vm1081, %v1188, %v1189
      %v1191 = vrot.slane %v1189, 4
      %v1192 = vrot.slane %v231, 5
      %v1193 = vsel %vm1081, %v1191, %v1192
      %s1194 = scalar_lea.vmem %s1, 4
      %v1195 = vld [vmem:[%s1194] sm:$0x3]
      %v1196 = vunpack.c.l.b16 %v1085
      %v1197 = vunpack.c.l.b16 %v1088
      %v1198 = vunpack.c.l.b16 %v1092
      %v1199 = vunpack.c.l.b16 %v1095
      %v1200 = vunpack.c.l.b16 %v1099
      %v1201 = vunpack.c.l.b16 %v1102
      %v1202 = vunpack.c.l.b16 %v1106
      %v1203 = vunpack.c.l.b16 %v1109
      %v1204 = vunpack.c.l.b16 %v1113
      %v1205 = vunpack.c.l.b16 %v1116
      %v1206 = vunpack.c.l.b16 %v1120
      %v1207 = vunpack.c.l.b16 %v1123
      %v1208 = vunpack.c.l.b16 %v1127
      %v1209 = vunpack.c.l.b16 %v1130
      %v1210 = vunpack.c.l.b16 %v1134
      %v1211 = vunpack.c.l.b16 %v1137
      %v1212 = vunpack.c.l.b16 %v1141
      %v1213 = vunpack.c.l.b16 %v1144
      %v1214 = vunpack.c.l.b16 %v1148
      %v1215 = vunpack.c.l.b16 %v1151
      %v1216 = vunpack.c.l.b16 %v1155
      %v1217 = vunpack.c.l.b16 %v1158
      %v1218 = vunpack.c.l.b16 %v1162
      %v1219 = vunpack.c.l.b16 %v1165
      %v1220 = vunpack.c.l.b16 %v1169
      %v1221 = vunpack.c.l.b16 %v1172
      %v1222 = vunpack.c.l.b16 %v1176
      %v1223 = vunpack.c.l.b16 %v1179
      %v1224 = vunpack.c.l.b16 %v1183
      %v1225 = vunpack.c.l.b16 %v1186
      %v1226 = vunpack.c.l.b16 %v1190
      %v1227 = vunpack.c.l.b16 %v1193
      %v1228 = vpack.c.b16 %v1197, %v1196
      %v1229 = vpack.c.b16 %v1199, %v1198
      %v1230 = vpack.c.b16 %v1201, %v1200
      %v1231 = vpack.c.b16 %v1203, %v1202
      %v1232 = vpack.c.b16 %v1205, %v1204
      %v1233 = vpack.c.b16 %v1207, %v1206
      %v1234 = vpack.c.b16 %v1209, %v1208
      %v1235 = vpack.c.b16 %v1211, %v1210
      %v1236 = vpack.c.b16 %v1213, %v1212
      %v1237 = vpack.c.b16 %v1215, %v1214
      %v1238 = vpack.c.b16 %v1217, %v1216
      %v1239 = vpack.c.b16 %v1219, %v1218
      %v1240 = vpack.c.b16 %v1221, %v1220
      %v1241 = vpack.c.b16 %v1223, %v1222
      %v1242 = vpack.c.b16 %v1225, %v1224
      %v1243 = vpack.c.b16 %v1227, %v1226
      %v1245 = vsel %vm669, %v1228, 0
      %v1248 = vsel %vm669, %v1229, 0
      %v1251 = vsel %vm669, %v1230, 0
      %v1254 = vsel %vm669, %v1231, 0
      %v1257 = vsel %vm669, %v1232, 0
      %v1260 = vsel %vm669, %v1233, 0
      %v1263 = vsel %vm669, %v1234, 0
      %v1266 = vsel %vm669, %v1235, 0
      %v1269 = vsel %vm669, %v1236, 0
      %v1272 = vsel %vm669, %v1237, 0
      %v1275 = vsel %vm669, %v1238, 0
      %v1278 = vsel %vm669, %v1239, 0
      %v1281 = vsel %vm669, %v1240, 0
      %v1284 = vsel %vm669, %v1241, 0
      %v1287 = vsel %vm669, %v1242, 0
      %v1290 = vsel %vm669, %v1243, 0
      %v1293 = vsel %vm718, %v1195, 0
      %1295 = vmatpush.bf16.msra.mxu0 0
      %1296 = vmatpush.bf16.msra.mxu0 0
      %1297 = vmatpush.bf16.msra.mxu0 0
      %1298 = vmatpush.bf16.msra.mxu0 0
      %1299 = vmatpush.bf16.msra.mxu0 0
      %1300 = vmatpush.bf16.msra.mxu0 0
      %1301 = vmatpush.bf16.msra.mxu0 0
      %1302 = vmatpush.bf16.msra.mxu0 %v1293
      %1303 = vmatmul.bf16.gmra.mxu0 %v1245
      %v1304 = vpop.f32.mrf.mxu0
      %v1305 = vadd.f32 0.0, %v1304
      %v1306 = vpop.f32.mrf.mxu0
      %v1307 = vadd.f32 0.0, %v1306
      %1308 = vmatmul.bf16.gmra.mxu0 %v1248
      %v1309 = vpop.f32.mrf.mxu0
      %v1310 = vadd.f32 0.0, %v1309
      %v1311 = vpop.f32.mrf.mxu0
      %v1312 = vadd.f32 0.0, %v1311
      %1313 = vmatmul.bf16.gmra.mxu0 %v1251
      %v1314 = vpop.f32.mrf.mxu0
      %v1315 = vadd.f32 0.0, %v1314
      %v1316 = vpop.f32.mrf.mxu0
      %v1317 = vadd.f32 0.0, %v1316
      %1318 = vmatmul.bf16.gmra.mxu0 %v1254
      %v1319 = vpop.f32.mrf.mxu0
      %v1320 = vadd.f32 0.0, %v1319
      %v1321 = vpop.f32.mrf.mxu0
      %v1322 = vadd.f32 0.0, %v1321
      %1323 = vmatmul.bf16.gmra.mxu0 %v1257
      %v1324 = vpop.f32.mrf.mxu0
      %v1325 = vadd.f32 0.0, %v1324
      %v1326 = vpop.f32.mrf.mxu0
      %v1327 = vadd.f32 0.0, %v1326
      %1328 = vmatmul.bf16.gmra.mxu0 %v1260
      %v1329 = vpop.f32.mrf.mxu0
      %v1330 = vadd.f32 0.0, %v1329
      %v1331 = vpop.f32.mrf.mxu0
      %v1332 = vadd.f32 0.0, %v1331
      %1333 = vmatmul.bf16.gmra.mxu0 %v1263
      %v1334 = vpop.f32.mrf.mxu0
      %v1335 = vadd.f32 0.0, %v1334
      %v1336 = vpop.f32.mrf.mxu0
      %v1337 = vadd.f32 0.0, %v1336
      %1338 = vmatmul.bf16.gmra.mxu0 %v1266
      %v1339 = vpop.f32.mrf.mxu0
      %v1340 = vadd.f32 0.0, %v1339
      %v1341 = vpop.f32.mrf.mxu0
      %v1342 = vadd.f32 0.0, %v1341
      %1343 = vmatmul.bf16.gmra.mxu0 %v1269
      %v1344 = vpop.f32.mrf.mxu0
      %v1345 = vadd.f32 0.0, %v1344
      %v1346 = vpop.f32.mrf.mxu0
      %v1347 = vadd.f32 0.0, %v1346
      %1348 = vmatmul.bf16.gmra.mxu0 %v1272
      %v1349 = vpop.f32.mrf.mxu0
      %v1350 = vadd.f32 0.0, %v1349
      %v1351 = vpop.f32.mrf.mxu0
      %v1352 = vadd.f32 0.0, %v1351
      %1353 = vmatmul.bf16.gmra.mxu0 %v1275
      %v1354 = vpop.f32.mrf.mxu0
      %v1355 = vadd.f32 0.0, %v1354
      %v1356 = vpop.f32.mrf.mxu0
      %v1357 = vadd.f32 0.0, %v1356
      %1358 = vmatmul.bf16.gmra.mxu0 %v1278
      %v1359 = vpop.f32.mrf.mxu0
      %v1360 = vadd.f32 0.0, %v1359
      %v1361 = vpop.f32.mrf.mxu0
      %v1362 = vadd.f32 0.0, %v1361
      %1363 = vmatmul.bf16.gmra.mxu0 %v1281
      %v1364 = vpop.f32.mrf.mxu0
      %v1365 = vadd.f32 0.0, %v1364
      %v1366 = vpop.f32.mrf.mxu0
      %v1367 = vadd.f32 0.0, %v1366
      %1368 = vmatmul.bf16.gmra.mxu0 %v1284
      %v1369 = vpop.f32.mrf.mxu0
      %v1370 = vadd.f32 0.0, %v1369
      %v1371 = vpop.f32.mrf.mxu0
      %v1372 = vadd.f32 0.0, %v1371
      %1373 = vmatmul.bf16.gmra.mxu0 %v1287
      %v1374 = vpop.f32.mrf.mxu0
      %v1375 = vadd.f32 0.0, %v1374
      %v1376 = vpop.f32.mrf.mxu0
      %v1377 = vadd.f32 0.0, %v1376
      %1378 = vmatmul.bf16.gmra.mxu0 %v1290
      %v1379 = vpop.f32.mrf.mxu0
      %v1380 = vadd.f32 0.0, %v1379
      %v1381 = vpop.f32.mrf.mxu0
      %v1382 = vadd.f32 0.0, %v1381
      %1383 = vdwg.mxu0
      %v1384 = vadd.f32 %v952, %v1305
      %v1385 = vadd.f32 %v954, %v1307
      %v1386 = vadd.f32 %v957, %v1310
      %v1387 = vadd.f32 %v959, %v1312
      %v1388 = vadd.f32 %v962, %v1315
      %v1389 = vadd.f32 %v964, %v1317
      %v1390 = vadd.f32 %v967, %v1320
      %v1391 = vadd.f32 %v969, %v1322
      %v1392 = vadd.f32 %v972, %v1325
      %v1393 = vadd.f32 %v974, %v1327
      %v1394 = vadd.f32 %v977, %v1330
      %v1395 = vadd.f32 %v979, %v1332
      %v1396 = vadd.f32 %v982, %v1335
      %v1397 = vadd.f32 %v984, %v1337
      %v1398 = vadd.f32 %v987, %v1340
      %v1399 = vadd.f32 %v989, %v1342
      %v1400 = vadd.f32 %v992, %v1345
      %v1401 = vadd.f32 %v994, %v1347
      %v1402 = vadd.f32 %v997, %v1350
      %v1403 = vadd.f32 %v999, %v1352
      %v1404 = vadd.f32 %v1002, %v1355
      %v1405 = vadd.f32 %v1004, %v1357
      %v1406 = vadd.f32 %v1007, %v1360
      %v1407 = vadd.f32 %v1009, %v1362
      %v1408 = vadd.f32 %v1012, %v1365
      %v1409 = vadd.f32 %v1014, %v1367
      %v1410 = vadd.f32 %v1017, %v1370
      %v1411 = vadd.f32 %v1019, %v1372
      %v1412 = vadd.f32 %v1022, %v1375
      %v1413 = vadd.f32 %v1024, %v1377
      %v1414 = vadd.f32 %v1027, %v1380
      %v1415 = vadd.f32 %v1029, %v1382
      %s1416 = scalar_lea.vmem %s172, 12
      %v1417 = vld [vmem:[%s1416] sm:$0xf]
      %v1418 = vld [vmem:[%s1416 + $0x4] sm:$0xf]
      %v1419 = vld [vmem:[%s1416 + $0xc] sm:$0xf]
      %v1420 = vld [vmem:[%s1416 + $0x10] sm:$0xf]
      %v1421 = vld [vmem:[%s1416 + $0x18] sm:$0xf]
      %v1422 = vld [vmem:[%s1416 + $0x1c] sm:$0xf]
      %v1423 = vld [vmem:[%s1416 + $0x24] sm:$0xf]
      %v1424 = vld [vmem:[%s1416 + $0x28] sm:$0xf]
      %v1425 = vld [vmem:[%s1416 + $0x30] sm:$0xf]
      %v1426 = vld [vmem:[%s1416 + $0x34] sm:$0xf]
      %v1427 = vld [vmem:[%s1416 + $0x3c] sm:$0xf]
      %v1428 = vld [vmem:[%s1416 + $0x40] sm:$0xf]
      %v1429 = vld [vmem:[%s1416 + $0x48] sm:$0xf]
      %v1430 = vld [vmem:[%s1416 + $0x4c] sm:$0xf]
      %v1431 = vld [vmem:[%s1416 + $0x54] sm:$0xf]
      %v1432 = vld [vmem:[%s1416 + $0x58] sm:$0xf]
      %v1433 = vld [vmem:[%s1416 + $0x60] sm:$0xf]
      %v1434 = vld [vmem:[%s1416 + $0x64] sm:$0xf]
      %v1435 = vld [vmem:[%s1416 + $0x6c] sm:$0xf]
      %v1436 = vld [vmem:[%s1416 + $0x70] sm:$0xf]
      %v1437 = vld [vmem:[%s1416 + $0x78] sm:$0xf]
      %v1438 = vld [vmem:[%s1416 + $0x7c] sm:$0xf]
      %v1439 = vld [vmem:[%s1416 + $0x84] sm:$0xf]
      %v1440 = vld [vmem:[%s1416 + $0x88] sm:$0xf]
      %v1441 = vld [vmem:[%s1416 + $0x90] sm:$0xf]
      %v1442 = vld [vmem:[%s1416 + $0x94] sm:$0xf]
      %v1443 = vld [vmem:[%s1416 + $0x9c] sm:$0xf]
      %v1444 = vld [vmem:[%s1416 + $0xa0] sm:$0xf]
      %v1445 = vld [vmem:[%s1416 + $0xa8] sm:$0xf]
      %v1446 = vld [vmem:[%s1416 + $0xac] sm:$0xf]
      %v1447 = vld [vmem:[%s1416 + $0xb4] sm:$0xf]
      %v1448 = vld [vmem:[%s1416 + $0xb8] sm:$0xf]
      %s1449 = scalar_lea.vmem %s1, 6
      %v1450 = vld [vmem:[%s1449] sm:$0x3]
      %v1483 = vunpack.c.l.b16 %v1417
      %v1484 = vunpack.c.l.b16 %v1418
      %v1485 = vunpack.c.l.b16 %v1419
      %v1486 = vunpack.c.l.b16 %v1420
      %v1487 = vunpack.c.l.b16 %v1421
      %v1488 = vunpack.c.l.b16 %v1422
      %v1489 = vunpack.c.l.b16 %v1423
      %v1490 = vunpack.c.l.b16 %v1424
      %v1491 = vunpack.c.l.b16 %v1425
      %v1492 = vunpack.c.l.b16 %v1426
      %v1493 = vunpack.c.l.b16 %v1427
      %v1494 = vunpack.c.l.b16 %v1428
      %v1495 = vunpack.c.l.b16 %v1429
      %v1496 = vunpack.c.l.b16 %v1430
      %v1497 = vunpack.c.l.b16 %v1431
      %v1498 = vunpack.c.l.b16 %v1432
      %v1499 = vunpack.c.l.b16 %v1433
      %v1500 = vunpack.c.l.b16 %v1434
      %v1501 = vunpack.c.l.b16 %v1435
      %v1502 = vunpack.c.l.b16 %v1436
      %v1503 = vunpack.c.l.b16 %v1437
      %v1504 = vunpack.c.l.b16 %v1438
      %v1505 = vunpack.c.l.b16 %v1439
      %v1506 = vunpack.c.l.b16 %v1440
      %v1507 = vunpack.c.l.b16 %v1441
      %v1508 = vunpack.c.l.b16 %v1442
      %v1509 = vunpack.c.l.b16 %v1443
      %v1510 = vunpack.c.l.b16 %v1444
      %v1511 = vunpack.c.l.b16 %v1445
      %v1512 = vunpack.c.l.b16 %v1446
      %v1513 = vunpack.c.l.b16 %v1447
      %v1514 = vunpack.c.l.b16 %v1448
      %v1515 = vpack.c.b16 %v1484, %v1483
      %v1516 = vpack.c.b16 %v1486, %v1485
      %v1517 = vpack.c.b16 %v1488, %v1487
      %v1518 = vpack.c.b16 %v1490, %v1489
      %v1519 = vpack.c.b16 %v1492, %v1491
      %v1520 = vpack.c.b16 %v1494, %v1493
      %v1521 = vpack.c.b16 %v1496, %v1495
      %v1522 = vpack.c.b16 %v1498, %v1497
      %v1523 = vpack.c.b16 %v1500, %v1499
      %v1524 = vpack.c.b16 %v1502, %v1501
      %v1525 = vpack.c.b16 %v1504, %v1503
      %v1526 = vpack.c.b16 %v1506, %v1505
      %v1527 = vpack.c.b16 %v1508, %v1507
      %v1528 = vpack.c.b16 %v1510, %v1509
      %v1529 = vpack.c.b16 %v1512, %v1511
      %v1530 = vpack.c.b16 %v1514, %v1513
      %v1532 = vsel %vm669, %v1515, 0
      %v1535 = vsel %vm669, %v1516, 0
      %v1538 = vsel %vm669, %v1517, 0
      %v1541 = vsel %vm669, %v1518, 0
      %v1544 = vsel %vm669, %v1519, 0
      %v1547 = vsel %vm669, %v1520, 0
      %v1550 = vsel %vm669, %v1521, 0
      %v1553 = vsel %vm669, %v1522, 0
      %v1556 = vsel %vm669, %v1523, 0
      %v1559 = vsel %vm669, %v1524, 0
      %v1562 = vsel %vm669, %v1525, 0
      %v1565 = vsel %vm669, %v1526, 0
      %v1568 = vsel %vm669, %v1527, 0
      %v1571 = vsel %vm669, %v1528, 0
      %v1574 = vsel %vm669, %v1529, 0
      %v1577 = vsel %vm669, %v1530, 0
      %v1580 = vsel %vm718, %v1450, 0
      %1582 = vmatpush.bf16.msra.mxu0 0
      %1583 = vmatpush.bf16.msra.mxu0 0
      %1584 = vmatpush.bf16.msra.mxu0 0
      %1585 = vmatpush.bf16.msra.mxu0 0
      %1586 = vmatpush.bf16.msra.mxu0 0
      %1587 = vmatpush.bf16.msra.mxu0 0
      %1588 = vmatpush.bf16.msra.mxu0 0
      %1589 = vmatpush.bf16.msra.mxu0 %v1580
      %1590 = vmatmul.bf16.gmra.mxu0 %v1532
      %v1591 = vpop.f32.mrf.mxu0
      %v1592 = vadd.f32 0.0, %v1591
      %v1593 = vpop.f32.mrf.mxu0
      %v1594 = vadd.f32 0.0, %v1593
      %1595 = vmatmul.bf16.gmra.mxu0 %v1535
      %v1596 = vpop.f32.mrf.mxu0
      %v1597 = vadd.f32 0.0, %v1596
      %v1598 = vpop.f32.mrf.mxu0
      %v1599 = vadd.f32 0.0, %v1598
      %1600 = vmatmul.bf16.gmra.mxu0 %v1538
      %v1601 = vpop.f32.mrf.mxu0
      %v1602 = vadd.f32 0.0, %v1601
      %v1603 = vpop.f32.mrf.mxu0
      %v1604 = vadd.f32 0.0, %v1603
      %1605 = vmatmul.bf16.gmra.mxu0 %v1541
      %v1606 = vpop.f32.mrf.mxu0
      %v1607 = vadd.f32 0.0, %v1606
      %v1608 = vpop.f32.mrf.mxu0
      %v1609 = vadd.f32 0.0, %v1608
      %1610 = vmatmul.bf16.gmra.mxu0 %v1544
      %v1611 = vpop.f32.mrf.mxu0
      %v1612 = vadd.f32 0.0, %v1611
      %v1613 = vpop.f32.mrf.mxu0
      %v1614 = vadd.f32 0.0, %v1613
      %1615 = vmatmul.bf16.gmra.mxu0 %v1547
      %v1616 = vpop.f32.mrf.mxu0
      %v1617 = vadd.f32 0.0, %v1616
      %v1618 = vpop.f32.mrf.mxu0
      %v1619 = vadd.f32 0.0, %v1618
      %1620 = vmatmul.bf16.gmra.mxu0 %v1550
      %v1621 = vpop.f32.mrf.mxu0
      %v1622 = vadd.f32 0.0, %v1621
      %v1623 = vpop.f32.mrf.mxu0
      %v1624 = vadd.f32 0.0, %v1623
      %1625 = vmatmul.bf16.gmra.mxu0 %v1553
      %v1626 = vpop.f32.mrf.mxu0
      %v1627 = vadd.f32 0.0, %v1626
      %v1628 = vpop.f32.mrf.mxu0
      %v1629 = vadd.f32 0.0, %v1628
      %1630 = vmatmul.bf16.gmra.mxu0 %v1556
      %v1631 = vpop.f32.mrf.mxu0
      %v1632 = vadd.f32 0.0, %v1631
      %v1633 = vpop.f32.mrf.mxu0
      %v1634 = vadd.f32 0.0, %v1633
      %1635 = vmatmul.bf16.gmra.mxu0 %v1559
      %v1636 = vpop.f32.mrf.mxu0
      %v1637 = vadd.f32 0.0, %v1636
      %v1638 = vpop.f32.mrf.mxu0
      %v1639 = vadd.f32 0.0, %v1638
      %1640 = vmatmul.bf16.gmra.mxu0 %v1562
      %v1641 = vpop.f32.mrf.mxu0
      %v1642 = vadd.f32 0.0, %v1641
      %v1643 = vpop.f32.mrf.mxu0
      %v1644 = vadd.f32 0.0, %v1643
      %1645 = vmatmul.bf16.gmra.mxu0 %v1565
      %v1646 = vpop.f32.mrf.mxu0
      %v1647 = vadd.f32 0.0, %v1646
      %v1648 = vpop.f32.mrf.mxu0
      %v1649 = vadd.f32 0.0, %v1648
      %1650 = vmatmul.bf16.gmra.mxu0 %v1568
      %v1651 = vpop.f32.mrf.mxu0
      %v1652 = vadd.f32 0.0, %v1651
      %v1653 = vpop.f32.mrf.mxu0
      %v1654 = vadd.f32 0.0, %v1653
      %1655 = vmatmul.bf16.gmra.mxu0 %v1571
      %v1656 = vpop.f32.mrf.mxu0
      %v1657 = vadd.f32 0.0, %v1656
      %v1658 = vpop.f32.mrf.mxu0
      %v1659 = vadd.f32 0.0, %v1658
      %1660 = vmatmul.bf16.gmra.mxu0 %v1574
      %v1661 = vpop.f32.mrf.mxu0
      %v1662 = vadd.f32 0.0, %v1661
      %v1663 = vpop.f32.mrf.mxu0
      %v1664 = vadd.f32 0.0, %v1663
      %1665 = vmatmul.bf16.gmra.mxu0 %v1577
      %v1666 = vpop.f32.mrf.mxu0
      %v1667 = vadd.f32 0.0, %v1666
      %v1668 = vpop.f32.mrf.mxu0
      %v1669 = vadd.f32 0.0, %v1668
      %1670 = vdwg.mxu0
      %v1671 = vadd.f32 %v1384, %v1592
      %v1672 = vadd.f32 %v1385, %v1594
      %v1673 = vadd.f32 %v1386, %v1597
      %v1674 = vadd.f32 %v1387, %v1599
      %v1675 = vadd.f32 %v1388, %v1602
      %v1676 = vadd.f32 %v1389, %v1604
      %v1677 = vadd.f32 %v1390, %v1607
      %v1678 = vadd.f32 %v1391, %v1609
      %v1679 = vadd.f32 %v1392, %v1612
      %v1680 = vadd.f32 %v1393, %v1614
      %v1681 = vadd.f32 %v1394, %v1617
      %v1682 = vadd.f32 %v1395, %v1619
      %v1683 = vadd.f32 %v1396, %v1622
      %v1684 = vadd.f32 %v1397, %v1624
      %v1685 = vadd.f32 %v1398, %v1627
      %v1686 = vadd.f32 %v1399, %v1629
      %v1687 = vadd.f32 %v1400, %v1632
      %v1688 = vadd.f32 %v1401, %v1634
      %v1689 = vadd.f32 %v1402, %v1637
      %v1690 = vadd.f32 %v1403, %v1639
      %v1691 = vadd.f32 %v1404, %v1642
      %v1692 = vadd.f32 %v1405, %v1644
      %v1693 = vadd.f32 %v1406, %v1647
      %v1694 = vadd.f32 %v1407, %v1649
      %v1695 = vadd.f32 %v1408, %v1652
      %v1696 = vadd.f32 %v1409, %v1654
      %v1697 = vadd.f32 %v1410, %v1657
      %v1698 = vadd.f32 %v1411, %v1659
      %v1699 = vadd.f32 %v1412, %v1662
      %v1700 = vadd.f32 %v1413, %v1664
      %v1701 = vadd.f32 %v1414, %v1667
      %v1702 = vadd.f32 %v1415, %v1669
      %v1703 = vld [vmem:[%s1416] sm:$0xf]
      %v1704 = vld [vmem:[%s1416 + $0x4] sm:$0xf]
      %v1705 = vld [vmem:[%s1416 + $0x8] sm:$0x1]
      %v1706 = vld [vmem:[%s1416 + $0xc] sm:$0xf]
      %v1707 = vld [vmem:[%s1416 + $0x10] sm:$0xf]
      %v1708 = vld [vmem:[%s1416 + $0x14] sm:$0x1]
      %v1709 = vld [vmem:[%s1416 + $0x18] sm:$0xf]
      %v1710 = vld [vmem:[%s1416 + $0x1c] sm:$0xf]
      %v1711 = vld [vmem:[%s1416 + $0x20] sm:$0x1]
      %v1712 = vld [vmem:[%s1416 + $0x24] sm:$0xf]
      %v1713 = vld [vmem:[%s1416 + $0x28] sm:$0xf]
      %v1714 = vld [vmem:[%s1416 + $0x2c] sm:$0x1]
      %v1715 = vld [vmem:[%s1416 + $0x30] sm:$0xf]
      %v1716 = vld [vmem:[%s1416 + $0x34] sm:$0xf]
      %v1717 = vld [vmem:[%s1416 + $0x38] sm:$0x1]
      %v1718 = vld [vmem:[%s1416 + $0x3c] sm:$0xf]
      %v1719 = vld [vmem:[%s1416 + $0x40] sm:$0xf]
      %v1720 = vld [vmem:[%s1416 + $0x44] sm:$0x1]
      %v1721 = vld [vmem:[%s1416 + $0x48] sm:$0xf]
      %v1722 = vld [vmem:[%s1416 + $0x4c] sm:$0xf]
      %v1723 = vld [vmem:[%s1416 + $0x50] sm:$0x1]
      %v1724 = vld [vmem:[%s1416 + $0x54] sm:$0xf]
      %v1725 = vld [vmem:[%s1416 + $0x58] sm:$0xf]
      %v1726 = vld [vmem:[%s1416 + $0x5c] sm:$0x1]
      %v1727 = vld [vmem:[%s1416 + $0x60] sm:$0xf]
      %v1728 = vld [vmem:[%s1416 + $0x64] sm:$0xf]
      %v1729 = vld [vmem:[%s1416 + $0x68] sm:$0x1]
      %v1730 = vld [vmem:[%s1416 + $0x6c] sm:$0xf]
      %v1731 = vld [vmem:[%s1416 + $0x70] sm:$0xf]
      %v1732 = vld [vmem:[%s1416 + $0x74] sm:$0x1]
      %v1733 = vld [vmem:[%s1416 + $0x78] sm:$0xf]
      %v1734 = vld [vmem:[%s1416 + $0x7c] sm:$0xf]
      %v1735 = vld [vmem:[%s1416 + $0x80] sm:$0x1]
      %v1736 = vld [vmem:[%s1416 + $0x84] sm:$0xf]
      %v1737 = vld [vmem:[%s1416 + $0x88] sm:$0xf]
      %v1738 = vld [vmem:[%s1416 + $0x8c] sm:$0x1]
      %v1739 = vld [vmem:[%s1416 + $0x90] sm:$0xf]
      %v1740 = vld [vmem:[%s1416 + $0x94] sm:$0xf]
      %v1741 = vld [vmem:[%s1416 + $0x98] sm:$0x1]
      %v1742 = vld [vmem:[%s1416 + $0x9c] sm:$0xf]
      %v1743 = vld [vmem:[%s1416 + $0xa0] sm:$0xf]
      %v1744 = vld [vmem:[%s1416 + $0xa4] sm:$0x1]
      %v1745 = vld [vmem:[%s1416 + $0xa8] sm:$0xf]
      %v1746 = vld [vmem:[%s1416 + $0xac] sm:$0xf]
      %v1747 = vld [vmem:[%s1416 + $0xb0] sm:$0x1]
      %v1748 = vld [vmem:[%s1416 + $0xb4] sm:$0xf]
      %v1749 = vld [vmem:[%s1416 + $0xb8] sm:$0xf]
      %v1750 = vld [vmem:[%s1416 + $0xbc] sm:$0x1]
      %v1752 = vshrl.u32 %v1703, 16
      %v1754 = vrot.slane %v1752, 4
      %v1755 = vshll.u32 %v1703, 16
      %v1757 = vrot.slane %v1755, 5
      %v1758 = vor.u32 %v1754, %v1757
      %v1759 = vrot.slane %v1758, 4
      %v1761 = vshll.u32 %v1704, 16
      %v1763 = vrot.slane %v1761, 5
      %v1764 = vsel %vm234, %v1759, %v1763
      %v1765 = vshrl.u32 %v1704, 16
      %v1767 = vrot.slane %v1765, 4
      %v1768 = vor.u32 %v1767, %v1763
      %v1769 = vrot.slane %v1768, 4
      %v1771 = vshll.u32 %v1705, 16
      %v1773 = vrot.slane %v1771, 5
      %v1774 = vsel %vm234, %v1769, %v1773
      %v1776 = vshrl.u32 %v1706, 16
      %v1778 = vrot.slane %v1776, 4
      %v1779 = vshll.u32 %v1706, 16
      %v1781 = vrot.slane %v1779, 5
      %v1782 = vor.u32 %v1778, %v1781
      %v1783 = vrot.slane %v1782, 4
      %v1785 = vshll.u32 %v1707, 16
      %v1787 = vrot.slane %v1785, 5
      %v1788 = vsel %vm234, %v1783, %v1787
      %v1789 = vshrl.u32 %v1707, 16
      %v1791 = vrot.slane %v1789, 4
      %v1792 = vor.u32 %v1791, %v1787
      %v1793 = vrot.slane %v1792, 4
      %v1795 = vshll.u32 %v1708, 16
      %v1797 = vrot.slane %v1795, 5
      %v1798 = vsel %vm234, %v1793, %v1797
      %v1800 = vshrl.u32 %v1709, 16
      %v1802 = vrot.slane %v1800, 4
      %v1803 = vshll.u32 %v1709, 16
      %v1805 = vrot.slane %v1803, 5
      %v1806 = vor.u32 %v1802, %v1805
      %v1807 = vrot.slane %v1806, 4
      %v1809 = vshll.u32 %v1710, 16
      %v1811 = vrot.slane %v1809, 5
      %v1812 = vsel %vm234, %v1807, %v1811
      %v1813 = vshrl.u32 %v1710, 16
      %v1815 = vrot.slane %v1813, 4
      %v1816 = vor.u32 %v1815, %v1811
      %v1817 = vrot.slane %v1816, 4
      %v1819 = vshll.u32 %v1711, 16
      %v1821 = vrot.slane %v1819, 5
      %v1822 = vsel %vm234, %v1817, %v1821
      %v1824 = vshrl.u32 %v1712, 16
      %v1826 = vrot.slane %v1824, 4
      %v1827 = vshll.u32 %v1712, 16
      %v1829 = vrot.slane %v1827, 5
      %v1830 = vor.u32 %v1826, %v1829
      %v1831 = vrot.slane %v1830, 4
      %v1833 = vshll.u32 %v1713, 16
      %v1835 = vrot.slane %v1833, 5
      %v1836 = vsel %vm234, %v1831, %v1835
      %v1837 = vshrl.u32 %v1713, 16
      %v1839 = vrot.slane %v1837, 4
      %v1840 = vor.u32 %v1839, %v1835
      %v1841 = vrot.slane %v1840, 4
      %v1843 = vshll.u32 %v1714, 16
      %v1845 = vrot.slane %v1843, 5
      %v1846 = vsel %vm234, %v1841, %v1845
      %v1848 = vshrl.u32 %v1715, 16
      %v1850 = vrot.slane %v1848, 4
      %v1851 = vshll.u32 %v1715, 16
      %v1853 = vrot.slane %v1851, 5
      %v1854 = vor.u32 %v1850, %v1853
      %v1855 = vrot.slane %v1854, 4
      %v1857 = vshll.u32 %v1716, 16
      %v1859 = vrot.slane %v1857, 5
      %v1860 = vsel %vm234, %v1855, %v1859
      %v1861 = vshrl.u32 %v1716, 16
      %v1863 = vrot.slane %v1861, 4
      %v1864 = vor.u32 %v1863, %v1859
      %v1865 = vrot.slane %v1864, 4
      %v1867 = vshll.u32 %v1717, 16
      %v1869 = vrot.slane %v1867, 5
      %v1870 = vsel %vm234, %v1865, %v1869
      %v1872 = vshrl.u32 %v1718, 16
      %v1874 = vrot.slane %v1872, 4
      %v1875 = vshll.u32 %v1718, 16
      %v1877 = vrot.slane %v1875, 5
      %v1878 = vor.u32 %v1874, %v1877
      %v1879 = vrot.slane %v1878, 4
      %v1881 = vshll.u32 %v1719, 16
      %v1883 = vrot.slane %v1881, 5
      %v1884 = vsel %vm234, %v1879, %v1883
      %v1885 = vshrl.u32 %v1719, 16
      %v1887 = vrot.slane %v1885, 4
      %v1888 = vor.u32 %v1887, %v1883
      %v1889 = vrot.slane %v1888, 4
      %v1891 = vshll.u32 %v1720, 16
      %v1893 = vrot.slane %v1891, 5
      %v1894 = vsel %vm234, %v1889, %v1893
      %v1896 = vshrl.u32 %v1721, 16
      %v1898 = vrot.slane %v1896, 4
      %v1899 = vshll.u32 %v1721, 16
      %v1901 = vrot.slane %v1899, 5
      %v1902 = vor.u32 %v1898, %v1901
      %v1903 = vrot.slane %v1902, 4
      %v1905 = vshll.u32 %v1722, 16
      %v1907 = vrot.slane %v1905, 5
      %v1908 = vsel %vm234, %v1903, %v1907
      %v1909 = vshrl.u32 %v1722, 16
      %v1911 = vrot.slane %v1909, 4
      %v1912 = vor.u32 %v1911, %v1907
      %v1913 = vrot.slane %v1912, 4
      %v1915 = vshll.u32 %v1723, 16
      %v1917 = vrot.slane %v1915, 5
      %v1918 = vsel %vm234, %v1913, %v1917
      %v1920 = vshrl.u32 %v1724, 16
      %v1922 = vrot.slane %v1920, 4
      %v1923 = vshll.u32 %v1724, 16
      %v1925 = vrot.slane %v1923, 5
      %v1926 = vor.u32 %v1922, %v1925
      %v1927 = vrot.slane %v1926, 4
      %v1929 = vshll.u32 %v1725, 16
      %v1931 = vrot.slane %v1929, 5
      %v1932 = vsel %vm234, %v1927, %v1931
      %v1933 = vshrl.u32 %v1725, 16
      %v1935 = vrot.slane %v1933, 4
      %v1936 = vor.u32 %v1935, %v1931
      %v1937 = vrot.slane %v1936, 4
      %v1939 = vshll.u32 %v1726, 16
      %v1941 = vrot.slane %v1939, 5
      %v1942 = vsel %vm234, %v1937, %v1941
      %v1944 = vshrl.u32 %v1727, 16
      %v1946 = vrot.slane %v1944, 4
      %v1947 = vshll.u32 %v1727, 16
      %v1949 = vrot.slane %v1947, 5
      %v1950 = vor.u32 %v1946, %v1949
      %v1951 = vrot.slane %v1950, 4
      %v1953 = vshll.u32 %v1728, 16
      %v1955 = vrot.slane %v1953, 5
      %v1956 = vsel %vm234, %v1951, %v1955
      %v1957 = vshrl.u32 %v1728, 16
      %v1959 = vrot.slane %v1957, 4
      %v1960 = vor.u32 %v1959, %v1955
      %v1961 = vrot.slane %v1960, 4
      %v1963 = vshll.u32 %v1729, 16
      %v1965 = vrot.slane %v1963, 5
      %v1966 = vsel %vm234, %v1961, %v1965
      %v1968 = vshrl.u32 %v1730, 16
      %v1970 = vrot.slane %v1968, 4
      %v1971 = vshll.u32 %v1730, 16
      %v1973 = vrot.slane %v1971, 5
      %v1974 = vor.u32 %v1970, %v1973
      %v1975 = vrot.slane %v1974, 4
      %v1977 = vshll.u32 %v1731, 16
      %v1979 = vrot.slane %v1977, 5
      %v1980 = vsel %vm234, %v1975, %v1979
      %v1981 = vshrl.u32 %v1731, 16
      %v1983 = vrot.slane %v1981, 4
      %v1984 = vor.u32 %v1983, %v1979
      %v1985 = vrot.slane %v1984, 4
      %v1987 = vshll.u32 %v1732, 16
      %v1989 = vrot.slane %v1987, 5
      %v1990 = vsel %vm234, %v1985, %v1989
      %v1992 = vshrl.u32 %v1733, 16
      %v1994 = vrot.slane %v1992, 4
      %v1995 = vshll.u32 %v1733, 16
      %v1997 = vrot.slane %v1995, 5
      %v1998 = vor.u32 %v1994, %v1997
      %v1999 = vrot.slane %v1998, 4
      %v2001 = vshll.u32 %v1734, 16
      %v2003 = vrot.slane %v2001, 5
      %v2004 = vsel %vm234, %v1999, %v2003
      %v2005 = vshrl.u32 %v1734, 16
      %v2007 = vrot.slane %v2005, 4
      %v2008 = vor.u32 %v2007, %v2003
      %v2009 = vrot.slane %v2008, 4
      %v2011 = vshll.u32 %v1735, 16
      %v2013 = vrot.slane %v2011, 5
      %v2014 = vsel %vm234, %v2009, %v2013
      %v2016 = vshrl.u32 %v1736, 16
      %v2018 = vrot.slane %v2016, 4
      %v2019 = vshll.u32 %v1736, 16
      %v2021 = vrot.slane %v2019, 5
      %v2022 = vor.u32 %v2018, %v2021
      %v2023 = vrot.slane %v2022, 4
      %v2025 = vshll.u32 %v1737, 16
      %v2027 = vrot.slane %v2025, 5
      %v2028 = vsel %vm234, %v2023, %v2027
      %v2029 = vshrl.u32 %v1737, 16
      %v2031 = vrot.slane %v2029, 4
      %v2032 = vor.u32 %v2031, %v2027
      %v2033 = vrot.slane %v2032, 4
      %v2035 = vshll.u32 %v1738, 16
      %v2037 = vrot.slane %v2035, 5
      %v2038 = vsel %vm234, %v2033, %v2037
      %v2040 = vshrl.u32 %v1739, 16
      %v2042 = vrot.slane %v2040, 4
      %v2043 = vshll.u32 %v1739, 16
      %v2045 = vrot.slane %v2043, 5
      %v2046 = vor.u32 %v2042, %v2045
      %v2047 = vrot.slane %v2046, 4
      %v2049 = vshll.u32 %v1740, 16
      %v2051 = vrot.slane %v2049, 5
      %v2052 = vsel %vm234, %v2047, %v2051
      %v2053 = vshrl.u32 %v1740, 16
      %v2055 = vrot.slane %v2053, 4
      %v2056 = vor.u32 %v2055, %v2051
      %v2057 = vrot.slane %v2056, 4
      %v2059 = vshll.u32 %v1741, 16
      %v2061 = vrot.slane %v2059, 5
      %v2062 = vsel %vm234, %v2057, %v2061
      %v2064 = vshrl.u32 %v1742, 16
      %v2066 = vrot.slane %v2064, 4
      %v2067 = vshll.u32 %v1742, 16
      %v2069 = vrot.slane %v2067, 5
      %v2070 = vor.u32 %v2066, %v2069
      %v2071 = vrot.slane %v2070, 4
      %v2073 = vshll.u32 %v1743, 16
      %v2075 = vrot.slane %v2073, 5
      %v2076 = vsel %vm234, %v2071, %v2075
      %v2077 = vshrl.u32 %v1743, 16
      %v2079 = vrot.slane %v2077, 4
      %v2080 = vor.u32 %v2079, %v2075
      %v2081 = vrot.slane %v2080, 4
      %v2083 = vshll.u32 %v1744, 16
      %v2085 = vrot.slane %v2083, 5
      %v2086 = vsel %vm234, %v2081, %v2085
      %v2088 = vshrl.u32 %v1745, 16
      %v2090 = vrot.slane %v2088, 4
      %v2091 = vshll.u32 %v1745, 16
      %v2093 = vrot.slane %v2091, 5
      %v2094 = vor.u32 %v2090, %v2093
      %v2095 = vrot.slane %v2094, 4
      %v2097 = vshll.u32 %v1746, 16
      %v2099 = vrot.slane %v2097, 5
      %v2100 = vsel %vm234, %v2095, %v2099
      %v2101 = vshrl.u32 %v1746, 16
      %v2103 = vrot.slane %v2101, 4
      %v2104 = vor.u32 %v2103, %v2099
      %v2105 = vrot.slane %v2104, 4
      %v2107 = vshll.u32 %v1747, 16
      %v2109 = vrot.slane %v2107, 5
      %v2110 = vsel %vm234, %v2105, %v2109
      %v2112 = vshrl.u32 %v1748, 16
      %v2114 = vrot.slane %v2112, 4
      %v2115 = vshll.u32 %v1748, 16
      %v2117 = vrot.slane %v2115, 5
      %v2118 = vor.u32 %v2114, %v2117
      %v2119 = vrot.slane %v2118, 4
      %v2121 = vshll.u32 %v1749, 16
      %v2123 = vrot.slane %v2121, 5
      %v2124 = vsel %vm234, %v2119, %v2123
      %v2125 = vshrl.u32 %v1749, 16
      %v2127 = vrot.slane %v2125, 4
      %v2128 = vor.u32 %v2127, %v2123
      %v2129 = vrot.slane %v2128, 4
      %v2131 = vshll.u32 %v1750, 16
      %v2133 = vrot.slane %v2131, 5
      %v2134 = vsel %vm234, %v2129, %v2133
      %s2135 = scalar_lea.vmem %s1, 8
      %v2136 = vld [vmem:[%s2135] sm:$0x3]
      %v2137 = vunpack.c.l.b16 %v1764
      %v2138 = vunpack.c.l.b16 %v1774
      %v2139 = vunpack.c.l.b16 %v1788
      %v2140 = vunpack.c.l.b16 %v1798
      %v2141 = vunpack.c.l.b16 %v1812
      %v2142 = vunpack.c.l.b16 %v1822
      %v2143 = vunpack.c.l.b16 %v1836
      %v2144 = vunpack.c.l.b16 %v1846
      %v2145 = vunpack.c.l.b16 %v1860
      %v2146 = vunpack.c.l.b16 %v1870
      %v2147 = vunpack.c.l.b16 %v1884
      %v2148 = vunpack.c.l.b16 %v1894
      %v2149 = vunpack.c.l.b16 %v1908
      %v2150 = vunpack.c.l.b16 %v1918
      %v2151 = vunpack.c.l.b16 %v1932
      %v2152 = vunpack.c.l.b16 %v1942
      %v2153 = vunpack.c.l.b16 %v1956
      %v2154 = vunpack.c.l.b16 %v1966
      %v2155 = vunpack.c.l.b16 %v1980
      %v2156 = vunpack.c.l.b16 %v1990
      %v2157 = vunpack.c.l.b16 %v2004
      %v2158 = vunpack.c.l.b16 %v2014
      %v2159 = vunpack.c.l.b16 %v2028
      %v2160 = vunpack.c.l.b16 %v2038
      %v2161 = vunpack.c.l.b16 %v2052
      %v2162 = vunpack.c.l.b16 %v2062
      %v2163 = vunpack.c.l.b16 %v2076
      %v2164 = vunpack.c.l.b16 %v2086
      %v2165 = vunpack.c.l.b16 %v2100
      %v2166 = vunpack.c.l.b16 %v2110
      %v2167 = vunpack.c.l.b16 %v2124
      %v2168 = vunpack.c.l.b16 %v2134
      %v2169 = vpack.c.b16 %v2138, %v2137
      %v2170 = vpack.c.b16 %v2140, %v2139
      %v2171 = vpack.c.b16 %v2142, %v2141
      %v2172 = vpack.c.b16 %v2144, %v2143
      %v2173 = vpack.c.b16 %v2146, %v2145
      %v2174 = vpack.c.b16 %v2148, %v2147
      %v2175 = vpack.c.b16 %v2150, %v2149
      %v2176 = vpack.c.b16 %v2152, %v2151
      %v2177 = vpack.c.b16 %v2154, %v2153
      %v2178 = vpack.c.b16 %v2156, %v2155
      %v2179 = vpack.c.b16 %v2158, %v2157
      %v2180 = vpack.c.b16 %v2160, %v2159
      %v2181 = vpack.c.b16 %v2162, %v2161
      %v2182 = vpack.c.b16 %v2164, %v2163
      %v2183 = vpack.c.b16 %v2166, %v2165
      %v2184 = vpack.c.b16 %v2168, %v2167
      %v2186 = vsel %vm669, %v2169, 0
      %v2189 = vsel %vm669, %v2170, 0
      %v2192 = vsel %vm669, %v2171, 0
      %v2195 = vsel %vm669, %v2172, 0
      %v2198 = vsel %vm669, %v2173, 0
      %v2201 = vsel %vm669, %v2174, 0
      %v2204 = vsel %vm669, %v2175, 0
      %v2207 = vsel %vm669, %v2176, 0
      %v2210 = vsel %vm669, %v2177, 0
      %v2213 = vsel %vm669, %v2178, 0
      %v2216 = vsel %vm669, %v2179, 0
      %v2219 = vsel %vm669, %v2180, 0
      %v2222 = vsel %vm669, %v2181, 0
      %v2225 = vsel %vm669, %v2182, 0
      %v2228 = vsel %vm669, %v2183, 0
      %v2231 = vsel %vm669, %v2184, 0
      %v2234 = vsel %vm718, %v2136, 0
      %2236 = vmatpush.bf16.msra.mxu0 0
      %2237 = vmatpush.bf16.msra.mxu0 0
      %2238 = vmatpush.bf16.msra.mxu0 0
      %2239 = vmatpush.bf16.msra.mxu0 0
      %2240 = vmatpush.bf16.msra.mxu0 0
      %2241 = vmatpush.bf16.msra.mxu0 0
      %2242 = vmatpush.bf16.msra.mxu0 0
      %2243 = vmatpush.bf16.msra.mxu0 %v2234
      %2244 = vmatmul.bf16.gmra.mxu0 %v2186
      %v2245 = vpop.f32.mrf.mxu0
      %v2246 = vadd.f32 0.0, %v2245
      %v2247 = vpop.f32.mrf.mxu0
      %v2248 = vadd.f32 0.0, %v2247
      %2249 = vmatmul.bf16.gmra.mxu0 %v2189
      %v2250 = vpop.f32.mrf.mxu0
      %v2251 = vadd.f32 0.0, %v2250
      %v2252 = vpop.f32.mrf.mxu0
      %v2253 = vadd.f32 0.0, %v2252
      %2254 = vmatmul.bf16.gmra.mxu0 %v2192
      %v2255 = vpop.f32.mrf.mxu0
      %v2256 = vadd.f32 0.0, %v2255
      %v2257 = vpop.f32.mrf.mxu0
      %v2258 = vadd.f32 0.0, %v2257
      %2259 = vmatmul.bf16.gmra.mxu0 %v2195
      %v2260 = vpop.f32.mrf.mxu0
      %v2261 = vadd.f32 0.0, %v2260
      %v2262 = vpop.f32.mrf.mxu0
      %v2263 = vadd.f32 0.0, %v2262
      %2264 = vmatmul.bf16.gmra.mxu0 %v2198
      %v2265 = vpop.f32.mrf.mxu0
      %v2266 = vadd.f32 0.0, %v2265
      %v2267 = vpop.f32.mrf.mxu0
      %v2268 = vadd.f32 0.0, %v2267
      %2269 = vmatmul.bf16.gmra.mxu0 %v2201
      %v2270 = vpop.f32.mrf.mxu0
      %v2271 = vadd.f32 0.0, %v2270
      %v2272 = vpop.f32.mrf.mxu0
      %v2273 = vadd.f32 0.0, %v2272
      %2274 = vmatmul.bf16.gmra.mxu0 %v2204
      %v2275 = vpop.f32.mrf.mxu0
      %v2276 = vadd.f32 0.0, %v2275
      %v2277 = vpop.f32.mrf.mxu0
      %v2278 = vadd.f32 0.0, %v2277
      %2279 = vmatmul.bf16.gmra.mxu0 %v2207
      %v2280 = vpop.f32.mrf.mxu0
      %v2281 = vadd.f32 0.0, %v2280
      %v2282 = vpop.f32.mrf.mxu0
      %v2283 = vadd.f32 0.0, %v2282
      %2284 = vmatmul.bf16.gmra.mxu0 %v2210
      %v2285 = vpop.f32.mrf.mxu0
      %v2286 = vadd.f32 0.0, %v2285
      %v2287 = vpop.f32.mrf.mxu0
      %v2288 = vadd.f32 0.0, %v2287
      %2289 = vmatmul.bf16.gmra.mxu0 %v2213
      %v2290 = vpop.f32.mrf.mxu0
      %v2291 = vadd.f32 0.0, %v2290
      %v2292 = vpop.f32.mrf.mxu0
      %v2293 = vadd.f32 0.0, %v2292
      %2294 = vmatmul.bf16.gmra.mxu0 %v2216
      %v2295 = vpop.f32.mrf.mxu0
      %v2296 = vadd.f32 0.0, %v2295
      %v2297 = vpop.f32.mrf.mxu0
      %v2298 = vadd.f32 0.0, %v2297
      %2299 = vmatmul.bf16.gmra.mxu0 %v2219
      %v2300 = vpop.f32.mrf.mxu0
      %v2301 = vadd.f32 0.0, %v2300
      %v2302 = vpop.f32.mrf.mxu0
      %v2303 = vadd.f32 0.0, %v2302
      %2304 = vmatmul.bf16.gmra.mxu0 %v2222
      %v2305 = vpop.f32.mrf.mxu0
      %v2306 = vadd.f32 0.0, %v2305
      %v2307 = vpop.f32.mrf.mxu0
      %v2308 = vadd.f32 0.0, %v2307
      %2309 = vmatmul.bf16.gmra.mxu0 %v2225
      %v2310 = vpop.f32.mrf.mxu0
      %v2311 = vadd.f32 0.0, %v2310
      %v2312 = vpop.f32.mrf.mxu0
      %v2313 = vadd.f32 0.0, %v2312
      %2314 = vmatmul.bf16.gmra.mxu0 %v2228
      %v2315 = vpop.f32.mrf.mxu0
      %v2316 = vadd.f32 0.0, %v2315
      %v2317 = vpop.f32.mrf.mxu0
      %v2318 = vadd.f32 0.0, %v2317
      %2319 = vmatmul.bf16.gmra.mxu0 %v2231
      %v2320 = vpop.f32.mrf.mxu0
      %v2321 = vadd.f32 0.0, %v2320
      %v2322 = vpop.f32.mrf.mxu0
      %v2323 = vadd.f32 0.0, %v2322
      %2324 = vdwg.mxu0
      %v2325 = vadd.f32 %v1671, %v2246
      %v2326 = vadd.f32 %v1672, %v2248
      %v2327 = vadd.f32 %v1673, %v2251
      %v2328 = vadd.f32 %v1674, %v2253
      %v2329 = vadd.f32 %v1675, %v2256
      %v2330 = vadd.f32 %v1676, %v2258
      %v2331 = vadd.f32 %v1677, %v2261
      %v2332 = vadd.f32 %v1678, %v2263
      %v2333 = vadd.f32 %v1679, %v2266
      %v2334 = vadd.f32 %v1680, %v2268
      %v2335 = vadd.f32 %v1681, %v2271
      %v2336 = vadd.f32 %v1682, %v2273
      %v2337 = vadd.f32 %v1683, %v2276
      %v2338 = vadd.f32 %v1684, %v2278
      %v2339 = vadd.f32 %v1685, %v2281
      %v2340 = vadd.f32 %v1686, %v2283
      %v2341 = vadd.f32 %v1687, %v2286
      %v2342 = vadd.f32 %v1688, %v2288
      %v2343 = vadd.f32 %v1689, %v2291
      %v2344 = vadd.f32 %v1690, %v2293
      %v2345 = vadd.f32 %v1691, %v2296
      %v2346 = vadd.f32 %v1692, %v2298
      %v2347 = vadd.f32 %v1693, %v2301
      %v2348 = vadd.f32 %v1694, %v2303
      %v2349 = vadd.f32 %v1695, %v2306
      %v2350 = vadd.f32 %v1696, %v2308
      %v2351 = vadd.f32 %v1697, %v2311
      %v2352 = vadd.f32 %v1698, %v2313
      %v2353 = vadd.f32 %v1699, %v2316
      %v2354 = vadd.f32 %v1700, %v2318
      %v2355 = vadd.f32 %v1701, %v2321
      %v2356 = vadd.f32 %v1702, %v2323
      %v2357 = vld [vmem:[%s1416] sm:$0xe]
      %v2358 = vld [vmem:[%s1416 + $0xc] sm:$0xe]
      %v2359 = vld [vmem:[%s1416 + $0x18] sm:$0xe]
      %v2360 = vld [vmem:[%s1416 + $0x24] sm:$0xe]
      %v2361 = vld [vmem:[%s1416 + $0x30] sm:$0xe]
      %v2362 = vld [vmem:[%s1416 + $0x3c] sm:$0xe]
      %v2363 = vld [vmem:[%s1416 + $0x48] sm:$0xe]
      %v2364 = vld [vmem:[%s1416 + $0x54] sm:$0xe]
      %v2365 = vld [vmem:[%s1416 + $0x60] sm:$0xe]
      %v2366 = vld [vmem:[%s1416 + $0x6c] sm:$0xe]
      %v2367 = vld [vmem:[%s1416 + $0x78] sm:$0xe]
      %v2368 = vld [vmem:[%s1416 + $0x84] sm:$0xe]
      %v2369 = vld [vmem:[%s1416 + $0x90] sm:$0xe]
      %v2370 = vld [vmem:[%s1416 + $0x9c] sm:$0xe]
      %v2371 = vld [vmem:[%s1416 + $0xa8] sm:$0xe]
      %v2372 = vld [vmem:[%s1416 + $0xb4] sm:$0xe]
      %v2421 = vrot.slane %v2357, 5
      %v2422 = vrot.slane %v2421, 4
      %v2423 = vrot.slane %v1704, 5
      %v2424 = vsel %vm1081, %v2422, %v2423
      %v2425 = vrot.slane %v2423, 4
      %v2426 = vrot.slane %v1705, 5
      %v2427 = vsel %vm1081, %v2425, %v2426
      %v2428 = vrot.slane %v2358, 5
      %v2429 = vrot.slane %v2428, 4
      %v2430 = vrot.slane %v1707, 5
      %v2431 = vsel %vm1081, %v2429, %v2430
      %v2432 = vrot.slane %v2430, 4
      %v2433 = vrot.slane %v1708, 5
      %v2434 = vsel %vm1081, %v2432, %v2433
      %v2435 = vrot.slane %v2359, 5
      %v2436 = vrot.slane %v2435, 4
      %v2437 = vrot.slane %v1710, 5
      %v2438 = vsel %vm1081, %v2436, %v2437
      %v2439 = vrot.slane %v2437, 4
      %v2440 = vrot.slane %v1711, 5
      %v2441 = vsel %vm1081, %v2439, %v2440
      %v2442 = vrot.slane %v2360, 5
      %v2443 = vrot.slane %v2442, 4
      %v2444 = vrot.slane %v1713, 5
      %v2445 = vsel %vm1081, %v2443, %v2444
      %v2446 = vrot.slane %v2444, 4
      %v2447 = vrot.slane %v1714, 5
      %v2448 = vsel %vm1081, %v2446, %v2447
      %v2449 = vrot.slane %v2361, 5
      %v2450 = vrot.slane %v2449, 4
      %v2451 = vrot.slane %v1716, 5
      %v2452 = vsel %vm1081, %v2450, %v2451
      %v2453 = vrot.slane %v2451, 4
      %v2454 = vrot.slane %v1717, 5
      %v2455 = vsel %vm1081, %v2453, %v2454
      %v2456 = vrot.slane %v2362, 5
      %v2457 = vrot.slane %v2456, 4
      %v2458 = vrot.slane %v1719, 5
      %v2459 = vsel %vm1081, %v2457, %v2458
      %v2460 = vrot.slane %v2458, 4
      %v2461 = vrot.slane %v1720, 5
      %v2462 = vsel %vm1081, %v2460, %v2461
      %v2463 = vrot.slane %v2363, 5
      %v2464 = vrot.slane %v2463, 4
      %v2465 = vrot.slane %v1722, 5
      %v2466 = vsel %vm1081, %v2464, %v2465
      %v2467 = vrot.slane %v2465, 4
      %v2468 = vrot.slane %v1723, 5
      %v2469 = vsel %vm1081, %v2467, %v2468
      %v2470 = vrot.slane %v2364, 5
      %v2471 = vrot.slane %v2470, 4
      %v2472 = vrot.slane %v1725, 5
      %v2473 = vsel %vm1081, %v2471, %v2472
      %v2474 = vrot.slane %v2472, 4
      %v2475 = vrot.slane %v1726, 5
      %v2476 = vsel %vm1081, %v2474, %v2475
      %v2477 = vrot.slane %v2365, 5
      %v2478 = vrot.slane %v2477, 4
      %v2479 = vrot.slane %v1728, 5
      %v2480 = vsel %vm1081, %v2478, %v2479
      %v2481 = vrot.slane %v2479, 4
      %v2482 = vrot.slane %v1729, 5
      %v2483 = vsel %vm1081, %v2481, %v2482
      %v2484 = vrot.slane %v2366, 5
      %v2485 = vrot.slane %v2484, 4
      %v2486 = vrot.slane %v1731, 5
      %v2487 = vsel %vm1081, %v2485, %v2486
      %v2488 = vrot.slane %v2486, 4
      %v2489 = vrot.slane %v1732, 5
      %v2490 = vsel %vm1081, %v2488, %v2489
      %v2491 = vrot.slane %v2367, 5
      %v2492 = vrot.slane %v2491, 4
      %v2493 = vrot.slane %v1734, 5
      %v2494 = vsel %vm1081, %v2492, %v2493
      %v2495 = vrot.slane %v2493, 4
      %v2496 = vrot.slane %v1735, 5
      %v2497 = vsel %vm1081, %v2495, %v2496
      %v2498 = vrot.slane %v2368, 5
      %v2499 = vrot.slane %v2498, 4
      %v2500 = vrot.slane %v1737, 5
      %v2501 = vsel %vm1081, %v2499, %v2500
      %v2502 = vrot.slane %v2500, 4
      %v2503 = vrot.slane %v1738, 5
      %v2504 = vsel %vm1081, %v2502, %v2503
      %v2505 = vrot.slane %v2369, 5
      %v2506 = vrot.slane %v2505, 4
      %v2507 = vrot.slane %v1740, 5
      %v2508 = vsel %vm1081, %v2506, %v2507
      %v2509 = vrot.slane %v2507, 4
      %v2510 = vrot.slane %v1741, 5
      %v2511 = vsel %vm1081, %v2509, %v2510
      %v2512 = vrot.slane %v2370, 5
      %v2513 = vrot.slane %v2512, 4
      %v2514 = vrot.slane %v1743, 5
      %v2515 = vsel %vm1081, %v2513, %v2514
      %v2516 = vrot.slane %v2514, 4
      %v2517 = vrot.slane %v1744, 5
      %v2518 = vsel %vm1081, %v2516, %v2517
      %v2519 = vrot.slane %v2371, 5
      %v2520 = vrot.slane %v2519, 4
      %v2521 = vrot.slane %v1746, 5
      %v2522 = vsel %vm1081, %v2520, %v2521
      %v2523 = vrot.slane %v2521, 4
      %v2524 = vrot.slane %v1747, 5
      %v2525 = vsel %vm1081, %v2523, %v2524
      %v2526 = vrot.slane %v2372, 5
      %v2527 = vrot.slane %v2526, 4
      %v2528 = vrot.slane %v1749, 5
      %v2529 = vsel %vm1081, %v2527, %v2528
      %v2530 = vrot.slane %v2528, 4
      %v2531 = vrot.slane %v1750, 5
      %v2532 = vsel %vm1081, %v2530, %v2531
      %s2533 = scalar_lea.vmem %s1, 10
      %v2534 = vld [vmem:[%s2533] sm:$0x3]
      %v2535 = vunpack.c.l.b16 %v2424
      %v2536 = vunpack.c.l.b16 %v2427
      %v2537 = vunpack.c.l.b16 %v2431
      %v2538 = vunpack.c.l.b16 %v2434
      %v2539 = vunpack.c.l.b16 %v2438
      %v2540 = vunpack.c.l.b16 %v2441
      %v2541 = vunpack.c.l.b16 %v2445
      %v2542 = vunpack.c.l.b16 %v2448
      %v2543 = vunpack.c.l.b16 %v2452
      %v2544 = vunpack.c.l.b16 %v2455
      %v2545 = vunpack.c.l.b16 %v2459
      %v2546 = vunpack.c.l.b16 %v2462
      %v2547 = vunpack.c.l.b16 %v2466
      %v2548 = vunpack.c.l.b16 %v2469
      %v2549 = vunpack.c.l.b16 %v2473
      %v2550 = vunpack.c.l.b16 %v2476
      %v2551 = vunpack.c.l.b16 %v2480
      %v2552 = vunpack.c.l.b16 %v2483
      %v2553 = vunpack.c.l.b16 %v2487
      %v2554 = vunpack.c.l.b16 %v2490
      %v2555 = vunpack.c.l.b16 %v2494
      %v2556 = vunpack.c.l.b16 %v2497
      %v2557 = vunpack.c.l.b16 %v2501
      %v2558 = vunpack.c.l.b16 %v2504
      %v2559 = vunpack.c.l.b16 %v2508
      %v2560 = vunpack.c.l.b16 %v2511
      %v2561 = vunpack.c.l.b16 %v2515
      %v2562 = vunpack.c.l.b16 %v2518
      %v2563 = vunpack.c.l.b16 %v2522
      %v2564 = vunpack.c.l.b16 %v2525
      %v2565 = vunpack.c.l.b16 %v2529
      %v2566 = vunpack.c.l.b16 %v2532
      %v2567 = vpack.c.b16 %v2536, %v2535
      %v2568 = vpack.c.b16 %v2538, %v2537
      %v2569 = vpack.c.b16 %v2540, %v2539
      %v2570 = vpack.c.b16 %v2542, %v2541
      %v2571 = vpack.c.b16 %v2544, %v2543
      %v2572 = vpack.c.b16 %v2546, %v2545
      %v2573 = vpack.c.b16 %v2548, %v2547
      %v2574 = vpack.c.b16 %v2550, %v2549
      %v2575 = vpack.c.b16 %v2552, %v2551
      %v2576 = vpack.c.b16 %v2554, %v2553
      %v2577 = vpack.c.b16 %v2556, %v2555
      %v2578 = vpack.c.b16 %v2558, %v2557
      %v2579 = vpack.c.b16 %v2560, %v2559
      %v2580 = vpack.c.b16 %v2562, %v2561
      %v2581 = vpack.c.b16 %v2564, %v2563
      %v2582 = vpack.c.b16 %v2566, %v2565
      %v2584 = vsel %vm669, %v2567, 0
      %v2587 = vsel %vm669, %v2568, 0
      %v2590 = vsel %vm669, %v2569, 0
      %v2593 = vsel %vm669, %v2570, 0
      %v2596 = vsel %vm669, %v2571, 0
      %v2599 = vsel %vm669, %v2572, 0
      %v2602 = vsel %vm669, %v2573, 0
      %v2605 = vsel %vm669, %v2574, 0
      %v2608 = vsel %vm669, %v2575, 0
      %v2611 = vsel %vm669, %v2576, 0
      %v2614 = vsel %vm669, %v2577, 0
      %v2617 = vsel %vm669, %v2578, 0
      %v2620 = vsel %vm669, %v2579, 0
      %v2623 = vsel %vm669, %v2580, 0
      %v2626 = vsel %vm669, %v2581, 0
      %v2629 = vsel %vm669, %v2582, 0
      %v2632 = vsel %vm718, %v2534, 0
      %2634 = vmatpush.bf16.msra.mxu0 0
      %2635 = vmatpush.bf16.msra.mxu0 0
      %2636 = vmatpush.bf16.msra.mxu0 0
      %2637 = vmatpush.bf16.msra.mxu0 0
      %2638 = vmatpush.bf16.msra.mxu0 0
      %2639 = vmatpush.bf16.msra.mxu0 0
      %2640 = vmatpush.bf16.msra.mxu0 0
      %2641 = vmatpush.bf16.msra.mxu0 %v2632
      %2642 = vmatmul.bf16.gmra.mxu0 %v2584
      %v2643 = vpop.f32.mrf.mxu0
      %v2644 = vadd.f32 0.0, %v2643
      %v2645 = vpop.f32.mrf.mxu0
      %v2646 = vadd.f32 0.0, %v2645
      %2647 = vmatmul.bf16.gmra.mxu0 %v2587
      %v2648 = vpop.f32.mrf.mxu0
      %v2649 = vadd.f32 0.0, %v2648
      %v2650 = vpop.f32.mrf.mxu0
      %v2651 = vadd.f32 0.0, %v2650
      %2652 = vmatmul.bf16.gmra.mxu0 %v2590
      %v2653 = vpop.f32.mrf.mxu0
      %v2654 = vadd.f32 0.0, %v2653
      %v2655 = vpop.f32.mrf.mxu0
      %v2656 = vadd.f32 0.0, %v2655
      %2657 = vmatmul.bf16.gmra.mxu0 %v2593
      %v2658 = vpop.f32.mrf.mxu0
      %v2659 = vadd.f32 0.0, %v2658
      %v2660 = vpop.f32.mrf.mxu0
      %v2661 = vadd.f32 0.0, %v2660
      %2662 = vmatmul.bf16.gmra.mxu0 %v2596
      %v2663 = vpop.f32.mrf.mxu0
      %v2664 = vadd.f32 0.0, %v2663
      %v2665 = vpop.f32.mrf.mxu0
      %v2666 = vadd.f32 0.0, %v2665
      %2667 = vmatmul.bf16.gmra.mxu0 %v2599
      %v2668 = vpop.f32.mrf.mxu0
      %v2669 = vadd.f32 0.0, %v2668
      %v2670 = vpop.f32.mrf.mxu0
      %v2671 = vadd.f32 0.0, %v2670
      %2672 = vmatmul.bf16.gmra.mxu0 %v2602
      %v2673 = vpop.f32.mrf.mxu0
      %v2674 = vadd.f32 0.0, %v2673
      %v2675 = vpop.f32.mrf.mxu0
      %v2676 = vadd.f32 0.0, %v2675
      %2677 = vmatmul.bf16.gmra.mxu0 %v2605
      %v2678 = vpop.f32.mrf.mxu0
      %v2679 = vadd.f32 0.0, %v2678
      %v2680 = vpop.f32.mrf.mxu0
      %v2681 = vadd.f32 0.0, %v2680
      %2682 = vmatmul.bf16.gmra.mxu0 %v2608
      %v2683 = vpop.f32.mrf.mxu0
      %v2684 = vadd.f32 0.0, %v2683
      %v2685 = vpop.f32.mrf.mxu0
      %v2686 = vadd.f32 0.0, %v2685
      %2687 = vmatmul.bf16.gmra.mxu0 %v2611
      %v2688 = vpop.f32.mrf.mxu0
      %v2689 = vadd.f32 0.0, %v2688
      %v2690 = vpop.f32.mrf.mxu0
      %v2691 = vadd.f32 0.0, %v2690
      %2692 = vmatmul.bf16.gmra.mxu0 %v2614
      %v2693 = vpop.f32.mrf.mxu0
      %v2694 = vadd.f32 0.0, %v2693
      %v2695 = vpop.f32.mrf.mxu0
      %v2696 = vadd.f32 0.0, %v2695
      %2697 = vmatmul.bf16.gmra.mxu0 %v2617
      %v2698 = vpop.f32.mrf.mxu0
      %v2699 = vadd.f32 0.0, %v2698
      %v2700 = vpop.f32.mrf.mxu0
      %v2701 = vadd.f32 0.0, %v2700
      %2702 = vmatmul.bf16.gmra.mxu0 %v2620
      %v2703 = vpop.f32.mrf.mxu0
      %v2704 = vadd.f32 0.0, %v2703
      %v2705 = vpop.f32.mrf.mxu0
      %v2706 = vadd.f32 0.0, %v2705
      %2707 = vmatmul.bf16.gmra.mxu0 %v2623
      %v2708 = vpop.f32.mrf.mxu0
      %v2709 = vadd.f32 0.0, %v2708
      %v2710 = vpop.f32.mrf.mxu0
      %v2711 = vadd.f32 0.0, %v2710
      %2712 = vmatmul.bf16.gmra.mxu0 %v2626
      %v2713 = vpop.f32.mrf.mxu0
      %v2714 = vadd.f32 0.0, %v2713
      %v2715 = vpop.f32.mrf.mxu0
      %v2716 = vadd.f32 0.0, %v2715
      %2717 = vmatmul.bf16.gmra.mxu0 %v2629
      %v2718 = vpop.f32.mrf.mxu0
      %v2719 = vadd.f32 0.0, %v2718
      %v2720 = vpop.f32.mrf.mxu0
      %v2721 = vadd.f32 0.0, %v2720
      %2722 = vdwg.mxu0
      %v2723 = vadd.f32 %v2325, %v2644
      %v2724 = vadd.f32 %v2326, %v2646
      %v2725 = vadd.f32 %v2327, %v2649
      %v2726 = vadd.f32 %v2328, %v2651
      %v2727 = vadd.f32 %v2329, %v2654
      %v2728 = vadd.f32 %v2330, %v2656
      %v2729 = vadd.f32 %v2331, %v2659
      %v2730 = vadd.f32 %v2332, %v2661
      %v2731 = vadd.f32 %v2333, %v2664
      %v2732 = vadd.f32 %v2334, %v2666
      %v2733 = vadd.f32 %v2335, %v2669
      %v2734 = vadd.f32 %v2336, %v2671
      %v2735 = vadd.f32 %v2337, %v2674
      %v2736 = vadd.f32 %v2338, %v2676
      %v2737 = vadd.f32 %v2339, %v2679
      %v2738 = vadd.f32 %v2340, %v2681
      %v2739 = vadd.f32 %v2341, %v2684
      %v2740 = vadd.f32 %v2342, %v2686
      %v2741 = vadd.f32 %v2343, %v2689
      %v2742 = vadd.f32 %v2344, %v2691
      %v2743 = vadd.f32 %v2345, %v2694
      %v2744 = vadd.f32 %v2346, %v2696
      %v2745 = vadd.f32 %v2347, %v2699
      %v2746 = vadd.f32 %v2348, %v2701
      %v2747 = vadd.f32 %v2349, %v2704
      %v2748 = vadd.f32 %v2350, %v2706
      %v2749 = vadd.f32 %v2351, %v2709
      %v2750 = vadd.f32 %v2352, %v2711
      %v2751 = vadd.f32 %v2353, %v2714
      %v2752 = vadd.f32 %v2354, %v2716
      %v2753 = vadd.f32 %v2355, %v2719
      %v2754 = vadd.f32 %v2356, %v2721
      %s2755 = scalar_lea.vmem %s172, 24
      %v2756 = vld [vmem:[%s2755] sm:$0xf]
      %v2757 = vld [vmem:[%s2755 + $0x4] sm:$0xf]
      %v2758 = vld [vmem:[%s2755 + $0xc] sm:$0xf]
      %v2759 = vld [vmem:[%s2755 + $0x10] sm:$0xf]
      %v2760 = vld [vmem:[%s2755 + $0x18] sm:$0xf]
      %v2761 = vld [vmem:[%s2755 + $0x1c] sm:$0xf]
      %v2762 = vld [vmem:[%s2755 + $0x24] sm:$0xf]
      %v2763 = vld [vmem:[%s2755 + $0x28] sm:$0xf]
      %v2764 = vld [vmem:[%s2755 + $0x30] sm:$0xf]
      %v2765 = vld [vmem:[%s2755 + $0x34] sm:$0xf]
      %v2766 = vld [vmem:[%s2755 + $0x3c] sm:$0xf]
      %v2767 = vld [vmem:[%s2755 + $0x40] sm:$0xf]
      %v2768 = vld [vmem:[%s2755 + $0x48] sm:$0xf]
      %v2769 = vld [vmem:[%s2755 + $0x4c] sm:$0xf]
      %v2770 = vld [vmem:[%s2755 + $0x54] sm:$0xf]
      %v2771 = vld [vmem:[%s2755 + $0x58] sm:$0xf]
      %v2772 = vld [vmem:[%s2755 + $0x60] sm:$0xf]
      %v2773 = vld [vmem:[%s2755 + $0x64] sm:$0xf]
      %v2774 = vld [vmem:[%s2755 + $0x6c] sm:$0xf]
      %v2775 = vld [vmem:[%s2755 + $0x70] sm:$0xf]
      %v2776 = vld [vmem:[%s2755 + $0x78] sm:$0xf]
      %v2777 = vld [vmem:[%s2755 + $0x7c] sm:$0xf]
      %v2778 = vld [vmem:[%s2755 + $0x84] sm:$0xf]
      %v2779 = vld [vmem:[%s2755 + $0x88] sm:$0xf]
      %v2780 = vld [vmem:[%s2755 + $0x90] sm:$0xf]
      %v2781 = vld [vmem:[%s2755 + $0x94] sm:$0xf]
      %v2782 = vld [vmem:[%s2755 + $0x9c] sm:$0xf]
      %v2783 = vld [vmem:[%s2755 + $0xa0] sm:$0xf]
      %v2784 = vld [vmem:[%s2755 + $0xa8] sm:$0xf]
      %v2785 = vld [vmem:[%s2755 + $0xac] sm:$0xf]
      %v2786 = vld [vmem:[%s2755 + $0xb4] sm:$0xf]
      %v2787 = vld [vmem:[%s2755 + $0xb8] sm:$0xf]
      %s2788 = scalar_lea.vmem %s1, 12
      %v2789 = vld [vmem:[%s2788] sm:$0x3]
      %v2822 = vunpack.c.l.b16 %v2756
      %v2823 = vunpack.c.l.b16 %v2757
      %v2824 = vunpack.c.l.b16 %v2758
      %v2825 = vunpack.c.l.b16 %v2759
      %v2826 = vunpack.c.l.b16 %v2760
      %v2827 = vunpack.c.l.b16 %v2761
      %v2828 = vunpack.c.l.b16 %v2762
      %v2829 = vunpack.c.l.b16 %v2763
      %v2830 = vunpack.c.l.b16 %v2764
      %v2831 = vunpack.c.l.b16 %v2765
      %v2832 = vunpack.c.l.b16 %v2766
      %v2833 = vunpack.c.l.b16 %v2767
      %v2834 = vunpack.c.l.b16 %v2768
      %v2835 = vunpack.c.l.b16 %v2769
      %v2836 = vunpack.c.l.b16 %v2770
      %v2837 = vunpack.c.l.b16 %v2771
      %v2838 = vunpack.c.l.b16 %v2772
      %v2839 = vunpack.c.l.b16 %v2773
      %v2840 = vunpack.c.l.b16 %v2774
      %v2841 = vunpack.c.l.b16 %v2775
      %v2842 = vunpack.c.l.b16 %v2776
      %v2843 = vunpack.c.l.b16 %v2777
      %v2844 = vunpack.c.l.b16 %v2778
      %v2845 = vunpack.c.l.b16 %v2779
      %v2846 = vunpack.c.l.b16 %v2780
      %v2847 = vunpack.c.l.b16 %v2781
      %v2848 = vunpack.c.l.b16 %v2782
      %v2849 = vunpack.c.l.b16 %v2783
      %v2850 = vunpack.c.l.b16 %v2784
      %v2851 = vunpack.c.l.b16 %v2785
      %v2852 = vunpack.c.l.b16 %v2786
      %v2853 = vunpack.c.l.b16 %v2787
      %v2854 = vpack.c.b16 %v2823, %v2822
      %v2855 = vpack.c.b16 %v2825, %v2824
      %v2856 = vpack.c.b16 %v2827, %v2826
      %v2857 = vpack.c.b16 %v2829, %v2828
      %v2858 = vpack.c.b16 %v2831, %v2830
      %v2859 = vpack.c.b16 %v2833, %v2832
      %v2860 = vpack.c.b16 %v2835, %v2834
      %v2861 = vpack.c.b16 %v2837, %v2836
      %v2862 = vpack.c.b16 %v2839, %v2838
      %v2863 = vpack.c.b16 %v2841, %v2840
      %v2864 = vpack.c.b16 %v2843, %v2842
      %v2865 = vpack.c.b16 %v2845, %v2844
      %v2866 = vpack.c.b16 %v2847, %v2846
      %v2867 = vpack.c.b16 %v2849, %v2848
      %v2868 = vpack.c.b16 %v2851, %v2850
      %v2869 = vpack.c.b16 %v2853, %v2852
      %v2871 = vsel %vm669, %v2854, 0
      %v2874 = vsel %vm669, %v2855, 0
      %v2877 = vsel %vm669, %v2856, 0
      %v2880 = vsel %vm669, %v2857, 0
      %v2883 = vsel %vm669, %v2858, 0
      %v2886 = vsel %vm669, %v2859, 0
      %v2889 = vsel %vm669, %v2860, 0
      %v2892 = vsel %vm669, %v2861, 0
      %v2895 = vsel %vm669, %v2862, 0
      %v2898 = vsel %vm669, %v2863, 0
      %v2901 = vsel %vm669, %v2864, 0
      %v2904 = vsel %vm669, %v2865, 0
      %v2907 = vsel %vm669, %v2866, 0
      %v2910 = vsel %vm669, %v2867, 0
      %v2913 = vsel %vm669, %v2868, 0
      %v2916 = vsel %vm669, %v2869, 0
      %v2919 = vsel %vm718, %v2789, 0
      %2921 = vmatpush.bf16.msra.mxu0 0
      %2922 = vmatpush.bf16.msra.mxu0 0
      %2923 = vmatpush.bf16.msra.mxu0 0
      %2924 = vmatpush.bf16.msra.mxu0 0
      %2925 = vmatpush.bf16.msra.mxu0 0
      %2926 = vmatpush.bf16.msra.mxu0 0
      %2927 = vmatpush.bf16.msra.mxu0 0
      %2928 = vmatpush.bf16.msra.mxu0 %v2919
      %2929 = vmatmul.bf16.gmra.mxu0 %v2871
      %v2930 = vpop.f32.mrf.mxu0
      %v2931 = vadd.f32 0.0, %v2930
      %v2932 = vpop.f32.mrf.mxu0
      %v2933 = vadd.f32 0.0, %v2932
      %2934 = vmatmul.bf16.gmra.mxu0 %v2874
      %v2935 = vpop.f32.mrf.mxu0
      %v2936 = vadd.f32 0.0, %v2935
      %v2937 = vpop.f32.mrf.mxu0
      %v2938 = vadd.f32 0.0, %v2937
      %2939 = vmatmul.bf16.gmra.mxu0 %v2877
      %v2940 = vpop.f32.mrf.mxu0
      %v2941 = vadd.f32 0.0, %v2940
      %v2942 = vpop.f32.mrf.mxu0
      %v2943 = vadd.f32 0.0, %v2942
      %2944 = vmatmul.bf16.gmra.mxu0 %v2880
      %v2945 = vpop.f32.mrf.mxu0
      %v2946 = vadd.f32 0.0, %v2945
      %v2947 = vpop.f32.mrf.mxu0
      %v2948 = vadd.f32 0.0, %v2947
      %2949 = vmatmul.bf16.gmra.mxu0 %v2883
      %v2950 = vpop.f32.mrf.mxu0
      %v2951 = vadd.f32 0.0, %v2950
      %v2952 = vpop.f32.mrf.mxu0
      %v2953 = vadd.f32 0.0, %v2952
      %2954 = vmatmul.bf16.gmra.mxu0 %v2886
      %v2955 = vpop.f32.mrf.mxu0
      %v2956 = vadd.f32 0.0, %v2955
      %v2957 = vpop.f32.mrf.mxu0
      %v2958 = vadd.f32 0.0, %v2957
      %2959 = vmatmul.bf16.gmra.mxu0 %v2889
      %v2960 = vpop.f32.mrf.mxu0
      %v2961 = vadd.f32 0.0, %v2960
      %v2962 = vpop.f32.mrf.mxu0
      %v2963 = vadd.f32 0.0, %v2962
      %2964 = vmatmul.bf16.gmra.mxu0 %v2892
      %v2965 = vpop.f32.mrf.mxu0
      %v2966 = vadd.f32 0.0, %v2965
      %v2967 = vpop.f32.mrf.mxu0
      %v2968 = vadd.f32 0.0, %v2967
      %2969 = vmatmul.bf16.gmra.mxu0 %v2895
      %v2970 = vpop.f32.mrf.mxu0
      %v2971 = vadd.f32 0.0, %v2970
      %v2972 = vpop.f32.mrf.mxu0
      %v2973 = vadd.f32 0.0, %v2972
      %2974 = vmatmul.bf16.gmra.mxu0 %v2898
      %v2975 = vpop.f32.mrf.mxu0
      %v2976 = vadd.f32 0.0, %v2975
      %v2977 = vpop.f32.mrf.mxu0
      %v2978 = vadd.f32 0.0, %v2977
      %2979 = vmatmul.bf16.gmra.mxu0 %v2901
      %v2980 = vpop.f32.mrf.mxu0
      %v2981 = vadd.f32 0.0, %v2980
      %v2982 = vpop.f32.mrf.mxu0
      %v2983 = vadd.f32 0.0, %v2982
      %2984 = vmatmul.bf16.gmra.mxu0 %v2904
      %v2985 = vpop.f32.mrf.mxu0
      %v2986 = vadd.f32 0.0, %v2985
      %v2987 = vpop.f32.mrf.mxu0
      %v2988 = vadd.f32 0.0, %v2987
      %2989 = vmatmul.bf16.gmra.mxu0 %v2907
      %v2990 = vpop.f32.mrf.mxu0
      %v2991 = vadd.f32 0.0, %v2990
      %v2992 = vpop.f32.mrf.mxu0
      %v2993 = vadd.f32 0.0, %v2992
      %2994 = vmatmul.bf16.gmra.mxu0 %v2910
      %v2995 = vpop.f32.mrf.mxu0
      %v2996 = vadd.f32 0.0, %v2995
      %v2997 = vpop.f32.mrf.mxu0
      %v2998 = vadd.f32 0.0, %v2997
      %2999 = vmatmul.bf16.gmra.mxu0 %v2913
      %v3000 = vpop.f32.mrf.mxu0
      %v3001 = vadd.f32 0.0, %v3000
      %v3002 = vpop.f32.mrf.mxu0
      %v3003 = vadd.f32 0.0, %v3002
      %3004 = vmatmul.bf16.gmra.mxu0 %v2916
      %v3005 = vpop.f32.mrf.mxu0
      %v3006 = vadd.f32 0.0, %v3005
      %v3007 = vpop.f32.mrf.mxu0
      %v3008 = vadd.f32 0.0, %v3007
      %3009 = vdwg.mxu0
      %v3010 = vadd.f32 %v2723, %v2931
      %v3011 = vadd.f32 %v2724, %v2933
      %v3012 = vadd.f32 %v2725, %v2936
      %v3013 = vadd.f32 %v2726, %v2938
      %v3014 = vadd.f32 %v2727, %v2941
      %v3015 = vadd.f32 %v2728, %v2943
      %v3016 = vadd.f32 %v2729, %v2946
      %v3017 = vadd.f32 %v2730, %v2948
      %v3018 = vadd.f32 %v2731, %v2951
      %v3019 = vadd.f32 %v2732, %v2953
      %v3020 = vadd.f32 %v2733, %v2956
      %v3021 = vadd.f32 %v2734, %v2958
      %v3022 = vadd.f32 %v2735, %v2961
      %v3023 = vadd.f32 %v2736, %v2963
      %v3024 = vadd.f32 %v2737, %v2966
      %v3025 = vadd.f32 %v2738, %v2968
      %v3026 = vadd.f32 %v2739, %v2971
      %v3027 = vadd.f32 %v2740, %v2973
      %v3028 = vadd.f32 %v2741, %v2976
      %v3029 = vadd.f32 %v2742, %v2978
      %v3030 = vadd.f32 %v2743, %v2981
      %v3031 = vadd.f32 %v2744, %v2983
      %v3032 = vadd.f32 %v2745, %v2986
      %v3033 = vadd.f32 %v2746, %v2988
      %v3034 = vadd.f32 %v2747, %v2991
      %v3035 = vadd.f32 %v2748, %v2993
      %v3036 = vadd.f32 %v2749, %v2996
      %v3037 = vadd.f32 %v2750, %v2998
      %v3038 = vadd.f32 %v2751, %v3001
      %v3039 = vadd.f32 %v2752, %v3003
      %v3040 = vadd.f32 %v2753, %v3006
      %v3041 = vadd.f32 %v2754, %v3008
      %v3042 = vld [vmem:[%s2755] sm:$0xf]
      %v3043 = vld [vmem:[%s2755 + $0x4] sm:$0xf]
      %v3044 = vld [vmem:[%s2755 + $0x8] sm:$0x1]
      %v3045 = vld [vmem:[%s2755 + $0xc] sm:$0xf]
      %v3046 = vld [vmem:[%s2755 + $0x10] sm:$0xf]
      %v3047 = vld [vmem:[%s2755 + $0x14] sm:$0x1]
      %v3048 = vld [vmem:[%s2755 + $0x18] sm:$0xf]
      %v3049 = vld [vmem:[%s2755 + $0x1c] sm:$0xf]
      %v3050 = vld [vmem:[%s2755 + $0x20] sm:$0x1]
      %v3051 = vld [vmem:[%s2755 + $0x24] sm:$0xf]
      %v3052 = vld [vmem:[%s2755 + $0x28] sm:$0xf]
      %v3053 = vld [vmem:[%s2755 + $0x2c] sm:$0x1]
      %v3054 = vld [vmem:[%s2755 + $0x30] sm:$0xf]
      %v3055 = vld [vmem:[%s2755 + $0x34] sm:$0xf]
      %v3056 = vld [vmem:[%s2755 + $0x38] sm:$0x1]
      %v3057 = vld [vmem:[%s2755 + $0x3c] sm:$0xf]
      %v3058 = vld [vmem:[%s2755 + $0x40] sm:$0xf]
      %v3059 = vld [vmem:[%s2755 + $0x44] sm:$0x1]
      %v3060 = vld [vmem:[%s2755 + $0x48] sm:$0xf]
      %v3061 = vld [vmem:[%s2755 + $0x4c] sm:$0xf]
      %v3062 = vld [vmem:[%s2755 + $0x50] sm:$0x1]
      %v3063 = vld [vmem:[%s2755 + $0x54] sm:$0xf]
      %v3064 = vld [vmem:[%s2755 + $0x58] sm:$0xf]
      %v3065 = vld [vmem:[%s2755 + $0x5c] sm:$0x1]
      %v3066 = vld [vmem:[%s2755 + $0x60] sm:$0xf]
      %v3067 = vld [vmem:[%s2755 + $0x64] sm:$0xf]
      %v3068 = vld [vmem:[%s2755 + $0x68] sm:$0x1]
      %v3069 = vld [vmem:[%s2755 + $0x6c] sm:$0xf]
      %v3070 = vld [vmem:[%s2755 + $0x70] sm:$0xf]
      %v3071 = vld [vmem:[%s2755 + $0x74] sm:$0x1]
      %v3072 = vld [vmem:[%s2755 + $0x78] sm:$0xf]
      %v3073 = vld [vmem:[%s2755 + $0x7c] sm:$0xf]
      %v3074 = vld [vmem:[%s2755 + $0x80] sm:$0x1]
      %v3075 = vld [vmem:[%s2755 + $0x84] sm:$0xf]
      %v3076 = vld [vmem:[%s2755 + $0x88] sm:$0xf]
      %v3077 = vld [vmem:[%s2755 + $0x8c] sm:$0x1]
      %v3078 = vld [vmem:[%s2755 + $0x90] sm:$0xf]
      %v3079 = vld [vmem:[%s2755 + $0x94] sm:$0xf]
      %v3080 = vld [vmem:[%s2755 + $0x98] sm:$0x1]
      %v3081 = vld [vmem:[%s2755 + $0x9c] sm:$0xf]
      %v3082 = vld [vmem:[%s2755 + $0xa0] sm:$0xf]
      %v3083 = vld [vmem:[%s2755 + $0xa4] sm:$0x1]
      %v3084 = vld [vmem:[%s2755 + $0xa8] sm:$0xf]
      %v3085 = vld [vmem:[%s2755 + $0xac] sm:$0xf]
      %v3086 = vld [vmem:[%s2755 + $0xb0] sm:$0x1]
      %v3087 = vld [vmem:[%s2755 + $0xb4] sm:$0xf]
      %v3088 = vld [vmem:[%s2755 + $0xb8] sm:$0xf]
      %v3089 = vld [vmem:[%s2755 + $0xbc] sm:$0x1]
      %v3091 = vshrl.u32 %v3042, 16
      %v3093 = vrot.slane %v3091, 4
      %v3094 = vshll.u32 %v3042, 16
      %v3096 = vrot.slane %v3094, 5
      %v3097 = vor.u32 %v3093, %v3096
      %v3098 = vrot.slane %v3097, 4
      %v3100 = vshll.u32 %v3043, 16
      %v3102 = vrot.slane %v3100, 5
      %v3103 = vsel %vm234, %v3098, %v3102
      %v3104 = vshrl.u32 %v3043, 16
      %v3106 = vrot.slane %v3104, 4
      %v3107 = vor.u32 %v3106, %v3102
      %v3108 = vrot.slane %v3107, 4
      %v3110 = vshll.u32 %v3044, 16
      %v3112 = vrot.slane %v3110, 5
      %v3113 = vsel %vm234, %v3108, %v3112
      %v3115 = vshrl.u32 %v3045, 16
      %v3117 = vrot.slane %v3115, 4
      %v3118 = vshll.u32 %v3045, 16
      %v3120 = vrot.slane %v3118, 5
      %v3121 = vor.u32 %v3117, %v3120
      %v3122 = vrot.slane %v3121, 4
      %v3124 = vshll.u32 %v3046, 16
      %v3126 = vrot.slane %v3124, 5
      %v3127 = vsel %vm234, %v3122, %v3126
      %v3128 = vshrl.u32 %v3046, 16
      %v3130 = vrot.slane %v3128, 4
      %v3131 = vor.u32 %v3130, %v3126
      %v3132 = vrot.slane %v3131, 4
      %v3134 = vshll.u32 %v3047, 16
      %v3136 = vrot.slane %v3134, 5
      %v3137 = vsel %vm234, %v3132, %v3136
      %v3139 = vshrl.u32 %v3048, 16
      %v3141 = vrot.slane %v3139, 4
      %v3142 = vshll.u32 %v3048, 16
      %v3144 = vrot.slane %v3142, 5
      %v3145 = vor.u32 %v3141, %v3144
      %v3146 = vrot.slane %v3145, 4
      %v3148 = vshll.u32 %v3049, 16
      %v3150 = vrot.slane %v3148, 5
      %v3151 = vsel %vm234, %v3146, %v3150
      %v3152 = vshrl.u32 %v3049, 16
      %v3154 = vrot.slane %v3152, 4
      %v3155 = vor.u32 %v3154, %v3150
      %v3156 = vrot.slane %v3155, 4
      %v3158 = vshll.u32 %v3050, 16
      %v3160 = vrot.slane %v3158, 5
      %v3161 = vsel %vm234, %v3156, %v3160
      %v3163 = vshrl.u32 %v3051, 16
      %v3165 = vrot.slane %v3163, 4
      %v3166 = vshll.u32 %v3051, 16
      %v3168 = vrot.slane %v3166, 5
      %v3169 = vor.u32 %v3165, %v3168
      %v3170 = vrot.slane %v3169, 4
      %v3172 = vshll.u32 %v3052, 16
      %v3174 = vrot.slane %v3172, 5
      %v3175 = vsel %vm234, %v3170, %v3174
      %v3176 = vshrl.u32 %v3052, 16
      %v3178 = vrot.slane %v3176, 4
      %v3179 = vor.u32 %v3178, %v3174
      %v3180 = vrot.slane %v3179, 4
      %v3182 = vshll.u32 %v3053, 16
      %v3184 = vrot.slane %v3182, 5
      %v3185 = vsel %vm234, %v3180, %v3184
      %v3187 = vshrl.u32 %v3054, 16
      %v3189 = vrot.slane %v3187, 4
      %v3190 = vshll.u32 %v3054, 16
      %v3192 = vrot.slane %v3190, 5
      %v3193 = vor.u32 %v3189, %v3192
      %v3194 = vrot.slane %v3193, 4
      %v3196 = vshll.u32 %v3055, 16
      %v3198 = vrot.slane %v3196, 5
      %v3199 = vsel %vm234, %v3194, %v3198
      %v3200 = vshrl.u32 %v3055, 16
      %v3202 = vrot.slane %v3200, 4
      %v3203 = vor.u32 %v3202, %v3198
      %v3204 = vrot.slane %v3203, 4
      %v3206 = vshll.u32 %v3056, 16
      %v3208 = vrot.slane %v3206, 5
      %v3209 = vsel %vm234, %v3204, %v3208
      %v3211 = vshrl.u32 %v3057, 16
      %v3213 = vrot.slane %v3211, 4
      %v3214 = vshll.u32 %v3057, 16
      %v3216 = vrot.slane %v3214, 5
      %v3217 = vor.u32 %v3213, %v3216
      %v3218 = vrot.slane %v3217, 4
      %v3220 = vshll.u32 %v3058, 16
      %v3222 = vrot.slane %v3220, 5
      %v3223 = vsel %vm234, %v3218, %v3222
      %v3224 = vshrl.u32 %v3058, 16
      %v3226 = vrot.slane %v3224, 4
      %v3227 = vor.u32 %v3226, %v3222
      %v3228 = vrot.slane %v3227, 4
      %v3230 = vshll.u32 %v3059, 16
      %v3232 = vrot.slane %v3230, 5
      %v3233 = vsel %vm234, %v3228, %v3232
      %v3235 = vshrl.u32 %v3060, 16
      %v3237 = vrot.slane %v3235, 4
      %v3238 = vshll.u32 %v3060, 16
      %v3240 = vrot.slane %v3238, 5
      %v3241 = vor.u32 %v3237, %v3240
      %v3242 = vrot.slane %v3241, 4
      %v3244 = vshll.u32 %v3061, 16
      %v3246 = vrot.slane %v3244, 5
      %v3247 = vsel %vm234, %v3242, %v3246
      %v3248 = vshrl.u32 %v3061, 16
      %v3250 = vrot.slane %v3248, 4
      %v3251 = vor.u32 %v3250, %v3246
      %v3252 = vrot.slane %v3251, 4
      %v3254 = vshll.u32 %v3062, 16
      %v3256 = vrot.slane %v3254, 5
      %v3257 = vsel %vm234, %v3252, %v3256
      %v3259 = vshrl.u32 %v3063, 16
      %v3261 = vrot.slane %v3259, 4
      %v3262 = vshll.u32 %v3063, 16
      %v3264 = vrot.slane %v3262, 5
      %v3265 = vor.u32 %v3261, %v3264
      %v3266 = vrot.slane %v3265, 4
      %v3268 = vshll.u32 %v3064, 16
      %v3270 = vrot.slane %v3268, 5
      %v3271 = vsel %vm234, %v3266, %v3270
      %v3272 = vshrl.u32 %v3064, 16
      %v3274 = vrot.slane %v3272, 4
      %v3275 = vor.u32 %v3274, %v3270
      %v3276 = vrot.slane %v3275, 4
      %v3278 = vshll.u32 %v3065, 16
      %v3280 = vrot.slane %v3278, 5
      %v3281 = vsel %vm234, %v3276, %v3280
      %v3283 = vshrl.u32 %v3066, 16
      %v3285 = vrot.slane %v3283, 4
      %v3286 = vshll.u32 %v3066, 16
      %v3288 = vrot.slane %v3286, 5
      %v3289 = vor.u32 %v3285, %v3288
      %v3290 = vrot.slane %v3289, 4
      %v3292 = vshll.u32 %v3067, 16
      %v3294 = vrot.slane %v3292, 5
      %v3295 = vsel %vm234, %v3290, %v3294
      %v3296 = vshrl.u32 %v3067, 16
      %v3298 = vrot.slane %v3296, 4
      %v3299 = vor.u32 %v3298, %v3294
      %v3300 = vrot.slane %v3299, 4
      %v3302 = vshll.u32 %v3068, 16
      %v3304 = vrot.slane %v3302, 5
      %v3305 = vsel %vm234, %v3300, %v3304
      %v3307 = vshrl.u32 %v3069, 16
      %v3309 = vrot.slane %v3307, 4
      %v3310 = vshll.u32 %v3069, 16
      %v3312 = vrot.slane %v3310, 5
      %v3313 = vor.u32 %v3309, %v3312
      %v3314 = vrot.slane %v3313, 4
      %v3316 = vshll.u32 %v3070, 16
      %v3318 = vrot.slane %v3316, 5
      %v3319 = vsel %vm234, %v3314, %v3318
      %v3320 = vshrl.u32 %v3070, 16
      %v3322 = vrot.slane %v3320, 4
      %v3323 = vor.u32 %v3322, %v3318
      %v3324 = vrot.slane %v3323, 4
      %v3326 = vshll.u32 %v3071, 16
      %v3328 = vrot.slane %v3326, 5
      %v3329 = vsel %vm234, %v3324, %v3328
      %v3331 = vshrl.u32 %v3072, 16
      %v3333 = vrot.slane %v3331, 4
      %v3334 = vshll.u32 %v3072, 16
      %v3336 = vrot.slane %v3334, 5
      %v3337 = vor.u32 %v3333, %v3336
      %v3338 = vrot.slane %v3337, 4
      %v3340 = vshll.u32 %v3073, 16
      %v3342 = vrot.slane %v3340, 5
      %v3343 = vsel %vm234, %v3338, %v3342
      %v3344 = vshrl.u32 %v3073, 16
      %v3346 = vrot.slane %v3344, 4
      %v3347 = vor.u32 %v3346, %v3342
      %v3348 = vrot.slane %v3347, 4
      %v3350 = vshll.u32 %v3074, 16
      %v3352 = vrot.slane %v3350, 5
      %v3353 = vsel %vm234, %v3348, %v3352
      %v3355 = vshrl.u32 %v3075, 16
      %v3357 = vrot.slane %v3355, 4
      %v3358 = vshll.u32 %v3075, 16
      %v3360 = vrot.slane %v3358, 5
      %v3361 = vor.u32 %v3357, %v3360
      %v3362 = vrot.slane %v3361, 4
      %v3364 = vshll.u32 %v3076, 16
      %v3366 = vrot.slane %v3364, 5
      %v3367 = vsel %vm234, %v3362, %v3366
      %v3368 = vshrl.u32 %v3076, 16
      %v3370 = vrot.slane %v3368, 4
      %v3371 = vor.u32 %v3370, %v3366
      %v3372 = vrot.slane %v3371, 4
      %v3374 = vshll.u32 %v3077, 16
      %v3376 = vrot.slane %v3374, 5
      %v3377 = vsel %vm234, %v3372, %v3376
      %v3379 = vshrl.u32 %v3078, 16
      %v3381 = vrot.slane %v3379, 4
      %v3382 = vshll.u32 %v3078, 16
      %v3384 = vrot.slane %v3382, 5
      %v3385 = vor.u32 %v3381, %v3384
      %v3386 = vrot.slane %v3385, 4
      %v3388 = vshll.u32 %v3079, 16
      %v3390 = vrot.slane %v3388, 5
      %v3391 = vsel %vm234, %v3386, %v3390
      %v3392 = vshrl.u32 %v3079, 16
      %v3394 = vrot.slane %v3392, 4
      %v3395 = vor.u32 %v3394, %v3390
      %v3396 = vrot.slane %v3395, 4
      %v3398 = vshll.u32 %v3080, 16
      %v3400 = vrot.slane %v3398, 5
      %v3401 = vsel %vm234, %v3396, %v3400
      %v3403 = vshrl.u32 %v3081, 16
      %v3405 = vrot.slane %v3403, 4
      %v3406 = vshll.u32 %v3081, 16
      %v3408 = vrot.slane %v3406, 5
      %v3409 = vor.u32 %v3405, %v3408
      %v3410 = vrot.slane %v3409, 4
      %v3412 = vshll.u32 %v3082, 16
      %v3414 = vrot.slane %v3412, 5
      %v3415 = vsel %vm234, %v3410, %v3414
      %v3416 = vshrl.u32 %v3082, 16
      %v3418 = vrot.slane %v3416, 4
      %v3419 = vor.u32 %v3418, %v3414
      %v3420 = vrot.slane %v3419, 4
      %v3422 = vshll.u32 %v3083, 16
      %v3424 = vrot.slane %v3422, 5
      %v3425 = vsel %vm234, %v3420, %v3424
      %v3427 = vshrl.u32 %v3084, 16
      %v3429 = vrot.slane %v3427, 4
      %v3430 = vshll.u32 %v3084, 16
      %v3432 = vrot.slane %v3430, 5
      %v3433 = vor.u32 %v3429, %v3432
      %v3434 = vrot.slane %v3433, 4
      %v3436 = vshll.u32 %v3085, 16
      %v3438 = vrot.slane %v3436, 5
      %v3439 = vsel %vm234, %v3434, %v3438
      %v3440 = vshrl.u32 %v3085, 16
      %v3442 = vrot.slane %v3440, 4
      %v3443 = vor.u32 %v3442, %v3438
      %v3444 = vrot.slane %v3443, 4
      %v3446 = vshll.u32 %v3086, 16
      %v3448 = vrot.slane %v3446, 5
      %v3449 = vsel %vm234, %v3444, %v3448
      %v3451 = vshrl.u32 %v3087, 16
      %v3453 = vrot.slane %v3451, 4
      %v3454 = vshll.u32 %v3087, 16
      %v3456 = vrot.slane %v3454, 5
      %v3457 = vor.u32 %v3453, %v3456
      %v3458 = vrot.slane %v3457, 4
      %v3460 = vshll.u32 %v3088, 16
      %v3462 = vrot.slane %v3460, 5
      %v3463 = vsel %vm234, %v3458, %v3462
      %v3464 = vshrl.u32 %v3088, 16
      %v3466 = vrot.slane %v3464, 4
      %v3467 = vor.u32 %v3466, %v3462
      %v3468 = vrot.slane %v3467, 4
      %v3470 = vshll.u32 %v3089, 16
      %v3472 = vrot.slane %v3470, 5
      %v3473 = vsel %vm234, %v3468, %v3472
      %s3474 = scalar_lea.vmem %s1, 14
      %v3475 = vld [vmem:[%s3474] sm:$0x3]
      %v3476 = vunpack.c.l.b16 %v3103
      %v3477 = vunpack.c.l.b16 %v3113
      %v3478 = vunpack.c.l.b16 %v3127
      %v3479 = vunpack.c.l.b16 %v3137
      %v3480 = vunpack.c.l.b16 %v3151
      %v3481 = vunpack.c.l.b16 %v3161
      %v3482 = vunpack.c.l.b16 %v3175
      %v3483 = vunpack.c.l.b16 %v3185
      %v3484 = vunpack.c.l.b16 %v3199
      %v3485 = vunpack.c.l.b16 %v3209
      %v3486 = vunpack.c.l.b16 %v3223
      %v3487 = vunpack.c.l.b16 %v3233
      %v3488 = vunpack.c.l.b16 %v3247
      %v3489 = vunpack.c.l.b16 %v3257
      %v3490 = vunpack.c.l.b16 %v3271
      %v3491 = vunpack.c.l.b16 %v3281
      %v3492 = vunpack.c.l.b16 %v3295
      %v3493 = vunpack.c.l.b16 %v3305
      %v3494 = vunpack.c.l.b16 %v3319
      %v3495 = vunpack.c.l.b16 %v3329
      %v3496 = vunpack.c.l.b16 %v3343
      %v3497 = vunpack.c.l.b16 %v3353
      %v3498 = vunpack.c.l.b16 %v3367
      %v3499 = vunpack.c.l.b16 %v3377
      %v3500 = vunpack.c.l.b16 %v3391
      %v3501 = vunpack.c.l.b16 %v3401
      %v3502 = vunpack.c.l.b16 %v3415
      %v3503 = vunpack.c.l.b16 %v3425
      %v3504 = vunpack.c.l.b16 %v3439
      %v3505 = vunpack.c.l.b16 %v3449
      %v3506 = vunpack.c.l.b16 %v3463
      %v3507 = vunpack.c.l.b16 %v3473
      %v3508 = vpack.c.b16 %v3477, %v3476
      %v3509 = vpack.c.b16 %v3479, %v3478
      %v3510 = vpack.c.b16 %v3481, %v3480
      %v3511 = vpack.c.b16 %v3483, %v3482
      %v3512 = vpack.c.b16 %v3485, %v3484
      %v3513 = vpack.c.b16 %v3487, %v3486
      %v3514 = vpack.c.b16 %v3489, %v3488
      %v3515 = vpack.c.b16 %v3491, %v3490
      %v3516 = vpack.c.b16 %v3493, %v3492
      %v3517 = vpack.c.b16 %v3495, %v3494
      %v3518 = vpack.c.b16 %v3497, %v3496
      %v3519 = vpack.c.b16 %v3499, %v3498
      %v3520 = vpack.c.b16 %v3501, %v3500
      %v3521 = vpack.c.b16 %v3503, %v3502
      %v3522 = vpack.c.b16 %v3505, %v3504
      %v3523 = vpack.c.b16 %v3507, %v3506
      %v3525 = vsel %vm669, %v3508, 0
      %v3528 = vsel %vm669, %v3509, 0
      %v3531 = vsel %vm669, %v3510, 0
      %v3534 = vsel %vm669, %v3511, 0
      %v3537 = vsel %vm669, %v3512, 0
      %v3540 = vsel %vm669, %v3513, 0
      %v3543 = vsel %vm669, %v3514, 0
      %v3546 = vsel %vm669, %v3515, 0
      %v3549 = vsel %vm669, %v3516, 0
      %v3552 = vsel %vm669, %v3517, 0
      %v3555 = vsel %vm669, %v3518, 0
      %v3558 = vsel %vm669, %v3519, 0
      %v3561 = vsel %vm669, %v3520, 0
      %v3564 = vsel %vm669, %v3521, 0
      %v3567 = vsel %vm669, %v3522, 0
      %v3570 = vsel %vm669, %v3523, 0
      %v3573 = vsel %vm718, %v3475, 0
      %3575 = vmatpush.bf16.msra.mxu0 0
      %3576 = vmatpush.bf16.msra.mxu0 0
      %3577 = vmatpush.bf16.msra.mxu0 0
      %3578 = vmatpush.bf16.msra.mxu0 0
      %3579 = vmatpush.bf16.msra.mxu0 0
      %3580 = vmatpush.bf16.msra.mxu0 0
      %3581 = vmatpush.bf16.msra.mxu0 0
      %3582 = vmatpush.bf16.msra.mxu0 %v3573
      %3583 = vmatmul.bf16.gmra.mxu0 %v3525
      %v3584 = vpop.f32.mrf.mxu0
      %v3585 = vadd.f32 0.0, %v3584
      %v3586 = vpop.f32.mrf.mxu0
      %v3587 = vadd.f32 0.0, %v3586
      %3588 = vmatmul.bf16.gmra.mxu0 %v3528
      %v3589 = vpop.f32.mrf.mxu0
      %v3590 = vadd.f32 0.0, %v3589
      %v3591 = vpop.f32.mrf.mxu0
      %v3592 = vadd.f32 0.0, %v3591
      %3593 = vmatmul.bf16.gmra.mxu0 %v3531
      %v3594 = vpop.f32.mrf.mxu0
      %v3595 = vadd.f32 0.0, %v3594
      %v3596 = vpop.f32.mrf.mxu0
      %v3597 = vadd.f32 0.0, %v3596
      %3598 = vmatmul.bf16.gmra.mxu0 %v3534
      %v3599 = vpop.f32.mrf.mxu0
      %v3600 = vadd.f32 0.0, %v3599
      %v3601 = vpop.f32.mrf.mxu0
      %v3602 = vadd.f32 0.0, %v3601
      %3603 = vmatmul.bf16.gmra.mxu0 %v3537
      %v3604 = vpop.f32.mrf.mxu0
      %v3605 = vadd.f32 0.0, %v3604
      %v3606 = vpop.f32.mrf.mxu0
      %v3607 = vadd.f32 0.0, %v3606
      %3608 = vmatmul.bf16.gmra.mxu0 %v3540
      %v3609 = vpop.f32.mrf.mxu0
      %v3610 = vadd.f32 0.0, %v3609
      %v3611 = vpop.f32.mrf.mxu0
      %v3612 = vadd.f32 0.0, %v3611
      %3613 = vmatmul.bf16.gmra.mxu0 %v3543
      %v3614 = vpop.f32.mrf.mxu0
      %v3615 = vadd.f32 0.0, %v3614
      %v3616 = vpop.f32.mrf.mxu0
      %v3617 = vadd.f32 0.0, %v3616
      %3618 = vmatmul.bf16.gmra.mxu0 %v3546
      %v3619 = vpop.f32.mrf.mxu0
      %v3620 = vadd.f32 0.0, %v3619
      %v3621 = vpop.f32.mrf.mxu0
      %v3622 = vadd.f32 0.0, %v3621
      %3623 = vmatmul.bf16.gmra.mxu0 %v3549
      %v3624 = vpop.f32.mrf.mxu0
      %v3625 = vadd.f32 0.0, %v3624
      %v3626 = vpop.f32.mrf.mxu0
      %v3627 = vadd.f32 0.0, %v3626
      %3628 = vmatmul.bf16.gmra.mxu0 %v3552
      %v3629 = vpop.f32.mrf.mxu0
      %v3630 = vadd.f32 0.0, %v3629
      %v3631 = vpop.f32.mrf.mxu0
      %v3632 = vadd.f32 0.0, %v3631
      %3633 = vmatmul.bf16.gmra.mxu0 %v3555
      %v3634 = vpop.f32.mrf.mxu0
      %v3635 = vadd.f32 0.0, %v3634
      %v3636 = vpop.f32.mrf.mxu0
      %v3637 = vadd.f32 0.0, %v3636
      %3638 = vmatmul.bf16.gmra.mxu0 %v3558
      %v3639 = vpop.f32.mrf.mxu0
      %v3640 = vadd.f32 0.0, %v3639
      %v3641 = vpop.f32.mrf.mxu0
      %v3642 = vadd.f32 0.0, %v3641
      %3643 = vmatmul.bf16.gmra.mxu0 %v3561
      %v3644 = vpop.f32.mrf.mxu0
      %v3645 = vadd.f32 0.0, %v3644
      %v3646 = vpop.f32.mrf.mxu0
      %v3647 = vadd.f32 0.0, %v3646
      %3648 = vmatmul.bf16.gmra.mxu0 %v3564
      %v3649 = vpop.f32.mrf.mxu0
      %v3650 = vadd.f32 0.0, %v3649
      %v3651 = vpop.f32.mrf.mxu0
      %v3652 = vadd.f32 0.0, %v3651
      %3653 = vmatmul.bf16.gmra.mxu0 %v3567
      %v3654 = vpop.f32.mrf.mxu0
      %v3655 = vadd.f32 0.0, %v3654
      %v3656 = vpop.f32.mrf.mxu0
      %v3657 = vadd.f32 0.0, %v3656
      %3658 = vmatmul.bf16.gmra.mxu0 %v3570
      %v3659 = vpop.f32.mrf.mxu0
      %v3660 = vadd.f32 0.0, %v3659
      %v3661 = vpop.f32.mrf.mxu0
      %v3662 = vadd.f32 0.0, %v3661
      %3663 = vdwg.mxu0
      %v3664 = vadd.f32 %v3010, %v3585
      %v3665 = vadd.f32 %v3011, %v3587
      %v3666 = vadd.f32 %v3012, %v3590
      %v3667 = vadd.f32 %v3013, %v3592
      %v3668 = vadd.f32 %v3014, %v3595
      %v3669 = vadd.f32 %v3015, %v3597
      %v3670 = vadd.f32 %v3016, %v3600
      %v3671 = vadd.f32 %v3017, %v3602
      %v3672 = vadd.f32 %v3018, %v3605
      %v3673 = vadd.f32 %v3019, %v3607
      %v3674 = vadd.f32 %v3020, %v3610
      %v3675 = vadd.f32 %v3021, %v3612
      %v3676 = vadd.f32 %v3022, %v3615
      %v3677 = vadd.f32 %v3023, %v3617
      %v3678 = vadd.f32 %v3024, %v3620
      %v3679 = vadd.f32 %v3025, %v3622
      %v3680 = vadd.f32 %v3026, %v3625
      %v3681 = vadd.f32 %v3027, %v3627
      %v3682 = vadd.f32 %v3028, %v3630
      %v3683 = vadd.f32 %v3029, %v3632
      %v3684 = vadd.f32 %v3030, %v3635
      %v3685 = vadd.f32 %v3031, %v3637
      %v3686 = vadd.f32 %v3032, %v3640
      %v3687 = vadd.f32 %v3033, %v3642
      %v3688 = vadd.f32 %v3034, %v3645
      %v3689 = vadd.f32 %v3035, %v3647
      %v3690 = vadd.f32 %v3036, %v3650
      %v3691 = vadd.f32 %v3037, %v3652
      %v3692 = vadd.f32 %v3038, %v3655
      %v3693 = vadd.f32 %v3039, %v3657
      %v3694 = vadd.f32 %v3040, %v3660
      %v3695 = vadd.f32 %v3041, %v3662
      %v3696 = vld [vmem:[%s2755] sm:$0xe]
      %v3697 = vld [vmem:[%s2755 + $0xc] sm:$0xe]
      %v3698 = vld [vmem:[%s2755 + $0x18] sm:$0xe]
      %v3699 = vld [vmem:[%s2755 + $0x24] sm:$0xe]
      %v3700 = vld [vmem:[%s2755 + $0x30] sm:$0xe]
      %v3701 = vld [vmem:[%s2755 + $0x3c] sm:$0xe]
      %v3702 = vld [vmem:[%s2755 + $0x48] sm:$0xe]
      %v3703 = vld [vmem:[%s2755 + $0x54] sm:$0xe]
      %v3704 = vld [vmem:[%s2755 + $0x60] sm:$0xe]
      %v3705 = vld [vmem:[%s2755 + $0x6c] sm:$0xe]
      %v3706 = vld [vmem:[%s2755 + $0x78] sm:$0xe]
      %v3707 = vld [vmem:[%s2755 + $0x84] sm:$0xe]
      %v3708 = vld [vmem:[%s2755 + $0x90] sm:$0xe]
      %v3709 = vld [vmem:[%s2755 + $0x9c] sm:$0xe]
      %v3710 = vld [vmem:[%s2755 + $0xa8] sm:$0xe]
      %v3711 = vld [vmem:[%s2755 + $0xb4] sm:$0xe]
      %v3760 = vrot.slane %v3696, 5
      %v3761 = vrot.slane %v3760, 4
      %v3762 = vrot.slane %v3043, 5
      %v3763 = vsel %vm1081, %v3761, %v3762
      %v3764 = vrot.slane %v3762, 4
      %v3765 = vrot.slane %v3044, 5
      %v3766 = vsel %vm1081, %v3764, %v3765
      %v3767 = vrot.slane %v3697, 5
      %v3768 = vrot.slane %v3767, 4
      %v3769 = vrot.slane %v3046, 5
      %v3770 = vsel %vm1081, %v3768, %v3769
      %v3771 = vrot.slane %v3769, 4
      %v3772 = vrot.slane %v3047, 5
      %v3773 = vsel %vm1081, %v3771, %v3772
      %v3774 = vrot.slane %v3698, 5
      %v3775 = vrot.slane %v3774, 4
      %v3776 = vrot.slane %v3049, 5
      %v3777 = vsel %vm1081, %v3775, %v3776
      %v3778 = vrot.slane %v3776, 4
      %v3779 = vrot.slane %v3050, 5
      %v3780 = vsel %vm1081, %v3778, %v3779
      %v3781 = vrot.slane %v3699, 5
      %v3782 = vrot.slane %v3781, 4
      %v3783 = vrot.slane %v3052, 5
      %v3784 = vsel %vm1081, %v3782, %v3783
      %v3785 = vrot.slane %v3783, 4
      %v3786 = vrot.slane %v3053, 5
      %v3787 = vsel %vm1081, %v3785, %v3786
      %v3788 = vrot.slane %v3700, 5
      %v3789 = vrot.slane %v3788, 4
      %v3790 = vrot.slane %v3055, 5
      %v3791 = vsel %vm1081, %v3789, %v3790
      %v3792 = vrot.slane %v3790, 4
      %v3793 = vrot.slane %v3056, 5
      %v3794 = vsel %vm1081, %v3792, %v3793
      %v3795 = vrot.slane %v3701, 5
      %v3796 = vrot.slane %v3795, 4
      %v3797 = vrot.slane %v3058, 5
      %v3798 = vsel %vm1081, %v3796, %v3797
      %v3799 = vrot.slane %v3797, 4
      %v3800 = vrot.slane %v3059, 5
      %v3801 = vsel %vm1081, %v3799, %v3800
      %v3802 = vrot.slane %v3702, 5
      %v3803 = vrot.slane %v3802, 4
      %v3804 = vrot.slane %v3061, 5
      %v3805 = vsel %vm1081, %v3803, %v3804
      %v3806 = vrot.slane %v3804, 4
      %v3807 = vrot.slane %v3062, 5
      %v3808 = vsel %vm1081, %v3806, %v3807
      %v3809 = vrot.slane %v3703, 5
      %v3810 = vrot.slane %v3809, 4
      %v3811 = vrot.slane %v3064, 5
      %v3812 = vsel %vm1081, %v3810, %v3811
      %v3813 = vrot.slane %v3811, 4
      %v3814 = vrot.slane %v3065, 5
      %v3815 = vsel %vm1081, %v3813, %v3814
      %v3816 = vrot.slane %v3704, 5
      %v3817 = vrot.slane %v3816, 4
      %v3818 = vrot.slane %v3067, 5
      %v3819 = vsel %vm1081, %v3817, %v3818
      %v3820 = vrot.slane %v3818, 4
      %v3821 = vrot.slane %v3068, 5
      %v3822 = vsel %vm1081, %v3820, %v3821
      %v3823 = vrot.slane %v3705, 5
      %v3824 = vrot.slane %v3823, 4
      %v3825 = vrot.slane %v3070, 5
      %v3826 = vsel %vm1081, %v3824, %v3825
      %v3827 = vrot.slane %v3825, 4
      %v3828 = vrot.slane %v3071, 5
      %v3829 = vsel %vm1081, %v3827, %v3828
      %v3830 = vrot.slane %v3706, 5
      %v3831 = vrot.slane %v3830, 4
      %v3832 = vrot.slane %v3073, 5
      %v3833 = vsel %vm1081, %v3831, %v3832
      %v3834 = vrot.slane %v3832, 4
      %v3835 = vrot.slane %v3074, 5
      %v3836 = vsel %vm1081, %v3834, %v3835
      %v3837 = vrot.slane %v3707, 5
      %v3838 = vrot.slane %v3837, 4
      %v3839 = vrot.slane %v3076, 5
      %v3840 = vsel %vm1081, %v3838, %v3839
      %v3841 = vrot.slane %v3839, 4
      %v3842 = vrot.slane %v3077, 5
      %v3843 = vsel %vm1081, %v3841, %v3842
      %v3844 = vrot.slane %v3708, 5
      %v3845 = vrot.slane %v3844, 4
      %v3846 = vrot.slane %v3079, 5
      %v3847 = vsel %vm1081, %v3845, %v3846
      %v3848 = vrot.slane %v3846, 4
      %v3849 = vrot.slane %v3080, 5
      %v3850 = vsel %vm1081, %v3848, %v3849
      %v3851 = vrot.slane %v3709, 5
      %v3852 = vrot.slane %v3851, 4
      %v3853 = vrot.slane %v3082, 5
      %v3854 = vsel %vm1081, %v3852, %v3853
      %v3855 = vrot.slane %v3853, 4
      %v3856 = vrot.slane %v3083, 5
      %v3857 = vsel %vm1081, %v3855, %v3856
      %v3858 = vrot.slane %v3710, 5
      %v3859 = vrot.slane %v3858, 4
      %v3860 = vrot.slane %v3085, 5
      %v3861 = vsel %vm1081, %v3859, %v3860
      %v3862 = vrot.slane %v3860, 4
      %v3863 = vrot.slane %v3086, 5
      %v3864 = vsel %vm1081, %v3862, %v3863
      %v3865 = vrot.slane %v3711, 5
      %v3866 = vrot.slane %v3865, 4
      %v3867 = vrot.slane %v3088, 5
      %v3868 = vsel %vm1081, %v3866, %v3867
      %v3869 = vrot.slane %v3867, 4
      %v3870 = vrot.slane %v3089, 5
      %v3871 = vsel %vm1081, %v3869, %v3870
      %s3872 = scalar_lea.vmem %s1, 16
      %v3873 = vld [vmem:[%s3872] sm:$0x3]
      %v3874 = vunpack.c.l.b16 %v3763
      %v3875 = vunpack.c.l.b16 %v3766
      %v3876 = vunpack.c.l.b16 %v3770
      %v3877 = vunpack.c.l.b16 %v3773
      %v3878 = vunpack.c.l.b16 %v3777
      %v3879 = vunpack.c.l.b16 %v3780
      %v3880 = vunpack.c.l.b16 %v3784
      %v3881 = vunpack.c.l.b16 %v3787
      %v3882 = vunpack.c.l.b16 %v3791
      %v3883 = vunpack.c.l.b16 %v3794
      %v3884 = vunpack.c.l.b16 %v3798
      %v3885 = vunpack.c.l.b16 %v3801
      %v3886 = vunpack.c.l.b16 %v3805
      %v3887 = vunpack.c.l.b16 %v3808
      %v3888 = vunpack.c.l.b16 %v3812
      %v3889 = vunpack.c.l.b16 %v3815
      %v3890 = vunpack.c.l.b16 %v3819
      %v3891 = vunpack.c.l.b16 %v3822
      %v3892 = vunpack.c.l.b16 %v3826
      %v3893 = vunpack.c.l.b16 %v3829
      %v3894 = vunpack.c.l.b16 %v3833
      %v3895 = vunpack.c.l.b16 %v3836
      %v3896 = vunpack.c.l.b16 %v3840
      %v3897 = vunpack.c.l.b16 %v3843
      %v3898 = vunpack.c.l.b16 %v3847
      %v3899 = vunpack.c.l.b16 %v3850
      %v3900 = vunpack.c.l.b16 %v3854
      %v3901 = vunpack.c.l.b16 %v3857
      %v3902 = vunpack.c.l.b16 %v3861
      %v3903 = vunpack.c.l.b16 %v3864
      %v3904 = vunpack.c.l.b16 %v3868
      %v3905 = vunpack.c.l.b16 %v3871
      %v3906 = vpack.c.b16 %v3875, %v3874
      %v3907 = vpack.c.b16 %v3877, %v3876
      %v3908 = vpack.c.b16 %v3879, %v3878
      %v3909 = vpack.c.b16 %v3881, %v3880
      %v3910 = vpack.c.b16 %v3883, %v3882
      %v3911 = vpack.c.b16 %v3885, %v3884
      %v3912 = vpack.c.b16 %v3887, %v3886
      %v3913 = vpack.c.b16 %v3889, %v3888
      %v3914 = vpack.c.b16 %v3891, %v3890
      %v3915 = vpack.c.b16 %v3893, %v3892
      %v3916 = vpack.c.b16 %v3895, %v3894
      %v3917 = vpack.c.b16 %v3897, %v3896
      %v3918 = vpack.c.b16 %v3899, %v3898
      %v3919 = vpack.c.b16 %v3901, %v3900
      %v3920 = vpack.c.b16 %v3903, %v3902
      %v3921 = vpack.c.b16 %v3905, %v3904
      %v3923 = vsel %vm669, %v3906, 0
      %v3926 = vsel %vm669, %v3907, 0
      %v3929 = vsel %vm669, %v3908, 0
      %v3932 = vsel %vm669, %v3909, 0
      %v3935 = vsel %vm669, %v3910, 0
      %v3938 = vsel %vm669, %v3911, 0
      %v3941 = vsel %vm669, %v3912, 0
      %v3944 = vsel %vm669, %v3913, 0
      %v3947 = vsel %vm669, %v3914, 0
      %v3950 = vsel %vm669, %v3915, 0
      %v3953 = vsel %vm669, %v3916, 0
      %v3956 = vsel %vm669, %v3917, 0
      %v3959 = vsel %vm669, %v3918, 0
      %v3962 = vsel %vm669, %v3919, 0
      %v3965 = vsel %vm669, %v3920, 0
      %v3968 = vsel %vm669, %v3921, 0
      %v3971 = vsel %vm718, %v3873, 0
      %3973 = vmatpush.bf16.msra.mxu0 0
      %3974 = vmatpush.bf16.msra.mxu0 0
      %3975 = vmatpush.bf16.msra.mxu0 0
      %3976 = vmatpush.bf16.msra.mxu0 0
      %3977 = vmatpush.bf16.msra.mxu0 0
      %3978 = vmatpush.bf16.msra.mxu0 0
      %3979 = vmatpush.bf16.msra.mxu0 0
      %3980 = vmatpush.bf16.msra.mxu0 %v3971
      %3981 = vmatmul.bf16.gmra.mxu0 %v3923
      %v3982 = vpop.f32.mrf.mxu0
      %v3983 = vadd.f32 0.0, %v3982
      %v3984 = vpop.f32.mrf.mxu0
      %v3985 = vadd.f32 0.0, %v3984
      %3986 = vmatmul.bf16.gmra.mxu0 %v3926
      %v3987 = vpop.f32.mrf.mxu0
      %v3988 = vadd.f32 0.0, %v3987
      %v3989 = vpop.f32.mrf.mxu0
      %v3990 = vadd.f32 0.0, %v3989
      %3991 = vmatmul.bf16.gmra.mxu0 %v3929
      %v3992 = vpop.f32.mrf.mxu0
      %v3993 = vadd.f32 0.0, %v3992
      %v3994 = vpop.f32.mrf.mxu0
      %v3995 = vadd.f32 0.0, %v3994
      %3996 = vmatmul.bf16.gmra.mxu0 %v3932
      %v3997 = vpop.f32.mrf.mxu0
      %v3998 = vadd.f32 0.0, %v3997
      %v3999 = vpop.f32.mrf.mxu0
      %v4000 = vadd.f32 0.0, %v3999
      %4001 = vmatmul.bf16.gmra.mxu0 %v3935
      %v4002 = vpop.f32.mrf.mxu0
      %v4003 = vadd.f32 0.0, %v4002
      %v4004 = vpop.f32.mrf.mxu0
      %v4005 = vadd.f32 0.0, %v4004
      %4006 = vmatmul.bf16.gmra.mxu0 %v3938
      %v4007 = vpop.f32.mrf.mxu0
      %v4008 = vadd.f32 0.0, %v4007
      %v4009 = vpop.f32.mrf.mxu0
      %v4010 = vadd.f32 0.0, %v4009
      %4011 = vmatmul.bf16.gmra.mxu0 %v3941
      %v4012 = vpop.f32.mrf.mxu0
      %v4013 = vadd.f32 0.0, %v4012
      %v4014 = vpop.f32.mrf.mxu0
      %v4015 = vadd.f32 0.0, %v4014
      %4016 = vmatmul.bf16.gmra.mxu0 %v3944
      %v4017 = vpop.f32.mrf.mxu0
      %v4018 = vadd.f32 0.0, %v4017
      %v4019 = vpop.f32.mrf.mxu0
      %v4020 = vadd.f32 0.0, %v4019
      %4021 = vmatmul.bf16.gmra.mxu0 %v3947
      %v4022 = vpop.f32.mrf.mxu0
      %v4023 = vadd.f32 0.0, %v4022
      %v4024 = vpop.f32.mrf.mxu0
      %v4025 = vadd.f32 0.0, %v4024
      %4026 = vmatmul.bf16.gmra.mxu0 %v3950
      %v4027 = vpop.f32.mrf.mxu0
      %v4028 = vadd.f32 0.0, %v4027
      %v4029 = vpop.f32.mrf.mxu0
      %v4030 = vadd.f32 0.0, %v4029
      %4031 = vmatmul.bf16.gmra.mxu0 %v3953
      %v4032 = vpop.f32.mrf.mxu0
      %v4033 = vadd.f32 0.0, %v4032
      %v4034 = vpop.f32.mrf.mxu0
      %v4035 = vadd.f32 0.0, %v4034
      %4036 = vmatmul.bf16.gmra.mxu0 %v3956
      %v4037 = vpop.f32.mrf.mxu0
      %v4038 = vadd.f32 0.0, %v4037
      %v4039 = vpop.f32.mrf.mxu0
      %v4040 = vadd.f32 0.0, %v4039
      %4041 = vmatmul.bf16.gmra.mxu0 %v3959
      %v4042 = vpop.f32.mrf.mxu0
      %v4043 = vadd.f32 0.0, %v4042
      %v4044 = vpop.f32.mrf.mxu0
      %v4045 = vadd.f32 0.0, %v4044
      %4046 = vmatmul.bf16.gmra.mxu0 %v3962
      %v4047 = vpop.f32.mrf.mxu0
      %v4048 = vadd.f32 0.0, %v4047
      %v4049 = vpop.f32.mrf.mxu0
      %v4050 = vadd.f32 0.0, %v4049
      %4051 = vmatmul.bf16.gmra.mxu0 %v3965
      %v4052 = vpop.f32.mrf.mxu0
      %v4053 = vadd.f32 0.0, %v4052
      %v4054 = vpop.f32.mrf.mxu0
      %v4055 = vadd.f32 0.0, %v4054
      %4056 = vmatmul.bf16.gmra.mxu0 %v3968
      %v4057 = vpop.f32.mrf.mxu0
      %v4058 = vadd.f32 0.0, %v4057
      %v4059 = vpop.f32.mrf.mxu0
      %v4060 = vadd.f32 0.0, %v4059
      %4061 = vdwg.mxu0
      %v4062 = vadd.f32 %v3664, %v3983
      %v4063 = vadd.f32 %v3665, %v3985
      %v4064 = vadd.f32 %v3666, %v3988
      %v4065 = vadd.f32 %v3667, %v3990
      %v4066 = vadd.f32 %v3668, %v3993
      %v4067 = vadd.f32 %v3669, %v3995
      %v4068 = vadd.f32 %v3670, %v3998
      %v4069 = vadd.f32 %v3671, %v4000
      %v4070 = vadd.f32 %v3672, %v4003
      %v4071 = vadd.f32 %v3673, %v4005
      %v4072 = vadd.f32 %v3674, %v4008
      %v4073 = vadd.f32 %v3675, %v4010
      %v4074 = vadd.f32 %v3676, %v4013
      %v4075 = vadd.f32 %v3677, %v4015
      %v4076 = vadd.f32 %v3678, %v4018
      %v4077 = vadd.f32 %v3679, %v4020
      %v4078 = vadd.f32 %v3680, %v4023
      %v4079 = vadd.f32 %v3681, %v4025
      %v4080 = vadd.f32 %v3682, %v4028
      %v4081 = vadd.f32 %v3683, %v4030
      %v4082 = vadd.f32 %v3684, %v4033
      %v4083 = vadd.f32 %v3685, %v4035
      %v4084 = vadd.f32 %v3686, %v4038
      %v4085 = vadd.f32 %v3687, %v4040
      %v4086 = vadd.f32 %v3688, %v4043
      %v4087 = vadd.f32 %v3689, %v4045
      %v4088 = vadd.f32 %v3690, %v4048
      %v4089 = vadd.f32 %v3691, %v4050
      %v4090 = vadd.f32 %v3692, %v4053
      %v4091 = vadd.f32 %v3693, %v4055
      %v4092 = vadd.f32 %v3694, %v4058
      %v4093 = vadd.f32 %v3695, %v4060
      %v4094 = vpack.c.bf16 %v4062, %v4062
      %v4095 = vpack.c.bf16 %v4063, %v4063
      %v4096 = vpack.c.bf16 %v4064, %v4064
      %v4097 = vpack.c.bf16 %v4065, %v4065
      %v4098 = vpack.c.bf16 %v4066, %v4066
      %v4099 = vpack.c.bf16 %v4067, %v4067
      %v4100 = vpack.c.bf16 %v4068, %v4068
      %v4101 = vpack.c.bf16 %v4069, %v4069
      %v4102 = vpack.c.bf16 %v4070, %v4070
      %v4103 = vpack.c.bf16 %v4071, %v4071
      %v4104 = vpack.c.bf16 %v4072, %v4072
      %v4105 = vpack.c.bf16 %v4073, %v4073
      %v4106 = vpack.c.bf16 %v4074, %v4074
      %v4107 = vpack.c.bf16 %v4075, %v4075
      %v4108 = vpack.c.bf16 %v4076, %v4076
      %v4109 = vpack.c.bf16 %v4077, %v4077
      %v4110 = vpack.c.bf16 %v4078, %v4078
      %v4111 = vpack.c.bf16 %v4079, %v4079
      %v4112 = vpack.c.bf16 %v4080, %v4080
      %v4113 = vpack.c.bf16 %v4081, %v4081
      %v4114 = vpack.c.bf16 %v4082, %v4082
      %v4115 = vpack.c.bf16 %v4083, %v4083
      %v4116 = vpack.c.bf16 %v4084, %v4084
      %v4117 = vpack.c.bf16 %v4085, %v4085
      %v4118 = vpack.c.bf16 %v4086, %v4086
      %v4119 = vpack.c.bf16 %v4087, %v4087
      %v4120 = vpack.c.bf16 %v4088, %v4088
      %v4121 = vpack.c.bf16 %v4089, %v4089
      %v4122 = vpack.c.bf16 %v4090, %v4090
      %v4123 = vpack.c.bf16 %v4091, %v4091
      %v4124 = vpack.c.bf16 %v4092, %v4092
      %v4125 = vpack.c.bf16 %v4093, %v4093
      %4126 = vst [vmem:[%s177] sm:$0xf] %v4094
      %4127 = vst [vmem:[%s177 + $0x4] sm:$0xf] %v4095
      %4128 = vst [vmem:[%s177 + $0x8] sm:$0xf] %v4096
      %4129 = vst [vmem:[%s177 + $0xc] sm:$0xf] %v4097
      %4130 = vst [vmem:[%s177 + $0x10] sm:$0xf] %v4098
      %4131 = vst [vmem:[%s177 + $0x14] sm:$0xf] %v4099
      %4132 = vst [vmem:[%s177 + $0x18] sm:$0xf] %v4100
      %4133 = vst [vmem:[%s177 + $0x1c] sm:$0xf] %v4101
      %4134 = vst [vmem:[%s177 + $0x20] sm:$0xf] %v4102
      %4135 = vst [vmem:[%s177 + $0x24] sm:$0xf] %v4103
      %4136 = vst [vmem:[%s177 + $0x28] sm:$0xf] %v4104
      %4137 = vst [vmem:[%s177 + $0x2c] sm:$0xf] %v4105
      %4138 = vst [vmem:[%s177 + $0x30] sm:$0xf] %v4106
      %4139 = vst [vmem:[%s177 + $0x34] sm:$0xf] %v4107
      %4140 = vst [vmem:[%s177 + $0x38] sm:$0xf] %v4108
      %4141 = vst [vmem:[%s177 + $0x3c] sm:$0xf] %v4109
      %4142 = vst [vmem:[%s177 + $0x40] sm:$0xf] %v4110
      %4143 = vst [vmem:[%s177 + $0x44] sm:$0xf] %v4111
      %4144 = vst [vmem:[%s177 + $0x48] sm:$0xf] %v4112
      %4145 = vst [vmem:[%s177 + $0x4c] sm:$0xf] %v4113
      %4146 = vst [vmem:[%s177 + $0x50] sm:$0xf] %v4114
      %4147 = vst [vmem:[%s177 + $0x54] sm:$0xf] %v4115
      %4148 = vst [vmem:[%s177 + $0x58] sm:$0xf] %v4116
      %4149 = vst [vmem:[%s177 + $0x5c] sm:$0xf] %v4117
      %4150 = vst [vmem:[%s177 + $0x60] sm:$0xf] %v4118
      %4151 = vst [vmem:[%s177 + $0x64] sm:$0xf] %v4119
      %4152 = vst [vmem:[%s177 + $0x68] sm:$0xf] %v4120
      %4153 = vst [vmem:[%s177 + $0x6c] sm:$0xf] %v4121
      %4154 = vst [vmem:[%s177 + $0x70] sm:$0xf] %v4122
      %4155 = vst [vmem:[%s177 + $0x74] sm:$0xf] %v4123
      %4156 = vst [vmem:[%s177 + $0x78] sm:$0xf] %v4124
      %4157 = vst [vmem:[%s177 + $0x7c] sm:$0xf] %v4125
      %v4158 = vadd.f32 %v4062, %v4063
      %v4159 = vadd.f32 %v4158, %v4064
      %v4160 = vadd.f32 %v4159, %v4065
      %v4161 = vadd.f32 %v4160, %v4066
      %v4162 = vadd.f32 %v4161, %v4067
      %v4163 = vadd.f32 %v4162, %v4068
      %v4164 = vadd.f32 %v4163, %v4069
      %v4165 = vadd.f32 %v4164, %v4070
      %v4166 = vadd.f32 %v4165, %v4071
      %v4167 = vadd.f32 %v4166, %v4072
      %v4168 = vadd.f32 %v4167, %v4073
      %v4169 = vadd.f32 %v4168, %v4074
      %v4170 = vadd.f32 %v4169, %v4075
      %v4171 = vadd.f32 %v4170, %v4076
      %v4172 = vadd.f32 %v4171, %v4077
      %v4173 = vadd.f32 %v4172, %v4078
      %v4174 = vadd.f32 %v4173, %v4079
      %v4175 = vadd.f32 %v4174, %v4080
      %v4176 = vadd.f32 %v4175, %v4081
      %v4177 = vadd.f32 %v4176, %v4082
      %v4178 = vadd.f32 %v4177, %v4083
      %v4179 = vadd.f32 %v4178, %v4084
      %v4180 = vadd.f32 %v4179, %v4085
      %v4181 = vadd.f32 %v4180, %v4086
      %v4182 = vadd.f32 %v4181, %v4087
      %v4183 = vadd.f32 %v4182, %v4088
      %v4184 = vadd.f32 %v4183, %v4089
      %v4185 = vadd.f32 %v4184, %v4090
      %v4186 = vadd.f32 %v4185, %v4091
      %v4187 = vadd.f32 %v4186, %v4092
      %v4188 = vadd.f32 %v4187, %v4093
      %v4189 = vrot.slane %v4188, 4
      %v4190 = vadd.f32 %v4188, %v4189
      %v4191 = vrot.slane %v4190, 2
      %v4192 = vadd.f32 %v4190, %v4191
      %v4193 = vrot.slane %v4192, 1
      %v4194 = vadd.f32 %v4192, %v4193
      %v4195 = vmul.f32 %v4062, %v4062
      %v4196 = vmul.f32 %v4063, %v4063
      %v4197 = vmul.f32 %v4064, %v4064
      %v4198 = vmul.f32 %v4065, %v4065
      %v4199 = vmul.f32 %v4066, %v4066
      %v4200 = vmul.f32 %v4067, %v4067
      %v4201 = vmul.f32 %v4068, %v4068
      %v4202 = vmul.f32 %v4069, %v4069
      %v4203 = vmul.f32 %v4070, %v4070
      %v4204 = vmul.f32 %v4071, %v4071
      %v4205 = vmul.f32 %v4072, %v4072
      %v4206 = vmul.f32 %v4073, %v4073
      %v4207 = vmul.f32 %v4074, %v4074
      %v4208 = vmul.f32 %v4075, %v4075
      %v4209 = vmul.f32 %v4076, %v4076
      %v4210 = vmul.f32 %v4077, %v4077
      %v4211 = vmul.f32 %v4078, %v4078
      %v4212 = vmul.f32 %v4079, %v4079
      %v4213 = vmul.f32 %v4080, %v4080
      %v4214 = vmul.f32 %v4081, %v4081
      %v4215 = vmul.f32 %v4082, %v4082
      %v4216 = vmul.f32 %v4083, %v4083
      %v4217 = vmul.f32 %v4084, %v4084
      %v4218 = vmul.f32 %v4085, %v4085
      %v4219 = vmul.f32 %v4086, %v4086
      %v4220 = vmul.f32 %v4087, %v4087
      %v4221 = vmul.f32 %v4088, %v4088
      %v4222 = vmul.f32 %v4089, %v4089
      %v4223 = vmul.f32 %v4090, %v4090
      %v4224 = vmul.f32 %v4091, %v4091
      %v4225 = vmul.f32 %v4092, %v4092
      %v4226 = vmul.f32 %v4093, %v4093
      %v4227 = vadd.f32 %v4195, %v4196
      %v4228 = vadd.f32 %v4227, %v4197
      %v4229 = vadd.f32 %v4228, %v4198
      %v4230 = vadd.f32 %v4229, %v4199
      %v4231 = vadd.f32 %v4230, %v4200
      %v4232 = vadd.f32 %v4231, %v4201
      %v4233 = vadd.f32 %v4232, %v4202
      %v4234 = vadd.f32 %v4233, %v4203
      %v4235 = vadd.f32 %v4234, %v4204
      %v4236 = vadd.f32 %v4235, %v4205
      %v4237 = vadd.f32 %v4236, %v4206
      %v4238 = vadd.f32 %v4237, %v4207
      %v4239 = vadd.f32 %v4238, %v4208
      %v4240 = vadd.f32 %v4239, %v4209
      %v4241 = vadd.f32 %v4240, %v4210
      %v4242 = vadd.f32 %v4241, %v4211
      %v4243 = vadd.f32 %v4242, %v4212
      %v4244 = vadd.f32 %v4243, %v4213
      %v4245 = vadd.f32 %v4244, %v4214
      %v4246 = vadd.f32 %v4245, %v4215
      %v4247 = vadd.f32 %v4246, %v4216
      %v4248 = vadd.f32 %v4247, %v4217
      %v4249 = vadd.f32 %v4248, %v4218
      %v4250 = vadd.f32 %v4249, %v4219
      %v4251 = vadd.f32 %v4250, %v4220
      %v4252 = vadd.f32 %v4251, %v4221
      %v4253 = vadd.f32 %v4252, %v4222
      %v4254 = vadd.f32 %v4253, %v4223
      %v4255 = vadd.f32 %v4254, %v4224
      %v4256 = vadd.f32 %v4255, %v4225
      %v4257 = vadd.f32 %v4256, %v4226
      %v4258 = vrot.slane %v4257, 4
      %v4259 = vadd.f32 %v4257, %v4258
      %v4260 = vrot.slane %v4259, 2
      %v4261 = vadd.f32 %v4259, %v4260
      %v4262 = vrot.slane %v4261, 1
      %v4263 = vadd.f32 %v4261, %v4262
      %vm4264 = vcmask 1040384
      %v4265 = vsel %vm4264, %v4194, %v4263
      %4266 = vst [vmem:[%s181] sm:$0x3] %v4265
      %p4267 = scmp.lt.s32.totalorder %s15, 1
      %s4268 = scalar_select %p4267, %s15, 1
      %s4269 = smul.addr %s4268, 32
      %s4270 = smul.addr %s4269, 4
      %s4271 = scalar_lea.vmem %s2, %s4270
      %p4272 = scmp.lt.s32.totalorder %s15, 1
      %s4273 = scalar_select %p4272, %s15, 1
      %s4274 = smul.addr %s4273, 2
      %s4275 = scalar_lea.vmem %s3, %s4274
      // Predicated region
      $region29: #{down_conv2d.4} parent=27 // pred_check
        %p4276 = pneg %p80
      $region30: #{down_conv2d.4} parent=27 // pred_check_branch
        %4278 = sbr.rel (%p4276) target = $region32
      $region31: #{down_conv2d.4} parent=27 // pred_region
        _
      $region32: #{down_conv2d.4} parent=27 // pred_fallthru
        _
      // Predicated region
      $region33: #{down_conv2d.4} parent=27 // pred_check
        %p4279 = pneg %p106
      $region34: #{down_conv2d.4} parent=27 // pred_check_branch
        %4281 = sbr.rel (%p4279) target = $region36
      $region35: #{down_conv2d.4} parent=27 // pred_region
        _
      $region36: #{down_conv2d.4} parent=27 // pred_fallthru
        _
    $region28: #{down_conv2d.4} parent=5 // pred_fallthru
      _
    %p4282 = scmp.le.s32.totalorder 2, %s10
    // Predicated region
    $region37: #{down_conv2d.4} parent=5 // pred_check
      %p4283 = pneg %p4282
    $region38: #{down_conv2d.4} parent=5 // pred_check_branch
      %4285 = sbr.rel (%p4283) target = $region40
    $region39: #{down_conv2d.4} parent=5 // pred_region
      %s4286 = ssub.s32 %s10, 2
      // Predicated region
      $region41: #{down_conv2d.4} parent=39 // pred_check
        %p4287 = pneg %p86
      $region42: #{down_conv2d.4} parent=39 // pred_check_branch
        %4289 = sbr.rel (%p4287) target = $region44
      $region43: #{down_conv2d.4} parent=39 // pred_region
        %p4290 = scmp.lt.s32.totalorder %s16, 1
        %s4291 = scalar_select %p4290, %s16, 1
        %s4292 = smul.addr %s4291, 32
        %s4293 = smul.addr %s4292, 4
        %s4294 = scalar_lea.vmem %s2, %s4293
      $region44: #{down_conv2d.4} parent=39 // pred_fallthru
        _
      // Predicated region
      $region45: #{down_conv2d.4} parent=39 // pred_check
        %p4295 = pneg %p112
      $region46: #{down_conv2d.4} parent=39 // pred_check_branch
        %4297 = sbr.rel (%p4295) target = $region48
      $region47: #{down_conv2d.4} parent=39 // pred_region
        %p4298 = scmp.lt.s32.totalorder %s16, 1
        %s4299 = scalar_select %p4298, %s16, 1
        %s4300 = smul.addr %s4299, 2
        %s4301 = scalar_lea.vmem %s3, %s4300
      $region48: #{down_conv2d.4} parent=39 // pred_fallthru
        _
    $region40: #{down_conv2d.4} parent=5 // pred_fallthru
      _
  $region6: #{down_conv2d.4} parent=0 // loop_footer
    %s14 = sadd.s32 1, %s10
  $region7: #{down_conv2d.4} parent=0 // loop_footer_branch
    %9 = sbr.rel target = $region3
  $region8: #{down_conv2d.4} parent=0 // loop_exit
    _

</llo_original>
